<compile_context>
chip_gen: v5e
topology: v5e:2x2
jax: 0.10.0
libtpu: 0.0.40
codegen_flags: <defaults>
</compile_context>

<pallas_src>
import functools
import math

import jax
import jax.numpy as jnp
from jax import lax
from jax.experimental import pallas as pl
from jax.experimental.pallas import tpu as pltpu


_VMEM_LIMIT_BYTES = 48 * 1024 * 1024   # explicit scoped-VMEM cap (fits v5e/v6e/v7x)


def _compiler_params():
    return pltpu.CompilerParams(
        dimension_semantics=("parallel",),
        vmem_limit_bytes=_VMEM_LIMIT_BYTES)


# ---------------- in-kernel helpers (traced inside the kernels) -------------

def _layernorm(z, g, b):
    # LayerNorm over the last dim, torch default eps=1e-5 (f32 math).
    mu = jnp.mean(z, axis=-1, keepdims=True)
    var = jnp.mean((z - mu) ** 2, axis=-1, keepdims=True)
    return (z - mu) * lax.rsqrt(var + 1e-5) * g + b


def _mha(q, k, v, wo, bo, num_heads, mask=None):
    # q: (Tq, D) f32, k/v: (Tk, D) f32, wo: (D, D) bf16, bo: (1, D) f32,
    # mask: (Tq, Tk) bool or None.  Scores per head (K=d_head is inherent),
    # but the output projection is ONE full-depth (Tq,D)@(D,D) matmul.
    tq, d = q.shape
    dh = d // num_heads
    scale = 1.0 / math.sqrt(dh)
    contract_last = (((1,), (1,)), ((), ()))       # A @ B^T, no explicit transpose
    head_outs = []
    for h in range(num_heads):                     # static, small head count
        sl = slice(h * dh, (h + 1) * dh)
        qh = (q[:, sl] * scale).astype(jnp.bfloat16)   # scale folded into Q
        kh = k[:, sl].astype(jnp.bfloat16)
        s = lax.dot_general(qh, kh, contract_last,
                            preferred_element_type=jnp.float32)
        if mask is not None:
            s = jnp.where(mask, s, -1e6)           # d2l masked_softmax convention
        m = jnp.max(s, axis=-1, keepdims=True)
        p = jnp.exp(s - m)
        p = p * pl.reciprocal(jnp.sum(p, axis=-1, keepdims=True), approx=True)
        head_outs.append(jnp.dot(p.astype(jnp.bfloat16),
                                 v[:, sl].astype(jnp.bfloat16),
                                 preferred_element_type=jnp.float32))
    o = jnp.concatenate(head_outs, axis=-1).astype(jnp.bfloat16)   # (Tq, D)
    return jnp.dot(o, wo, preferred_element_type=jnp.float32) + bo


# ----------------------------- fused kernels --------------------------------

def _encoder_block_kernel(vlen_ref, x_ref,
                          wqkv_ref, bqkv_ref, wo_ref, bo_ref,
                          ln1g_ref, ln1b_ref,
                          w1_ref, b1_ref, w2_ref, b2_ref,
                          ln2g_ref, ln2b_ref,
                          o_ref, *, num_heads):
    x = x_ref[...]                                  # (T, D) f32, one batch element
    t, d = x.shape
    vl = vlen_ref[pl.program_id(0)]                 # per-batch valid length (SMEM)
    mask = lax.broadcasted_iota(jnp.int32, (t, t), 1) < vl
    qkv = (jnp.dot(x.astype(jnp.bfloat16), wqkv_ref[...],
                   preferred_element_type=jnp.float32) + bqkv_ref[...])
    y = _mha(qkv[:, :d], qkv[:, d:2 * d], qkv[:, 2 * d:],
             wo_ref[...], bo_ref[...], num_heads, mask)
    x1 = _layernorm(x + y, ln1g_ref[...], ln1b_ref[...])
    h = (jnp.dot(x1.astype(jnp.bfloat16), w1_ref[...],
                 preferred_element_type=jnp.float32) + b1_ref[...])
    h = jnp.maximum(h, 0.0).astype(jnp.bfloat16)
    f = (jnp.dot(h, w2_ref[...],
                 preferred_element_type=jnp.float32) + b2_ref[...])
    o_ref[...] = _layernorm(x1 + f, ln2g_ref[...], ln2b_ref[...])


def _decoder_block_kernel(vlen_ref, x_ref, enc_ref,
                          wqkv_ref, bqkv_ref, wo1_ref, bo1_ref,
                          ln1g_ref, ln1b_ref,
                          wq_ref, bq_ref, wkv_ref, bkv_ref, wo2_ref, bo2_ref,
                          ln2g_ref, ln2b_ref,
                          w1_ref, b1_ref, w2_ref, b2_ref,
                          ln3g_ref, ln3b_ref,
                          o_ref, *, num_heads):
    x = x_ref[...]                                  # (Td, D) one batch element
    enc = enc_ref[...]                              # (Te, D) same batch element
    td, d = x.shape
    te = enc.shape[0]
    vl = vlen_ref[pl.program_id(0)]
    cross_mask = lax.broadcasted_iota(jnp.int32, (td, te), 1) < vl
    # --- decoder self-attention: reference passes None as the decoder-side
    #     mask -> no causal / length masking, only (implicit) batch separation,
    #     which the per-batch grid already provides.
    # TODO(synk): for training-time teacher forcing, add a causal mask here.
    qkv = (jnp.dot(x.astype(jnp.bfloat16), wqkv_ref[...],
                   preferred_element_type=jnp.float32) + bqkv_ref[...])
    y = _mha(qkv[:, :d], qkv[:, d:2 * d], qkv[:, 2 * d:],
             wo1_ref[...], bo1_ref[...], num_heads, None)
    x1 = _layernorm(x + y, ln1g_ref[...], ln1b_ref[...])
    # --- encoder-decoder cross-attention ---
    q2 = (jnp.dot(x1.astype(jnp.bfloat16), wq_ref[...],
                  preferred_element_type=jnp.float32) + bq_ref[...])
    kv = (jnp.dot(enc.astype(jnp.bfloat16), wkv_ref[...],
                  preferred_element_type=jnp.float32) + bkv_ref[...])
    y2 = _mha(q2, kv[:, :d], kv[:, d:], wo2_ref[...], bo2_ref[...],
              num_heads, cross_mask)
    x2 = _layernorm(x1 + y2, ln2g_ref[...], ln2b_ref[...])
    # --- position-wise FFN ---
    h = (jnp.dot(x2.astype(jnp.bfloat16), w1_ref[...],
                 preferred_element_type=jnp.float32) + b1_ref[...])
    h = jnp.maximum(h, 0.0).astype(jnp.bfloat16)
    f = (jnp.dot(h, w2_ref[...],
                 preferred_element_type=jnp.float32) + b2_ref[...])
    o_ref[...] = _layernorm(x2 + f, ln3g_ref[...], ln3b_ref[...])


def _vocab_proj_kernel(x_ref, w_ref, b_ref, o_ref):
    # One lane-dense vocab-column tile per grid step; weights streamed.
    o_ref[...] = (jnp.dot(x_ref[...].astype(jnp.bfloat16), w_ref[...],
                          preferred_element_type=jnp.float32) + b_ref[...])


# ------------------------------ host wrappers --------------------------------

def _const2d(w):
    # weight spec: full array, constant block index -> stays VMEM-resident
    return pl.BlockSpec(w.shape, lambda b, vl: (0, 0))


def encoder_block(x2d, valid_lens, blk, num_heads, batch, seq):
    d = x2d.shape[1]
    row_spec = pl.BlockSpec((seq, d), lambda b, vl: (b, 0))
    weights = [blk["Wqkv"], blk["bqkv"], blk["Wo"], blk["bo"],
               blk["ln1_g"], blk["ln1_b"],
               blk["W1"], blk["b1"], blk["W2"], blk["b2"],
               blk["ln2_g"], blk["ln2_b"]]
    grid_spec = pltpu.PrefetchScalarGridSpec(
        num_scalar_prefetch=1,
        grid=(batch,),
        in_specs=[row_spec] + [_const2d(w) for w in weights],
        out_specs=row_spec)
    return pl.pallas_call(
        functools.partial(_encoder_block_kernel, num_heads=num_heads),
        out_shape=jax.ShapeDtypeStruct(x2d.shape, jnp.float32),
        grid_spec=grid_spec,
        compiler_params=_compiler_params(),
    )(valid_lens, x2d, *weights)


def decoder_block(x2d, enc2d, valid_lens, blk, num_heads, batch, seq_dec, seq_enc):
    d = x2d.shape[1]
    row_spec = pl.BlockSpec((seq_dec, d), lambda b, vl: (b, 0))
    enc_spec = pl.BlockSpec((seq_enc, d), lambda b, vl: (b, 0))
    weights = [blk["self_Wqkv"], blk["self_bqkv"], blk["self_Wo"], blk["self_bo"],
               blk["ln1_g"], blk["ln1_b"],
               blk["cross_Wq"], blk["cross_bq"], blk["cross_Wkv"], blk["cross_bkv"],
               blk["cross_Wo"], blk["cross_bo"],
               blk["ln2_g"], blk["ln2_b"],
               blk["W1"], blk["b1"], blk["W2"], blk["b2"],
               blk["ln3_g"], blk["ln3_b"]]
    grid_spec = pltpu.PrefetchScalarGridSpec(
        num_scalar_prefetch=1,
        grid=(batch,),
        in_specs=[row_spec, enc_spec] + [_const2d(w) for w in weights],
        out_specs=row_spec)
    return pl.pallas_call(
        functools.partial(_decoder_block_kernel, num_heads=num_heads),
        out_shape=jax.ShapeDtypeStruct(x2d.shape, jnp.float32),
        grid_spec=grid_spec,
        compiler_params=_compiler_params(),
    )(valid_lens, x2d, enc2d, *weights)


def output_projection(x2d, w_pad, b_pad, out_dim):
    rows, d = x2d.shape
    vpad = w_pad.shape[1]
    tile_v = 512 if vpad % 512 == 0 else (256 if vpad % 256 == 0 else 128)
    out = pl.pallas_call(
        _vocab_proj_kernel,
        out_shape=jax.ShapeDtypeStruct((rows, vpad), jnp.float32),
        grid=(vpad // tile_v,),
        in_specs=[pl.BlockSpec((rows, d), lambda j: (0, 0)),
                  pl.BlockSpec((d, tile_v), lambda j: (0, j)),
                  pl.BlockSpec((1, tile_v), lambda j: (0, j))],
        out_specs=pl.BlockSpec((rows, tile_v), lambda j: (0, j)),
        compiler_params=_compiler_params(),
    )(x2d, w_pad, b_pad)
    return out[:, :out_dim]


# ----------------------------- model pieces ----------------------------------

def encoder_forward(p, enc_in, enc_valid_lens, d_model, num_heads, pe):
    b, t = enc_in.shape
    x = p["emb"][enc_in] * math.sqrt(d_model) + pe[:t][None]
    x = x.reshape(b * t, d_model).astype(jnp.float32)
    for blk in p["blocks"]:
        x = encoder_block(x, enc_valid_lens, blk, num_heads, b, t)
    return x                                                  # (b*t, d_model)


def decoder_forward(p, dec_in, enc_out2d, enc_t, enc_valid_lens,
                    d_model, num_heads, pe, tgt_vocab_size):
    b, t = dec_in.shape
    x = p["emb"][dec_in] * math.sqrt(d_model) + pe[:t][None]
    x = x.reshape(b * t, d_model).astype(jnp.float32)
    for blk in p["blocks"]:
        x = decoder_block(x, enc_out2d, enc_valid_lens, blk, num_heads, b, t, enc_t)
    logits = output_projection(x, p["out_W_pad"], p["out_b_pad"], tgt_vocab_size)
    return logits.reshape(b, t, tgt_vocab_size)


def transformer_forward(params, enc_in, enc_valid_lens, dec_in,
                        d_model, num_heads, tgt_vocab_size):
    pe = params["pe"]
    enc_out = encoder_forward(params["encoder"], enc_in, enc_valid_lens,
                              d_model, num_heads, pe)
    return decoder_forward(params["decoder"], dec_in, enc_out, enc_in.shape[1],
                           enc_valid_lens, d_model, num_heads, pe,
                           tgt_vocab_size)


# ----------------------------- parameter init --------------------------------

def positional_encoding(max_len, d_model):
    # NOTE: assumes even d_model (sin/cos interleave), same as d2l.
    pos = jnp.arange(max_len, dtype=jnp.float32)[:, None]
    i = jnp.arange(0, d_model, 2, dtype=jnp.float32)[None, :]
    ang = pos / jnp.power(10000.0, i / d_model)
    pe = jnp.zeros((max_len, d_model), jnp.float32)
    pe = pe.at[:, 0::2].set(jnp.sin(ang))
    pe = pe.at[:, 1::2].set(jnp.cos(ang))
    return pe


def init_params(key, d_model, num_layers, num_heads, num_ffn_hiddens,
                src_vocab_size, tgt_vocab_size, max_len=512):
    kiter = iter(jax.random.split(key, 4096))

    def nrm(shape, scale=0.02, dtype=jnp.bfloat16):
        # matmul weights stored bf16 (MXU-native); bias/LN params stay f32.
        return (jax.random.normal(next(kiter), shape, jnp.float32) * scale).astype(dtype)

    def row_zeros(n):
        return jnp.zeros((1, n), jnp.float32)

    def ln():
        return jnp.ones((1, d_model), jnp.float32), jnp.zeros((1, d_model), jnp.float32)

    def ffn():
        return {"W1": nrm((d_model, num_ffn_hiddens)), "b1": row_zeros(num_ffn_hiddens),
                "W2": nrm((num_ffn_hiddens, d_model)), "b2": row_zeros(d_model)}

    enc_blocks = []
    for _ in range(num_layers):
        g1, b1 = ln(); g2, b2 = ln()
        enc_blocks.append({
            "Wqkv": nrm((d_model, 3 * d_model)), "bqkv": row_zeros(3 * d_model),
            "Wo": nrm((d_model, d_model)), "bo": row_zeros(d_model),
            "ln1_g": g1, "ln1_b": b1,
            **ffn(),
            "ln2_g": g2, "ln2_b": b2})

    dec_blocks = []
    for _ in range(num_layers):
        g1, b1 = ln(); g2, b2 = ln(); g3, b3 = ln()
        dec_blocks.append({
            "self_Wqkv": nrm((d_model, 3 * d_model)), "self_bqkv": row_zeros(3 * d_model),
            "self_Wo": nrm((d_model, d_model)), "self_bo": row_zeros(d_model),
            "ln1_g": g1, "ln1_b": b1,
            "cross_Wq": nrm((d_model, d_model)), "cross_bq": row_zeros(d_model),
            "cross_Wkv": nrm((d_model, 2 * d_model)), "cross_bkv": row_zeros(2 * d_model),
            "cross_Wo": nrm((d_model, d_model)), "cross_bo": row_zeros(d_model),
            "ln2_g": g2, "ln2_b": b2,
            **ffn(),
            "ln3_g": g3, "ln3_b": b3})

    # final vocab projection, lane-padded to a multiple of 128 for unmasked stores
    vocab_pad = ((tgt_vocab_size + 127) // 128) * 128
    out_w = jax.random.normal(next(kiter), (d_model, tgt_vocab_size), jnp.float32) * 0.02
    out_w_pad = jnp.zeros((d_model, vocab_pad), jnp.float32).at[:, :tgt_vocab_size].set(out_w)
    out_w_pad = out_w_pad.astype(jnp.bfloat16)
    out_b_pad = jnp.zeros((1, vocab_pad), jnp.float32)

    def emb(n):
        return jax.random.normal(next(kiter), (n, d_model), jnp.float32)

    return {
        "pe": positional_encoding(max_len, d_model),
        "encoder": {"emb": emb(src_vocab_size), "blocks": enc_blocks},
        "decoder": {"emb": emb(tgt_vocab_size), "blocks": dec_blocks,
                    "out_W_pad": out_w_pad, "out_b_pad": out_b_pad},
    }


# --------------------------------- main ---------------------------------------

if __name__ == "__main__":
    # Small toy config (for realistic runs, d_model should be a multiple of 128
    # so activations/heads are lane-dense; the kernels accept any sizes whose
    # sequence length is a multiple of 8).
    d_model, num_layers, num_heads, num_ffn_hiddens = 32, 2, 4, 64
    src_vocab, tgt_vocab = 50, 60
    batch, src_len, tgt_len = 2, 8, 8

    root = jax.random.PRNGKey(0)
    k_par, k_enc, k_dec = jax.random.split(root, 3)

    params = init_params(k_par, d_model, num_layers, num_heads,
                         num_ffn_hiddens, src_vocab, tgt_vocab)

    enc_in = jax.random.randint(k_enc, (batch, src_len), 0, src_vocab, jnp.int32)
    dec_in = jax.random.randint(k_dec, (batch, tgt_len), 0, tgt_vocab, jnp.int32)
    enc_valid_lens = jnp.array([5, 8], dtype=jnp.int32)

    fwd = jax.jit(lambda p, a, vl, b: transformer_forward(
        p, a, vl, b, d_model, num_heads, tgt_vocab))
    logits = fwd(params, enc_in, enc_valid_lens, dec_in)
    jax.block_until_ready(logits)

    assert logits.shape == (batch, tgt_len, tgt_vocab), logits.shape
    assert bool(jnp.all(jnp.isfinite(logits)))
    print("KERNEL_OK")
</pallas_src>

<mosaic_0001>
module attributes {stable_mosaic.version = 11 : i64} {
  func.func @_vocab_proj_kernel(%arg0: i32, %arg1: memref<16x32xf32, #tpu.memory_space<vmem>>, %arg2: memref<32x128xbf16, #tpu.memory_space<vmem>>, %arg3: memref<1x128xf32, #tpu.memory_space<vmem>>, %arg4: memref<16x128xf32, #tpu.memory_space<vmem>>) attributes {dimension_semantics = [#tpu.dimension_semantics<parallel>], iteration_bounds = array<i64: 1>, scalar_prefetch = 0 : i64, scratch_operands = 0 : i64, tpu.core_type = #tpu.core_type<tc>, window_params = [{pipeline_mode = #tpu.pipeline_mode<synchronous>, transform_indices = @transform_0, window_bounds = array<i64: 16, 32>}, {transform_indices = @transform_1, window_bounds = array<i64: 32, 128>}, {transform_indices = @transform_2, window_bounds = array<i64: 1, 128>}, {transform_indices = @transform_3, window_bounds = array<i64: 16, 128>}]} {
    %c0 = arith.constant 0 : index
    %c0_0 = arith.constant 0 : index
    %0 = vector.load %arg1[%c0, %c0_0] : memref<16x32xf32, #tpu.memory_space<vmem>>, vector<16x32xf32>
    %1 = arith.truncf %0 : vector<16x32xf32> to vector<16x32xbf16>
    %c0_1 = arith.constant 0 : index
    %c0_2 = arith.constant 0 : index
    %2 = vector.load %arg2[%c0_1, %c0_2] : memref<32x128xbf16, #tpu.memory_space<vmem>>, vector<32x128xbf16>
    %cst = arith.constant dense<0.000000e+00> : vector<16x128xf32>
    %3 = tpu.matmul %1, %2, %cst {dimension_numbers = #tpu.dot_dimension_numbers<[1], [0], [0], [1], [0, 0, 1, 1], [], []>} : vector<16x32xbf16>, vector<32x128xbf16>, vector<16x128xf32> -> vector<16x128xf32>
    %c0_3 = arith.constant 0 : index
    %c0_4 = arith.constant 0 : index
    %4 = vector.load %arg3[%c0_3, %c0_4] : memref<1x128xf32, #tpu.memory_space<vmem>>, vector<1x128xf32>
    %5 = vector.broadcast %4 : vector<1x128xf32> to vector<16x128xf32>
    %6 = arith.addf %3, %5 : vector<16x128xf32>
    %c0_5 = arith.constant 0 : index
    %c0_6 = arith.constant 0 : index
    %7 = vector.load %arg4[%c0_5, %c0_6] : memref<16x128xf32, #tpu.memory_space<vmem>>, vector<16x128xf32>
    tpu.vector_store %arg4[%c0_5, %c0_6], %6 {strides = array<i32>} : memref<16x128xf32, #tpu.memory_space<vmem>>, vector<16x128xf32>,
    return
  }
  func.func @transform_0(%arg0: i32) -> (i32, i32) {
    %c0_i32 = arith.constant 0 : i32
    %c0_i32_0 = arith.constant 0 : i32
    %c0_i32_1 = arith.constant 0 : i32
    return %c0_i32, %c0_i32_0 : i32, i32
  }
  func.func @transform_1(%arg0: i32) -> (i32, i32) {
    %c0_i32 = arith.constant 0 : i32
    %c0_i32_0 = arith.constant 0 : i32
    return %c0_i32, %arg0 : i32, i32
  }
  func.func @transform_2(%arg0: i32) -> (i32, i32) {
    %c0_i32 = arith.constant 0 : i32
    %c0_i32_0 = arith.constant 0 : i32
    return %c0_i32, %arg0 : i32, i32
  }
  func.func @transform_3(%arg0: i32) -> (i32, i32) {
    %c0_i32 = arith.constant 0 : i32
    %c0_i32_0 = arith.constant 0 : i32
    return %c0_i32, %arg0 : i32, i32
  }
}

module attributes {stable_mosaic.version = 11 : i64} {
  func.func @_encoder_block_kernel(%arg0: i32, %arg1: memref<2xi32, #tpu.memory_space<smem>>, %arg2: memref<8x32xf32, #tpu.memory_space<vmem>>, %arg3: memref<32x96xbf16, #tpu.memory_space<vmem>>, %arg4: memref<1x96xf32, #tpu.memory_space<vmem>>, %arg5: memref<32x32xbf16, #tpu.memory_space<vmem>>, %arg6: memref<1x32xf32, #tpu.memory_space<vmem>>, %arg7: memref<1x32xf32, #tpu.memory_space<vmem>>, %arg8: memref<1x32xf32, #tpu.memory_space<vmem>>, %arg9: memref<32x64xbf16, #tpu.memory_space<vmem>>, %arg10: memref<1x64xf32, #tpu.memory_space<vmem>>, %arg11: memref<64x32xbf16, #tpu.memory_space<vmem>>, %arg12: memref<1x32xf32, #tpu.memory_space<vmem>>, %arg13: memref<1x32xf32, #tpu.memory_space<vmem>>, %arg14: memref<1x32xf32, #tpu.memory_space<vmem>>, %arg15: memref<8x32xf32, #tpu.memory_space<vmem>>) attributes {dimension_semantics = [#tpu.dimension_semantics<parallel>], iteration_bounds = array<i64: 2>, scalar_prefetch = 1 : i64, scratch_operands = 0 : i64, tpu.core_type = #tpu.core_type<tc>, window_params = [{transform_indices = @transform_0, window_bounds = array<i64: 8, 32>}, {pipeline_mode = #tpu.pipeline_mode<synchronous>, transform_indices = @transform_1, window_bounds = array<i64: 32, 96>}, {pipeline_mode = #tpu.pipeline_mode<synchronous>, transform_indices = @transform_2, window_bounds = array<i64: 1, 96>}, {pipeline_mode = #tpu.pipeline_mode<synchronous>, transform_indices = @transform_3, window_bounds = array<i64: 32, 32>}, {pipeline_mode = #tpu.pipeline_mode<synchronous>, transform_indices = @transform_4, window_bounds = array<i64: 1, 32>}, {pipeline_mode = #tpu.pipeline_mode<synchronous>, transform_indices = @transform_5, window_bounds = array<i64: 1, 32>}, {pipeline_mode = #tpu.pipeline_mode<synchronous>, transform_indices = @transform_6, window_bounds = array<i64: 1, 32>}, {pipeline_mode = #tpu.pipeline_mode<synchronous>, transform_indices = @transform_7, window_bounds = array<i64: 32, 64>}, {pipeline_mode = #tpu.pipeline_mode<synchronous>, transform_indices = @transform_8, window_bounds = array<i64: 1, 64>}, {pipeline_mode = #tpu.pipeline_mode<synchronous>, transform_indices = @transform_9, window_bounds = array<i64: 64, 32>}, {pipeline_mode = #tpu.pipeline_mode<synchronous>, transform_indices = @transform_10, window_bounds = array<i64: 1, 32>}, {pipeline_mode = #tpu.pipeline_mode<synchronous>, transform_indices = @transform_11, window_bounds = array<i64: 1, 32>}, {pipeline_mode = #tpu.pipeline_mode<synchronous>, transform_indices = @transform_12, window_bounds = array<i64: 1, 32>}, {transform_indices = @transform_13, window_bounds = array<i64: 8, 32>}]} {
    %c0 = arith.constant 0 : index
    %c0_0 = arith.constant 0 : index
    %0 = vector.load %arg2[%c0, %c0_0] : memref<8x32xf32, #tpu.memory_space<vmem>>, vector<8x32xf32>
    %1 = arith.index_cast %arg0 : i32 to index
    %2 = memref.load %arg1[%1] : memref<2xi32, #tpu.memory_space<smem>>
    %3 = tpu.iota {dimensions = array<i32: 1>} : vector<8x8xi32>
    %4 = vector.broadcast %2 : i32 to vector<8x8xi32>
    %5 = arith.cmpi slt, %3, %4 : vector<8x8xi32>
    %6 = arith.truncf %0 : vector<8x32xf32> to vector<8x32xbf16>
    %c0_1 = arith.constant 0 : index
    %c0_2 = arith.constant 0 : index
    %7 = vector.load %arg3[%c0_1, %c0_2] : memref<32x96xbf16, #tpu.memory_space<vmem>>, vector<32x96xbf16>
    %cst = arith.constant dense<0.000000e+00> : vector<8x96xf32>
    %8 = tpu.matmul %6, %7, %cst {dimension_numbers = #tpu.dot_dimension_numbers<[1], [0], [0], [1], [0, 0, 1, 1], [], []>} : vector<8x32xbf16>, vector<32x96xbf16>, vector<8x96xf32> -> vector<8x96xf32>
    %c0_3 = arith.constant 0 : index
    %c0_4 = arith.constant 0 : index
    %9 = vector.load %arg4[%c0_3, %c0_4] : memref<1x96xf32, #tpu.memory_space<vmem>>, vector<1x96xf32>
    %10 = vector.broadcast %9 : vector<1x96xf32> to vector<8x96xf32>
    %11 = arith.addf %8, %10 : vector<8x96xf32>
    %12 = vector.extract_strided_slice %11 {offsets = [0, 0], sizes = [8, 32], strides = [1, 1]} : vector<8x96xf32> to vector<8x32xf32>
    %13 = vector.extract_strided_slice %11 {offsets = [0, 32], sizes = [8, 32], strides = [1, 1]} : vector<8x96xf32> to vector<8x32xf32>
    %14 = vector.extract_strided_slice %11 {offsets = [0, 64], sizes = [8, 32], strides = [1, 1]} : vector<8x96xf32> to vector<8x32xf32>
    %c0_5 = arith.constant 0 : index
    %c0_6 = arith.constant 0 : index
    %15 = vector.load %arg5[%c0_5, %c0_6] : memref<32x32xbf16, #tpu.memory_space<vmem>>, vector<32x32xbf16>
    %c0_7 = arith.constant 0 : index
    %c0_8 = arith.constant 0 : index
    %16 = vector.load %arg6[%c0_7, %c0_8] : memref<1x32xf32, #tpu.memory_space<vmem>>, vector<1x32xf32>
    %17 = vector.extract_strided_slice %12 {offsets = [0, 0], sizes = [8, 8], strides = [1, 1]} : vector<8x32xf32> to vector<8x8xf32>
    %cst_9 = arith.constant 0.353553385 : f32
    %18 = vector.broadcast %cst_9 : f32 to vector<8x8xf32>
    %19 = arith.mulf %17, %18 : vector<8x8xf32>
    %20 = arith.truncf %19 : vector<8x8xf32> to vector<8x8xbf16>
    %21 = vector.extract_strided_slice %13 {offsets = [0, 0], sizes = [8, 8], strides = [1, 1]} : vector<8x32xf32> to vector<8x8xf32>
    %22 = arith.truncf %21 : vector<8x8xf32> to vector<8x8xbf16>
    %cst_10 = arith.constant dense<0.000000e+00> : vector<8x8xf32>
    %23 = tpu.matmul %20, %22, %cst_10 {dimension_numbers = #tpu.dot_dimension_numbers<[1], [1], [0], [0], [0, 0, 1, 0], [], []>} : vector<8x8xbf16>, vector<8x8xbf16>, vector<8x8xf32> -> vector<8x8xf32>
    %cst_11 = arith.constant -1.000000e+06 : f32
    %24 = vector.broadcast %cst_11 : f32 to vector<8x8xf32>
    %25 = arith.select %5, %23, %24 : vector<8x8xi1>, vector<8x8xf32>
    %cst_12 = arith.constant dense<0xFF800000> : vector<8xf32>
    %26 = vector.multi_reduction <maximumf>, %25, %cst_12 [1] : vector<8x8xf32> to vector<8xf32>
    %27 = vector.shape_cast %26 : vector<8xf32> to vector<8x1xf32>
    %28 = vector.broadcast %27 : vector<8x1xf32> to vector<8x8xf32>
    %29 = arith.subf %25, %28 : vector<8x8xf32>
    %30 = math.exp %29 : vector<8x8xf32>
    %cst_13 = arith.constant dense<0.000000e+00> : vector<8xf32>
    %31 = vector.multi_reduction <add>, %30, %cst_13 [1] : vector<8x8xf32> to vector<8xf32>
    %32 = vector.shape_cast %31 : vector<8xf32> to vector<8x1xf32>
    %33 = tpu.reciprocal %32 {approx = true} : vector<8x1xf32> -> vector<8x1xf32>
    %34 = vector.broadcast %33 : vector<8x1xf32> to vector<8x8xf32>
    %35 = arith.mulf %30, %34 : vector<8x8xf32>
    %36 = arith.truncf %35 : vector<8x8xf32> to vector<8x8xbf16>
    %37 = vector.extract_strided_slice %14 {offsets = [0, 0], sizes = [8, 8], strides = [1, 1]} : vector<8x32xf32> to vector<8x8xf32>
    %38 = arith.truncf %37 : vector<8x8xf32> to vector<8x8xbf16>
    %cst_14 = arith.constant dense<0.000000e+00> : vector<8x8xf32>
    %39 = tpu.matmul %36, %38, %cst_14 {dimension_numbers = #tpu.dot_dimension_numbers<[1], [0], [0], [1], [0, 0, 1, 1], [], []>} : vector<8x8xbf16>, vector<8x8xbf16>, vector<8x8xf32> -> vector<8x8xf32>
    %40 = vector.extract_strided_slice %12 {offsets = [0, 8], sizes = [8, 8], strides = [1, 1]} : vector<8x32xf32> to vector<8x8xf32>
    %cst_15 = arith.constant 0.353553385 : f32
    %41 = vector.broadcast %cst_15 : f32 to vector<8x8xf32>
    %42 = arith.mulf %40, %41 : vector<8x8xf32>
    %43 = arith.truncf %42 : vector<8x8xf32> to vector<8x8xbf16>
    %44 = vector.extract_strided_slice %13 {offsets = [0, 8], sizes = [8, 8], strides = [1, 1]} : vector<8x32xf32> to vector<8x8xf32>
    %45 = arith.truncf %44 : vector<8x8xf32> to vector<8x8xbf16>
    %cst_16 = arith.constant dense<0.000000e+00> : vector<8x8xf32>
    %46 = tpu.matmul %43, %45, %cst_16 {dimension_numbers = #tpu.dot_dimension_numbers<[1], [1], [0], [0], [0, 0, 1, 0], [], []>} : vector<8x8xbf16>, vector<8x8xbf16>, vector<8x8xf32> -> vector<8x8xf32>
    %cst_17 = arith.constant -1.000000e+06 : f32
    %47 = vector.broadcast %cst_17 : f32 to vector<8x8xf32>
    %48 = arith.select %5, %46, %47 : vector<8x8xi1>, vector<8x8xf32>
    %cst_18 = arith.constant dense<0xFF800000> : vector<8xf32>
    %49 = vector.multi_reduction <maximumf>, %48, %cst_18 [1] : vector<8x8xf32> to vector<8xf32>
    %50 = vector.shape_cast %49 : vector<8xf32> to vector<8x1xf32>
    %51 = vector.broadcast %50 : vector<8x1xf32> to vector<8x8xf32>
    %52 = arith.subf %48, %51 : vector<8x8xf32>
    %53 = math.exp %52 : vector<8x8xf32>
    %cst_19 = arith.constant dense<0.000000e+00> : vector<8xf32>
    %54 = vector.multi_reduction <add>, %53, %cst_19 [1] : vector<8x8xf32> to vector<8xf32>
    %55 = vector.shape_cast %54 : vector<8xf32> to vector<8x1xf32>
    %56 = tpu.reciprocal %55 {approx = true} : vector<8x1xf32> -> vector<8x1xf32>
    %57 = vector.broadcast %56 : vector<8x1xf32> to vector<8x8xf32>
    %58 = arith.mulf %53, %57 : vector<8x8xf32>
    %59 = arith.truncf %58 : vector<8x8xf32> to vector<8x8xbf16>
    %60 = vector.extract_strided_slice %14 {offsets = [0, 8], sizes = [8, 8], strides = [1, 1]} : vector<8x32xf32> to vector<8x8xf32>
    %61 = arith.truncf %60 : vector<8x8xf32> to vector<8x8xbf16>
    %cst_20 = arith.constant dense<0.000000e+00> : vector<8x8xf32>
    %62 = tpu.matmul %59, %61, %cst_20 {dimension_numbers = #tpu.dot_dimension_numbers<[1], [0], [0], [1], [0, 0, 1, 1], [], []>} : vector<8x8xbf16>, vector<8x8xbf16>, vector<8x8xf32> -> vector<8x8xf32>
    %63 = vector.extract_strided_slice %12 {offsets = [0, 16], sizes = [8, 8], strides = [1, 1]} : vector<8x32xf32> to vector<8x8xf32>
    %cst_21 = arith.constant 0.353553385 : f32
    %64 = vector.broadcast %cst_21 : f32 to vector<8x8xf32>
    %65 = arith.mulf %63, %64 : vector<8x8xf32>
    %66 = arith.truncf %65 : vector<8x8xf32> to vector<8x8xbf16>
    %67 = vector.extract_strided_slice %13 {offsets = [0, 16], sizes = [8, 8], strides = [1, 1]} : vector<8x32xf32> to vector<8x8xf32>
    %68 = arith.truncf %67 : vector<8x8xf32> to vector<8x8xbf16>
    %cst_22 = arith.constant dense<0.000000e+00> : vector<8x8xf32>
    %69 = tpu.matmul %66, %68, %cst_22 {dimension_numbers = #tpu.dot_dimension_numbers<[1], [1], [0], [0], [0, 0, 1, 0], [], []>} : vector<8x8xbf16>, vector<8x8xbf16>, vector<8x8xf32> -> vector<8x8xf32>
    %cst_23 = arith.constant -1.000000e+06 : f32
    %70 = vector.broadcast %cst_23 : f32 to vector<8x8xf32>
    %71 = arith.select %5, %69, %70 : vector<8x8xi1>, vector<8x8xf32>
    %cst_24 = arith.constant dense<0xFF800000> : vector<8xf32>
    %72 = vector.multi_reduction <maximumf>, %71, %cst_24 [1] : vector<8x8xf32> to vector<8xf32>
    %73 = vector.shape_cast %72 : vector<8xf32> to vector<8x1xf32>
    %74 = vector.broadcast %73 : vector<8x1xf32> to vector<8x8xf32>
    %75 = arith.subf %71, %74 : vector<8x8xf32>
    %76 = math.exp %75 : vector<8x8xf32>
    %cst_25 = arith.constant dense<0.000000e+00> : vector<8xf32>
    %77 = vector.multi_reduction <add>, %76, %cst_25 [1] : vector<8x8xf32> to vector<8xf32>
    %78 = vector.shape_cast %77 : vector<8xf32> to vector<8x1xf32>
    %79 = tpu.reciprocal %78 {approx = true} : vector<8x1xf32> -> vector<8x1xf32>
    %80 = vector.broadcast %79 : vector<8x1xf32> to vector<8x8xf32>
    %81 = arith.mulf %76, %80 : vector<8x8xf32>
    %82 = arith.truncf %81 : vector<8x8xf32> to vector<8x8xbf16>
    %83 = vector.extract_strided_slice %14 {offsets = [0, 16], sizes = [8, 8], strides = [1, 1]} : vector<8x32xf32> to vector<8x8xf32>
    %84 = arith.truncf %83 : vector<8x8xf32> to vector<8x8xbf16>
    %cst_26 = arith.constant dense<0.000000e+00> : vector<8x8xf32>
    %85 = tpu.matmul %82, %84, %cst_26 {dimension_numbers = #tpu.dot_dimension_numbers<[1], [0], [0], [1], [0, 0, 1, 1], [], []>} : vector<8x8xbf16>, vector<8x8xbf16>, vector<8x8xf32> -> vector<8x8xf32>
    %86 = vector.extract_strided_slice %12 {offsets = [0, 24], sizes = [8, 8], strides = [1, 1]} : vector<8x32xf32> to vector<8x8xf32>
    %cst_27 = arith.constant 0.353553385 : f32
    %87 = vector.broadcast %cst_27 : f32 to vector<8x8xf32>
    %88 = arith.mulf %86, %87 : vector<8x8xf32>
    %89 = arith.truncf %88 : vector<8x8xf32> to vector<8x8xbf16>
    %90 = vector.extract_strided_slice %13 {offsets = [0, 24], sizes = [8, 8], strides = [1, 1]} : vector<8x32xf32> to vector<8x8xf32>
    %91 = arith.truncf %90 : vector<8x8xf32> to vector<8x8xbf16>
    %cst_28 = arith.constant dense<0.000000e+00> : vector<8x8xf32>
    %92 = tpu.matmul %89, %91, %cst_28 {dimension_numbers = #tpu.dot_dimension_numbers<[1], [1], [0], [0], [0, 0, 1, 0], [], []>} : vector<8x8xbf16>, vector<8x8xbf16>, vector<8x8xf32> -> vector<8x8xf32>
    %cst_29 = arith.constant -1.000000e+06 : f32
    %93 = vector.broadcast %cst_29 : f32 to vector<8x8xf32>
    %94 = arith.select %5, %92, %93 : vector<8x8xi1>, vector<8x8xf32>
    %cst_30 = arith.constant dense<0xFF800000> : vector<8xf32>
    %95 = vector.multi_reduction <maximumf>, %94, %cst_30 [1] : vector<8x8xf32> to vector<8xf32>
    %96 = vector.shape_cast %95 : vector<8xf32> to vector<8x1xf32>
    %97 = vector.broadcast %96 : vector<8x1xf32> to vector<8x8xf32>
    %98 = arith.subf %94, %97 : vector<8x8xf32>
    %99 = math.exp %98 : vector<8x8xf32>
    %cst_31 = arith.constant dense<0.000000e+00> : vector<8xf32>
    %100 = vector.multi_reduction <add>, %99, %cst_31 [1] : vector<8x8xf32> to vector<8xf32>
    %101 = vector.shape_cast %100 : vector<8xf32> to vector<8x1xf32>
    %102 = tpu.reciprocal %101 {approx = true} : vector<8x1xf32> -> vector<8x1xf32>
    %103 = vector.broadcast %102 : vector<8x1xf32> to vector<8x8xf32>
    %104 = arith.mulf %99, %103 : vector<8x8xf32>
    %105 = arith.truncf %104 : vector<8x8xf32> to vector<8x8xbf16>
    %106 = vector.extract_strided_slice %14 {offsets = [0, 24], sizes = [8, 8], strides = [1, 1]} : vector<8x32xf32> to vector<8x8xf32>
    %107 = arith.truncf %106 : vector<8x8xf32> to vector<8x8xbf16>
    %cst_32 = arith.constant dense<0.000000e+00> : vector<8x8xf32>
    %108 = tpu.matmul %105, %107, %cst_32 {dimension_numbers = #tpu.dot_dimension_numbers<[1], [0], [0], [1], [0, 0, 1, 1], [], []>} : vector<8x8xbf16>, vector<8x8xbf16>, vector<8x8xf32> -> vector<8x8xf32>
    %109 = tpu.concatenate %39, %62, %85, %108 in 1 : vector<8x8xf32>, vector<8x8xf32>, vector<8x8xf32>, vector<8x8xf32> -> vector<8x32xf32>
    %110 = arith.truncf %109 : vector<8x32xf32> to vector<8x32xbf16>
    %cst_33 = arith.constant dense<0.000000e+00> : vector<8x32xf32>
    %111 = tpu.matmul %110, %15, %cst_33 {dimension_numbers = #tpu.dot_dimension_numbers<[1], [0], [0], [1], [0, 0, 1, 1], [], []>} : vector<8x32xbf16>, vector<32x32xbf16>, vector<8x32xf32> -> vector<8x32xf32>
    %112 = vector.broadcast %16 : vector<1x32xf32> to vector<8x32xf32>
    %113 = arith.addf %111, %112 : vector<8x32xf32>
    %114 = arith.addf %0, %113 : vector<8x32xf32>
    %c0_34 = arith.constant 0 : index
    %c0_35 = arith.constant 0 : index
    %115 = vector.load %arg7[%c0_34, %c0_35] : memref<1x32xf32, #tpu.memory_space<vmem>>, vector<1x32xf32>
    %c0_36 = arith.constant 0 : index
    %c0_37 = arith.constant 0 : index
    %116 = vector.load %arg8[%c0_36, %c0_37] : memref<1x32xf32, #tpu.memory_space<vmem>>, vector<1x32xf32>
    %cst_38 = arith.constant dense<0.000000e+00> : vector<8xf32>
    %117 = vector.multi_reduction <add>, %114, %cst_38 [1] : vector<8x32xf32> to vector<8xf32>
    %118 = vector.shape_cast %117 : vector<8xf32> to vector<8x1xf32>
    %cst_39 = arith.constant 3.200000e+01 : f32
    %119 = vector.broadcast %cst_39 : f32 to vector<8x1xf32>
    %120 = arith.divf %118, %119 : vector<8x1xf32>
    %121 = vector.broadcast %120 : vector<8x1xf32> to vector<8x32xf32>
    %122 = arith.subf %114, %121 : vector<8x32xf32>
    %123 = arith.mulf %122, %122 : vector<8x32xf32>
    %cst_40 = arith.constant dense<0.000000e+00> : vector<8xf32>
    %124 = vector.multi_reduction <add>, %123, %cst_40 [1] : vector<8x32xf32> to vector<8xf32>
    %125 = vector.shape_cast %124 : vector<8xf32> to vector<8x1xf32>
    %cst_41 = arith.constant 3.200000e+01 : f32
    %126 = vector.broadcast %cst_41 : f32 to vector<8x1xf32>
    %127 = arith.divf %125, %126 : vector<8x1xf32>
    %128 = vector.broadcast %120 : vector<8x1xf32> to vector<8x32xf32>
    %129 = arith.subf %114, %128 : vector<8x32xf32>
    %cst_42 = arith.constant 9.99999974E-6 : f32
    %130 = vector.broadcast %cst_42 : f32 to vector<8x1xf32>
    %131 = arith.addf %127, %130 : vector<8x1xf32>
    %132 = math.rsqrt %131 : vector<8x1xf32>
    %133 = vector.broadcast %132 : vector<8x1xf32> to vector<8x32xf32>
    %134 = arith.mulf %129, %133 : vector<8x32xf32>
    %135 = vector.broadcast %115 : vector<1x32xf32> to vector<8x32xf32>
    %136 = arith.mulf %134, %135 : vector<8x32xf32>
    %137 = vector.broadcast %116 : vector<1x32xf32> to vector<8x32xf32>
    %138 = arith.addf %136, %137 : vector<8x32xf32>
    %139 = arith.truncf %138 : vector<8x32xf32> to vector<8x32xbf16>
    %c0_43 = arith.constant 0 : index
    %c0_44 = arith.constant 0 : index
    %140 = vector.load %arg9[%c0_43, %c0_44] : memref<32x64xbf16, #tpu.memory_space<vmem>>, vector<32x64xbf16>
    %cst_45 = arith.constant dense<0.000000e+00> : vector<8x64xf32>
    %141 = tpu.matmul %139, %140, %cst_45 {dimension_numbers = #tpu.dot_dimension_numbers<[1], [0], [0], [1], [0, 0, 1, 1], [], []>} : vector<8x32xbf16>, vector<32x64xbf16>, vector<8x64xf32> -> vector<8x64xf32>
    %c0_46 = arith.constant 0 : index
    %c0_47 = arith.constant 0 : index
    %142 = vector.load %arg10[%c0_46, %c0_47] : memref<1x64xf32, #tpu.memory_space<vmem>>, vector<1x64xf32>
    %143 = vector.broadcast %142 : vector<1x64xf32> to vector<8x64xf32>
    %144 = arith.addf %141, %143 : vector<8x64xf32>
    %cst_48 = arith.constant 0.000000e+00 : f32
    %145 = vector.broadcast %cst_48 : f32 to vector<8x64xf32>
    %146 = arith.maximumf %144, %145 : vector<8x64xf32>
    %147 = arith.truncf %146 : vector<8x64xf32> to vector<8x64xbf16>
    %c0_49 = arith.constant 0 : index
    %c0_50 = arith.constant 0 : index
    %148 = vector.load %arg11[%c0_49, %c0_50] : memref<64x32xbf16, #tpu.memory_space<vmem>>, vector<64x32xbf16>
    %cst_51 = arith.constant dense<0.000000e+00> : vector<8x32xf32>
    %149 = tpu.matmul %147, %148, %cst_51 {dimension_numbers = #tpu.dot_dimension_numbers<[1], [0], [0], [1], [0, 0, 1, 1], [], []>} : vector<8x64xbf16>, vector<64x32xbf16>, vector<8x32xf32> -> vector<8x32xf32>
    %c0_52 = arith.constant 0 : index
    %c0_53 = arith.constant 0 : index
    %150 = vector.load %arg12[%c0_52, %c0_53] : memref<1x32xf32, #tpu.memory_space<vmem>>, vector<1x32xf32>
    %151 = vector.broadcast %150 : vector<1x32xf32> to vector<8x32xf32>
    %152 = arith.addf %149, %151 : vector<8x32xf32>
    %153 = arith.addf %138, %152 : vector<8x32xf32>
    %c0_54 = arith.constant 0 : index
    %c0_55 = arith.constant 0 : index
    %154 = vector.load %arg13[%c0_54, %c0_55] : memref<1x32xf32, #tpu.memory_space<vmem>>, vector<1x32xf32>
    %c0_56 = arith.constant 0 : index
    %c0_57 = arith.constant 0 : index
    %155 = vector.load %arg14[%c0_56, %c0_57] : memref<1x32xf32, #tpu.memory_space<vmem>>, vector<1x32xf32>
    %cst_58 = arith.constant dense<0.000000e+00> : vector<8xf32>
    %156 = vector.multi_reduction <add>, %153, %cst_58 [1] : vector<8x32xf32> to vector<8xf32>
    %157 = vector.shape_cast %156 : vector<8xf32> to vector<8x1xf32>
    %cst_59 = arith.constant 3.200000e+01 : f32
    %158 = vector.broadcast %cst_59 : f32 to vector<8x1xf32>
    %159 = arith.divf %157, %158 : vector<8x1xf32>
    %160 = vector.broadcast %159 : vector<8x1xf32> to vector<8x32xf32>
    %161 = arith.subf %153, %160 : vector<8x32xf32>
    %162 = arith.mulf %161, %161 : vector<8x32xf32>
    %cst_60 = arith.constant dense<0.000000e+00> : vector<8xf32>
    %163 = vector.multi_reduction <add>, %162, %cst_60 [1] : vector<8x32xf32> to vector<8xf32>
    %164 = vector.shape_cast %163 : vector<8xf32> to vector<8x1xf32>
    %cst_61 = arith.constant 3.200000e+01 : f32
    %165 = vector.broadcast %cst_61 : f32 to vector<8x1xf32>
    %166 = arith.divf %164, %165 : vector<8x1xf32>
    %167 = vector.broadcast %159 : vector<8x1xf32> to vector<8x32xf32>
    %168 = arith.subf %153, %167 : vector<8x32xf32>
    %cst_62 = arith.constant 9.99999974E-6 : f32
    %169 = vector.broadcast %cst_62 : f32 to vector<8x1xf32>
    %170 = arith.addf %166, %169 : vector<8x1xf32>
    %171 = math.rsqrt %170 : vector<8x1xf32>
    %172 = vector.broadcast %171 : vector<8x1xf32> to vector<8x32xf32>
    %173 = arith.mulf %168, %172 : vector<8x32xf32>
    %174 = vector.broadcast %154 : vector<1x32xf32> to vector<8x32xf32>
    %175 = arith.mulf %173, %174 : vector<8x32xf32>
    %176 = vector.broadcast %155 : vector<1x32xf32> to vector<8x32xf32>
    %177 = arith.addf %175, %176 : vector<8x32xf32>
    %c0_63 = arith.constant 0 : index
    %c0_64 = arith.constant 0 : index
    %178 = vector.load %arg15[%c0_63, %c0_64] : memref<8x32xf32, #tpu.memory_space<vmem>>, vector<8x32xf32>
    tpu.vector_store %arg15[%c0_63, %c0_64], %177 {strides = array<i32>} : memref<8x32xf32, #tpu.memory_space<vmem>>, vector<8x32xf32>,
    return
  }
  func.func @transform_0(%arg0: i32, %arg1: memref<2xi32, #tpu.memory_space<smem>>) -> (i32, i32) {
    %c0_i32 = arith.constant 0 : i32
    %c0_i32_0 = arith.constant 0 : i32
    return %arg0, %c0_i32 : i32, i32
  }
  func.func @transform_1(%arg0: i32, %arg1: memref<2xi32, #tpu.memory_space<smem>>) -> (i32, i32) {
    %c0_i32 = arith.constant 0 : i32
    %c0_i32_0 = arith.constant 0 : i32
    %c0_i32_1 = arith.constant 0 : i32
    return %c0_i32, %c0_i32_0 : i32, i32
  }
  func.func @transform_2(%arg0: i32, %arg1: memref<2xi32, #tpu.memory_space<smem>>) -> (i32, i32) {
    %c0_i32 = arith.constant 0 : i32
    %c0_i32_0 = arith.constant 0 : i32
    %c0_i32_1 = arith.constant 0 : i32
    return %c0_i32, %c0_i32_0 : i32, i32
  }
  func.func @transform_3(%arg0: i32, %arg1: memref<2xi32, #tpu.memory_space<smem>>) -> (i32, i32) {
    %c0_i32 = arith.constant 0 : i32
    %c0_i32_0 = arith.constant 0 : i32
    %c0_i32_1 = arith.constant 0 : i32
    return %c0_i32, %c0_i32_0 : i32, i32
  }
  func.func @transform_4(%arg0: i32, %arg1: memref<2xi32, #tpu.memory_space<smem>>) -> (i32, i32) {
    %c0_i32 = arith.constant 0 : i32
    %c0_i32_0 = arith.constant 0 : i32
    %c0_i32_1 = arith.constant 0 : i32
    return %c0_i32, %c0_i32_0 : i32, i32
  }
  func.func @transform_5(%arg0: i32, %arg1: memref<2xi32, #tpu.memory_space<smem>>) -> (i32, i32) {
    %c0_i32 = arith.constant 0 : i32
    %c0_i32_0 = arith.constant 0 : i32
    %c0_i32_1 = arith.constant 0 : i32
    return %c0_i32, %c0_i32_0 : i32, i32
  }
  func.func @transform_6(%arg0: i32, %arg1: memref<2xi32, #tpu.memory_space<smem>>) -> (i32, i32) {
    %c0_i32 = arith.constant 0 : i32
    %c0_i32_0 = arith.constant 0 : i32
    %c0_i32_1 = arith.constant 0 : i32
    return %c0_i32, %c0_i32_0 : i32, i32
  }
  func.func @transform_7(%arg0: i32, %arg1: memref<2xi32, #tpu.memory_space<smem>>) -> (i32, i32) {
    %c0_i32 = arith.constant 0 : i32
    %c0_i32_0 = arith.constant 0 : i32
    %c0_i32_1 = arith.constant 0 : i32
    return %c0_i32, %c0_i32_0 : i32, i32
  }
  func.func @transform_8(%arg0: i32, %arg1: memref<2xi32, #tpu.memory_space<smem>>) -> (i32, i32) {
    %c0_i32 = arith.constant 0 : i32
    %c0_i32_0 = arith.constant 0 : i32
    %c0_i32_1 = arith.constant 0 : i32
    return %c0_i32, %c0_i32_0 : i32, i32
  }
  func.func @transform_9(%arg0: i32, %arg1: memref<2xi32, #tpu.memory_space<smem>>) -> (i32, i32) {
    %c0_i32 = arith.constant 0 : i32
    %c0_i32_0 = arith.constant 0 : i32
    %c0_i32_1 = arith.constant 0 : i32
    return %c0_i32, %c0_i32_0 : i32, i32
  }
  func.func @transform_10(%arg0: i32, %arg1: memref<2xi32, #tpu.memory_space<smem>>) -> (i32, i32) {
    %c0_i32 = arith.constant 0 : i32
    %c0_i32_0 = arith.constant 0 : i32
    %c0_i32_1 = arith.constant 0 : i32
    return %c0_i32, %c0_i32_0 : i32, i32
  }
  func.func @transform_11(%arg0: i32, %arg1: memref<2xi32, #tpu.memory_space<smem>>) -> (i32, i32) {
    %c0_i32 = arith.constant 0 : i32
    %c0_i32_0 = arith.constant 0 : i32
    %c0_i32_1 = arith.constant 0 : i32
    return %c0_i32, %c0_i32_0 : i32, i32
  }
  func.func @transform_12(%arg0: i32, %arg1: memref<2xi32, #tpu.memory_space<smem>>) -> (i32, i32) {
    %c0_i32 = arith.constant 0 : i32
    %c0_i32_0 = arith.constant 0 : i32
    %c0_i32_1 = arith.constant 0 : i32
    return %c0_i32, %c0_i32_0 : i32, i32
  }
  func.func @transform_13(%arg0: i32, %arg1: memref<2xi32, #tpu.memory_space<smem>>) -> (i32, i32) {
    %c0_i32 = arith.constant 0 : i32
    %c0_i32_0 = arith.constant 0 : i32
    return %arg0, %c0_i32 : i32, i32
  }
}

module attributes {stable_mosaic.version = 11 : i64} {
  func.func @_decoder_block_kernel(%arg0: i32, %arg1: memref<2xi32, #tpu.memory_space<smem>>, %arg2: memref<8x32xf32, #tpu.memory_space<vmem>>, %arg3: memref<8x32xf32, #tpu.memory_space<vmem>>, %arg4: memref<32x96xbf16, #tpu.memory_space<vmem>>, %arg5: memref<1x96xf32, #tpu.memory_space<vmem>>, %arg6: memref<32x32xbf16, #tpu.memory_space<vmem>>, %arg7: memref<1x32xf32, #tpu.memory_space<vmem>>, %arg8: memref<1x32xf32, #tpu.memory_space<vmem>>, %arg9: memref<1x32xf32, #tpu.memory_space<vmem>>, %arg10: memref<32x32xbf16, #tpu.memory_space<vmem>>, %arg11: memref<1x32xf32, #tpu.memory_space<vmem>>, %arg12: memref<32x64xbf16, #tpu.memory_space<vmem>>, %arg13: memref<1x64xf32, #tpu.memory_space<vmem>>, %arg14: memref<32x32xbf16, #tpu.memory_space<vmem>>, %arg15: memref<1x32xf32, #tpu.memory_space<vmem>>, %arg16: memref<1x32xf32, #tpu.memory_space<vmem>>, %arg17: memref<1x32xf32, #tpu.memory_space<vmem>>, %arg18: memref<32x64xbf16, #tpu.memory_space<vmem>>, %arg19: memref<1x64xf32, #tpu.memory_space<vmem>>, %arg20: memref<64x32xbf16, #tpu.memory_space<vmem>>, %arg21: memref<1x32xf32, #tpu.memory_space<vmem>>, %arg22: memref<1x32xf32, #tpu.memory_space<vmem>>, %arg23: memref<1x32xf32, #tpu.memory_space<vmem>>, %arg24: memref<8x32xf32, #tpu.memory_space<vmem>>) attributes {dimension_semantics = [#tpu.dimension_semantics<parallel>], iteration_bounds = array<i64: 2>, scalar_prefetch = 1 : i64, scratch_operands = 0 : i64, tpu.core_type = #tpu.core_type<tc>, window_params = [{transform_indices = @transform_0, window_bounds = array<i64: 8, 32>}, {transform_indices = @transform_1, window_bounds = array<i64: 8, 32>}, {pipeline_mode = #tpu.pipeline_mode<synchronous>, transform_indices = @transform_2, window_bounds = array<i64: 32, 96>}, {pipeline_mode = #tpu.pipeline_mode<synchronous>, transform_indices = @transform_3, window_bounds = array<i64: 1, 96>}, {pipeline_mode = #tpu.pipeline_mode<synchronous>, transform_indices = @transform_4, window_bounds = array<i64: 32, 32>}, {pipeline_mode = #tpu.pipeline_mode<synchronous>, transform_indices = @transform_5, window_bounds = array<i64: 1, 32>}, {pipeline_mode = #tpu.pipeline_mode<synchronous>, transform_indices = @transform_6, window_bounds = array<i64: 1, 32>}, {pipeline_mode = #tpu.pipeline_mode<synchronous>, transform_indices = @transform_7, window_bounds = array<i64: 1, 32>}, {pipeline_mode = #tpu.pipeline_mode<synchronous>, transform_indices = @transform_8, window_bounds = array<i64: 32, 32>}, {pipeline_mode = #tpu.pipeline_mode<synchronous>, transform_indices = @transform_9, window_bounds = array<i64: 1, 32>}, {pipeline_mode = #tpu.pipeline_mode<synchronous>, transform_indices = @transform_10, window_bounds = array<i64: 32, 64>}, {pipeline_mode = #tpu.pipeline_mode<synchronous>, transform_indices = @transform_11, window_bounds = array<i64: 1, 64>}, {pipeline_mode = #tpu.pipeline_mode<synchronous>, transform_indices = @transform_12, window_bounds = array<i64: 32, 32>}, {pipeline_mode = #tpu.pipeline_mode<synchronous>, transform_indices = @transform_13, window_bounds = array<i64: 1, 32>}, {pipeline_mode = #tpu.pipeline_mode<synchronous>, transform_indices = @transform_14, window_bounds = array<i64: 1, 32>}, {pipeline_mode = #tpu.pipeline_mode<synchronous>, transform_indices = @transform_15, window_bounds = array<i64: 1, 32>}, {pipeline_mode = #tpu.pipeline_mode<synchronous>, transform_indices = @transform_16, window_bounds = array<i64: 32, 64>}, {pipeline_mode = #tpu.pipeline_mode<synchronous>, transform_indices = @transform_17, window_bounds = array<i64: 1, 64>}, {pipeline_mode = #tpu.pipeline_mode<synchronous>, transform_indices = @transform_18, window_bounds = array<i64: 64, 32>}, {pipeline_mode = #tpu.pipeline_mode<synchronous>, transform_indices = @transform_19, window_bounds = array<i64: 1, 32>}, {pipeline_mode = #tpu.pipeline_mode<synchronous>, transform_indices = @transform_20, window_bounds = array<i64: 1, 32>}, {pipeline_mode = #tpu.pipeline_mode<synchronous>, transform_indices = @transform_21, window_bounds = array<i64: 1, 32>}, {transform_indices = @transform_22, window_bounds = array<i64: 8, 32>}]} {
    %c0 = arith.constant 0 : index
    %c0_0 = arith.constant 0 : index
    %0 = vector.load %arg2[%c0, %c0_0] : memref<8x32xf32, #tpu.memory_space<vmem>>, vector<8x32xf32>
    %c0_1 = arith.constant 0 : index
    %c0_2 = arith.constant 0 : index
    %1 = vector.load %arg3[%c0_1, %c0_2] : memref<8x32xf32, #tpu.memory_space<vmem>>, vector<8x32xf32>
    %2 = arith.index_cast %arg0 : i32 to index
    %3 = memref.load %arg1[%2] : memref<2xi32, #tpu.memory_space<smem>>
    %4 = tpu.iota {dimensions = array<i32: 1>} : vector<8x8xi32>
    %5 = vector.broadcast %3 : i32 to vector<8x8xi32>
    %6 = arith.cmpi slt, %4, %5 : vector<8x8xi32>
    %7 = arith.truncf %0 : vector<8x32xf32> to vector<8x32xbf16>
    %c0_3 = arith.constant 0 : index
    %c0_4 = arith.constant 0 : index
    %8 = vector.load %arg4[%c0_3, %c0_4] : memref<32x96xbf16, #tpu.memory_space<vmem>>, vector<32x96xbf16>
    %cst = arith.constant dense<0.000000e+00> : vector<8x96xf32>
    %9 = tpu.matmul %7, %8, %cst {dimension_numbers = #tpu.dot_dimension_numbers<[1], [0], [0], [1], [0, 0, 1, 1], [], []>} : vector<8x32xbf16>, vector<32x96xbf16>, vector<8x96xf32> -> vector<8x96xf32>
    %c0_5 = arith.constant 0 : index
    %c0_6 = arith.constant 0 : index
    %10 = vector.load %arg5[%c0_5, %c0_6] : memref<1x96xf32, #tpu.memory_space<vmem>>, vector<1x96xf32>
    %11 = vector.broadcast %10 : vector<1x96xf32> to vector<8x96xf32>
    %12 = arith.addf %9, %11 : vector<8x96xf32>
    %13 = vector.extract_strided_slice %12 {offsets = [0, 0], sizes = [8, 32], strides = [1, 1]} : vector<8x96xf32> to vector<8x32xf32>
    %14 = vector.extract_strided_slice %12 {offsets = [0, 32], sizes = [8, 32], strides = [1, 1]} : vector<8x96xf32> to vector<8x32xf32>
    %15 = vector.extract_strided_slice %12 {offsets = [0, 64], sizes = [8, 32], strides = [1, 1]} : vector<8x96xf32> to vector<8x32xf32>
    %c0_7 = arith.constant 0 : index
    %c0_8 = arith.constant 0 : index
    %16 = vector.load %arg6[%c0_7, %c0_8] : memref<32x32xbf16, #tpu.memory_space<vmem>>, vector<32x32xbf16>
    %c0_9 = arith.constant 0 : index
    %c0_10 = arith.constant 0 : index
    %17 = vector.load %arg7[%c0_9, %c0_10] : memref<1x32xf32, #tpu.memory_space<vmem>>, vector<1x32xf32>
    %18 = vector.extract_strided_slice %13 {offsets = [0, 0], sizes = [8, 8], strides = [1, 1]} : vector<8x32xf32> to vector<8x8xf32>
    %cst_11 = arith.constant 0.353553385 : f32
    %19 = vector.broadcast %cst_11 : f32 to vector<8x8xf32>
    %20 = arith.mulf %18, %19 : vector<8x8xf32>
    %21 = arith.truncf %20 : vector<8x8xf32> to vector<8x8xbf16>
    %22 = vector.extract_strided_slice %14 {offsets = [0, 0], sizes = [8, 8], strides = [1, 1]} : vector<8x32xf32> to vector<8x8xf32>
    %23 = arith.truncf %22 : vector<8x8xf32> to vector<8x8xbf16>
    %cst_12 = arith.constant dense<0.000000e+00> : vector<8x8xf32>
    %24 = tpu.matmul %21, %23, %cst_12 {dimension_numbers = #tpu.dot_dimension_numbers<[1], [1], [0], [0], [0, 0, 1, 0], [], []>} : vector<8x8xbf16>, vector<8x8xbf16>, vector<8x8xf32> -> vector<8x8xf32>
    %cst_13 = arith.constant dense<0xFF800000> : vector<8xf32>
    %25 = vector.multi_reduction <maximumf>, %24, %cst_13 [1] : vector<8x8xf32> to vector<8xf32>
    %26 = vector.shape_cast %25 : vector<8xf32> to vector<8x1xf32>
    %27 = vector.broadcast %26 : vector<8x1xf32> to vector<8x8xf32>
    %28 = arith.subf %24, %27 : vector<8x8xf32>
    %29 = math.exp %28 : vector<8x8xf32>
    %cst_14 = arith.constant dense<0.000000e+00> : vector<8xf32>
    %30 = vector.multi_reduction <add>, %29, %cst_14 [1] : vector<8x8xf32> to vector<8xf32>
    %31 = vector.shape_cast %30 : vector<8xf32> to vector<8x1xf32>
    %32 = tpu.reciprocal %31 {approx = true} : vector<8x1xf32> -> vector<8x1xf32>
    %33 = vector.broadcast %32 : vector<8x1xf32> to vector<8x8xf32>
    %34 = arith.mulf %29, %33 : vector<8x8xf32>
    %35 = arith.truncf %34 : vector<8x8xf32> to vector<8x8xbf16>
    %36 = vector.extract_strided_slice %15 {offsets = [0, 0], sizes = [8, 8], strides = [1, 1]} : vector<8x32xf32> to vector<8x8xf32>
    %37 = arith.truncf %36 : vector<8x8xf32> to vector<8x8xbf16>
    %cst_15 = arith.constant dense<0.000000e+00> : vector<8x8xf32>
    %38 = tpu.matmul %35, %37, %cst_15 {dimension_numbers = #tpu.dot_dimension_numbers<[1], [0], [0], [1], [0, 0, 1, 1], [], []>} : vector<8x8xbf16>, vector<8x8xbf16>, vector<8x8xf32> -> vector<8x8xf32>
    %39 = vector.extract_strided_slice %13 {offsets = [0, 8], sizes = [8, 8], strides = [1, 1]} : vector<8x32xf32> to vector<8x8xf32>
    %cst_16 = arith.constant 0.353553385 : f32
    %40 = vector.broadcast %cst_16 : f32 to vector<8x8xf32>
    %41 = arith.mulf %39, %40 : vector<8x8xf32>
    %42 = arith.truncf %41 : vector<8x8xf32> to vector<8x8xbf16>
    %43 = vector.extract_strided_slice %14 {offsets = [0, 8], sizes = [8, 8], strides = [1, 1]} : vector<8x32xf32> to vector<8x8xf32>
    %44 = arith.truncf %43 : vector<8x8xf32> to vector<8x8xbf16>
    %cst_17 = arith.constant dense<0.000000e+00> : vector<8x8xf32>
    %45 = tpu.matmul %42, %44, %cst_17 {dimension_numbers = #tpu.dot_dimension_numbers<[1], [1], [0], [0], [0, 0, 1, 0], [], []>} : vector<8x8xbf16>, vector<8x8xbf16>, vector<8x8xf32> -> vector<8x8xf32>
    %cst_18 = arith.constant dense<0xFF800000> : vector<8xf32>
    %46 = vector.multi_reduction <maximumf>, %45, %cst_18 [1] : vector<8x8xf32> to vector<8xf32>
    %47 = vector.shape_cast %46 : vector<8xf32> to vector<8x1xf32>
    %48 = vector.broadcast %47 : vector<8x1xf32> to vector<8x8xf32>
    %49 = arith.subf %45, %48 : vector<8x8xf32>
    %50 = math.exp %49 : vector<8x8xf32>
    %cst_19 = arith.constant dense<0.000000e+00> : vector<8xf32>
    %51 = vector.multi_reduction <add>, %50, %cst_19 [1] : vector<8x8xf32> to vector<8xf32>
    %52 = vector.shape_cast %51 : vector<8xf32> to vector<8x1xf32>
    %53 = tpu.reciprocal %52 {approx = true} : vector<8x1xf32> -> vector<8x1xf32>
    %54 = vector.broadcast %53 : vector<8x1xf32> to vector<8x8xf32>
    %55 = arith.mulf %50, %54 : vector<8x8xf32>
    %56 = arith.truncf %55 : vector<8x8xf32> to vector<8x8xbf16>
    %57 = vector.extract_strided_slice %15 {offsets = [0, 8], sizes = [8, 8], strides = [1, 1]} : vector<8x32xf32> to vector<8x8xf32>
    %58 = arith.truncf %57 : vector<8x8xf32> to vector<8x8xbf16>
    %cst_20 = arith.constant dense<0.000000e+00> : vector<8x8xf32>
    %59 = tpu.matmul %56, %58, %cst_20 {dimension_numbers = #tpu.dot_dimension_numbers<[1], [0], [0], [1], [0, 0, 1, 1], [], []>} : vector<8x8xbf16>, vector<8x8xbf16>, vector<8x8xf32> -> vector<8x8xf32>
    %60 = vector.extract_strided_slice %13 {offsets = [0, 16], sizes = [8, 8], strides = [1, 1]} : vector<8x32xf32> to vector<8x8xf32>
    %cst_21 = arith.constant 0.353553385 : f32
    %61 = vector.broadcast %cst_21 : f32 to vector<8x8xf32>
    %62 = arith.mulf %60, %61 : vector<8x8xf32>
    %63 = arith.truncf %62 : vector<8x8xf32> to vector<8x8xbf16>
    %64 = vector.extract_strided_slice %14 {offsets = [0, 16], sizes = [8, 8], strides = [1, 1]} : vector<8x32xf32> to vector<8x8xf32>
    %65 = arith.truncf %64 : vector<8x8xf32> to vector<8x8xbf16>
    %cst_22 = arith.constant dense<0.000000e+00> : vector<8x8xf32>
    %66 = tpu.matmul %63, %65, %cst_22 {dimension_numbers = #tpu.dot_dimension_numbers<[1], [1], [0], [0], [0, 0, 1, 0], [], []>} : vector<8x8xbf16>, vector<8x8xbf16>, vector<8x8xf32> -> vector<8x8xf32>
    %cst_23 = arith.constant dense<0xFF800000> : vector<8xf32>
    %67 = vector.multi_reduction <maximumf>, %66, %cst_23 [1] : vector<8x8xf32> to vector<8xf32>
    %68 = vector.shape_cast %67 : vector<8xf32> to vector<8x1xf32>
    %69 = vector.broadcast %68 : vector<8x1xf32> to vector<8x8xf32>
    %70 = arith.subf %66, %69 : vector<8x8xf32>
    %71 = math.exp %70 : vector<8x8xf32>
    %cst_24 = arith.constant dense<0.000000e+00> : vector<8xf32>
    %72 = vector.multi_reduction <add>, %71, %cst_24 [1] : vector<8x8xf32> to vector<8xf32>
    %73 = vector.shape_cast %72 : vector<8xf32> to vector<8x1xf32>
    %74 = tpu.reciprocal %73 {approx = true} : vector<8x1xf32> -> vector<8x1xf32>
    %75 = vector.broadcast %74 : vector<8x1xf32> to vector<8x8xf32>
    %76 = arith.mulf %71, %75 : vector<8x8xf32>
    %77 = arith.truncf %76 : vector<8x8xf32> to vector<8x8xbf16>
    %78 = vector.extract_strided_slice %15 {offsets = [0, 16], sizes = [8, 8], strides = [1, 1]} : vector<8x32xf32> to vector<8x8xf32>
    %79 = arith.truncf %78 : vector<8x8xf32> to vector<8x8xbf16>
    %cst_25 = arith.constant dense<0.000000e+00> : vector<8x8xf32>
    %80 = tpu.matmul %77, %79, %cst_25 {dimension_numbers = #tpu.dot_dimension_numbers<[1], [0], [0], [1], [0, 0, 1, 1], [], []>} : vector<8x8xbf16>, vector<8x8xbf16>, vector<8x8xf32> -> vector<8x8xf32>
    %81 = vector.extract_strided_slice %13 {offsets = [0, 24], sizes = [8, 8], strides = [1, 1]} : vector<8x32xf32> to vector<8x8xf32>
    %cst_26 = arith.constant 0.353553385 : f32
    %82 = vector.broadcast %cst_26 : f32 to vector<8x8xf32>
    %83 = arith.mulf %81, %82 : vector<8x8xf32>
    %84 = arith.truncf %83 : vector<8x8xf32> to vector<8x8xbf16>
    %85 = vector.extract_strided_slice %14 {offsets = [0, 24], sizes = [8, 8], strides = [1, 1]} : vector<8x32xf32> to vector<8x8xf32>
    %86 = arith.truncf %85 : vector<8x8xf32> to vector<8x8xbf16>
    %cst_27 = arith.constant dense<0.000000e+00> : vector<8x8xf32>
    %87 = tpu.matmul %84, %86, %cst_27 {dimension_numbers = #tpu.dot_dimension_numbers<[1], [1], [0], [0], [0, 0, 1, 0], [], []>} : vector<8x8xbf16>, vector<8x8xbf16>, vector<8x8xf32> -> vector<8x8xf32>
    %cst_28 = arith.constant dense<0xFF800000> : vector<8xf32>
    %88 = vector.multi_reduction <maximumf>, %87, %cst_28 [1] : vector<8x8xf32> to vector<8xf32>
    %89 = vector.shape_cast %88 : vector<8xf32> to vector<8x1xf32>
    %90 = vector.broadcast %89 : vector<8x1xf32> to vector<8x8xf32>
    %91 = arith.subf %87, %90 : vector<8x8xf32>
    %92 = math.exp %91 : vector<8x8xf32>
    %cst_29 = arith.constant dense<0.000000e+00> : vector<8xf32>
    %93 = vector.multi_reduction <add>, %92, %cst_29 [1] : vector<8x8xf32> to vector<8xf32>
    %94 = vector.shape_cast %93 : vector<8xf32> to vector<8x1xf32>
    %95 = tpu.reciprocal %94 {approx = true} : vector<8x1xf32> -> vector<8x1xf32>
    %96 = vector.broadcast %95 : vector<8x1xf32> to vector<8x8xf32>
    %97 = arith.mulf %92, %96 : vector<8x8xf32>
    %98 = arith.truncf %97 : vector<8x8xf32> to vector<8x8xbf16>
    %99 = vector.extract_strided_slice %15 {offsets = [0, 24], sizes = [8, 8], strides = [1, 1]} : vector<8x32xf32> to vector<8x8xf32>
    %100 = arith.truncf %99 : vector<8x8xf32> to vector<8x8xbf16>
    %cst_30 = arith.constant dense<0.000000e+00> : vector<8x8xf32>
    %101 = tpu.matmul %98, %100, %cst_30 {dimension_numbers = #tpu.dot_dimension_numbers<[1], [0], [0], [1], [0, 0, 1, 1], [], []>} : vector<8x8xbf16>, vector<8x8xbf16>, vector<8x8xf32> -> vector<8x8xf32>
    %102 = tpu.concatenate %38, %59, %80, %101 in 1 : vector<8x8xf32>, vector<8x8xf32>, vector<8x8xf32>, vector<8x8xf32> -> vector<8x32xf32>
    %103 = arith.truncf %102 : vector<8x32xf32> to vector<8x32xbf16>
    %cst_31 = arith.constant dense<0.000000e+00> : vector<8x32xf32>
    %104 = tpu.matmul %103, %16, %cst_31 {dimension_numbers = #tpu.dot_dimension_numbers<[1], [0], [0], [1], [0, 0, 1, 1], [], []>} : vector<8x32xbf16>, vector<32x32xbf16>, vector<8x32xf32> -> vector<8x32xf32>
    %105 = vector.broadcast %17 : vector<1x32xf32> to vector<8x32xf32>
    %106 = arith.addf %104, %105 : vector<8x32xf32>
    %107 = arith.addf %0, %106 : vector<8x32xf32>
    %c0_32 = arith.constant 0 : index
    %c0_33 = arith.constant 0 : index
    %108 = vector.load %arg8[%c0_32, %c0_33] : memref<1x32xf32, #tpu.memory_space<vmem>>, vector<1x32xf32>
    %c0_34 = arith.constant 0 : index
    %c0_35 = arith.constant 0 : index
    %109 = vector.load %arg9[%c0_34, %c0_35] : memref<1x32xf32, #tpu.memory_space<vmem>>, vector<1x32xf32>
    %cst_36 = arith.constant dense<0.000000e+00> : vector<8xf32>
    %110 = vector.multi_reduction <add>, %107, %cst_36 [1] : vector<8x32xf32> to vector<8xf32>
    %111 = vector.shape_cast %110 : vector<8xf32> to vector<8x1xf32>
    %cst_37 = arith.constant 3.200000e+01 : f32
    %112 = vector.broadcast %cst_37 : f32 to vector<8x1xf32>
    %113 = arith.divf %111, %112 : vector<8x1xf32>
    %114 = vector.broadcast %113 : vector<8x1xf32> to vector<8x32xf32>
    %115 = arith.subf %107, %114 : vector<8x32xf32>
    %116 = arith.mulf %115, %115 : vector<8x32xf32>
    %cst_38 = arith.constant dense<0.000000e+00> : vector<8xf32>
    %117 = vector.multi_reduction <add>, %116, %cst_38 [1] : vector<8x32xf32> to vector<8xf32>
    %118 = vector.shape_cast %117 : vector<8xf32> to vector<8x1xf32>
    %cst_39 = arith.constant 3.200000e+01 : f32
    %119 = vector.broadcast %cst_39 : f32 to vector<8x1xf32>
    %120 = arith.divf %118, %119 : vector<8x1xf32>
    %121 = vector.broadcast %113 : vector<8x1xf32> to vector<8x32xf32>
    %122 = arith.subf %107, %121 : vector<8x32xf32>
    %cst_40 = arith.constant 9.99999974E-6 : f32
    %123 = vector.broadcast %cst_40 : f32 to vector<8x1xf32>
    %124 = arith.addf %120, %123 : vector<8x1xf32>
    %125 = math.rsqrt %124 : vector<8x1xf32>
    %126 = vector.broadcast %125 : vector<8x1xf32> to vector<8x32xf32>
    %127 = arith.mulf %122, %126 : vector<8x32xf32>
    %128 = vector.broadcast %108 : vector<1x32xf32> to vector<8x32xf32>
    %129 = arith.mulf %127, %128 : vector<8x32xf32>
    %130 = vector.broadcast %109 : vector<1x32xf32> to vector<8x32xf32>
    %131 = arith.addf %129, %130 : vector<8x32xf32>
    %132 = arith.truncf %131 : vector<8x32xf32> to vector<8x32xbf16>
    %c0_41 = arith.constant 0 : index
    %c0_42 = arith.constant 0 : index
    %133 = vector.load %arg10[%c0_41, %c0_42] : memref<32x32xbf16, #tpu.memory_space<vmem>>, vector<32x32xbf16>
    %cst_43 = arith.constant dense<0.000000e+00> : vector<8x32xf32>
    %134 = tpu.matmul %132, %133, %cst_43 {dimension_numbers = #tpu.dot_dimension_numbers<[1], [0], [0], [1], [0, 0, 1, 1], [], []>} : vector<8x32xbf16>, vector<32x32xbf16>, vector<8x32xf32> -> vector<8x32xf32>
    %c0_44 = arith.constant 0 : index
    %c0_45 = arith.constant 0 : index
    %135 = vector.load %arg11[%c0_44, %c0_45] : memref<1x32xf32, #tpu.memory_space<vmem>>, vector<1x32xf32>
    %136 = vector.broadcast %135 : vector<1x32xf32> to vector<8x32xf32>
    %137 = arith.addf %134, %136 : vector<8x32xf32>
    %138 = arith.truncf %1 : vector<8x32xf32> to vector<8x32xbf16>
    %c0_46 = arith.constant 0 : index
    %c0_47 = arith.constant 0 : index
    %139 = vector.load %arg12[%c0_46, %c0_47] : memref<32x64xbf16, #tpu.memory_space<vmem>>, vector<32x64xbf16>
    %cst_48 = arith.constant dense<0.000000e+00> : vector<8x64xf32>
    %140 = tpu.matmul %138, %139, %cst_48 {dimension_numbers = #tpu.dot_dimension_numbers<[1], [0], [0], [1], [0, 0, 1, 1], [], []>} : vector<8x32xbf16>, vector<32x64xbf16>, vector<8x64xf32> -> vector<8x64xf32>
    %c0_49 = arith.constant 0 : index
    %c0_50 = arith.constant 0 : index
    %141 = vector.load %arg13[%c0_49, %c0_50] : memref<1x64xf32, #tpu.memory_space<vmem>>, vector<1x64xf32>
    %142 = vector.broadcast %141 : vector<1x64xf32> to vector<8x64xf32>
    %143 = arith.addf %140, %142 : vector<8x64xf32>
    %144 = vector.extract_strided_slice %143 {offsets = [0, 0], sizes = [8, 32], strides = [1, 1]} : vector<8x64xf32> to vector<8x32xf32>
    %145 = vector.extract_strided_slice %143 {offsets = [0, 32], sizes = [8, 32], strides = [1, 1]} : vector<8x64xf32> to vector<8x32xf32>
    %c0_51 = arith.constant 0 : index
    %c0_52 = arith.constant 0 : index
    %146 = vector.load %arg14[%c0_51, %c0_52] : memref<32x32xbf16, #tpu.memory_space<vmem>>, vector<32x32xbf16>
    %c0_53 = arith.constant 0 : index
    %c0_54 = arith.constant 0 : index
    %147 = vector.load %arg15[%c0_53, %c0_54] : memref<1x32xf32, #tpu.memory_space<vmem>>, vector<1x32xf32>
    %148 = vector.extract_strided_slice %137 {offsets = [0, 0], sizes = [8, 8], strides = [1, 1]} : vector<8x32xf32> to vector<8x8xf32>
    %cst_55 = arith.constant 0.353553385 : f32
    %149 = vector.broadcast %cst_55 : f32 to vector<8x8xf32>
    %150 = arith.mulf %148, %149 : vector<8x8xf32>
    %151 = arith.truncf %150 : vector<8x8xf32> to vector<8x8xbf16>
    %152 = vector.extract_strided_slice %144 {offsets = [0, 0], sizes = [8, 8], strides = [1, 1]} : vector<8x32xf32> to vector<8x8xf32>
    %153 = arith.truncf %152 : vector<8x8xf32> to vector<8x8xbf16>
    %cst_56 = arith.constant dense<0.000000e+00> : vector<8x8xf32>
    %154 = tpu.matmul %151, %153, %cst_56 {dimension_numbers = #tpu.dot_dimension_numbers<[1], [1], [0], [0], [0, 0, 1, 0], [], []>} : vector<8x8xbf16>, vector<8x8xbf16>, vector<8x8xf32> -> vector<8x8xf32>
    %cst_57 = arith.constant -1.000000e+06 : f32
    %155 = vector.broadcast %cst_57 : f32 to vector<8x8xf32>
    %156 = arith.select %6, %154, %155 : vector<8x8xi1>, vector<8x8xf32>
    %cst_58 = arith.constant dense<0xFF800000> : vector<8xf32>
    %157 = vector.multi_reduction <maximumf>, %156, %cst_58 [1] : vector<8x8xf32> to vector<8xf32>
    %158 = vector.shape_cast %157 : vector<8xf32> to vector<8x1xf32>
    %159 = vector.broadcast %158 : vector<8x1xf32> to vector<8x8xf32>
    %160 = arith.subf %156, %159 : vector<8x8xf32>
    %161 = math.exp %160 : vector<8x8xf32>
    %cst_59 = arith.constant dense<0.000000e+00> : vector<8xf32>
    %162 = vector.multi_reduction <add>, %161, %cst_59 [1] : vector<8x8xf32> to vector<8xf32>
    %163 = vector.shape_cast %162 : vector<8xf32> to vector<8x1xf32>
    %164 = tpu.reciprocal %163 {approx = true} : vector<8x1xf32> -> vector<8x1xf32>
    %165 = vector.broadcast %164 : vector<8x1xf32> to vector<8x8xf32>
    %166 = arith.mulf %161, %165 : vector<8x8xf32>
    %167 = arith.truncf %166 : vector<8x8xf32> to vector<8x8xbf16>
    %168 = vector.extract_strided_slice %145 {offsets = [0, 0], sizes = [8, 8], strides = [1, 1]} : vector<8x32xf32> to vector<8x8xf32>
    %169 = arith.truncf %168 : vector<8x8xf32> to vector<8x8xbf16>
    %cst_60 = arith.constant dense<0.000000e+00> : vector<8x8xf32>
    %170 = tpu.matmul %167, %169, %cst_60 {dimension_numbers = #tpu.dot_dimension_numbers<[1], [0], [0], [1], [0, 0, 1, 1], [], []>} : vector<8x8xbf16>, vector<8x8xbf16>, vector<8x8xf32> -> vector<8x8xf32>
    %171 = vector.extract_strided_slice %137 {offsets = [0, 8], sizes = [8, 8], strides = [1, 1]} : vector<8x32xf32> to vector<8x8xf32>
    %cst_61 = arith.constant 0.353553385 : f32
    %172 = vector.broadcast %cst_61 : f32 to vector<8x8xf32>
    %173 = arith.mulf %171, %172 : vector<8x8xf32>
    %174 = arith.truncf %173 : vector<8x8xf32> to vector<8x8xbf16>
    %175 = vector.extract_strided_slice %144 {offsets = [0, 8], sizes = [8, 8], strides = [1, 1]} : vector<8x32xf32> to vector<8x8xf32>
    %176 = arith.truncf %175 : vector<8x8xf32> to vector<8x8xbf16>
    %cst_62 = arith.constant dense<0.000000e+00> : vector<8x8xf32>
    %177 = tpu.matmul %174, %176, %cst_62 {dimension_numbers = #tpu.dot_dimension_numbers<[1], [1], [0], [0], [0, 0, 1, 0], [], []>} : vector<8x8xbf16>, vector<8x8xbf16>, vector<8x8xf32> -> vector<8x8xf32>
    %cst_63 = arith.constant -1.000000e+06 : f32
    %178 = vector.broadcast %cst_63 : f32 to vector<8x8xf32>
    %179 = arith.select %6, %177, %178 : vector<8x8xi1>, vector<8x8xf32>
    %cst_64 = arith.constant dense<0xFF800000> : vector<8xf32>
    %180 = vector.multi_reduction <maximumf>, %179, %cst_64 [1] : vector<8x8xf32> to vector<8xf32>
    %181 = vector.shape_cast %180 : vector<8xf32> to vector<8x1xf32>
    %182 = vector.broadcast %181 : vector<8x1xf32> to vector<8x8xf32>
    %183 = arith.subf %179, %182 : vector<8x8xf32>
    %184 = math.exp %183 : vector<8x8xf32>
    %cst_65 = arith.constant dense<0.000000e+00> : vector<8xf32>
    %185 = vector.multi_reduction <add>, %184, %cst_65 [1] : vector<8x8xf32> to vector<8xf32>
    %186 = vector.shape_cast %185 : vector<8xf32> to vector<8x1xf32>
    %187 = tpu.reciprocal %186 {approx = true} : vector<8x1xf32> -> vector<8x1xf32>
    %188 = vector.broadcast %187 : vector<8x1xf32> to vector<8x8xf32>
    %189 = arith.mulf %184, %188 : vector<8x8xf32>
    %190 = arith.truncf %189 : vector<8x8xf32> to vector<8x8xbf16>
    %191 = vector.extract_strided_slice %145 {offsets = [0, 8], sizes = [8, 8], strides = [1, 1]} : vector<8x32xf32> to vector<8x8xf32>
    %192 = arith.truncf %191 : vector<8x8xf32> to vector<8x8xbf16>
    %cst_66 = arith.constant dense<0.000000e+00> : vector<8x8xf32>
    %193 = tpu.matmul %190, %192, %cst_66 {dimension_numbers = #tpu.dot_dimension_numbers<[1], [0], [0], [1], [0, 0, 1, 1], [], []>} : vector<8x8xbf16>, vector<8x8xbf16>, vector<8x8xf32> -> vector<8x8xf32>
    %194 = vector.extract_strided_slice %137 {offsets = [0, 16], sizes = [8, 8], strides = [1, 1]} : vector<8x32xf32> to vector<8x8xf32>
    %cst_67 = arith.constant 0.353553385 : f32
    %195 = vector.broadcast %cst_67 : f32 to vector<8x8xf32>
    %196 = arith.mulf %194, %195 : vector<8x8xf32>
    %197 = arith.truncf %196 : vector<8x8xf32> to vector<8x8xbf16>
    %198 = vector.extract_strided_slice %144 {offsets = [0, 16], sizes = [8, 8], strides = [1, 1]} : vector<8x32xf32> to vector<8x8xf32>
    %199 = arith.truncf %198 : vector<8x8xf32> to vector<8x8xbf16>
    %cst_68 = arith.constant dense<0.000000e+00> : vector<8x8xf32>
    %200 = tpu.matmul %197, %199, %cst_68 {dimension_numbers = #tpu.dot_dimension_numbers<[1], [1], [0], [0], [0, 0, 1, 0], [], []>} : vector<8x8xbf16>, vector<8x8xbf16>, vector<8x8xf32> -> vector<8x8xf32>
    %cst_69 = arith.constant -1.000000e+06 : f32
    %201 = vector.broadcast %cst_69 : f32 to vector<8x8xf32>
    %202 = arith.select %6, %200, %201 : vector<8x8xi1>, vector<8x8xf32>
    %cst_70 = arith.constant dense<0xFF800000> : vector<8xf32>
    %203 = vector.multi_reduction <maximumf>, %202, %cst_70 [1] : vector<8x8xf32> to vector<8xf32>
    %204 = vector.shape_cast %203 : vector<8xf32> to vector<8x1xf32>
    %205 = vector.broadcast %204 : vector<8x1xf32> to vector<8x8xf32>
    %206 = arith.subf %202, %205 : vector<8x8xf32>
    %207 = math.exp %206 : vector<8x8xf32>
    %cst_71 = arith.constant dense<0.000000e+00> : vector<8xf32>
    %208 = vector.multi_reduction <add>, %207, %cst_71 [1] : vector<8x8xf32> to vector<8xf32>
    %209 = vector.shape_cast %208 : vector<8xf32> to vector<8x1xf32>
    %210 = tpu.reciprocal %209 {approx = true} : vector<8x1xf32> -> vector<8x1xf32>
    %211 = vector.broadcast %210 : vector<8x1xf32> to vector<8x8xf32>
    %212 = arith.mulf %207, %211 : vector<8x8xf32>
    %213 = arith.truncf %212 : vector<8x8xf32> to vector<8x8xbf16>
    %214 = vector.extract_strided_slice %145 {offsets = [0, 16], sizes = [8, 8], strides = [1, 1]} : vector<8x32xf32> to vector<8x8xf32>
    %215 = arith.truncf %214 : vector<8x8xf32> to vector<8x8xbf16>
    %cst_72 = arith.constant dense<0.000000e+00> : vector<8x8xf32>
    %216 = tpu.matmul %213, %215, %cst_72 {dimension_numbers = #tpu.dot_dimension_numbers<[1], [0], [0], [1], [0, 0, 1, 1], [], []>} : vector<8x8xbf16>, vector<8x8xbf16>, vector<8x8xf32> -> vector<8x8xf32>
    %217 = vector.extract_strided_slice %137 {offsets = [0, 24], sizes = [8, 8], strides = [1, 1]} : vector<8x32xf32> to vector<8x8xf32>
    %cst_73 = arith.constant 0.353553385 : f32
    %218 = vector.broadcast %cst_73 : f32 to vector<8x8xf32>
    %219 = arith.mulf %217, %218 : vector<8x8xf32>
    %220 = arith.truncf %219 : vector<8x8xf32> to vector<8x8xbf16>
    %221 = vector.extract_strided_slice %144 {offsets = [0, 24], sizes = [8, 8], strides = [1, 1]} : vector<8x32xf32> to vector<8x8xf32>
    %222 = arith.truncf %221 : vector<8x8xf32> to vector<8x8xbf16>
    %cst_74 = arith.constant dense<0.000000e+00> : vector<8x8xf32>
    %223 = tpu.matmul %220, %222, %cst_74 {dimension_numbers = #tpu.dot_dimension_numbers<[1], [1], [0], [0], [0, 0, 1, 0], [], []>} : vector<8x8xbf16>, vector<8x8xbf16>, vector<8x8xf32> -> vector<8x8xf32>
    %cst_75 = arith.constant -1.000000e+06 : f32
    %224 = vector.broadcast %cst_75 : f32 to vector<8x8xf32>
    %225 = arith.select %6, %223, %224 : vector<8x8xi1>, vector<8x8xf32>
    %cst_76 = arith.constant dense<0xFF800000> : vector<8xf32>
    %226 = vector.multi_reduction <maximumf>, %225, %cst_76 [1] : vector<8x8xf32> to vector<8xf32>
    %227 = vector.shape_cast %226 : vector<8xf32> to vector<8x1xf32>
    %228 = vector.broadcast %227 : vector<8x1xf32> to vector<8x8xf32>
    %229 = arith.subf %225, %228 : vector<8x8xf32>
    %230 = math.exp %229 : vector<8x8xf32>
    %cst_77 = arith.constant dense<0.000000e+00> : vector<8xf32>
    %231 = vector.multi_reduction <add>, %230, %cst_77 [1] : vector<8x8xf32> to vector<8xf32>
    %232 = vector.shape_cast %231 : vector<8xf32> to vector<8x1xf32>
    %233 = tpu.reciprocal %232 {approx = true} : vector<8x1xf32> -> vector<8x1xf32>
    %234 = vector.broadcast %233 : vector<8x1xf32> to vector<8x8xf32>
    %235 = arith.mulf %230, %234 : vector<8x8xf32>
    %236 = arith.truncf %235 : vector<8x8xf32> to vector<8x8xbf16>
    %237 = vector.extract_strided_slice %145 {offsets = [0, 24], sizes = [8, 8], strides = [1, 1]} : vector<8x32xf32> to vector<8x8xf32>
    %238 = arith.truncf %237 : vector<8x8xf32> to vector<8x8xbf16>
    %cst_78 = arith.constant dense<0.000000e+00> : vector<8x8xf32>
    %239 = tpu.matmul %236, %238, %cst_78 {dimension_numbers = #tpu.dot_dimension_numbers<[1], [0], [0], [1], [0, 0, 1, 1], [], []>} : vector<8x8xbf16>, vector<8x8xbf16>, vector<8x8xf32> -> vector<8x8xf32>
    %240 = tpu.concatenate %170, %193, %216, %239 in 1 : vector<8x8xf32>, vector<8x8xf32>, vector<8x8xf32>, vector<8x8xf32> -> vector<8x32xf32>
    %241 = arith.truncf %240 : vector<8x32xf32> to vector<8x32xbf16>
    %cst_79 = arith.constant dense<0.000000e+00> : vector<8x32xf32>
    %242 = tpu.matmul %241, %146, %cst_79 {dimension_numbers = #tpu.dot_dimension_numbers<[1], [0], [0], [1], [0, 0, 1, 1], [], []>} : vector<8x32xbf16>, vector<32x32xbf16>, vector<8x32xf32> -> vector<8x32xf32>
    %243 = vector.broadcast %147 : vector<1x32xf32> to vector<8x32xf32>
    %244 = arith.addf %242, %243 : vector<8x32xf32>
    %245 = arith.addf %131, %244 : vector<8x32xf32>
    %c0_80 = arith.constant 0 : index
    %c0_81 = arith.constant 0 : index
    %246 = vector.load %arg16[%c0_80, %c0_81] : memref<1x32xf32, #tpu.memory_space<vmem>>, vector<1x32xf32>
    %c0_82 = arith.constant 0 : index
    %c0_83 = arith.constant 0 : index
    %247 = vector.load %arg17[%c0_82, %c0_83] : memref<1x32xf32, #tpu.memory_space<vmem>>, vector<1x32xf32>
    %cst_84 = arith.constant dense<0.000000e+00> : vector<8xf32>
    %248 = vector.multi_reduction <add>, %245, %cst_84 [1] : vector<8x32xf32> to vector<8xf32>
    %249 = vector.shape_cast %248 : vector<8xf32> to vector<8x1xf32>
    %cst_85 = arith.constant 3.200000e+01 : f32
    %250 = vector.broadcast %cst_85 : f32 to vector<8x1xf32>
    %251 = arith.divf %249, %250 : vector<8x1xf32>
    %252 = vector.broadcast %251 : vector<8x1xf32> to vector<8x32xf32>
    %253 = arith.subf %245, %252 : vector<8x32xf32>
    %254 = arith.mulf %253, %253 : vector<8x32xf32>
    %cst_86 = arith.constant dense<0.000000e+00> : vector<8xf32>
    %255 = vector.multi_reduction <add>, %254, %cst_86 [1] : vector<8x32xf32> to vector<8xf32>
    %256 = vector.shape_cast %255 : vector<8xf32> to vector<8x1xf32>
    %cst_87 = arith.constant 3.200000e+01 : f32
    %257 = vector.broadcast %cst_87 : f32 to vector<8x1xf32>
    %258 = arith.divf %256, %257 : vector<8x1xf32>
    %259 = vector.broadcast %251 : vector<8x1xf32> to vector<8x32xf32>
    %260 = arith.subf %245, %259 : vector<8x32xf32>
    %cst_88 = arith.constant 9.99999974E-6 : f32
    %261 = vector.broadcast %cst_88 : f32 to vector<8x1xf32>
    %262 = arith.addf %258, %261 : vector<8x1xf32>
    %263 = math.rsqrt %262 : vector<8x1xf32>
    %264 = vector.broadcast %263 : vector<8x1xf32> to vector<8x32xf32>
    %265 = arith.mulf %260, %264 : vector<8x32xf32>
    %266 = vector.broadcast %246 : vector<1x32xf32> to vector<8x32xf32>
    %267 = arith.mulf %265, %266 : vector<8x32xf32>
    %268 = vector.broadcast %247 : vector<1x32xf32> to vector<8x32xf32>
    %269 = arith.addf %267, %268 : vector<8x32xf32>
    %270 = arith.truncf %269 : vector<8x32xf32> to vector<8x32xbf16>
    %c0_89 = arith.constant 0 : index
    %c0_90 = arith.constant 0 : index
    %271 = vector.load %arg18[%c0_89, %c0_90] : memref<32x64xbf16, #tpu.memory_space<vmem>>, vector<32x64xbf16>
    %cst_91 = arith.constant dense<0.000000e+00> : vector<8x64xf32>
    %272 = tpu.matmul %270, %271, %cst_91 {dimension_numbers = #tpu.dot_dimension_numbers<[1], [0], [0], [1], [0, 0, 1, 1], [], []>} : vector<8x32xbf16>, vector<32x64xbf16>, vector<8x64xf32> -> vector<8x64xf32>
    %c0_92 = arith.constant 0 : index
    %c0_93 = arith.constant 0 : index
    %273 = vector.load %arg19[%c0_92, %c0_93] : memref<1x64xf32, #tpu.memory_space<vmem>>, vector<1x64xf32>
    %274 = vector.broadcast %273 : vector<1x64xf32> to vector<8x64xf32>
    %275 = arith.addf %272, %274 : vector<8x64xf32>
    %cst_94 = arith.constant 0.000000e+00 : f32
    %276 = vector.broadcast %cst_94 : f32 to vector<8x64xf32>
    %277 = arith.maximumf %275, %276 : vector<8x64xf32>
    %278 = arith.truncf %277 : vector<8x64xf32> to vector<8x64xbf16>
    %c0_95 = arith.constant 0 : index
    %c0_96 = arith.constant 0 : index
    %279 = vector.load %arg20[%c0_95, %c0_96] : memref<64x32xbf16, #tpu.memory_space<vmem>>, vector<64x32xbf16>
    %cst_97 = arith.constant dense<0.000000e+00> : vector<8x32xf32>
    %280 = tpu.matmul %278, %279, %cst_97 {dimension_numbers = #tpu.dot_dimension_numbers<[1], [0], [0], [1], [0, 0, 1, 1], [], []>} : vector<8x64xbf16>, vector<64x32xbf16>, vector<8x32xf32> -> vector<8x32xf32>
    %c0_98 = arith.constant 0 : index
    %c0_99 = arith.constant 0 : index
    %281 = vector.load %arg21[%c0_98, %c0_99] : memref<1x32xf32, #tpu.memory_space<vmem>>, vector<1x32xf32>
    %282 = vector.broadcast %281 : vector<1x32xf32> to vector<8x32xf32>
    %283 = arith.addf %280, %282 : vector<8x32xf32>
    %284 = arith.addf %269, %283 : vector<8x32xf32>
    %c0_100 = arith.constant 0 : index
    %c0_101 = arith.constant 0 : index
    %285 = vector.load %arg22[%c0_100, %c0_101] : memref<1x32xf32, #tpu.memory_space<vmem>>, vector<1x32xf32>
    %c0_102 = arith.constant 0 : index
    %c0_103 = arith.constant 0 : index
    %286 = vector.load %arg23[%c0_102, %c0_103] : memref<1x32xf32, #tpu.memory_space<vmem>>, vector<1x32xf32>
    %cst_104 = arith.constant dense<0.000000e+00> : vector<8xf32>
    %287 = vector.multi_reduction <add>, %284, %cst_104 [1] : vector<8x32xf32> to vector<8xf32>
    %288 = vector.shape_cast %287 : vector<8xf32> to vector<8x1xf32>
    %cst_105 = arith.constant 3.200000e+01 : f32
    %289 = vector.broadcast %cst_105 : f32 to vector<8x1xf32>
    %290 = arith.divf %288, %289 : vector<8x1xf32>
    %291 = vector.broadcast %290 : vector<8x1xf32> to vector<8x32xf32>
    %292 = arith.subf %284, %291 : vector<8x32xf32>
    %293 = arith.mulf %292, %292 : vector<8x32xf32>
    %cst_106 = arith.constant dense<0.000000e+00> : vector<8xf32>
    %294 = vector.multi_reduction <add>, %293, %cst_106 [1] : vector<8x32xf32> to vector<8xf32>
    %295 = vector.shape_cast %294 : vector<8xf32> to vector<8x1xf32>
    %cst_107 = arith.constant 3.200000e+01 : f32
    %296 = vector.broadcast %cst_107 : f32 to vector<8x1xf32>
    %297 = arith.divf %295, %296 : vector<8x1xf32>
    %298 = vector.broadcast %290 : vector<8x1xf32> to vector<8x32xf32>
    %299 = arith.subf %284, %298 : vector<8x32xf32>
    %cst_108 = arith.constant 9.99999974E-6 : f32
    %300 = vector.broadcast %cst_108 : f32 to vector<8x1xf32>
    %301 = arith.addf %297, %300 : vector<8x1xf32>
    %302 = math.rsqrt %301 : vector<8x1xf32>
    %303 = vector.broadcast %302 : vector<8x1xf32> to vector<8x32xf32>
    %304 = arith.mulf %299, %303 : vector<8x32xf32>
    %305 = vector.broadcast %285 : vector<1x32xf32> to vector<8x32xf32>
    %306 = arith.mulf %304, %305 : vector<8x32xf32>
    %307 = vector.broadcast %286 : vector<1x32xf32> to vector<8x32xf32>
    %308 = arith.addf %306, %307 : vector<8x32xf32>
    %c0_109 = arith.constant 0 : index
    %c0_110 = arith.constant 0 : index
    %309 = vector.load %arg24[%c0_109, %c0_110] : memref<8x32xf32, #tpu.memory_space<vmem>>, vector<8x32xf32>
    tpu.vector_store %arg24[%c0_109, %c0_110], %308 {strides = array<i32>} : memref<8x32xf32, #tpu.memory_space<vmem>>, vector<8x32xf32>,
    return
  }
  func.func @transform_0(%arg0: i32, %arg1: memref<2xi32, #tpu.memory_space<smem>>) -> (i32, i32) {
    %c0_i32 = arith.constant 0 : i32
    %c0_i32_0 = arith.constant 0 : i32
    return %arg0, %c0_i32 : i32, i32
  }
  func.func @transform_1(%arg0: i32, %arg1: memref<2xi32, #tpu.memory_space<smem>>) -> (i32, i32) {
    %c0_i32 = arith.constant 0 : i32
    %c0_i32_0 = arith.constant 0 : i32
    return %arg0, %c0_i32 : i32, i32
  }
  func.func @transform_2(%arg0: i32, %arg1: memref<2xi32, #tpu.memory_space<smem>>) -> (i32, i32) {
    %c0_i32 = arith.constant 0 : i32
    %c0_i32_0 = arith.constant 0 : i32
    %c0_i32_1 = arith.constant 0 : i32
    return %c0_i32, %c0_i32_0 : i32, i32
  }
  func.func @transform_3(%arg0: i32, %arg1: memref<2xi32, #tpu.memory_space<smem>>) -> (i32, i32) {
    %c0_i32 = arith.constant 0 : i32
    %c0_i32_0 = arith.constant 0 : i32
    %c0_i32_1 = arith.constant 0 : i32
    return %c0_i32, %c0_i32_0 : i32, i32
  }
  func.func @transform_4(%arg0: i32, %arg1: memref<2xi32, #tpu.memory_space<smem>>) -> (i32, i32) {
    %c0_i32 = arith.constant 0 : i32
    %c0_i32_0 = arith.constant 0 : i32
    %c0_i32_1 = arith.constant 0 : i32
    return %c0_i32, %c0_i32_0 : i32, i32
  }
  func.func @transform_5(%arg0: i32, %arg1: memref<2xi32, #tpu.memory_space<smem>>) -> (i32, i32) {
    %c0_i32 = arith.constant 0 : i32
    %c0_i32_0 = arith.constant 0 : i32
    %c0_i32_1 = arith.constant 0 : i32
    return %c0_i32, %c0_i32_0 : i32, i32
  }
  func.func @transform_6(%arg0: i32, %arg1: memref<2xi32, #tpu.memory_space<smem>>) -> (i32, i32) {
    %c0_i32 = arith.constant 0 : i32
    %c0_i32_0 = arith.constant 0 : i32
    %c0_i32_1 = arith.constant 0 : i32
    return %c0_i32, %c0_i32_0 : i32, i32
  }
  func.func @transform_7(%arg0: i32, %arg1: memref<2xi32, #tpu.memory_space<smem>>) -> (i32, i32) {
    %c0_i32 = arith.constant 0 : i32
    %c0_i32_0 = arith.constant 0 : i32
    %c0_i32_1 = arith.constant 0 : i32
    return %c0_i32, %c0_i32_0 : i32, i32
  }
  func.func @transform_8(%arg0: i32, %arg1: memref<2xi32, #tpu.memory_space<smem>>) -> (i32, i32) {
    %c0_i32 = arith.constant 0 : i32
    %c0_i32_0 = arith.constant 0 : i32
    %c0_i32_1 = arith.constant 0 : i32
    return %c0_i32, %c0_i32_0 : i32, i32
  }
  func.func @transform_9(%arg0: i32, %arg1: memref<2xi32, #tpu.memory_space<smem>>) -> (i32, i32) {
    %c0_i32 = arith.constant 0 : i32
    %c0_i32_0 = arith.constant 0 : i32
    %c0_i32_1 = arith.constant 0 : i32
    return %c0_i32, %c0_i32_0 : i32, i32
  }
  func.func @transform_10(%arg0: i32, %arg1: memref<2xi32, #tpu.memory_space<smem>>) -> (i32, i32) {
    %c0_i32 = arith.constant 0 : i32
    %c0_i32_0 = arith.constant 0 : i32
    %c0_i32_1 = arith.constant 0 : i32
    return %c0_i32, %c0_i32_0 : i32, i32
  }
  func.func @transform_11(%arg0: i32, %arg1: memref<2xi32, #tpu.memory_space<smem>>) -> (i32, i32) {
    %c0_i32 = arith.constant 0 : i32
    %c0_i32_0 = arith.constant 0 : i32
    %c0_i32_1 = arith.constant 0 : i32
    return %c0_i32, %c0_i32_0 : i32, i32
  }
  func.func @transform_12(%arg0: i32, %arg1: memref<2xi32, #tpu.memory_space<smem>>) -> (i32, i32) {
    %c0_i32 = arith.constant 0 : i32
    %c0_i32_0 = arith.constant 0 : i32
    %c0_i32_1 = arith.constant 0 : i32
    return %c0_i32, %c0_i32_0 : i32, i32
  }
  func.func @transform_13(%arg0: i32, %arg1: memref<2xi32, #tpu.memory_space<smem>>) -> (i32, i32) {
    %c0_i32 = arith.constant 0 : i32
    %c0_i32_0 = arith.constant 0 : i32
    %c0_i32_1 = arith.constant 0 : i32
    return %c0_i32, %c0_i32_0 : i32, i32
  }
  func.func @transform_14(%arg0: i32, %arg1: memref<2xi32, #tpu.memory_space<smem>>) -> (i32, i32) {
    %c0_i32 = arith.constant 0 : i32
    %c0_i32_0 = arith.constant 0 : i32
    %c0_i32_1 = arith.constant 0 : i32
    return %c0_i32, %c0_i32_0 : i32, i32
  }
  func.func @transform_15(%arg0: i32, %arg1: memref<2xi32, #tpu.memory_space<smem>>) -> (i32, i32) {
    %c0_i32 = arith.constant 0 : i32
    %c0_i32_0 = arith.constant 0 : i32
    %c0_i32_1 = arith.constant 0 : i32
    return %c0_i32, %c0_i32_0 : i32, i32
  }
  func.func @transform_16(%arg0: i32, %arg1: memref<2xi32, #tpu.memory_space<smem>>) -> (i32, i32) {
    %c0_i32 = arith.constant 0 : i32
    %c0_i32_0 = arith.constant 0 : i32
    %c0_i32_1 = arith.constant 0 : i32
    return %c0_i32, %c0_i32_0 : i32, i32
  }
  func.func @transform_17(%arg0: i32, %arg1: memref<2xi32, #tpu.memory_space<smem>>) -> (i32, i32) {
    %c0_i32 = arith.constant 0 : i32
    %c0_i32_0 = arith.constant 0 : i32
    %c0_i32_1 = arith.constant 0 : i32
    return %c0_i32, %c0_i32_0 : i32, i32
  }
  func.func @transform_18(%arg0: i32, %arg1: memref<2xi32, #tpu.memory_space<smem>>) -> (i32, i32) {
    %c0_i32 = arith.constant 0 : i32
    %c0_i32_0 = arith.constant 0 : i32
    %c0_i32_1 = arith.constant 0 : i32
    return %c0_i32, %c0_i32_0 : i32, i32
  }
  func.func @transform_19(%arg0: i32, %arg1: memref<2xi32, #tpu.memory_space<smem>>) -> (i32, i32) {
    %c0_i32 = arith.constant 0 : i32
    %c0_i32_0 = arith.constant 0 : i32
    %c0_i32_1 = arith.constant 0 : i32
    return %c0_i32, %c0_i32_0 : i32, i32
  }
  func.func @transform_20(%arg0: i32, %arg1: memref<2xi32, #tpu.memory_space<smem>>) -> (i32, i32) {
    %c0_i32 = arith.constant 0 : i32
    %c0_i32_0 = arith.constant 0 : i32
    %c0_i32_1 = arith.constant 0 : i32
    return %c0_i32, %c0_i32_0 : i32, i32
  }
  func.func @transform_21(%arg0: i32, %arg1: memref<2xi32, #tpu.memory_space<smem>>) -> (i32, i32) {
    %c0_i32 = arith.constant 0 : i32
    %c0_i32_0 = arith.constant 0 : i32
    %c0_i32_1 = arith.constant 0 : i32
    return %c0_i32, %c0_i32_0 : i32, i32
  }
  func.func @transform_22(%arg0: i32, %arg1: memref<2xi32, #tpu.memory_space<smem>>) -> (i32, i32) {
    %c0_i32 = arith.constant 0 : i32
    %c0_i32_0 = arith.constant 0 : i32
    return %arg0, %c0_i32 : i32, i32
  }
}

module attributes {stable_mosaic.version = 11 : i64} {
  func.func @_decoder_block_kernel(%arg0: i32, %arg1: memref<2xi32, #tpu.memory_space<smem>>, %arg2: memref<8x32xf32, #tpu.memory_space<vmem>>, %arg3: memref<8x32xf32, #tpu.memory_space<vmem>>, %arg4: memref<32x96xbf16, #tpu.memory_space<vmem>>, %arg5: memref<1x96xf32, #tpu.memory_space<vmem>>, %arg6: memref<32x32xbf16, #tpu.memory_space<vmem>>, %arg7: memref<1x32xf32, #tpu.memory_space<vmem>>, %arg8: memref<1x32xf32, #tpu.memory_space<vmem>>, %arg9: memref<1x32xf32, #tpu.memory_space<vmem>>, %arg10: memref<32x32xbf16, #tpu.memory_space<vmem>>, %arg11: memref<1x32xf32, #tpu.memory_space<vmem>>, %arg12: memref<32x64xbf16, #tpu.memory_space<vmem>>, %arg13: memref<1x64xf32, #tpu.memory_space<vmem>>, %arg14: memref<32x32xbf16, #tpu.memory_space<vmem>>, %arg15: memref<1x32xf32, #tpu.memory_space<vmem>>, %arg16: memref<1x32xf32, #tpu.memory_space<vmem>>, %arg17: memref<1x32xf32, #tpu.memory_space<vmem>>, %arg18: memref<32x64xbf16, #tpu.memory_space<vmem>>, %arg19: memref<1x64xf32, #tpu.memory_space<vmem>>, %arg20: memref<64x32xbf16, #tpu.memory_space<vmem>>, %arg21: memref<1x32xf32, #tpu.memory_space<vmem>>, %arg22: memref<1x32xf32, #tpu.memory_space<vmem>>, %arg23: memref<1x32xf32, #tpu.memory_space<vmem>>, %arg24: memref<8x32xf32, #tpu.memory_space<vmem>>) attributes {dimension_semantics = [#tpu.dimension_semantics<parallel>], iteration_bounds = array<i64: 2>, scalar_prefetch = 1 : i64, scratch_operands = 0 : i64, tpu.core_type = #tpu.core_type<tc>, window_params = [{transform_indices = @transform_0, window_bounds = array<i64: 8, 32>}, {transform_indices = @transform_1, window_bounds = array<i64: 8, 32>}, {pipeline_mode = #tpu.pipeline_mode<synchronous>, transform_indices = @transform_2, window_bounds = array<i64: 32, 96>}, {pipeline_mode = #tpu.pipeline_mode<synchronous>, transform_indices = @transform_3, window_bounds = array<i64: 1, 96>}, {pipeline_mode = #tpu.pipeline_mode<synchronous>, transform_indices = @transform_4, window_bounds = array<i64: 32, 32>}, {pipeline_mode = #tpu.pipeline_mode<synchronous>, transform_indices = @transform_5, window_bounds = array<i64: 1, 32>}, {pipeline_mode = #tpu.pipeline_mode<synchronous>, transform_indices = @transform_6, window_bounds = array<i64: 1, 32>}, {pipeline_mode = #tpu.pipeline_mode<synchronous>, transform_indices = @transform_7, window_bounds = array<i64: 1, 32>}, {pipeline_mode = #tpu.pipeline_mode<synchronous>, transform_indices = @transform_8, window_bounds = array<i64: 32, 32>}, {pipeline_mode = #tpu.pipeline_mode<synchronous>, transform_indices = @transform_9, window_bounds = array<i64: 1, 32>}, {pipeline_mode = #tpu.pipeline_mode<synchronous>, transform_indices = @transform_10, window_bounds = array<i64: 32, 64>}, {pipeline_mode = #tpu.pipeline_mode<synchronous>, transform_indices = @transform_11, window_bounds = array<i64: 1, 64>}, {pipeline_mode = #tpu.pipeline_mode<synchronous>, transform_indices = @transform_12, window_bounds = array<i64: 32, 32>}, {pipeline_mode = #tpu.pipeline_mode<synchronous>, transform_indices = @transform_13, window_bounds = array<i64: 1, 32>}, {pipeline_mode = #tpu.pipeline_mode<synchronous>, transform_indices = @transform_14, window_bounds = array<i64: 1, 32>}, {pipeline_mode = #tpu.pipeline_mode<synchronous>, transform_indices = @transform_15, window_bounds = array<i64: 1, 32>}, {pipeline_mode = #tpu.pipeline_mode<synchronous>, transform_indices = @transform_16, window_bounds = array<i64: 32, 64>}, {pipeline_mode = #tpu.pipeline_mode<synchronous>, transform_indices = @transform_17, window_bounds = array<i64: 1, 64>}, {pipeline_mode = #tpu.pipeline_mode<synchronous>, transform_indices = @transform_18, window_bounds = array<i64: 64, 32>}, {pipeline_mode = #tpu.pipeline_mode<synchronous>, transform_indices = @transform_19, window_bounds = array<i64: 1, 32>}, {pipeline_mode = #tpu.pipeline_mode<synchronous>, transform_indices = @transform_20, window_bounds = array<i64: 1, 32>}, {pipeline_mode = #tpu.pipeline_mode<synchronous>, transform_indices = @transform_21, window_bounds = array<i64: 1, 32>}, {transform_indices = @transform_22, window_bounds = array<i64: 8, 32>}]} {
    %c0 = arith.constant 0 : index
    %c0_0 = arith.constant 0 : index
    %0 = vector.load %arg2[%c0, %c0_0] : memref<8x32xf32, #tpu.memory_space<vmem>>, vector<8x32xf32>
    %c0_1 = arith.constant 0 : index
    %c0_2 = arith.constant 0 : index
    %1 = vector.load %arg3[%c0_1, %c0_2] : memref<8x32xf32, #tpu.memory_space<vmem>>, vector<8x32xf32>
    %2 = arith.index_cast %arg0 : i32 to index
    %3 = memref.load %arg1[%2] : memref<2xi32, #tpu.memory_space<smem>>
    %4 = tpu.iota {dimensions = array<i32: 1>} : vector<8x8xi32>
    %5 = vector.broadcast %3 : i32 to vector<8x8xi32>
    %6 = arith.cmpi slt, %4, %5 : vector<8x8xi32>
    %7 = arith.truncf %0 : vector<8x32xf32> to vector<8x32xbf16>
    %c0_3 = arith.constant 0 : index
    %c0_4 = arith.constant 0 : index
    %8 = vector.load %arg4[%c0_3, %c0_4] : memref<32x96xbf16, #tpu.memory_space<vmem>>, vector<32x96xbf16>
    %cst = arith.constant dense<0.000000e+00> : vector<8x96xf32>
    %9 = tpu.matmul %7, %8, %cst {dimension_numbers = #tpu.dot_dimension_numbers<[1], [0], [0], [1], [0, 0, 1, 1], [], []>} : vector<8x32xbf16>, vector<32x96xbf16>, vector<8x96xf32> -> vector<8x96xf32>
    %c0_5 = arith.constant 0 : index
    %c0_6 = arith.constant 0 : index
    %10 = vector.load %arg5[%c0_5, %c0_6] : memref<1x96xf32, #tpu.memory_space<vmem>>, vector<1x96xf32>
    %11 = vector.broadcast %10 : vector<1x96xf32> to vector<8x96xf32>
    %12 = arith.addf %9, %11 : vector<8x96xf32>
    %13 = vector.extract_strided_slice %12 {offsets = [0, 0], sizes = [8, 32], strides = [1, 1]} : vector<8x96xf32> to vector<8x32xf32>
    %14 = vector.extract_strided_slice %12 {offsets = [0, 32], sizes = [8, 32], strides = [1, 1]} : vector<8x96xf32> to vector<8x32xf32>
    %15 = vector.extract_strided_slice %12 {offsets = [0, 64], sizes = [8, 32], strides = [1, 1]} : vector<8x96xf32> to vector<8x32xf32>
    %c0_7 = arith.constant 0 : index
    %c0_8 = arith.constant 0 : index
    %16 = vector.load %arg6[%c0_7, %c0_8] : memref<32x32xbf16, #tpu.memory_space<vmem>>, vector<32x32xbf16>
    %c0_9 = arith.constant 0 : index
    %c0_10 = arith.constant 0 : index
    %17 = vector.load %arg7[%c0_9, %c0_10] : memref<1x32xf32, #tpu.memory_space<vmem>>, vector<1x32xf32>
    %18 = vector.extract_strided_slice %13 {offsets = [0, 0], sizes = [8, 8], strides = [1, 1]} : vector<8x32xf32> to vector<8x8xf32>
    %cst_11 = arith.constant 0.353553385 : f32
    %19 = vector.broadcast %cst_11 : f32 to vector<8x8xf32>
    %20 = arith.mulf %18, %19 : vector<8x8xf32>
    %21 = arith.truncf %20 : vector<8x8xf32> to vector<8x8xbf16>
    %22 = vector.extract_strided_slice %14 {offsets = [0, 0], sizes = [8, 8], strides = [1, 1]} : vector<8x32xf32> to vector<8x8xf32>
    %23 = arith.truncf %22 : vector<8x8xf32> to vector<8x8xbf16>
    %cst_12 = arith.constant dense<0.000000e+00> : vector<8x8xf32>
    %24 = tpu.matmul %21, %23, %cst_12 {dimension_numbers = #tpu.dot_dimension_numbers<[1], [1], [0], [0], [0, 0, 1, 0], [], []>} : vector<8x8xbf16>, vector<8x8xbf16>, vector<8x8xf32> -> vector<8x8xf32>
    %cst_13 = arith.constant dense<0xFF800000> : vector<8xf32>
    %25 = vector.multi_reduction <maximumf>, %24, %cst_13 [1] : vector<8x8xf32> to vector<8xf32>
    %26 = vector.shape_cast %25 : vector<8xf32> to vector<8x1xf32>
    %27 = vector.broadcast %26 : vector<8x1xf32> to vector<8x8xf32>
    %28 = arith.subf %24, %27 : vector<8x8xf32>
    %29 = math.exp %28 : vector<8x8xf32>
    %cst_14 = arith.constant dense<0.000000e+00> : vector<8xf32>
    %30 = vector.multi_reduction <add>, %29, %cst_14 [1] : vector<8x8xf32> to vector<8xf32>
    %31 = vector.shape_cast %30 : vector<8xf32> to vector<8x1xf32>
    %32 = tpu.reciprocal %31 {approx = true} : vector<8x1xf32> -> vector<8x1xf32>
    %33 = vector.broadcast %32 : vector<8x1xf32> to vector<8x8xf32>
    %34 = arith.mulf %29, %33 : vector<8x8xf32>
    %35 = arith.truncf %34 : vector<8x8xf32> to vector<8x8xbf16>
    %36 = vector.extract_strided_slice %15 {offsets = [0, 0], sizes = [8, 8], strides = [1, 1]} : vector<8x32xf32> to vector<8x8xf32>
    %37 = arith.truncf %36 : vector<8x8xf32> to vector<8x8xbf16>
    %cst_15 = arith.constant dense<0.000000e+00> : vector<8x8xf32>
    %38 = tpu.matmul %35, %37, %cst_15 {dimension_numbers = #tpu.dot_dimension_numbers<[1], [0], [0], [1], [0, 0, 1, 1], [], []>} : vector<8x8xbf16>, vector<8x8xbf16>, vector<8x8xf32> -> vector<8x8xf32>
    %39 = vector.extract_strided_slice %13 {offsets = [0, 8], sizes = [8, 8], strides = [1, 1]} : vector<8x32xf32> to vector<8x8xf32>
    %cst_16 = arith.constant 0.353553385 : f32
    %40 = vector.broadcast %cst_16 : f32 to vector<8x8xf32>
    %41 = arith.mulf %39, %40 : vector<8x8xf32>
    %42 = arith.truncf %41 : vector<8x8xf32> to vector<8x8xbf16>
    %43 = vector.extract_strided_slice %14 {offsets = [0, 8], sizes = [8, 8], strides = [1, 1]} : vector<8x32xf32> to vector<8x8xf32>
    %44 = arith.truncf %43 : vector<8x8xf32> to vector<8x8xbf16>
    %cst_17 = arith.constant dense<0.000000e+00> : vector<8x8xf32>
    %45 = tpu.matmul %42, %44, %cst_17 {dimension_numbers = #tpu.dot_dimension_numbers<[1], [1], [0], [0], [0, 0, 1, 0], [], []>} : vector<8x8xbf16>, vector<8x8xbf16>, vector<8x8xf32> -> vector<8x8xf32>
    %cst_18 = arith.constant dense<0xFF800000> : vector<8xf32>
    %46 = vector.multi_reduction <maximumf>, %45, %cst_18 [1] : vector<8x8xf32> to vector<8xf32>
    %47 = vector.shape_cast %46 : vector<8xf32> to vector<8x1xf32>
    %48 = vector.broadcast %47 : vector<8x1xf32> to vector<8x8xf32>
    %49 = arith.subf %45, %48 : vector<8x8xf32>
    %50 = math.exp %49 : vector<8x8xf32>
    %cst_19 = arith.constant dense<0.000000e+00> : vector<8xf32>
    %51 = vector.multi_reduction <add>, %50, %cst_19 [1] : vector<8x8xf32> to vector<8xf32>
    %52 = vector.shape_cast %51 : vector<8xf32> to vector<8x1xf32>
    %53 = tpu.reciprocal %52 {approx = true} : vector<8x1xf32> -> vector<8x1xf32>
    %54 = vector.broadcast %53 : vector<8x1xf32> to vector<8x8xf32>
    %55 = arith.mulf %50, %54 : vector<8x8xf32>
    %56 = arith.truncf %55 : vector<8x8xf32> to vector<8x8xbf16>
    %57 = vector.extract_strided_slice %15 {offsets = [0, 8], sizes = [8, 8], strides = [1, 1]} : vector<8x32xf32> to vector<8x8xf32>
    %58 = arith.truncf %57 : vector<8x8xf32> to vector<8x8xbf16>
    %cst_20 = arith.constant dense<0.000000e+00> : vector<8x8xf32>
    %59 = tpu.matmul %56, %58, %cst_20 {dimension_numbers = #tpu.dot_dimension_numbers<[1], [0], [0], [1], [0, 0, 1, 1], [], []>} : vector<8x8xbf16>, vector<8x8xbf16>, vector<8x8xf32> -> vector<8x8xf32>
    %60 = vector.extract_strided_slice %13 {offsets = [0, 16], sizes = [8, 8], strides = [1, 1]} : vector<8x32xf32> to vector<8x8xf32>
    %cst_21 = arith.constant 0.353553385 : f32
    %61 = vector.broadcast %cst_21 : f32 to vector<8x8xf32>
    %62 = arith.mulf %60, %61 : vector<8x8xf32>
    %63 = arith.truncf %62 : vector<8x8xf32> to vector<8x8xbf16>
    %64 = vector.extract_strided_slice %14 {offsets = [0, 16], sizes = [8, 8], strides = [1, 1]} : vector<8x32xf32> to vector<8x8xf32>
    %65 = arith.truncf %64 : vector<8x8xf32> to vector<8x8xbf16>
    %cst_22 = arith.constant dense<0.000000e+00> : vector<8x8xf32>
    %66 = tpu.matmul %63, %65, %cst_22 {dimension_numbers = #tpu.dot_dimension_numbers<[1], [1], [0], [0], [0, 0, 1, 0], [], []>} : vector<8x8xbf16>, vector<8x8xbf16>, vector<8x8xf32> -> vector<8x8xf32>
    %cst_23 = arith.constant dense<0xFF800000> : vector<8xf32>
    %67 = vector.multi_reduction <maximumf>, %66, %cst_23 [1] : vector<8x8xf32> to vector<8xf32>
    %68 = vector.shape_cast %67 : vector<8xf32> to vector<8x1xf32>
    %69 = vector.broadcast %68 : vector<8x1xf32> to vector<8x8xf32>
    %70 = arith.subf %66, %69 : vector<8x8xf32>
    %71 = math.exp %70 : vector<8x8xf32>
    %cst_24 = arith.constant dense<0.000000e+00> : vector<8xf32>
    %72 = vector.multi_reduction <add>, %71, %cst_24 [1] : vector<8x8xf32> to vector<8xf32>
    %73 = vector.shape_cast %72 : vector<8xf32> to vector<8x1xf32>
    %74 = tpu.reciprocal %73 {approx = true} : vector<8x1xf32> -> vector<8x1xf32>
    %75 = vector.broadcast %74 : vector<8x1xf32> to vector<8x8xf32>
    %76 = arith.mulf %71, %75 : vector<8x8xf32>
    %77 = arith.truncf %76 : vector<8x8xf32> to vector<8x8xbf16>
    %78 = vector.extract_strided_slice %15 {offsets = [0, 16], sizes = [8, 8], strides = [1, 1]} : vector<8x32xf32> to vector<8x8xf32>
    %79 = arith.truncf %78 : vector<8x8xf32> to vector<8x8xbf16>
    %cst_25 = arith.constant dense<0.000000e+00> : vector<8x8xf32>
    %80 = tpu.matmul %77, %79, %cst_25 {dimension_numbers = #tpu.dot_dimension_numbers<[1], [0], [0], [1], [0, 0, 1, 1], [], []>} : vector<8x8xbf16>, vector<8x8xbf16>, vector<8x8xf32> -> vector<8x8xf32>
    %81 = vector.extract_strided_slice %13 {offsets = [0, 24], sizes = [8, 8], strides = [1, 1]} : vector<8x32xf32> to vector<8x8xf32>
    %cst_26 = arith.constant 0.353553385 : f32
    %82 = vector.broadcast %cst_26 : f32 to vector<8x8xf32>
    %83 = arith.mulf %81, %82 : vector<8x8xf32>
    %84 = arith.truncf %83 : vector<8x8xf32> to vector<8x8xbf16>
    %85 = vector.extract_strided_slice %14 {offsets = [0, 24], sizes = [8, 8], strides = [1, 1]} : vector<8x32xf32> to vector<8x8xf32>
    %86 = arith.truncf %85 : vector<8x8xf32> to vector<8x8xbf16>
    %cst_27 = arith.constant dense<0.000000e+00> : vector<8x8xf32>
    %87 = tpu.matmul %84, %86, %cst_27 {dimension_numbers = #tpu.dot_dimension_numbers<[1], [1], [0], [0], [0, 0, 1, 0], [], []>} : vector<8x8xbf16>, vector<8x8xbf16>, vector<8x8xf32> -> vector<8x8xf32>
    %cst_28 = arith.constant dense<0xFF800000> : vector<8xf32>
    %88 = vector.multi_reduction <maximumf>, %87, %cst_28 [1] : vector<8x8xf32> to vector<8xf32>
    %89 = vector.shape_cast %88 : vector<8xf32> to vector<8x1xf32>
    %90 = vector.broadcast %89 : vector<8x1xf32> to vector<8x8xf32>
    %91 = arith.subf %87, %90 : vector<8x8xf32>
    %92 = math.exp %91 : vector<8x8xf32>
    %cst_29 = arith.constant dense<0.000000e+00> : vector<8xf32>
    %93 = vector.multi_reduction <add>, %92, %cst_29 [1] : vector<8x8xf32> to vector<8xf32>
    %94 = vector.shape_cast %93 : vector<8xf32> to vector<8x1xf32>
    %95 = tpu.reciprocal %94 {approx = true} : vector<8x1xf32> -> vector<8x1xf32>
    %96 = vector.broadcast %95 : vector<8x1xf32> to vector<8x8xf32>
    %97 = arith.mulf %92, %96 : vector<8x8xf32>
    %98 = arith.truncf %97 : vector<8x8xf32> to vector<8x8xbf16>
    %99 = vector.extract_strided_slice %15 {offsets = [0, 24], sizes = [8, 8], strides = [1, 1]} : vector<8x32xf32> to vector<8x8xf32>
    %100 = arith.truncf %99 : vector<8x8xf32> to vector<8x8xbf16>
    %cst_30 = arith.constant dense<0.000000e+00> : vector<8x8xf32>
    %101 = tpu.matmul %98, %100, %cst_30 {dimension_numbers = #tpu.dot_dimension_numbers<[1], [0], [0], [1], [0, 0, 1, 1], [], []>} : vector<8x8xbf16>, vector<8x8xbf16>, vector<8x8xf32> -> vector<8x8xf32>
    %102 = tpu.concatenate %38, %59, %80, %101 in 1 : vector<8x8xf32>, vector<8x8xf32>, vector<8x8xf32>, vector<8x8xf32> -> vector<8x32xf32>
    %103 = arith.truncf %102 : vector<8x32xf32> to vector<8x32xbf16>
    %cst_31 = arith.constant dense<0.000000e+00> : vector<8x32xf32>
    %104 = tpu.matmul %103, %16, %cst_31 {dimension_numbers = #tpu.dot_dimension_numbers<[1], [0], [0], [1], [0, 0, 1, 1], [], []>} : vector<8x32xbf16>, vector<32x32xbf16>, vector<8x32xf32> -> vector<8x32xf32>
    %105 = vector.broadcast %17 : vector<1x32xf32> to vector<8x32xf32>
    %106 = arith.addf %104, %105 : vector<8x32xf32>
    %107 = arith.addf %0, %106 : vector<8x32xf32>
    %c0_32 = arith.constant 0 : index
    %c0_33 = arith.constant 0 : index
    %108 = vector.load %arg8[%c0_32, %c0_33] : memref<1x32xf32, #tpu.memory_space<vmem>>, vector<1x32xf32>
    %c0_34 = arith.constant 0 : index
    %c0_35 = arith.constant 0 : index
    %109 = vector.load %arg9[%c0_34, %c0_35] : memref<1x32xf32, #tpu.memory_space<vmem>>, vector<1x32xf32>
    %cst_36 = arith.constant dense<0.000000e+00> : vector<8xf32>
    %110 = vector.multi_reduction <add>, %107, %cst_36 [1] : vector<8x32xf32> to vector<8xf32>
    %111 = vector.shape_cast %110 : vector<8xf32> to vector<8x1xf32>
    %cst_37 = arith.constant 3.200000e+01 : f32
    %112 = vector.broadcast %cst_37 : f32 to vector<8x1xf32>
    %113 = arith.divf %111, %112 : vector<8x1xf32>
    %114 = vector.broadcast %113 : vector<8x1xf32> to vector<8x32xf32>
    %115 = arith.subf %107, %114 : vector<8x32xf32>
    %116 = arith.mulf %115, %115 : vector<8x32xf32>
    %cst_38 = arith.constant dense<0.000000e+00> : vector<8xf32>
    %117 = vector.multi_reduction <add>, %116, %cst_38 [1] : vector<8x32xf32> to vector<8xf32>
    %118 = vector.shape_cast %117 : vector<8xf32> to vector<8x1xf32>
    %cst_39 = arith.constant 3.200000e+01 : f32
    %119 = vector.broadcast %cst_39 : f32 to vector<8x1xf32>
    %120 = arith.divf %118, %119 : vector<8x1xf32>
    %121 = vector.broadcast %113 : vector<8x1xf32> to vector<8x32xf32>
    %122 = arith.subf %107, %121 : vector<8x32xf32>
    %cst_40 = arith.constant 9.99999974E-6 : f32
    %123 = vector.broadcast %cst_40 : f32 to vector<8x1xf32>
    %124 = arith.addf %120, %123 : vector<8x1xf32>
    %125 = math.rsqrt %124 : vector<8x1xf32>
    %126 = vector.broadcast %125 : vector<8x1xf32> to vector<8x32xf32>
    %127 = arith.mulf %122, %126 : vector<8x32xf32>
    %128 = vector.broadcast %108 : vector<1x32xf32> to vector<8x32xf32>
    %129 = arith.mulf %127, %128 : vector<8x32xf32>
    %130 = vector.broadcast %109 : vector<1x32xf32> to vector<8x32xf32>
    %131 = arith.addf %129, %130 : vector<8x32xf32>
    %132 = arith.truncf %131 : vector<8x32xf32> to vector<8x32xbf16>
    %c0_41 = arith.constant 0 : index
    %c0_42 = arith.constant 0 : index
    %133 = vector.load %arg10[%c0_41, %c0_42] : memref<32x32xbf16, #tpu.memory_space<vmem>>, vector<32x32xbf16>
    %cst_43 = arith.constant dense<0.000000e+00> : vector<8x32xf32>
    %134 = tpu.matmul %132, %133, %cst_43 {dimension_numbers = #tpu.dot_dimension_numbers<[1], [0], [0], [1], [0, 0, 1, 1], [], []>} : vector<8x32xbf16>, vector<32x32xbf16>, vector<8x32xf32> -> vector<8x32xf32>
    %c0_44 = arith.constant 0 : index
    %c0_45 = arith.constant 0 : index
    %135 = vector.load %arg11[%c0_44, %c0_45] : memref<1x32xf32, #tpu.memory_space<vmem>>, vector<1x32xf32>
    %136 = vector.broadcast %135 : vector<1x32xf32> to vector<8x32xf32>
    %137 = arith.addf %134, %136 : vector<8x32xf32>
    %138 = arith.truncf %1 : vector<8x32xf32> to vector<8x32xbf16>
    %c0_46 = arith.constant 0 : index
    %c0_47 = arith.constant 0 : index
    %139 = vector.load %arg12[%c0_46, %c0_47] : memref<32x64xbf16, #tpu.memory_space<vmem>>, vector<32x64xbf16>
    %cst_48 = arith.constant dense<0.000000e+00> : vector<8x64xf32>
    %140 = tpu.matmul %138, %139, %cst_48 {dimension_numbers = #tpu.dot_dimension_numbers<[1], [0], [0], [1], [0, 0, 1, 1], [], []>} : vector<8x32xbf16>, vector<32x64xbf16>, vector<8x64xf32> -> vector<8x64xf32>
    %c0_49 = arith.constant 0 : index
    %c0_50 = arith.constant 0 : index
    %141 = vector.load %arg13[%c0_49, %c0_50] : memref<1x64xf32, #tpu.memory_space<vmem>>, vector<1x64xf32>
    %142 = vector.broadcast %141 : vector<1x64xf32> to vector<8x64xf32>
    %143 = arith.addf %140, %142 : vector<8x64xf32>
    %144 = vector.extract_strided_slice %143 {offsets = [0, 0], sizes = [8, 32], strides = [1, 1]} : vector<8x64xf32> to vector<8x32xf32>
    %145 = vector.extract_strided_slice %143 {offsets = [0, 32], sizes = [8, 32], strides = [1, 1]} : vector<8x64xf32> to vector<8x32xf32>
    %c0_51 = arith.constant 0 : index
    %c0_52 = arith.constant 0 : index
    %146 = vector.load %arg14[%c0_51, %c0_52] : memref<32x32xbf16, #tpu.memory_space<vmem>>, vector<32x32xbf16>
    %c0_53 = arith.constant 0 : index
    %c0_54 = arith.constant 0 : index
    %147 = vector.load %arg15[%c0_53, %c0_54] : memref<1x32xf32, #tpu.memory_space<vmem>>, vector<1x32xf32>
    %148 = vector.extract_strided_slice %137 {offsets = [0, 0], sizes = [8, 8], strides = [1, 1]} : vector<8x32xf32> to vector<8x8xf32>
    %cst_55 = arith.constant 0.353553385 : f32
    %149 = vector.broadcast %cst_55 : f32 to vector<8x8xf32>
    %150 = arith.mulf %148, %149 : vector<8x8xf32>
    %151 = arith.truncf %150 : vector<8x8xf32> to vector<8x8xbf16>
    %152 = vector.extract_strided_slice %144 {offsets = [0, 0], sizes = [8, 8], strides = [1, 1]} : vector<8x32xf32> to vector<8x8xf32>
    %153 = arith.truncf %152 : vector<8x8xf32> to vector<8x8xbf16>
    %cst_56 = arith.constant dense<0.000000e+00> : vector<8x8xf32>
    %154 = tpu.matmul %151, %153, %cst_56 {dimension_numbers = #tpu.dot_dimension_numbers<[1], [1], [0], [0], [0, 0, 1, 0], [], []>} : vector<8x8xbf16>, vector<8x8xbf16>, vector<8x8xf32> -> vector<8x8xf32>
    %cst_57 = arith.constant -1.000000e+06 : f32
    %155 = vector.broadcast %cst_57 : f32 to vector<8x8xf32>
    %156 = arith.select %6, %154, %155 : vector<8x8xi1>, vector<8x8xf32>
    %cst_58 = arith.constant dense<0xFF800000> : vector<8xf32>
    %157 = vector.multi_reduction <maximumf>, %156, %cst_58 [1] : vector<8x8xf32> to vector<8xf32>
    %158 = vector.shape_cast %157 : vector<8xf32> to vector<8x1xf32>
    %159 = vector.broadcast %158 : vector<8x1xf32> to vector<8x8xf32>
    %160 = arith.subf %156, %159 : vector<8x8xf32>
    %161 = math.exp %160 : vector<8x8xf32>
    %cst_59 = arith.constant dense<0.000000e+00> : vector<8xf32>
    %162 = vector.multi_reduction <add>, %161, %cst_59 [1] : vector<8x8xf32> to vector<8xf32>
    %163 = vector.shape_cast %162 : vector<8xf32> to vector<8x1xf32>
    %164 = tpu.reciprocal %163 {approx = true} : vector<8x1xf32> -> vector<8x1xf32>
    %165 = vector.broadcast %164 : vector<8x1xf32> to vector<8x8xf32>
    %166 = arith.mulf %161, %165 : vector<8x8xf32>
    %167 = arith.truncf %166 : vector<8x8xf32> to vector<8x8xbf16>
    %168 = vector.extract_strided_slice %145 {offsets = [0, 0], sizes = [8, 8], strides = [1, 1]} : vector<8x32xf32> to vector<8x8xf32>
    %169 = arith.truncf %168 : vector<8x8xf32> to vector<8x8xbf16>
    %cst_60 = arith.constant dense<0.000000e+00> : vector<8x8xf32>
    %170 = tpu.matmul %167, %169, %cst_60 {dimension_numbers = #tpu.dot_dimension_numbers<[1], [0], [0], [1], [0, 0, 1, 1], [], []>} : vector<8x8xbf16>, vector<8x8xbf16>, vector<8x8xf32> -> vector<8x8xf32>
    %171 = vector.extract_strided_slice %137 {offsets = [0, 8], sizes = [8, 8], strides = [1, 1]} : vector<8x32xf32> to vector<8x8xf32>
    %cst_61 = arith.constant 0.353553385 : f32
    %172 = vector.broadcast %cst_61 : f32 to vector<8x8xf32>
    %173 = arith.mulf %171, %172 : vector<8x8xf32>
    %174 = arith.truncf %173 : vector<8x8xf32> to vector<8x8xbf16>
    %175 = vector.extract_strided_slice %144 {offsets = [0, 8], sizes = [8, 8], strides = [1, 1]} : vector<8x32xf32> to vector<8x8xf32>
    %176 = arith.truncf %175 : vector<8x8xf32> to vector<8x8xbf16>
    %cst_62 = arith.constant dense<0.000000e+00> : vector<8x8xf32>
    %177 = tpu.matmul %174, %176, %cst_62 {dimension_numbers = #tpu.dot_dimension_numbers<[1], [1], [0], [0], [0, 0, 1, 0], [], []>} : vector<8x8xbf16>, vector<8x8xbf16>, vector<8x8xf32> -> vector<8x8xf32>
    %cst_63 = arith.constant -1.000000e+06 : f32
    %178 = vector.broadcast %cst_63 : f32 to vector<8x8xf32>
    %179 = arith.select %6, %177, %178 : vector<8x8xi1>, vector<8x8xf32>
    %cst_64 = arith.constant dense<0xFF800000> : vector<8xf32>
    %180 = vector.multi_reduction <maximumf>, %179, %cst_64 [1] : vector<8x8xf32> to vector<8xf32>
    %181 = vector.shape_cast %180 : vector<8xf32> to vector<8x1xf32>
    %182 = vector.broadcast %181 : vector<8x1xf32> to vector<8x8xf32>
    %183 = arith.subf %179, %182 : vector<8x8xf32>
    %184 = math.exp %183 : vector<8x8xf32>
    %cst_65 = arith.constant dense<0.000000e+00> : vector<8xf32>
    %185 = vector.multi_reduction <add>, %184, %cst_65 [1] : vector<8x8xf32> to vector<8xf32>
    %186 = vector.shape_cast %185 : vector<8xf32> to vector<8x1xf32>
    %187 = tpu.reciprocal %186 {approx = true} : vector<8x1xf32> -> vector<8x1xf32>
    %188 = vector.broadcast %187 : vector<8x1xf32> to vector<8x8xf32>
    %189 = arith.mulf %184, %188 : vector<8x8xf32>
    %190 = arith.truncf %189 : vector<8x8xf32> to vector<8x8xbf16>
    %191 = vector.extract_strided_slice %145 {offsets = [0, 8], sizes = [8, 8], strides = [1, 1]} : vector<8x32xf32> to vector<8x8xf32>
    %192 = arith.truncf %191 : vector<8x8xf32> to vector<8x8xbf16>
    %cst_66 = arith.constant dense<0.000000e+00> : vector<8x8xf32>
    %193 = tpu.matmul %190, %192, %cst_66 {dimension_numbers = #tpu.dot_dimension_numbers<[1], [0], [0], [1], [0, 0, 1, 1], [], []>} : vector<8x8xbf16>, vector<8x8xbf16>, vector<8x8xf32> -> vector<8x8xf32>
    %194 = vector.extract_strided_slice %137 {offsets = [0, 16], sizes = [8, 8], strides = [1, 1]} : vector<8x32xf32> to vector<8x8xf32>
    %cst_67 = arith.constant 0.353553385 : f32
    %195 = vector.broadcast %cst_67 : f32 to vector<8x8xf32>
    %196 = arith.mulf %194, %195 : vector<8x8xf32>
    %197 = arith.truncf %196 : vector<8x8xf32> to vector<8x8xbf16>
    %198 = vector.extract_strided_slice %144 {offsets = [0, 16], sizes = [8, 8], strides = [1, 1]} : vector<8x32xf32> to vector<8x8xf32>
    %199 = arith.truncf %198 : vector<8x8xf32> to vector<8x8xbf16>
    %cst_68 = arith.constant dense<0.000000e+00> : vector<8x8xf32>
    %200 = tpu.matmul %197, %199, %cst_68 {dimension_numbers = #tpu.dot_dimension_numbers<[1], [1], [0], [0], [0, 0, 1, 0], [], []>} : vector<8x8xbf16>, vector<8x8xbf16>, vector<8x8xf32> -> vector<8x8xf32>
    %cst_69 = arith.constant -1.000000e+06 : f32
    %201 = vector.broadcast %cst_69 : f32 to vector<8x8xf32>
    %202 = arith.select %6, %200, %201 : vector<8x8xi1>, vector<8x8xf32>
    %cst_70 = arith.constant dense<0xFF800000> : vector<8xf32>
    %203 = vector.multi_reduction <maximumf>, %202, %cst_70 [1] : vector<8x8xf32> to vector<8xf32>
    %204 = vector.shape_cast %203 : vector<8xf32> to vector<8x1xf32>
    %205 = vector.broadcast %204 : vector<8x1xf32> to vector<8x8xf32>
    %206 = arith.subf %202, %205 : vector<8x8xf32>
    %207 = math.exp %206 : vector<8x8xf32>
    %cst_71 = arith.constant dense<0.000000e+00> : vector<8xf32>
    %208 = vector.multi_reduction <add>, %207, %cst_71 [1] : vector<8x8xf32> to vector<8xf32>
    %209 = vector.shape_cast %208 : vector<8xf32> to vector<8x1xf32>
    %210 = tpu.reciprocal %209 {approx = true} : vector<8x1xf32> -> vector<8x1xf32>
    %211 = vector.broadcast %210 : vector<8x1xf32> to vector<8x8xf32>
    %212 = arith.mulf %207, %211 : vector<8x8xf32>
    %213 = arith.truncf %212 : vector<8x8xf32> to vector<8x8xbf16>
    %214 = vector.extract_strided_slice %145 {offsets = [0, 16], sizes = [8, 8], strides = [1, 1]} : vector<8x32xf32> to vector<8x8xf32>
    %215 = arith.truncf %214 : vector<8x8xf32> to vector<8x8xbf16>
    %cst_72 = arith.constant dense<0.000000e+00> : vector<8x8xf32>
    %216 = tpu.matmul %213, %215, %cst_72 {dimension_numbers = #tpu.dot_dimension_numbers<[1], [0], [0], [1], [0, 0, 1, 1], [], []>} : vector<8x8xbf16>, vector<8x8xbf16>, vector<8x8xf32> -> vector<8x8xf32>
    %217 = vector.extract_strided_slice %137 {offsets = [0, 24], sizes = [8, 8], strides = [1, 1]} : vector<8x32xf32> to vector<8x8xf32>
    %cst_73 = arith.constant 0.353553385 : f32
    %218 = vector.broadcast %cst_73 : f32 to vector<8x8xf32>
    %219 = arith.mulf %217, %218 : vector<8x8xf32>
    %220 = arith.truncf %219 : vector<8x8xf32> to vector<8x8xbf16>
    %221 = vector.extract_strided_slice %144 {offsets = [0, 24], sizes = [8, 8], strides = [1, 1]} : vector<8x32xf32> to vector<8x8xf32>
    %222 = arith.truncf %221 : vector<8x8xf32> to vector<8x8xbf16>
    %cst_74 = arith.constant dense<0.000000e+00> : vector<8x8xf32>
    %223 = tpu.matmul %220, %222, %cst_74 {dimension_numbers = #tpu.dot_dimension_numbers<[1], [1], [0], [0], [0, 0, 1, 0], [], []>} : vector<8x8xbf16>, vector<8x8xbf16>, vector<8x8xf32> -> vector<8x8xf32>
    %cst_75 = arith.constant -1.000000e+06 : f32
    %224 = vector.broadcast %cst_75 : f32 to vector<8x8xf32>
    %225 = arith.select %6, %223, %224 : vector<8x8xi1>, vector<8x8xf32>
    %cst_76 = arith.constant dense<0xFF800000> : vector<8xf32>
    %226 = vector.multi_reduction <maximumf>, %225, %cst_76 [1] : vector<8x8xf32> to vector<8xf32>
    %227 = vector.shape_cast %226 : vector<8xf32> to vector<8x1xf32>
    %228 = vector.broadcast %227 : vector<8x1xf32> to vector<8x8xf32>
    %229 = arith.subf %225, %228 : vector<8x8xf32>
    %230 = math.exp %229 : vector<8x8xf32>
    %cst_77 = arith.constant dense<0.000000e+00> : vector<8xf32>
    %231 = vector.multi_reduction <add>, %230, %cst_77 [1] : vector<8x8xf32> to vector<8xf32>
    %232 = vector.shape_cast %231 : vector<8xf32> to vector<8x1xf32>
    %233 = tpu.reciprocal %232 {approx = true} : vector<8x1xf32> -> vector<8x1xf32>
    %234 = vector.broadcast %233 : vector<8x1xf32> to vector<8x8xf32>
    %235 = arith.mulf %230, %234 : vector<8x8xf32>
    %236 = arith.truncf %235 : vector<8x8xf32> to vector<8x8xbf16>
    %237 = vector.extract_strided_slice %145 {offsets = [0, 24], sizes = [8, 8], strides = [1, 1]} : vector<8x32xf32> to vector<8x8xf32>
    %238 = arith.truncf %237 : vector<8x8xf32> to vector<8x8xbf16>
    %cst_78 = arith.constant dense<0.000000e+00> : vector<8x8xf32>
    %239 = tpu.matmul %236, %238, %cst_78 {dimension_numbers = #tpu.dot_dimension_numbers<[1], [0], [0], [1], [0, 0, 1, 1], [], []>} : vector<8x8xbf16>, vector<8x8xbf16>, vector<8x8xf32> -> vector<8x8xf32>
    %240 = tpu.concatenate %170, %193, %216, %239 in 1 : vector<8x8xf32>, vector<8x8xf32>, vector<8x8xf32>, vector<8x8xf32> -> vector<8x32xf32>
    %241 = arith.truncf %240 : vector<8x32xf32> to vector<8x32xbf16>
    %cst_79 = arith.constant dense<0.000000e+00> : vector<8x32xf32>
    %242 = tpu.matmul %241, %146, %cst_79 {dimension_numbers = #tpu.dot_dimension_numbers<[1], [0], [0], [1], [0, 0, 1, 1], [], []>} : vector<8x32xbf16>, vector<32x32xbf16>, vector<8x32xf32> -> vector<8x32xf32>
    %243 = vector.broadcast %147 : vector<1x32xf32> to vector<8x32xf32>
    %244 = arith.addf %242, %243 : vector<8x32xf32>
    %245 = arith.addf %131, %244 : vector<8x32xf32>
    %c0_80 = arith.constant 0 : index
    %c0_81 = arith.constant 0 : index
    %246 = vector.load %arg16[%c0_80, %c0_81] : memref<1x32xf32, #tpu.memory_space<vmem>>, vector<1x32xf32>
    %c0_82 = arith.constant 0 : index
    %c0_83 = arith.constant 0 : index
    %247 = vector.load %arg17[%c0_82, %c0_83] : memref<1x32xf32, #tpu.memory_space<vmem>>, vector<1x32xf32>
    %cst_84 = arith.constant dense<0.000000e+00> : vector<8xf32>
    %248 = vector.multi_reduction <add>, %245, %cst_84 [1] : vector<8x32xf32> to vector<8xf32>
    %249 = vector.shape_cast %248 : vector<8xf32> to vector<8x1xf32>
    %cst_85 = arith.constant 3.200000e+01 : f32
    %250 = vector.broadcast %cst_85 : f32 to vector<8x1xf32>
    %251 = arith.divf %249, %250 : vector<8x1xf32>
    %252 = vector.broadcast %251 : vector<8x1xf32> to vector<8x32xf32>
    %253 = arith.subf %245, %252 : vector<8x32xf32>
    %254 = arith.mulf %253, %253 : vector<8x32xf32>
    %cst_86 = arith.constant dense<0.000000e+00> : vector<8xf32>
    %255 = vector.multi_reduction <add>, %254, %cst_86 [1] : vector<8x32xf32> to vector<8xf32>
    %256 = vector.shape_cast %255 : vector<8xf32> to vector<8x1xf32>
    %cst_87 = arith.constant 3.200000e+01 : f32
    %257 = vector.broadcast %cst_87 : f32 to vector<8x1xf32>
    %258 = arith.divf %256, %257 : vector<8x1xf32>
    %259 = vector.broadcast %251 : vector<8x1xf32> to vector<8x32xf32>
    %260 = arith.subf %245, %259 : vector<8x32xf32>
    %cst_88 = arith.constant 9.99999974E-6 : f32
    %261 = vector.broadcast %cst_88 : f32 to vector<8x1xf32>
    %262 = arith.addf %258, %261 : vector<8x1xf32>
    %263 = math.rsqrt %262 : vector<8x1xf32>
    %264 = vector.broadcast %263 : vector<8x1xf32> to vector<8x32xf32>
    %265 = arith.mulf %260, %264 : vector<8x32xf32>
    %266 = vector.broadcast %246 : vector<1x32xf32> to vector<8x32xf32>
    %267 = arith.mulf %265, %266 : vector<8x32xf32>
    %268 = vector.broadcast %247 : vector<1x32xf32> to vector<8x32xf32>
    %269 = arith.addf %267, %268 : vector<8x32xf32>
    %270 = arith.truncf %269 : vector<8x32xf32> to vector<8x32xbf16>
    %c0_89 = arith.constant 0 : index
    %c0_90 = arith.constant 0 : index
    %271 = vector.load %arg18[%c0_89, %c0_90] : memref<32x64xbf16, #tpu.memory_space<vmem>>, vector<32x64xbf16>
    %cst_91 = arith.constant dense<0.000000e+00> : vector<8x64xf32>
    %272 = tpu.matmul %270, %271, %cst_91 {dimension_numbers = #tpu.dot_dimension_numbers<[1], [0], [0], [1], [0, 0, 1, 1], [], []>} : vector<8x32xbf16>, vector<32x64xbf16>, vector<8x64xf32> -> vector<8x64xf32>
    %c0_92 = arith.constant 0 : index
    %c0_93 = arith.constant 0 : index
    %273 = vector.load %arg19[%c0_92, %c0_93] : memref<1x64xf32, #tpu.memory_space<vmem>>, vector<1x64xf32>
    %274 = vector.broadcast %273 : vector<1x64xf32> to vector<8x64xf32>
    %275 = arith.addf %272, %274 : vector<8x64xf32>
    %cst_94 = arith.constant 0.000000e+00 : f32
    %276 = vector.broadcast %cst_94 : f32 to vector<8x64xf32>
    %277 = arith.maximumf %275, %276 : vector<8x64xf32>
    %278 = arith.truncf %277 : vector<8x64xf32> to vector<8x64xbf16>
    %c0_95 = arith.constant 0 : index
    %c0_96 = arith.constant 0 : index
    %279 = vector.load %arg20[%c0_95, %c0_96] : memref<64x32xbf16, #tpu.memory_space<vmem>>, vector<64x32xbf16>
    %cst_97 = arith.constant dense<0.000000e+00> : vector<8x32xf32>
    %280 = tpu.matmul %278, %279, %cst_97 {dimension_numbers = #tpu.dot_dimension_numbers<[1], [0], [0], [1], [0, 0, 1, 1], [], []>} : vector<8x64xbf16>, vector<64x32xbf16>, vector<8x32xf32> -> vector<8x32xf32>
    %c0_98 = arith.constant 0 : index
    %c0_99 = arith.constant 0 : index
    %281 = vector.load %arg21[%c0_98, %c0_99] : memref<1x32xf32, #tpu.memory_space<vmem>>, vector<1x32xf32>
    %282 = vector.broadcast %281 : vector<1x32xf32> to vector<8x32xf32>
    %283 = arith.addf %280, %282 : vector<8x32xf32>
    %284 = arith.addf %269, %283 : vector<8x32xf32>
    %c0_100 = arith.constant 0 : index
    %c0_101 = arith.constant 0 : index
    %285 = vector.load %arg22[%c0_100, %c0_101] : memref<1x32xf32, #tpu.memory_space<vmem>>, vector<1x32xf32>
    %c0_102 = arith.constant 0 : index
    %c0_103 = arith.constant 0 : index
    %286 = vector.load %arg23[%c0_102, %c0_103] : memref<1x32xf32, #tpu.memory_space<vmem>>, vector<1x32xf32>
    %cst_104 = arith.constant dense<0.000000e+00> : vector<8xf32>
    %287 = vector.multi_reduction <add>, %284, %cst_104 [1] : vector<8x32xf32> to vector<8xf32>
    %288 = vector.shape_cast %287 : vector<8xf32> to vector<8x1xf32>
    %cst_105 = arith.constant 3.200000e+01 : f32
    %289 = vector.broadcast %cst_105 : f32 to vector<8x1xf32>
    %290 = arith.divf %288, %289 : vector<8x1xf32>
    %291 = vector.broadcast %290 : vector<8x1xf32> to vector<8x32xf32>
    %292 = arith.subf %284, %291 : vector<8x32xf32>
    %293 = arith.mulf %292, %292 : vector<8x32xf32>
    %cst_106 = arith.constant dense<0.000000e+00> : vector<8xf32>
    %294 = vector.multi_reduction <add>, %293, %cst_106 [1] : vector<8x32xf32> to vector<8xf32>
    %295 = vector.shape_cast %294 : vector<8xf32> to vector<8x1xf32>
    %cst_107 = arith.constant 3.200000e+01 : f32
    %296 = vector.broadcast %cst_107 : f32 to vector<8x1xf32>
    %297 = arith.divf %295, %296 : vector<8x1xf32>
    %298 = vector.broadcast %290 : vector<8x1xf32> to vector<8x32xf32>
    %299 = arith.subf %284, %298 : vector<8x32xf32>
    %cst_108 = arith.constant 9.99999974E-6 : f32
    %300 = vector.broadcast %cst_108 : f32 to vector<8x1xf32>
    %301 = arith.addf %297, %300 : vector<8x1xf32>
    %302 = math.rsqrt %301 : vector<8x1xf32>
    %303 = vector.broadcast %302 : vector<8x1xf32> to vector<8x32xf32>
    %304 = arith.mulf %299, %303 : vector<8x32xf32>
    %305 = vector.broadcast %285 : vector<1x32xf32> to vector<8x32xf32>
    %306 = arith.mulf %304, %305 : vector<8x32xf32>
    %307 = vector.broadcast %286 : vector<1x32xf32> to vector<8x32xf32>
    %308 = arith.addf %306, %307 : vector<8x32xf32>
    %c0_109 = arith.constant 0 : index
    %c0_110 = arith.constant 0 : index
    %309 = vector.load %arg24[%c0_109, %c0_110] : memref<8x32xf32, #tpu.memory_space<vmem>>, vector<8x32xf32>
    tpu.vector_store %arg24[%c0_109, %c0_110], %308 {strides = array<i32>} : memref<8x32xf32, #tpu.memory_space<vmem>>, vector<8x32xf32>,
    return
  }
  func.func @transform_0(%arg0: i32, %arg1: memref<2xi32, #tpu.memory_space<smem>>) -> (i32, i32) {
    %c0_i32 = arith.constant 0 : i32
    %c0_i32_0 = arith.constant 0 : i32
    return %arg0, %c0_i32 : i32, i32
  }
  func.func @transform_1(%arg0: i32, %arg1: memref<2xi32, #tpu.memory_space<smem>>) -> (i32, i32) {
    %c0_i32 = arith.constant 0 : i32
    %c0_i32_0 = arith.constant 0 : i32
    return %arg0, %c0_i32 : i32, i32
  }
  func.func @transform_2(%arg0: i32, %arg1: memref<2xi32, #tpu.memory_space<smem>>) -> (i32, i32) {
    %c0_i32 = arith.constant 0 : i32
    %c0_i32_0 = arith.constant 0 : i32
    %c0_i32_1 = arith.constant 0 : i32
    return %c0_i32, %c0_i32_0 : i32, i32
  }
  func.func @transform_3(%arg0: i32, %arg1: memref<2xi32, #tpu.memory_space<smem>>) -> (i32, i32) {
    %c0_i32 = arith.constant 0 : i32
    %c0_i32_0 = arith.constant 0 : i32
    %c0_i32_1 = arith.constant 0 : i32
    return %c0_i32, %c0_i32_0 : i32, i32
  }
  func.func @transform_4(%arg0: i32, %arg1: memref<2xi32, #tpu.memory_space<smem>>) -> (i32, i32) {
    %c0_i32 = arith.constant 0 : i32
    %c0_i32_0 = arith.constant 0 : i32
    %c0_i32_1 = arith.constant 0 : i32
    return %c0_i32, %c0_i32_0 : i32, i32
  }
  func.func @transform_5(%arg0: i32, %arg1: memref<2xi32, #tpu.memory_space<smem>>) -> (i32, i32) {
    %c0_i32 = arith.constant 0 : i32
    %c0_i32_0 = arith.constant 0 : i32
    %c0_i32_1 = arith.constant 0 : i32
    return %c0_i32, %c0_i32_0 : i32, i32
  }
  func.func @transform_6(%arg0: i32, %arg1: memref<2xi32, #tpu.memory_space<smem>>) -> (i32, i32) {
    %c0_i32 = arith.constant 0 : i32
    %c0_i32_0 = arith.constant 0 : i32
    %c0_i32_1 = arith.constant 0 : i32
    return %c0_i32, %c0_i32_0 : i32, i32
  }
  func.func @transform_7(%arg0: i32, %arg1: memref<2xi32, #tpu.memory_space<smem>>) -> (i32, i32) {
    %c0_i32 = arith.constant 0 : i32
    %c0_i32_0 = arith.constant 0 : i32
    %c0_i32_1 = arith.constant 0 : i32
    return %c0_i32, %c0_i32_0 : i32, i32
  }
  func.func @transform_8(%arg0: i32, %arg1: memref<2xi32, #tpu.memory_space<smem>>) -> (i32, i32) {
    %c0_i32 = arith.constant 0 : i32
    %c0_i32_0 = arith.constant 0 : i32
    %c0_i32_1 = arith.constant 0 : i32
    return %c0_i32, %c0_i32_0 : i32, i32
  }
  func.func @transform_9(%arg0: i32, %arg1: memref<2xi32, #tpu.memory_space<smem>>) -> (i32, i32) {
    %c0_i32 = arith.constant 0 : i32
    %c0_i32_0 = arith.constant 0 : i32
    %c0_i32_1 = arith.constant 0 : i32
    return %c0_i32, %c0_i32_0 : i32, i32
  }
  func.func @transform_10(%arg0: i32, %arg1: memref<2xi32, #tpu.memory_space<smem>>) -> (i32, i32) {
    %c0_i32 = arith.constant 0 : i32
    %c0_i32_0 = arith.constant 0 : i32
    %c0_i32_1 = arith.constant 0 : i32
    return %c0_i32, %c0_i32_0 : i32, i32
  }
  func.func @transform_11(%arg0: i32, %arg1: memref<2xi32, #tpu.memory_space<smem>>) -> (i32, i32) {
    %c0_i32 = arith.constant 0 : i32
    %c0_i32_0 = arith.constant 0 : i32
    %c0_i32_1 = arith.constant 0 : i32
    return %c0_i32, %c0_i32_0 : i32, i32
  }
  func.func @transform_12(%arg0: i32, %arg1: memref<2xi32, #tpu.memory_space<smem>>) -> (i32, i32) {
    %c0_i32 = arith.constant 0 : i32
    %c0_i32_0 = arith.constant 0 : i32
    %c0_i32_1 = arith.constant 0 : i32
    return %c0_i32, %c0_i32_0 : i32, i32
  }
  func.func @transform_13(%arg0: i32, %arg1: memref<2xi32, #tpu.memory_space<smem>>) -> (i32, i32) {
    %c0_i32 = arith.constant 0 : i32
    %c0_i32_0 = arith.constant 0 : i32
    %c0_i32_1 = arith.constant 0 : i32
    return %c0_i32, %c0_i32_0 : i32, i32
  }
  func.func @transform_14(%arg0: i32, %arg1: memref<2xi32, #tpu.memory_space<smem>>) -> (i32, i32) {
    %c0_i32 = arith.constant 0 : i32
    %c0_i32_0 = arith.constant 0 : i32
    %c0_i32_1 = arith.constant 0 : i32
    return %c0_i32, %c0_i32_0 : i32, i32
  }
  func.func @transform_15(%arg0: i32, %arg1: memref<2xi32, #tpu.memory_space<smem>>) -> (i32, i32) {
    %c0_i32 = arith.constant 0 : i32
    %c0_i32_0 = arith.constant 0 : i32
    %c0_i32_1 = arith.constant 0 : i32
    return %c0_i32, %c0_i32_0 : i32, i32
  }
  func.func @transform_16(%arg0: i32, %arg1: memref<2xi32, #tpu.memory_space<smem>>) -> (i32, i32) {
    %c0_i32 = arith.constant 0 : i32
    %c0_i32_0 = arith.constant 0 : i32
    %c0_i32_1 = arith.constant 0 : i32
    return %c0_i32, %c0_i32_0 : i32, i32
  }
  func.func @transform_17(%arg0: i32, %arg1: memref<2xi32, #tpu.memory_space<smem>>) -> (i32, i32) {
    %c0_i32 = arith.constant 0 : i32
    %c0_i32_0 = arith.constant 0 : i32
    %c0_i32_1 = arith.constant 0 : i32
    return %c0_i32, %c0_i32_0 : i32, i32
  }
  func.func @transform_18(%arg0: i32, %arg1: memref<2xi32, #tpu.memory_space<smem>>) -> (i32, i32) {
    %c0_i32 = arith.constant 0 : i32
    %c0_i32_0 = arith.constant 0 : i32
    %c0_i32_1 = arith.constant 0 : i32
    return %c0_i32, %c0_i32_0 : i32, i32
  }
  func.func @transform_19(%arg0: i32, %arg1: memref<2xi32, #tpu.memory_space<smem>>) -> (i32, i32) {
    %c0_i32 = arith.constant 0 : i32
    %c0_i32_0 = arith.constant 0 : i32
    %c0_i32_1 = arith.constant 0 : i32
    return %c0_i32, %c0_i32_0 : i32, i32
  }
  func.func @transform_20(%arg0: i32, %arg1: memref<2xi32, #tpu.memory_space<smem>>) -> (i32, i32) {
    %c0_i32 = arith.constant 0 : i32
    %c0_i32_0 = arith.constant 0 : i32
    %c0_i32_1 = arith.constant 0 : i32
    return %c0_i32, %c0_i32_0 : i32, i32
  }
  func.func @transform_21(%arg0: i32, %arg1: memref<2xi32, #tpu.memory_space<smem>>) -> (i32, i32) {
    %c0_i32 = arith.constant 0 : i32
    %c0_i32_0 = arith.constant 0 : i32
    %c0_i32_1 = arith.constant 0 : i32
    return %c0_i32, %c0_i32_0 : i32, i32
  }
  func.func @transform_22(%arg0: i32, %arg1: memref<2xi32, #tpu.memory_space<smem>>) -> (i32, i32) {
    %c0_i32 = arith.constant 0 : i32
    %c0_i32_0 = arith.constant 0 : i32
    return %arg0, %c0_i32 : i32, i32
  }
}

</mosaic_0001>

<llo_original>
// kernel: _lambda_.9
$region0: #{_lambda_.9}
  #allocation0 [shape = 'u32[]', space=smem, size = 0x4, offset = 0x4, fixed_abs, tag = 'smem constant byte address 0x4 - core index']
  #allocation1 [shape = 'u32[72,128]{1,0:T(1,128)}', space=vmem, size = 0x9000, scoped, tag = 'internal scratch']
  %s0 = inlined_call_operand.vmem [shape: f32[16,32], index: 0, kind: input, shape index: {}]
  %s1 = inlined_call_operand.vmem [shape: bf16[32,128], index: 1, kind: input, shape index: {}]
  %s2 = inlined_call_operand.hbm [shape: f32[1,128], index: 2, kind: input, shape index: {}]
  %s3 = inlined_call_operand.vmem [shape: f32[16,128], index: 3, kind: output, shape index: {}]
  %s4 = sld [smem:[#allocation0]]
  $region26: #{_lambda_.9} parent=0
    _
  %s6 = ssub.s32 1, %s4
  %s7 = scalar_select 0, %s6, %s4
  $region1: #{_lambda_.9} parent=0
    #allocation2 [shape = 'u8[512]{0}', space=vmem, size = 0x400, scoped, tag = 'input window, operand 2, single buffered']
    #allocation3 [shape = 's32[1]{0}', space=sflag, size = 0x4, scoped, tag = 'scoped memory for _lambda_.9']
    %8 = vsyncpa [#allocation3], 0
    // Predicated region
    $region2: #{_lambda_.9} parent=1 // pred_check
      _
    $region3: #{_lambda_.9} parent=1 // pred_check_branch
      %10 = sbr.rel (0) target = $region5
    $region4: #{_lambda_.9} parent=1 // pred_region
      _
    $region5: #{_lambda_.9} parent=1 // pred_fallthru
      _
    // Predicated region
    $region6: #{_lambda_.9} parent=1 // pred_check
      _
    $region7: #{_lambda_.9} parent=1 // pred_check_branch
      %12 = sbr.rel (0) target = $region9
    $region8: #{_lambda_.9} parent=1 // pred_region
      _
    $region9: #{_lambda_.9} parent=1 // pred_fallthru
      _
    // Predicated region
    $region10: #{_lambda_.9} parent=1 // pred_check
      _
    $region11: #{_lambda_.9} parent=1 // pred_check_branch
      %14 = sbr.rel (0) target = $region13
    $region12: #{_lambda_.9} parent=1 // pred_region
      %16 = vsyncadd [#allocation3], 0
      %s18 = sshll.u32 %s2, 4
      %s19 = int_to_ptr.hbm [resolvable:$true] %s18
      %s20 = sshll.u32 [#allocation2], 4
      %s21 = int_to_ptr.vmem [resolvable:$true] %s20
      %23 = dma.hbm_to_vmem [thread:$0]  %s19, 16, %s21, [#allocation3]
    $region13: #{_lambda_.9} parent=1 // pred_fallthru
      _
    // Predicated region
    $region14: #{_lambda_.9} parent=1 // pred_check
      _
    $region15: #{_lambda_.9} parent=1 // pred_check_branch
      %25 = sbr.rel (0) target = $region17
    $region16: #{_lambda_.9} parent=1 // pred_region
      %27 = dma.done [#allocation3], 16
    $region17: #{_lambda_.9} parent=1 // pred_fallthru
      _
    %v29 = vld [vmem:[%s0] sm:$0xff]
    %v30 = vld [vmem:[%s0 + $0x8] sm:$0xff]
    %v31 = vpack.c.bf16 %v30, %v29
    %v32 = vld [vmem:[%s1] sm:$0xf]
    %v33 = vld [vmem:[%s1 + $0x4] sm:$0xf]
    %v34 = vld [vmem:[%s1 + $0x8] sm:$0xf]
    %v35 = vld [vmem:[%s1 + $0xc] sm:$0xf]
    %v36 = vld [vmem:[#allocation2] sm:$0x1]
    %v38 = vperm.slane %v36, 0
    %v44 = vunpack.c.l.b16 %v32
    %v45 = vunpack.c.l.b16 %v33
    %v46 = vunpack.c.l.b16 %v34
    %v47 = vunpack.c.l.b16 %v35
    %v48 = vpack.c.b16 %v45, %v44
    %v49 = vpack.c.b16 %v47, %v46
    %vm52 = vcmask 261120
    %v54 = vsel %vm52, %v31, 0
    %56 = vmatpush.bf16.msra.mxu0 0
    %57 = vmatpush.bf16.msra.mxu0 0
    %58 = vmatpush.bf16.msra.mxu0 0
    %59 = vmatpush.bf16.msra.mxu0 0
    %60 = vmatpush.bf16.msra.mxu0 0
    %61 = vmatpush.bf16.msra.mxu0 0
    %62 = vmatpush.bf16.msra.mxu0 %v49
    %63 = vmatpush.bf16.msra.mxu0 %v48
    %64 = vmatmul.bf16.gmra.mxu0 %v54
    %v65 = vpop.f32.mrf.mxu0
    %v66 = vadd.f32 %v38, %v65
    %v67 = vpop.f32.mrf.mxu0
    %v68 = vadd.f32 %v38, %v67
    %69 = vdwg.mxu0
    %70 = vst [vmem:[%s3] sm:$0xff] %v66
    %71 = vst [vmem:[%s3 + $0x8] sm:$0xff] %v68
    // Predicated region
    $region18: #{_lambda_.9} parent=1 // pred_check
      _
    $region19: #{_lambda_.9} parent=1 // pred_check_branch
      %73 = sbr.rel (0) target = $region21
    $region20: #{_lambda_.9} parent=1 // pred_region
      _
    $region21: #{_lambda_.9} parent=1 // pred_fallthru
      _
    // Predicated region
    $region22: #{_lambda_.9} parent=1 // pred_check
      _
    $region23: #{_lambda_.9} parent=1 // pred_check_branch
      %75 = sbr.rel (0) target = $region25
    $region24: #{_lambda_.9} parent=1 // pred_region
      _
    $region25: #{_lambda_.9} parent=1 // pred_fallthru
      _
    %76 = vsyncpa [#allocation3], 1

// kernel: _lambda_.5
$region0: #{_lambda_.5}
  #allocation0 [shape = 'u32[]', space=smem, size = 0x4, offset = 0x4, fixed_abs, tag = 'smem constant byte address 0x4 - core index']
  #allocation1 [shape = 'u32[72,128]{1,0:T(1,128)}', space=vmem, size = 0x9000, scoped, tag = 'internal scratch']
  #allocation2 [shape = 's32[1]{0}', space=sflag, size = 0x4, scoped, tag = 'scoped memory for _lambda_.5']
  #allocation3 [shape = 'u8[512]{0}', space=smem, size = 0x200, scoped, tag = 'prefetched SMEM operand 0']
  %s0 = inlined_call_operand.vmem [shape: s32[2], index: 0, kind: input, shape index: {}]
  %s1 = inlined_call_operand.vmem [shape: f32[16,32], index: 1, kind: input, shape index: {}]
  %s2 = inlined_call_operand.vmem [shape: bf16[32,96], index: 2, kind: input, shape index: {}]
  %s3 = inlined_call_operand.vmem [shape: f32[1,96], index: 3, kind: input, shape index: {}]
  %s4 = inlined_call_operand.vmem [shape: bf16[32,32], index: 4, kind: input, shape index: {}]
  %s5 = inlined_call_operand.vmem [shape: f32[1,32], index: 5, kind: input, shape index: {}]
  %s6 = inlined_call_operand.vmem [shape: f32[1,32], index: 6, kind: input, shape index: {}]
  %s7 = inlined_call_operand.vmem [shape: f32[1,32], index: 7, kind: input, shape index: {}]
  %s8 = inlined_call_operand.vmem [shape: bf16[32,64], index: 8, kind: input, shape index: {}]
  %s9 = inlined_call_operand.vmem [shape: f32[1,64], index: 9, kind: input, shape index: {}]
  %s10 = inlined_call_operand.vmem [shape: bf16[64,32], index: 10, kind: input, shape index: {}]
  %s11 = inlined_call_operand.vmem [shape: f32[1,32], index: 11, kind: input, shape index: {}]
  %s12 = inlined_call_operand.vmem [shape: f32[1,32], index: 12, kind: input, shape index: {}]
  %s13 = inlined_call_operand.vmem [shape: f32[1,32], index: 13, kind: input, shape index: {}]
  %s14 = inlined_call_operand.vmem [shape: f32[16,32], index: 14, kind: output, shape index: {}]
  %s15 = sld [smem:[#allocation0]]
  $region85: #{_lambda_.5} parent=0
    _
  %s17 = ssub.s32 1, %s15
  %s18 = scalar_select 0, %s17, %s15
  %s20 = sshll.u32 %s0, 4
  %s21 = int_to_ptr.vmem [resolvable:$true] %s20
  %23 = dma.vmem_to_smem %s21, 16, [#allocation3], [#allocation2]
  %25 = dma.done [#allocation2], 16
  %26 = sfence
  loop: start=0, step=1, limit=4
  $region2: #{_lambda_.5} parent=0 // loop_pre_header
    _
  $region3: #{_lambda_.5} parent=0 // loop_header
    %s28 = sphi 0, %s32
    %p29 = scmp.ge.s32.totalorder %s28, 4
    %s38 = sphi 0, %s40
    %s41 = sphi 0, %s38
    %s42 = sphi 0, %s41
    %s58 = sphi 0, %s42
    %s62 = sphi 0, %s62
    %s64 = sphi 0, %s62
    %s65 = sphi 0, %s64
    %s79 = sphi 0, %s65
    %s83 = sphi 0, %s83
    %s85 = sphi 0, %s83
    %s86 = sphi 0, %s85
    %s100 = sphi 0, %s86
    %s104 = sphi 0, %s104
    %s106 = sphi 0, %s104
    %s107 = sphi 0, %s106
    %s121 = sphi 0, %s107
    %s125 = sphi 0, %s125
    %s127 = sphi 0, %s125
    %s128 = sphi 0, %s127
    %s142 = sphi 0, %s128
    %s146 = sphi 0, %s146
    %s148 = sphi 0, %s146
    %s149 = sphi 0, %s148
    %s163 = sphi 0, %s149
    %s167 = sphi 0, %s167
    %s169 = sphi 0, %s167
    %s170 = sphi 0, %s169
    %s184 = sphi 0, %s170
    %s188 = sphi 0, %s188
    %s190 = sphi 0, %s188
    %s191 = sphi 0, %s190
    %s205 = sphi 0, %s191
    %s209 = sphi 0, %s209
    %s211 = sphi 0, %s209
    %s212 = sphi 0, %s211
    %s226 = sphi 0, %s212
    %s230 = sphi 0, %s230
    %s232 = sphi 0, %s230
    %s233 = sphi 0, %s232
    %s247 = sphi 0, %s233
    %s251 = sphi 0, %s251
    %s253 = sphi 0, %s251
    %s254 = sphi 0, %s253
    %s268 = sphi 0, %s254
    %s272 = sphi 0, %s272
    %s274 = sphi 0, %s272
    %s275 = sphi 0, %s274
    %s289 = sphi 0, %s275
    %s293 = sphi 0, %s293
    %s295 = sphi 0, %s293
    %s296 = sphi 0, %s295
    %s310 = sphi 0, %s296
    %s316 = sphi 0, %s318
    %s319 = sphi 0, %s316
    %s320 = sphi 0, %s319
    %s336 = sphi 0, %s320
  $region4: #{_lambda_.5} parent=0 // loop_header_branch
    %31 = sbr.rel (%p29) target = $region8
  $region5: #{_lambda_.5} parent=0 // loop_body
    %s33 = ssub.s32 %s28, 1
    %s34 = ssub.s32 %s28, 2
    %s35 = sadd.s32 %s28, 1
    %s36 = ssub.s32 %s28, %s35
    %p37 = scmp.eq.s32.totalorder %s36, 0
    %s39 = sadd.s32 %s38, 1
    %s40 = scalar_select %p37, %s38, %s39
    %p43 = pneg %p37
    %p44 = scmp.eq.s32.totalorder %s28, 1
    %p45 = por %p43, %p44
    %p46 = scmp.ne.s32.totalorder %s38, %s41
    %p47 = scmp.eq.s32.totalorder %s28, 0
    %p48 = por %p46, %p47
    %p49 = scmp.ne.s32.totalorder %s38, %s41
    %p50 = scmp.eq.s32.totalorder %s33, 1
    %p51 = por %p49, %p50
    %p52 = scmp.ne.s32.totalorder %s41, %s42
    %p53 = scmp.eq.s32.totalorder %s33, 0
    %p54 = por %p52, %p53
    %p55 = scmp.ne.s32.totalorder %s41, %s42
    %p56 = scmp.eq.s32.totalorder %s34, 1
    %p57 = por %p55, %p56
    %p59 = scmp.ne.s32.totalorder %s42, %s58
    %p60 = scmp.eq.s32.totalorder %s34, 0
    %p61 = por %p59, %p60
    %s63 = sadd.s32 %s62, 1
    %p66 = scmp.eq.s32.totalorder %s28, 1
    %p67 = scmp.ne.s32.totalorder %s62, %s64
    %p68 = scmp.eq.s32.totalorder %s28, 0
    %p69 = por %p67, %p68
    %p70 = scmp.ne.s32.totalorder %s62, %s64
    %p71 = scmp.eq.s32.totalorder %s33, 1
    %p72 = por %p70, %p71
    %p73 = scmp.ne.s32.totalorder %s64, %s65
    %p74 = scmp.eq.s32.totalorder %s33, 0
    %p75 = por %p73, %p74
    %p76 = scmp.ne.s32.totalorder %s64, %s65
    %p77 = scmp.eq.s32.totalorder %s34, 1
    %p78 = por %p76, %p77
    %p80 = scmp.ne.s32.totalorder %s65, %s79
    %p81 = scmp.eq.s32.totalorder %s34, 0
    %p82 = por %p80, %p81
    %s84 = sadd.s32 %s83, 1
    %p87 = scmp.eq.s32.totalorder %s28, 1
    %p88 = scmp.ne.s32.totalorder %s83, %s85
    %p89 = scmp.eq.s32.totalorder %s28, 0
    %p90 = por %p88, %p89
    %p91 = scmp.ne.s32.totalorder %s83, %s85
    %p92 = scmp.eq.s32.totalorder %s33, 1
    %p93 = por %p91, %p92
    %p94 = scmp.ne.s32.totalorder %s85, %s86
    %p95 = scmp.eq.s32.totalorder %s33, 0
    %p96 = por %p94, %p95
    %p97 = scmp.ne.s32.totalorder %s85, %s86
    %p98 = scmp.eq.s32.totalorder %s34, 1
    %p99 = por %p97, %p98
    %p101 = scmp.ne.s32.totalorder %s86, %s100
    %p102 = scmp.eq.s32.totalorder %s34, 0
    %p103 = por %p101, %p102
    %s105 = sadd.s32 %s104, 1
    %p108 = scmp.eq.s32.totalorder %s28, 1
    %p109 = scmp.ne.s32.totalorder %s104, %s106
    %p110 = scmp.eq.s32.totalorder %s28, 0
    %p111 = por %p109, %p110
    %p112 = scmp.ne.s32.totalorder %s104, %s106
    %p113 = scmp.eq.s32.totalorder %s33, 1
    %p114 = por %p112, %p113
    %p115 = scmp.ne.s32.totalorder %s106, %s107
    %p116 = scmp.eq.s32.totalorder %s33, 0
    %p117 = por %p115, %p116
    %p118 = scmp.ne.s32.totalorder %s106, %s107
    %p119 = scmp.eq.s32.totalorder %s34, 1
    %p120 = por %p118, %p119
    %p122 = scmp.ne.s32.totalorder %s107, %s121
    %p123 = scmp.eq.s32.totalorder %s34, 0
    %p124 = por %p122, %p123
    %s126 = sadd.s32 %s125, 1
    %p129 = scmp.eq.s32.totalorder %s28, 1
    %p130 = scmp.ne.s32.totalorder %s125, %s127
    %p131 = scmp.eq.s32.totalorder %s28, 0
    %p132 = por %p130, %p131
    %p133 = scmp.ne.s32.totalorder %s125, %s127
    %p134 = scmp.eq.s32.totalorder %s33, 1
    %p135 = por %p133, %p134
    %p136 = scmp.ne.s32.totalorder %s127, %s128
    %p137 = scmp.eq.s32.totalorder %s33, 0
    %p138 = por %p136, %p137
    %p139 = scmp.ne.s32.totalorder %s127, %s128
    %p140 = scmp.eq.s32.totalorder %s34, 1
    %p141 = por %p139, %p140
    %p143 = scmp.ne.s32.totalorder %s128, %s142
    %p144 = scmp.eq.s32.totalorder %s34, 0
    %p145 = por %p143, %p144
    %s147 = sadd.s32 %s146, 1
    %p150 = scmp.eq.s32.totalorder %s28, 1
    %p151 = scmp.ne.s32.totalorder %s146, %s148
    %p152 = scmp.eq.s32.totalorder %s28, 0
    %p153 = por %p151, %p152
    %p154 = scmp.ne.s32.totalorder %s146, %s148
    %p155 = scmp.eq.s32.totalorder %s33, 1
    %p156 = por %p154, %p155
    %p157 = scmp.ne.s32.totalorder %s148, %s149
    %p158 = scmp.eq.s32.totalorder %s33, 0
    %p159 = por %p157, %p158
    %p160 = scmp.ne.s32.totalorder %s148, %s149
    %p161 = scmp.eq.s32.totalorder %s34, 1
    %p162 = por %p160, %p161
    %p164 = scmp.ne.s32.totalorder %s149, %s163
    %p165 = scmp.eq.s32.totalorder %s34, 0
    %p166 = por %p164, %p165
    %s168 = sadd.s32 %s167, 1
    %p171 = scmp.eq.s32.totalorder %s28, 1
    %p172 = scmp.ne.s32.totalorder %s167, %s169
    %p173 = scmp.eq.s32.totalorder %s28, 0
    %p174 = por %p172, %p173
    %p175 = scmp.ne.s32.totalorder %s167, %s169
    %p176 = scmp.eq.s32.totalorder %s33, 1
    %p177 = por %p175, %p176
    %p178 = scmp.ne.s32.totalorder %s169, %s170
    %p179 = scmp.eq.s32.totalorder %s33, 0
    %p180 = por %p178, %p179
    %p181 = scmp.ne.s32.totalorder %s169, %s170
    %p182 = scmp.eq.s32.totalorder %s34, 1
    %p183 = por %p181, %p182
    %p185 = scmp.ne.s32.totalorder %s170, %s184
    %p186 = scmp.eq.s32.totalorder %s34, 0
    %p187 = por %p185, %p186
    %s189 = sadd.s32 %s188, 1
    %p192 = scmp.eq.s32.totalorder %s28, 1
    %p193 = scmp.ne.s32.totalorder %s188, %s190
    %p194 = scmp.eq.s32.totalorder %s28, 0
    %p195 = por %p193, %p194
    %p196 = scmp.ne.s32.totalorder %s188, %s190
    %p197 = scmp.eq.s32.totalorder %s33, 1
    %p198 = por %p196, %p197
    %p199 = scmp.ne.s32.totalorder %s190, %s191
    %p200 = scmp.eq.s32.totalorder %s33, 0
    %p201 = por %p199, %p200
    %p202 = scmp.ne.s32.totalorder %s190, %s191
    %p203 = scmp.eq.s32.totalorder %s34, 1
    %p204 = por %p202, %p203
    %p206 = scmp.ne.s32.totalorder %s191, %s205
    %p207 = scmp.eq.s32.totalorder %s34, 0
    %p208 = por %p206, %p207
    %s210 = sadd.s32 %s209, 1
    %p213 = scmp.eq.s32.totalorder %s28, 1
    %p214 = scmp.ne.s32.totalorder %s209, %s211
    %p215 = scmp.eq.s32.totalorder %s28, 0
    %p216 = por %p214, %p215
    %p217 = scmp.ne.s32.totalorder %s209, %s211
    %p218 = scmp.eq.s32.totalorder %s33, 1
    %p219 = por %p217, %p218
    %p220 = scmp.ne.s32.totalorder %s211, %s212
    %p221 = scmp.eq.s32.totalorder %s33, 0
    %p222 = por %p220, %p221
    %p223 = scmp.ne.s32.totalorder %s211, %s212
    %p224 = scmp.eq.s32.totalorder %s34, 1
    %p225 = por %p223, %p224
    %p227 = scmp.ne.s32.totalorder %s212, %s226
    %p228 = scmp.eq.s32.totalorder %s34, 0
    %p229 = por %p227, %p228
    %s231 = sadd.s32 %s230, 1
    %p234 = scmp.eq.s32.totalorder %s28, 1
    %p235 = scmp.ne.s32.totalorder %s230, %s232
    %p236 = scmp.eq.s32.totalorder %s28, 0
    %p237 = por %p235, %p236
    %p238 = scmp.ne.s32.totalorder %s230, %s232
    %p239 = scmp.eq.s32.totalorder %s33, 1
    %p240 = por %p238, %p239
    %p241 = scmp.ne.s32.totalorder %s232, %s233
    %p242 = scmp.eq.s32.totalorder %s33, 0
    %p243 = por %p241, %p242
    %p244 = scmp.ne.s32.totalorder %s232, %s233
    %p245 = scmp.eq.s32.totalorder %s34, 1
    %p246 = por %p244, %p245
    %p248 = scmp.ne.s32.totalorder %s233, %s247
    %p249 = scmp.eq.s32.totalorder %s34, 0
    %p250 = por %p248, %p249
    %s252 = sadd.s32 %s251, 1
    %p255 = scmp.eq.s32.totalorder %s28, 1
    %p256 = scmp.ne.s32.totalorder %s251, %s253
    %p257 = scmp.eq.s32.totalorder %s28, 0
    %p258 = por %p256, %p257
    %p259 = scmp.ne.s32.totalorder %s251, %s253
    %p260 = scmp.eq.s32.totalorder %s33, 1
    %p261 = por %p259, %p260
    %p262 = scmp.ne.s32.totalorder %s253, %s254
    %p263 = scmp.eq.s32.totalorder %s33, 0
    %p264 = por %p262, %p263
    %p265 = scmp.ne.s32.totalorder %s253, %s254
    %p266 = scmp.eq.s32.totalorder %s34, 1
    %p267 = por %p265, %p266
    %p269 = scmp.ne.s32.totalorder %s254, %s268
    %p270 = scmp.eq.s32.totalorder %s34, 0
    %p271 = por %p269, %p270
    %s273 = sadd.s32 %s272, 1
    %p276 = scmp.eq.s32.totalorder %s28, 1
    %p277 = scmp.ne.s32.totalorder %s272, %s274
    %p278 = scmp.eq.s32.totalorder %s28, 0
    %p279 = por %p277, %p278
    %p280 = scmp.ne.s32.totalorder %s272, %s274
    %p281 = scmp.eq.s32.totalorder %s33, 1
    %p282 = por %p280, %p281
    %p283 = scmp.ne.s32.totalorder %s274, %s275
    %p284 = scmp.eq.s32.totalorder %s33, 0
    %p285 = por %p283, %p284
    %p286 = scmp.ne.s32.totalorder %s274, %s275
    %p287 = scmp.eq.s32.totalorder %s34, 1
    %p288 = por %p286, %p287
    %p290 = scmp.ne.s32.totalorder %s275, %s289
    %p291 = scmp.eq.s32.totalorder %s34, 0
    %p292 = por %p290, %p291
    %s294 = sadd.s32 %s293, 1
    %p297 = scmp.eq.s32.totalorder %s28, 1
    %p298 = scmp.ne.s32.totalorder %s293, %s295
    %p299 = scmp.eq.s32.totalorder %s28, 0
    %p300 = por %p298, %p299
    %p301 = scmp.ne.s32.totalorder %s293, %s295
    %p302 = scmp.eq.s32.totalorder %s33, 1
    %p303 = por %p301, %p302
    %p304 = scmp.ne.s32.totalorder %s295, %s296
    %p305 = scmp.eq.s32.totalorder %s33, 0
    %p306 = por %p304, %p305
    %p307 = scmp.ne.s32.totalorder %s295, %s296
    %p308 = scmp.eq.s32.totalorder %s34, 1
    %p309 = por %p307, %p308
    %p311 = scmp.ne.s32.totalorder %s296, %s310
    %p312 = scmp.eq.s32.totalorder %s34, 0
    %p313 = por %p311, %p312
    %s314 = ssub.s32 %s28, %s35
    %p315 = scmp.eq.s32.totalorder %s314, 0
    %s317 = sadd.s32 %s316, 1
    %s318 = scalar_select %p315, %s316, %s317
    %p321 = pneg %p315
    %p322 = scmp.eq.s32.totalorder %s28, 1
    %p323 = por %p321, %p322
    %p324 = scmp.ne.s32.totalorder %s316, %s319
    %p325 = scmp.eq.s32.totalorder %s28, 0
    %p326 = por %p324, %p325
    %p327 = scmp.ne.s32.totalorder %s316, %s319
    %p328 = scmp.eq.s32.totalorder %s33, 1
    %p329 = por %p327, %p328
    %p330 = scmp.ne.s32.totalorder %s319, %s320
    %p331 = scmp.eq.s32.totalorder %s33, 0
    %p332 = por %p330, %p331
    %p333 = scmp.ne.s32.totalorder %s319, %s320
    %p334 = scmp.eq.s32.totalorder %s34, 1
    %p335 = por %p333, %p334
    %p337 = scmp.ne.s32.totalorder %s320, %s336
    %p338 = scmp.eq.s32.totalorder %s34, 0
    %p339 = por %p337, %p338
    %p340 = scmp.le.s32.totalorder 1, %s28
    %p341 = scmp.lt.s32.totalorder %s28, 3
    %p342 = pnand %p340, %p341
    %p343 = pneg %p342
    // Predicated region
    $region9: #{_lambda_.5} parent=5 // pred_check
      _
    $region10: #{_lambda_.5} parent=5 // pred_check_branch
      %345 = sbr.rel (%p342) target = $region12
    $region11: #{_lambda_.5} parent=5 // pred_region
      %s346 = ssub.s32 %s28, 1
      // Predicated region
      $region13: #{_lambda_.5} parent=11 // pred_check
        %p347 = pneg %p75
      $region14: #{_lambda_.5} parent=11 // pred_check_branch
        %349 = sbr.rel (%p347) target = $region16
      $region15: #{_lambda_.5} parent=11 // pred_region
        _
      $region16: #{_lambda_.5} parent=11 // pred_fallthru
        _
      // Predicated region
      $region17: #{_lambda_.5} parent=11 // pred_check
        %p350 = pneg %p96
      $region18: #{_lambda_.5} parent=11 // pred_check_branch
        %352 = sbr.rel (%p350) target = $region20
      $region19: #{_lambda_.5} parent=11 // pred_region
        _
      $region20: #{_lambda_.5} parent=11 // pred_fallthru
        _
      // Predicated region
      $region21: #{_lambda_.5} parent=11 // pred_check
        %p353 = pneg %p117
      $region22: #{_lambda_.5} parent=11 // pred_check_branch
        %355 = sbr.rel (%p353) target = $region24
      $region23: #{_lambda_.5} parent=11 // pred_region
        _
      $region24: #{_lambda_.5} parent=11 // pred_fallthru
        _
      // Predicated region
      $region25: #{_lambda_.5} parent=11 // pred_check
        %p356 = pneg %p138
      $region26: #{_lambda_.5} parent=11 // pred_check_branch
        %358 = sbr.rel (%p356) target = $region28
      $region27: #{_lambda_.5} parent=11 // pred_region
        _
      $region28: #{_lambda_.5} parent=11 // pred_fallthru
        _
      // Predicated region
      $region29: #{_lambda_.5} parent=11 // pred_check
        %p359 = pneg %p159
      $region30: #{_lambda_.5} parent=11 // pred_check_branch
        %361 = sbr.rel (%p359) target = $region32
      $region31: #{_lambda_.5} parent=11 // pred_region
        _
      $region32: #{_lambda_.5} parent=11 // pred_fallthru
        _
      // Predicated region
      $region33: #{_lambda_.5} parent=11 // pred_check
        %p362 = pneg %p180
      $region34: #{_lambda_.5} parent=11 // pred_check_branch
        %364 = sbr.rel (%p362) target = $region36
      $region35: #{_lambda_.5} parent=11 // pred_region
        _
      $region36: #{_lambda_.5} parent=11 // pred_fallthru
        _
      // Predicated region
      $region37: #{_lambda_.5} parent=11 // pred_check
        %p365 = pneg %p201
      $region38: #{_lambda_.5} parent=11 // pred_check_branch
        %367 = sbr.rel (%p365) target = $region40
      $region39: #{_lambda_.5} parent=11 // pred_region
        _
      $region40: #{_lambda_.5} parent=11 // pred_fallthru
        _
      // Predicated region
      $region41: #{_lambda_.5} parent=11 // pred_check
        %p368 = pneg %p222
      $region42: #{_lambda_.5} parent=11 // pred_check_branch
        %370 = sbr.rel (%p368) target = $region44
      $region43: #{_lambda_.5} parent=11 // pred_region
        _
      $region44: #{_lambda_.5} parent=11 // pred_fallthru
        _
      // Predicated region
      $region45: #{_lambda_.5} parent=11 // pred_check
        %p371 = pneg %p243
      $region46: #{_lambda_.5} parent=11 // pred_check_branch
        %373 = sbr.rel (%p371) target = $region48
      $region47: #{_lambda_.5} parent=11 // pred_region
        _
      $region48: #{_lambda_.5} parent=11 // pred_fallthru
        _
      // Predicated region
      $region49: #{_lambda_.5} parent=11 // pred_check
        %p374 = pneg %p264
      $region50: #{_lambda_.5} parent=11 // pred_check_branch
        %376 = sbr.rel (%p374) target = $region52
      $region51: #{_lambda_.5} parent=11 // pred_region
        _
      $region52: #{_lambda_.5} parent=11 // pred_fallthru
        _
      // Predicated region
      $region53: #{_lambda_.5} parent=11 // pred_check
        %p377 = pneg %p285
      $region54: #{_lambda_.5} parent=11 // pred_check_branch
        %379 = sbr.rel (%p377) target = $region56
      $region55: #{_lambda_.5} parent=11 // pred_region
        _
      $region56: #{_lambda_.5} parent=11 // pred_fallthru
        _
      // Predicated region
      $region57: #{_lambda_.5} parent=11 // pred_check
        %p380 = pneg %p306
      $region58: #{_lambda_.5} parent=11 // pred_check_branch
        %382 = sbr.rel (%p380) target = $region60
      $region59: #{_lambda_.5} parent=11 // pred_region
        _
      $region60: #{_lambda_.5} parent=11 // pred_fallthru
        _
    $region12: #{_lambda_.5} parent=5 // pred_fallthru
      _
    %p383 = scmp.lt.s32.totalorder %s28, 2
    // Predicated region
    $region61: #{_lambda_.5} parent=5 // pred_check
      %p384 = pneg %p383
    $region62: #{_lambda_.5} parent=5 // pred_check_branch
      %386 = sbr.rel (%p384) target = $region64
    $region63: #{_lambda_.5} parent=5 // pred_region
      // Predicated region
      $region65: #{_lambda_.5} parent=63 // pred_check
        %p387 = pneg %p48
      $region66: #{_lambda_.5} parent=63 // pred_check_branch
        %389 = sbr.rel (%p387) target = $region68
      $region67: #{_lambda_.5} parent=63 // pred_region
        %p390 = scmp.lt.s32.totalorder %s28, 1
        %s391 = scalar_select %p390, %s28, 1
        %s392 = smul.addr %s391, 8
        %s393 = scalar_lea.vmem %s1, %s392
      $region68: #{_lambda_.5} parent=63 // pred_fallthru
        _
    $region64: #{_lambda_.5} parent=5 // pred_fallthru
      _
    %p394 = scmp.le.s32.totalorder 1, %s28
    %p395 = scmp.lt.s32.totalorder %s28, 3
    %p396 = pnand %p394, %p395
    %p397 = pneg %p396
    // Predicated region
    $region69: #{_lambda_.5} parent=5 // pred_check
      _
    $region70: #{_lambda_.5} parent=5 // pred_check_branch
      %399 = sbr.rel (%p396) target = $region72
    $region71: #{_lambda_.5} parent=5 // pred_region
      %s400 = ssub.s32 %s28, 1
      %p401 = scmp.lt.s32.totalorder %s33, 1
      %s402 = scalar_select %p401, %s33, 1
      %s403 = smul.addr %s402, 8
      %s404 = scalar_lea.vmem %s1, %s403
      %p405 = pneg %p54
      %p406 = pneg %p51
      %p407 = pneg %p75
      %p408 = pneg %p72
      %p409 = pneg %p96
      %p410 = pneg %p93
      %p411 = pneg %p117
      %p412 = pneg %p114
      %p413 = pneg %p138
      %p414 = pneg %p135
      %p415 = pneg %p159
      %p416 = pneg %p156
      %p417 = pneg %p180
      %p418 = pneg %p177
      %p419 = pneg %p201
      %p420 = pneg %p198
      %p421 = pneg %p222
      %p422 = pneg %p219
      %p423 = pneg %p243
      %p424 = pneg %p240
      %p425 = pneg %p264
      %p426 = pneg %p261
      %p427 = pneg %p285
      %p428 = pneg %p282
      %p429 = pneg %p306
      %p430 = pneg %p303
      %p431 = pneg %p332
      %p432 = pneg %p329
      %p433 = scmp.lt.s32.totalorder %s33, 1
      %s434 = scalar_select %p433, %s33, 1
      %s435 = smul.addr %s434, 8
      %s436 = scalar_lea.vmem %s14, %s435
      %p437 = scmp.lt.s32.totalorder %s33, 1
      %s438 = scalar_select %p437, %s33, 1
      %s439 = smul.addr %s438, 8
      %s440 = scalar_lea.vmem %s1, %s439
      %p441 = scmp.lt.s32.totalorder %s33, 1
      %s442 = scalar_select %p441, %s33, 1
      %s443 = smul.addr %s442, 8
      %s444 = scalar_lea.vmem %s14, %s443
      %v446 = vld [vmem:[%s440] sm:$0xff]
      %s447 = sld [smem:[#allocation3 + %s33]]
      %v448 = vlaneseq
      %v449 = vand.u32 %v448, 127
      %v450 = vstv %s447
      %vm451 = vcmp.lt.s32.totalorder %v449, %v450
      %v452 = vpack.c.bf16 %v446, %v446
      %v453 = vld [vmem:[%s2] sm:$0xf]
      %v454 = vld [vmem:[%s2 + $0x4] sm:$0xf]
      %v455 = vld [vmem:[%s2 + $0x8] sm:$0xf]
      %v456 = vld [vmem:[%s2 + $0xc] sm:$0xf]
      %v457 = vld [vmem:[%s3] sm:$0x1]
      %v459 = vperm.slane %v457, 0
      %v465 = vunpack.c.l.b16 %v453
      %v466 = vunpack.c.l.b16 %v454
      %v467 = vunpack.c.l.b16 %v455
      %v468 = vunpack.c.l.b16 %v456
      %v469 = vpack.c.b16 %v466, %v465
      %v470 = vpack.c.b16 %v468, %v467
      %vm473 = vcmask 261120
      %v475 = vsel %vm473, %v452, 0
      %477 = vmatpush.bf16.msra.mxu0 0
      %478 = vmatpush.bf16.msra.mxu0 0
      %479 = vmatpush.bf16.msra.mxu0 0
      %480 = vmatpush.bf16.msra.mxu0 0
      %481 = vmatpush.bf16.msra.mxu0 0
      %482 = vmatpush.bf16.msra.mxu0 0
      %483 = vmatpush.bf16.msra.mxu0 %v470
      %484 = vmatpush.bf16.msra.mxu0 %v469
      %485 = vmatmul.bf16.gmra.mxu0 %v475
      %v486 = vpop.f32.mrf.mxu0
      %v487 = vadd.f32 %v459, %v486
      %v488 = vpop.f32.mrf.mxu0
      %489 = vdwg.mxu0
      %v490 = vld [vmem:[%s4] sm:$0xf]
      %v491 = vld [vmem:[%s4 + $0x4] sm:$0xf]
      %v492 = vld [vmem:[%s4 + $0x8] sm:$0xf]
      %v493 = vld [vmem:[%s4 + $0xc] sm:$0xf]
      %v494 = vld [vmem:[%s5] sm:$0x1]
      %v495 = vmul.f32 %v487, 0.35355338
      %v496 = vpack.c.bf16 %v495, %v495
      %v497 = vpack.c.bf16 %v487, %v487
      %499 = vrot.lane.b32.xlu0 %v497, 96
      %v500 = vpop.permute.xlu0 %499
      %vm501 = vcmask 64512
      %v503 = vsel %vm501, %v496, 0
      %v506 = vsel %vm501, %v500, 0
      %508 = vmatpush.bf16.xpose.msra.mxu0 0
      %509 = vmatpush.bf16.xpose.msra.mxu0 0
      %510 = vmatpush.bf16.xpose.msra.mxu0 0
      %511 = vmatpush.bf16.xpose.msra.mxu0 0
      %512 = vmatpush.bf16.xpose.msra.mxu0 0
      %513 = vmatpush.bf16.xpose.msra.mxu0 0
      %514 = vmatpush.bf16.xpose.msra.mxu0 0
      %515 = vmatpush.bf16.xpose.msra.mxu0 %v506
      %516 = vmatmul.bf16.gmra.mxu0 %v503
      %v517 = vpop.f32.mrf.mxu0
      %v518 = vadd.f32 0.0, %v517
      %v519 = vpop.f32.mrf.mxu0
      %520 = vdwg.mxu0
      %v521 = vsel %vm451, %v518, -1000000.0
      %v522 = vsel %vm501, %v521, -inf
      %523 = vmax.xlane.f32.xlu0 %v522
      %v524 = vpop.xlane.xlu0 %523
      %v525 = vsub.f32 %v521, %v524
      %v526 = vmul.f32 %v525, 1.442695
      %v527 = vpow.pop %v526
      %v528 = vsel %vm501, %v527, 0.0
      %529 = vadd.xlane.f32.xlu0 %v528
      %v530 = vpop.xlane.xlu0 %529
      %v531 = vrcp.pop %v530
      %v532 = vmul.f32 %v527, %v531
      %v533 = vpack.c.bf16 %v532, %v532
      %534 = vrot.lane.b32.xlu0 %v497, 64
      %v535 = vpop.permute.xlu0 %534
      %v537 = vsel %vm501, %v533, 0
      %vm539 = vcmask 1043456
      %v541 = vsel %vm539, %v535, 0
      %543 = vmatpush.bf16.msra.mxu0 0
      %544 = vmatpush.bf16.msra.mxu0 0
      %545 = vmatpush.bf16.msra.mxu0 0
      %546 = vmatpush.bf16.msra.mxu0 0
      %547 = vmatpush.bf16.msra.mxu0 0
      %548 = vmatpush.bf16.msra.mxu0 0
      %549 = vmatpush.bf16.msra.mxu0 0
      %550 = vmatpush.bf16.msra.mxu0 %v541
      %551 = vmatmul.bf16.gmra.mxu0 %v537
      %v552 = vpop.f32.mrf.mxu0
      %v553 = vadd.f32 0.0, %v552
      %v554 = vpop.f32.mrf.mxu0
      %555 = vdwg.mxu0
      %557 = vrot.lane.b32.xlu0 %v496, 120
      %v558 = vpop.permute.xlu0 %557
      %559 = vrot.lane.b32.xlu0 %v497, 88
      %v560 = vpop.permute.xlu0 %559
      %v562 = vsel %vm501, %v558, 0
      %v565 = vsel %vm501, %v560, 0
      %567 = vmatpush.bf16.xpose.msra.mxu0 0
      %568 = vmatpush.bf16.xpose.msra.mxu0 0
      %569 = vmatpush.bf16.xpose.msra.mxu0 0
      %570 = vmatpush.bf16.xpose.msra.mxu0 0
      %571 = vmatpush.bf16.xpose.msra.mxu0 0
      %572 = vmatpush.bf16.xpose.msra.mxu0 0
      %573 = vmatpush.bf16.xpose.msra.mxu0 0
      %574 = vmatpush.bf16.xpose.msra.mxu0 %v565
      %575 = vmatmul.bf16.gmra.mxu0 %v562
      %v576 = vpop.f32.mrf.mxu0
      %v577 = vadd.f32 0.0, %v576
      %v578 = vpop.f32.mrf.mxu0
      %579 = vdwg.mxu0
      %v580 = vsel %vm451, %v577, -1000000.0
      %v581 = vsel %vm501, %v580, -inf
      %582 = vmax.xlane.f32.xlu0 %v581
      %v583 = vpop.xlane.xlu0 %582
      %v584 = vsub.f32 %v580, %v583
      %v585 = vmul.f32 %v584, 1.442695
      %v586 = vpow.pop %v585
      %v587 = vsel %vm501, %v586, 0.0
      %588 = vadd.xlane.f32.xlu0 %v587
      %v589 = vpop.xlane.xlu0 %588
      %v590 = vrcp.pop %v589
      %v591 = vmul.f32 %v586, %v590
      %v592 = vpack.c.bf16 %v591, %v591
      %593 = vrot.lane.b32.xlu0 %v497, 56
      %v594 = vpop.permute.xlu0 %593
      %v596 = vsel %vm501, %v592, 0
      %v599 = vsel %vm539, %v594, 0
      %601 = vmatpush.bf16.msra.mxu0 0
      %602 = vmatpush.bf16.msra.mxu0 0
      %603 = vmatpush.bf16.msra.mxu0 0
      %604 = vmatpush.bf16.msra.mxu0 0
      %605 = vmatpush.bf16.msra.mxu0 0
      %606 = vmatpush.bf16.msra.mxu0 0
      %607 = vmatpush.bf16.msra.mxu0 0
      %608 = vmatpush.bf16.msra.mxu0 %v599
      %609 = vmatmul.bf16.gmra.mxu0 %v596
      %v610 = vpop.f32.mrf.mxu0
      %v611 = vadd.f32 0.0, %v610
      %v612 = vpop.f32.mrf.mxu0
      %613 = vdwg.mxu0
      %614 = vrot.lane.b32.xlu0 %v496, 112
      %v615 = vpop.permute.xlu0 %614
      %616 = vrot.lane.b32.xlu0 %v497, 80
      %v617 = vpop.permute.xlu0 %616
      %v619 = vsel %vm501, %v615, 0
      %v622 = vsel %vm501, %v617, 0
      %624 = vmatpush.bf16.xpose.msra.mxu0 0
      %625 = vmatpush.bf16.xpose.msra.mxu0 0
      %626 = vmatpush.bf16.xpose.msra.mxu0 0
      %627 = vmatpush.bf16.xpose.msra.mxu0 0
      %628 = vmatpush.bf16.xpose.msra.mxu0 0
      %629 = vmatpush.bf16.xpose.msra.mxu0 0
      %630 = vmatpush.bf16.xpose.msra.mxu0 0
      %631 = vmatpush.bf16.xpose.msra.mxu0 %v622
      %632 = vmatmul.bf16.gmra.mxu0 %v619
      %v633 = vpop.f32.mrf.mxu0
      %v634 = vadd.f32 0.0, %v633
      %v635 = vpop.f32.mrf.mxu0
      %636 = vdwg.mxu0
      %v637 = vsel %vm451, %v634, -1000000.0
      %v638 = vsel %vm501, %v637, -inf
      %639 = vmax.xlane.f32.xlu0 %v638
      %v640 = vpop.xlane.xlu0 %639
      %v641 = vsub.f32 %v637, %v640
      %v642 = vmul.f32 %v641, 1.442695
      %v643 = vpow.pop %v642
      %v644 = vsel %vm501, %v643, 0.0
      %645 = vadd.xlane.f32.xlu0 %v644
      %v646 = vpop.xlane.xlu0 %645
      %v647 = vrcp.pop %v646
      %v648 = vmul.f32 %v643, %v647
      %v649 = vpack.c.bf16 %v648, %v648
      %650 = vrot.lane.b32.xlu0 %v497, 48
      %v651 = vpop.permute.xlu0 %650
      %v653 = vsel %vm501, %v649, 0
      %v656 = vsel %vm539, %v651, 0
      %658 = vmatpush.bf16.msra.mxu0 0
      %659 = vmatpush.bf16.msra.mxu0 0
      %660 = vmatpush.bf16.msra.mxu0 0
      %661 = vmatpush.bf16.msra.mxu0 0
      %662 = vmatpush.bf16.msra.mxu0 0
      %663 = vmatpush.bf16.msra.mxu0 0
      %664 = vmatpush.bf16.msra.mxu0 0
      %665 = vmatpush.bf16.msra.mxu0 %v656
      %666 = vmatmul.bf16.gmra.mxu0 %v653
      %v667 = vpop.f32.mrf.mxu0
      %v668 = vadd.f32 0.0, %v667
      %v669 = vpop.f32.mrf.mxu0
      %670 = vdwg.mxu0
      %671 = vrot.lane.b32.xlu0 %v496, 104
      %v672 = vpop.permute.xlu0 %671
      %673 = vrot.lane.b32.xlu0 %v497, 72
      %v674 = vpop.permute.xlu0 %673
      %v676 = vsel %vm501, %v672, 0
      %v679 = vsel %vm501, %v674, 0
      %681 = vmatpush.bf16.xpose.msra.mxu0 0
      %682 = vmatpush.bf16.xpose.msra.mxu0 0
      %683 = vmatpush.bf16.xpose.msra.mxu0 0
      %684 = vmatpush.bf16.xpose.msra.mxu0 0
      %685 = vmatpush.bf16.xpose.msra.mxu0 0
      %686 = vmatpush.bf16.xpose.msra.mxu0 0
      %687 = vmatpush.bf16.xpose.msra.mxu0 0
      %688 = vmatpush.bf16.xpose.msra.mxu0 %v679
      %689 = vmatmul.bf16.gmra.mxu0 %v676
      %v690 = vpop.f32.mrf.mxu0
      %v691 = vadd.f32 0.0, %v690
      %v692 = vpop.f32.mrf.mxu0
      %693 = vdwg.mxu0
      %v694 = vsel %vm451, %v691, -1000000.0
      %v695 = vsel %vm501, %v694, -inf
      %696 = vmax.xlane.f32.xlu0 %v695
      %v697 = vpop.xlane.xlu0 %696
      %v698 = vsub.f32 %v694, %v697
      %v699 = vmul.f32 %v698, 1.442695
      %v700 = vpow.pop %v699
      %v701 = vsel %vm501, %v700, 0.0
      %702 = vadd.xlane.f32.xlu0 %v701
      %v703 = vpop.xlane.xlu0 %702
      %v704 = vrcp.pop %v703
      %v705 = vmul.f32 %v700, %v704
      %v706 = vpack.c.bf16 %v705, %v705
      %707 = vrot.lane.b32.xlu0 %v497, 40
      %v708 = vpop.permute.xlu0 %707
      %v710 = vsel %vm501, %v706, 0
      %v713 = vsel %vm539, %v708, 0
      %715 = vmatpush.bf16.msra.mxu0 0
      %716 = vmatpush.bf16.msra.mxu0 0
      %717 = vmatpush.bf16.msra.mxu0 0
      %718 = vmatpush.bf16.msra.mxu0 0
      %719 = vmatpush.bf16.msra.mxu0 0
      %720 = vmatpush.bf16.msra.mxu0 0
      %721 = vmatpush.bf16.msra.mxu0 0
      %722 = vmatpush.bf16.msra.mxu0 %v713
      %723 = vmatmul.bf16.gmra.mxu0 %v710
      %v724 = vpop.f32.mrf.mxu0
      %v725 = vadd.f32 0.0, %v724
      %v726 = vpop.f32.mrf.mxu0
      %727 = vdwg.mxu0
      %729 = vrot.lane.b32.xlu0 %v611, 8
      %v730 = vpop.permute.xlu0 %729
      %733 = vrot.lane.b32.xlu0 %v668, 16
      %v734 = vpop.permute.xlu0 %733
      %737 = vrot.lane.b32.xlu0 %v725, 24
      %v738 = vpop.permute.xlu0 %737
      %v740 = vsel %vm501, %v553, %v730
      %vm741 = vcmask 130048
      %v742 = vsel %vm741, %v740, %v734
      %vm743 = vcmask 195584
      %v744 = vsel %vm743, %v742, %v738
      %v745 = vpack.c.bf16 %v744, %v744
      %v747 = vperm.slane %v494, 0
      %v753 = vunpack.c.l.b16 %v490
      %v754 = vunpack.c.l.b16 %v491
      %v755 = vunpack.c.l.b16 %v492
      %v756 = vunpack.c.l.b16 %v493
      %v757 = vpack.c.b16 %v754, %v753
      %v758 = vpack.c.b16 %v756, %v755
      %v762 = vsel %vm473, %v745, 0
      %764 = vmatpush.bf16.msra.mxu0 0
      %765 = vmatpush.bf16.msra.mxu0 0
      %766 = vmatpush.bf16.msra.mxu0 0
      %767 = vmatpush.bf16.msra.mxu0 0
      %768 = vmatpush.bf16.msra.mxu0 0
      %769 = vmatpush.bf16.msra.mxu0 0
      %770 = vmatpush.bf16.msra.mxu0 %v758
      %771 = vmatpush.bf16.msra.mxu0 %v757
      %772 = vmatmul.bf16.gmra.mxu0 %v762
      %v773 = vpop.f32.mrf.mxu0
      %v774 = vadd.f32 %v747, %v773
      %v775 = vpop.f32.mrf.mxu0
      %776 = vdwg.mxu0
      %v777 = vadd.f32 %v446, %v774
      %v778 = vld [vmem:[%s6] sm:$0x1]
      %v779 = vld [vmem:[%s7] sm:$0x1]
      %v780 = vsel %vm473, %v777, 0.0
      %781 = vadd.xlane.f32.xlu0 %v780
      %v782 = vpop.xlane.xlu0 %781
      %v783 = vrcp.pop 32.0
      %v784 = vmul.f32 32.0, %v783
      %v785 = vsub.f32 1.0, %v784
      %v786 = vmul.f32 %v783, %v785
      %v787 = vadd.f32 %v783, %v786
      %vm788 = vweird.f32 %v783
      %v789 = vsel %vm788, %v783, %v787
      %v790 = vmul.f32 %v782, %v789
      %v791 = vsub.f32 %v777, %v790
      %v792 = vmul.f32 %v791, %v791
      %v793 = vsel %vm473, %v792, 0.0
      %794 = vadd.xlane.f32.xlu0 %v793
      %v795 = vpop.xlane.xlu0 %794
      %v796 = vmul.f32 %v795, %v789
      %v797 = vadd.f32 %v796, 1e-05
      %v798 = vrsqrt.pop %v797
      %v799 = vmul.f32 %v798, %v797
      %v800 = vmul.f32 %v799, %v798
      %v801 = vmul.f32 0.5, %v800
      %v802 = vsub.f32 1.5, %v801
      %v803 = vmul.f32 %v798, %v802
      %vm804 = vweird.f32 %v797
      %vm805 = vweird.f32 %v798
      %vm806 = vmor %vm804, %vm805
      %v807 = vsel %vm806, %v798, %v803
      %v808 = vmul.f32 %v791, %v807
      %v810 = vperm.slane %v778, 0
      %v812 = vmul.f32 %v808, %v810
      %v814 = vperm.slane %v779, 0
      %v816 = vadd.f32 %v812, %v814
      %v817 = vpack.c.bf16 %v816, %v816
      %v818 = vld [vmem:[%s8] sm:$0xf]
      %v819 = vld [vmem:[%s8 + $0x4] sm:$0xf]
      %v820 = vld [vmem:[%s8 + $0x8] sm:$0xf]
      %v821 = vld [vmem:[%s8 + $0xc] sm:$0xf]
      %v822 = vld [vmem:[%s9] sm:$0x1]
      %v824 = vperm.slane %v822, 0
      %v830 = vunpack.c.l.b16 %v818
      %v831 = vunpack.c.l.b16 %v819
      %v832 = vunpack.c.l.b16 %v820
      %v833 = vunpack.c.l.b16 %v821
      %v834 = vpack.c.b16 %v831, %v830
      %v835 = vpack.c.b16 %v833, %v832
      %v839 = vsel %vm473, %v817, 0
      %841 = vmatpush.bf16.msra.mxu0 0
      %842 = vmatpush.bf16.msra.mxu0 0
      %843 = vmatpush.bf16.msra.mxu0 0
      %844 = vmatpush.bf16.msra.mxu0 0
      %845 = vmatpush.bf16.msra.mxu0 0
      %846 = vmatpush.bf16.msra.mxu0 0
      %847 = vmatpush.bf16.msra.mxu0 %v835
      %848 = vmatpush.bf16.msra.mxu0 %v834
      %849 = vmatmul.bf16.gmra.mxu0 %v839
      %v850 = vpop.f32.mrf.mxu0
      %v851 = vadd.f32 %v824, %v850
      %v852 = vpop.f32.mrf.mxu0
      %853 = vdwg.mxu0
      %v854 = vmax.f32 %v851, 0.0
      %v855 = vpack.c.bf16 %v854, %v854
      %v856 = vld [vmem:[%s10] sm:$0xf]
      %v857 = vld [vmem:[%s10 + $0x4] sm:$0xf]
      %v858 = vld [vmem:[%s10 + $0x8] sm:$0xf]
      %v859 = vld [vmem:[%s10 + $0xc] sm:$0xf]
      %v860 = vld [vmem:[%s10 + $0x10] sm:$0xf]
      %v861 = vld [vmem:[%s10 + $0x14] sm:$0xf]
      %v862 = vld [vmem:[%s10 + $0x18] sm:$0xf]
      %v863 = vld [vmem:[%s10 + $0x1c] sm:$0xf]
      %v864 = vld [vmem:[%s11] sm:$0x1]
      %v866 = vperm.slane %v864, 0
      %v876 = vunpack.c.l.b16 %v856
      %v877 = vunpack.c.l.b16 %v857
      %v878 = vunpack.c.l.b16 %v858
      %v879 = vunpack.c.l.b16 %v859
      %v880 = vunpack.c.l.b16 %v860
      %v881 = vunpack.c.l.b16 %v861
      %v882 = vunpack.c.l.b16 %v862
      %v883 = vunpack.c.l.b16 %v863
      %v884 = vpack.c.b16 %v877, %v876
      %v885 = vpack.c.b16 %v879, %v878
      %v886 = vpack.c.b16 %v881, %v880
      %v887 = vpack.c.b16 %v883, %v882
      %vm892 = vcmask 523264
      %v894 = vsel %vm892, %v855, 0
      %896 = vmatpush.bf16.msra.mxu0 0
      %897 = vmatpush.bf16.msra.mxu0 0
      %898 = vmatpush.bf16.msra.mxu0 0
      %899 = vmatpush.bf16.msra.mxu0 0
      %900 = vmatpush.bf16.msra.mxu0 %v887
      %901 = vmatpush.bf16.msra.mxu0 %v886
      %902 = vmatpush.bf16.msra.mxu0 %v885
      %903 = vmatpush.bf16.msra.mxu0 %v884
      %904 = vmatmul.bf16.gmra.mxu0 %v894
      %v905 = vpop.f32.mrf.mxu0
      %v906 = vadd.f32 %v866, %v905
      %v907 = vpop.f32.mrf.mxu0
      %908 = vdwg.mxu0
      %v909 = vadd.f32 %v816, %v906
      %v910 = vld [vmem:[%s12] sm:$0x1]
      %v911 = vld [vmem:[%s13] sm:$0x1]
      %v912 = vsel %vm473, %v909, 0.0
      %913 = vadd.xlane.f32.xlu0 %v912
      %v914 = vpop.xlane.xlu0 %913
      %v915 = vmul.f32 %v914, %v789
      %v916 = vsub.f32 %v909, %v915
      %v917 = vmul.f32 %v916, %v916
      %v918 = vsel %vm473, %v917, 0.0
      %919 = vadd.xlane.f32.xlu0 %v918
      %v920 = vpop.xlane.xlu0 %919
      %v921 = vmul.f32 %v920, %v789
      %v922 = vadd.f32 %v921, 1e-05
      %v923 = vrsqrt.pop %v922
      %v924 = vmul.f32 %v923, %v922
      %v925 = vmul.f32 %v924, %v923
      %v926 = vmul.f32 0.5, %v925
      %v927 = vsub.f32 1.5, %v926
      %v928 = vmul.f32 %v923, %v927
      %vm929 = vweird.f32 %v922
      %vm930 = vweird.f32 %v923
      %vm931 = vmor %vm929, %vm930
      %v932 = vsel %vm931, %v923, %v928
      %v933 = vmul.f32 %v916, %v932
      %v935 = vperm.slane %v910, 0
      %v937 = vmul.f32 %v933, %v935
      %v939 = vperm.slane %v911, 0
      %v941 = vadd.f32 %v937, %v939
      %942 = vst.msk [vmem:[%s444] sm:$0xff] %vm473, %v941
      %p943 = scmp.lt.s32.totalorder %s33, 1
      %s944 = scalar_select %p943, %s33, 1
      %s945 = smul.addr %s944, 8
      %s946 = scalar_lea.vmem %s14, %s945
      // Predicated region
      $region73: #{_lambda_.5} parent=71 // pred_check
        %p947 = pneg %p329
      $region74: #{_lambda_.5} parent=71 // pred_check_branch
        %949 = sbr.rel (%p947) target = $region76
      $region75: #{_lambda_.5} parent=71 // pred_region
        _
      $region76: #{_lambda_.5} parent=71 // pred_fallthru
        _
    $region72: #{_lambda_.5} parent=5 // pred_fallthru
      _
    %p950 = scmp.le.s32.totalorder 2, %s28
    // Predicated region
    $region77: #{_lambda_.5} parent=5 // pred_check
      %p951 = pneg %p950
    $region78: #{_lambda_.5} parent=5 // pred_check_branch
      %953 = sbr.rel (%p951) target = $region80
    $region79: #{_lambda_.5} parent=5 // pred_region
      %s954 = ssub.s32 %s28, 2
      // Predicated region
      $region81: #{_lambda_.5} parent=79 // pred_check
        %p955 = pneg %p335
      $region82: #{_lambda_.5} parent=79 // pred_check_branch
        %957 = sbr.rel (%p955) target = $region84
      $region83: #{_lambda_.5} parent=79 // pred_region
        %p958 = scmp.lt.s32.totalorder %s34, 1
        %s959 = scalar_select %p958, %s34, 1
        %s960 = smul.addr %s959, 8
        %s961 = scalar_lea.vmem %s14, %s960
      $region84: #{_lambda_.5} parent=79 // pred_fallthru
        _
    $region80: #{_lambda_.5} parent=5 // pred_fallthru
      _
  $region6: #{_lambda_.5} parent=0 // loop_footer
    %s32 = sadd.s32 1, %s28
  $region7: #{_lambda_.5} parent=0 // loop_footer_branch
    %27 = sbr.rel target = $region3
  $region8: #{_lambda_.5} parent=0 // loop_exit
    _

// kernel: _lambda_.8
$region0: #{_lambda_.8}
  #allocation0 [shape = 'u32[]', space=smem, size = 0x4, offset = 0x4, fixed_abs, tag = 'smem constant byte address 0x4 - core index']
  #allocation1 [shape = 'u32[72,128]{1,0:T(1,128)}', space=vmem, size = 0x9000, scoped, tag = 'internal scratch']
  #allocation2 [shape = 's32[1]{0}', space=sflag, size = 0x4, scoped, tag = 'scoped memory for _lambda_.8']
  #allocation3 [shape = 'u8[512]{0}', space=smem, size = 0x200, scoped, tag = 'prefetched SMEM operand 0']
  %s0 = inlined_call_operand.vmem [shape: s32[2], index: 0, kind: input, shape index: {}]
  %s1 = inlined_call_operand.vmem [shape: f32[16,32], index: 1, kind: input, shape index: {}]
  %s2 = inlined_call_operand.vmem [shape: f32[16,32], index: 2, kind: input, shape index: {}]
  %s3 = inlined_call_operand.vmem [shape: bf16[32,96], index: 3, kind: input, shape index: {}]
  %s4 = inlined_call_operand.hbm [shape: f32[1,96], index: 4, kind: input, shape index: {}]
  %s5 = inlined_call_operand.vmem [shape: bf16[32,32], index: 5, kind: input, shape index: {}]
  %s6 = inlined_call_operand.hbm [shape: f32[1,32], index: 6, kind: input, shape index: {}]
  %s7 = inlined_call_operand.hbm [shape: f32[1,32], index: 7, kind: input, shape index: {}]
  %s8 = inlined_call_operand.hbm [shape: f32[1,32], index: 8, kind: input, shape index: {}]
  %s9 = inlined_call_operand.vmem [shape: bf16[32,32], index: 9, kind: input, shape index: {}]
  %s10 = inlined_call_operand.hbm [shape: f32[1,32], index: 10, kind: input, shape index: {}]
  %s11 = inlined_call_operand.vmem [shape: bf16[32,64], index: 11, kind: input, shape index: {}]
  %s12 = inlined_call_operand.hbm [shape: f32[1,64], index: 12, kind: input, shape index: {}]
  %s13 = inlined_call_operand.vmem [shape: bf16[32,32], index: 13, kind: input, shape index: {}]
  %s14 = inlined_call_operand.hbm [shape: f32[1,32], index: 14, kind: input, shape index: {}]
  %s15 = inlined_call_operand.hbm [shape: f32[1,32], index: 15, kind: input, shape index: {}]
  %s16 = inlined_call_operand.hbm [shape: f32[1,32], index: 16, kind: input, shape index: {}]
  %s17 = inlined_call_operand.vmem [shape: bf16[32,64], index: 17, kind: input, shape index: {}]
  %s18 = inlined_call_operand.hbm [shape: f32[1,64], index: 18, kind: input, shape index: {}]
  %s19 = inlined_call_operand.vmem [shape: bf16[64,32], index: 19, kind: input, shape index: {}]
  %s20 = inlined_call_operand.hbm [shape: f32[1,32], index: 20, kind: input, shape index: {}]
  %s21 = inlined_call_operand.hbm [shape: f32[1,32], index: 21, kind: input, shape index: {}]
  %s22 = inlined_call_operand.hbm [shape: f32[1,32], index: 22, kind: input, shape index: {}]
  %s23 = inlined_call_operand.vmem [shape: f32[16,32], index: 23, kind: output, shape index: {}]
  %s24 = sld [smem:[#allocation0]]
  $region173: #{_lambda_.8} parent=0
    _
  %s26 = ssub.s32 1, %s24
  %s27 = scalar_select 0, %s26, %s24
  %s29 = sshll.u32 %s0, 4
  %s30 = int_to_ptr.vmem [resolvable:$true] %s29
  %32 = dma.vmem_to_smem %s30, 16, [#allocation3], [#allocation2]
  %34 = dma.done [#allocation2], 16
  %35 = sfence
  $region1: #{_lambda_.8} parent=0
    #allocation4 [shape = 'u8[512]{0}', space=vmem, size = 0x400, scoped, tag = 'input window, operand 4, single buffered']
    #allocation5 [shape = 's32[2]{0}', space=sflag, size = 0x8, scoped, tag = 'scoped memory for _lambda_.8']
    #allocation6 [shape = 'u8[512]{0}', space=vmem, size = 0x400, scoped, tag = 'input window, operand 6, single buffered']
    #allocation7 [shape = 's32[1]{0}', space=sflag, size = 0x4, scoped, tag = 'scoped memory for _lambda_.8']
    #allocation8 [shape = 'u8[512]{0}', space=vmem, size = 0x400, scoped, tag = 'input window, operand 7, single buffered']
    #allocation9 [shape = 'u8[512]{0}', space=vmem, size = 0x400, scoped, tag = 'input window, operand 8, single buffered']
    #allocation10 [shape = 's32[1]{0}', space=sflag, size = 0x4, scoped, tag = 'scoped memory for _lambda_.8']
    #allocation11 [shape = 'u8[512]{0}', space=vmem, size = 0x400, scoped, tag = 'input window, operand 10, single buffered']
    #allocation12 [shape = 'u8[512]{0}', space=vmem, size = 0x400, scoped, tag = 'input window, operand 12, single buffered']
    #allocation13 [shape = 's32[1]{0}', space=sflag, size = 0x4, scoped, tag = 'scoped memory for _lambda_.8']
    #allocation14 [shape = 'u8[512]{0}', space=vmem, size = 0x400, scoped, tag = 'input window, operand 14, single buffered']
    #allocation15 [shape = 'u8[512]{0}', space=vmem, size = 0x400, scoped, tag = 'input window, operand 15, single buffered']
    #allocation16 [shape = 's32[1]{0}', space=sflag, size = 0x4, scoped, tag = 'scoped memory for _lambda_.8']
    #allocation17 [shape = 'u8[512]{0}', space=vmem, size = 0x400, scoped, tag = 'input window, operand 16, single buffered']
    #allocation18 [shape = 'u8[512]{0}', space=vmem, size = 0x400, scoped, tag = 'input window, operand 18, single buffered']
    #allocation19 [shape = 's32[1]{0}', space=sflag, size = 0x4, scoped, tag = 'scoped memory for _lambda_.8']
    #allocation20 [shape = 'u8[512]{0}', space=vmem, size = 0x400, scoped, tag = 'input window, operand 20, single buffered']
    #allocation21 [shape = 'u8[512]{0}', space=vmem, size = 0x400, scoped, tag = 'input window, operand 21, single buffered']
    #allocation22 [shape = 's32[1]{0}', space=sflag, size = 0x4, scoped, tag = 'scoped memory for _lambda_.8']
    #allocation23 [shape = 'u8[512]{0}', space=vmem, size = 0x400, scoped, tag = 'input window, operand 22, single buffered']
    %36 = vsyncpa [#allocation5], 0
    %37 = vsyncpa [#allocation7], 0
    %38 = vsyncpa [#allocation10], 0
    %39 = vsyncpa [#allocation13], 0
    %40 = vsyncpa [#allocation16], 0
    %41 = vsyncpa [#allocation19], 0
    %42 = vsyncpa [#allocation22], 0
    loop: start=0, step=1, limit=4
    $region2: #{_lambda_.8} parent=1 // loop_pre_header
      _
    $region3: #{_lambda_.8} parent=1 // loop_header
      %s44 = sphi 0, %s48
      %p45 = scmp.ge.s32.totalorder %s44, 4
      %s54 = sphi 0, %s56
      %s57 = sphi 0, %s54
      %s58 = sphi 0, %s57
      %s74 = sphi 0, %s58
      %s80 = sphi 0, %s82
      %s83 = sphi 0, %s80
      %s84 = sphi 0, %s83
      %s100 = sphi 0, %s84
      %s104 = sphi 0, %s104
      %s106 = sphi 0, %s104
      %s107 = sphi 0, %s106
      %s121 = sphi 0, %s107
      %s125 = sphi 0, %s125
      %s127 = sphi 0, %s125
      %s128 = sphi 0, %s127
      %s142 = sphi 0, %s128
      %s146 = sphi 0, %s146
      %s148 = sphi 0, %s146
      %s149 = sphi 0, %s148
      %s163 = sphi 0, %s149
      %s167 = sphi 0, %s167
      %s169 = sphi 0, %s167
      %s170 = sphi 0, %s169
      %s184 = sphi 0, %s170
      %s188 = sphi 0, %s188
      %s190 = sphi 0, %s188
      %s191 = sphi 0, %s190
      %s205 = sphi 0, %s191
      %s209 = sphi 0, %s209
      %s211 = sphi 0, %s209
      %s212 = sphi 0, %s211
      %s226 = sphi 0, %s212
      %s230 = sphi 0, %s230
      %s232 = sphi 0, %s230
      %s233 = sphi 0, %s232
      %s247 = sphi 0, %s233
      %s251 = sphi 0, %s251
      %s253 = sphi 0, %s251
      %s254 = sphi 0, %s253
      %s268 = sphi 0, %s254
      %s272 = sphi 0, %s272
      %s274 = sphi 0, %s272
      %s275 = sphi 0, %s274
      %s289 = sphi 0, %s275
      %s293 = sphi 0, %s293
      %s295 = sphi 0, %s293
      %s296 = sphi 0, %s295
      %s310 = sphi 0, %s296
      %s314 = sphi 0, %s314
      %s316 = sphi 0, %s314
      %s317 = sphi 0, %s316
      %s331 = sphi 0, %s317
      %s335 = sphi 0, %s335
      %s337 = sphi 0, %s335
      %s338 = sphi 0, %s337
      %s352 = sphi 0, %s338
      %s356 = sphi 0, %s356
      %s358 = sphi 0, %s356
      %s359 = sphi 0, %s358
      %s373 = sphi 0, %s359
      %s377 = sphi 0, %s377
      %s379 = sphi 0, %s377
      %s380 = sphi 0, %s379
      %s394 = sphi 0, %s380
      %s398 = sphi 0, %s398
      %s400 = sphi 0, %s398
      %s401 = sphi 0, %s400
      %s415 = sphi 0, %s401
      %s419 = sphi 0, %s419
      %s421 = sphi 0, %s419
      %s422 = sphi 0, %s421
      %s436 = sphi 0, %s422
      %s440 = sphi 0, %s440
      %s442 = sphi 0, %s440
      %s443 = sphi 0, %s442
      %s457 = sphi 0, %s443
      %s461 = sphi 0, %s461
      %s463 = sphi 0, %s461
      %s464 = sphi 0, %s463
      %s478 = sphi 0, %s464
      %s482 = sphi 0, %s482
      %s484 = sphi 0, %s482
      %s485 = sphi 0, %s484
      %s499 = sphi 0, %s485
      %s503 = sphi 0, %s503
      %s505 = sphi 0, %s503
      %s506 = sphi 0, %s505
      %s520 = sphi 0, %s506
      %s526 = sphi 0, %s528
      %s529 = sphi 0, %s526
      %s530 = sphi 0, %s529
      %s546 = sphi 0, %s530
    $region4: #{_lambda_.8} parent=1 // loop_header_branch
      %47 = sbr.rel (%p45) target = $region8
    $region5: #{_lambda_.8} parent=1 // loop_body
      %s49 = ssub.s32 %s44, 1
      %s50 = ssub.s32 %s44, 2
      %s51 = sadd.s32 %s44, 1
      %s52 = ssub.s32 %s44, %s51
      %p53 = scmp.eq.s32.totalorder %s52, 0
      %s55 = sadd.s32 %s54, 1
      %s56 = scalar_select %p53, %s54, %s55
      %p59 = pneg %p53
      %p60 = scmp.eq.s32.totalorder %s44, 1
      %p61 = por %p59, %p60
      %p62 = scmp.ne.s32.totalorder %s54, %s57
      %p63 = scmp.eq.s32.totalorder %s44, 0
      %p64 = por %p62, %p63
      %p65 = scmp.ne.s32.totalorder %s54, %s57
      %p66 = scmp.eq.s32.totalorder %s49, 1
      %p67 = por %p65, %p66
      %p68 = scmp.ne.s32.totalorder %s57, %s58
      %p69 = scmp.eq.s32.totalorder %s49, 0
      %p70 = por %p68, %p69
      %p71 = scmp.ne.s32.totalorder %s57, %s58
      %p72 = scmp.eq.s32.totalorder %s50, 1
      %p73 = por %p71, %p72
      %p75 = scmp.ne.s32.totalorder %s58, %s74
      %p76 = scmp.eq.s32.totalorder %s50, 0
      %p77 = por %p75, %p76
      %s78 = ssub.s32 %s44, %s51
      %p79 = scmp.eq.s32.totalorder %s78, 0
      %s81 = sadd.s32 %s80, 1
      %s82 = scalar_select %p79, %s80, %s81
      %p85 = pneg %p79
      %p86 = scmp.eq.s32.totalorder %s44, 1
      %p87 = por %p85, %p86
      %p88 = scmp.ne.s32.totalorder %s80, %s83
      %p89 = scmp.eq.s32.totalorder %s44, 0
      %p90 = por %p88, %p89
      %p91 = scmp.ne.s32.totalorder %s80, %s83
      %p92 = scmp.eq.s32.totalorder %s49, 1
      %p93 = por %p91, %p92
      %p94 = scmp.ne.s32.totalorder %s83, %s84
      %p95 = scmp.eq.s32.totalorder %s49, 0
      %p96 = por %p94, %p95
      %p97 = scmp.ne.s32.totalorder %s83, %s84
      %p98 = scmp.eq.s32.totalorder %s50, 1
      %p99 = por %p97, %p98
      %p101 = scmp.ne.s32.totalorder %s84, %s100
      %p102 = scmp.eq.s32.totalorder %s50, 0
      %p103 = por %p101, %p102
      %s105 = sadd.s32 %s104, 1
      %p108 = scmp.eq.s32.totalorder %s44, 1
      %p109 = scmp.ne.s32.totalorder %s104, %s106
      %p110 = scmp.eq.s32.totalorder %s44, 0
      %p111 = por %p109, %p110
      %p112 = scmp.ne.s32.totalorder %s104, %s106
      %p113 = scmp.eq.s32.totalorder %s49, 1
      %p114 = por %p112, %p113
      %p115 = scmp.ne.s32.totalorder %s106, %s107
      %p116 = scmp.eq.s32.totalorder %s49, 0
      %p117 = por %p115, %p116
      %p118 = scmp.ne.s32.totalorder %s106, %s107
      %p119 = scmp.eq.s32.totalorder %s50, 1
      %p120 = por %p118, %p119
      %p122 = scmp.ne.s32.totalorder %s107, %s121
      %p123 = scmp.eq.s32.totalorder %s50, 0
      %p124 = por %p122, %p123
      %s126 = sadd.s32 %s125, 1
      %p129 = scmp.eq.s32.totalorder %s44, 1
      %p130 = scmp.ne.s32.totalorder %s125, %s127
      %p131 = scmp.eq.s32.totalorder %s44, 0
      %p132 = por %p130, %p131
      %p133 = scmp.ne.s32.totalorder %s125, %s127
      %p134 = scmp.eq.s32.totalorder %s49, 1
      %p135 = por %p133, %p134
      %p136 = scmp.ne.s32.totalorder %s127, %s128
      %p137 = scmp.eq.s32.totalorder %s49, 0
      %p138 = por %p136, %p137
      %p139 = scmp.ne.s32.totalorder %s127, %s128
      %p140 = scmp.eq.s32.totalorder %s50, 1
      %p141 = por %p139, %p140
      %p143 = scmp.ne.s32.totalorder %s128, %s142
      %p144 = scmp.eq.s32.totalorder %s50, 0
      %p145 = por %p143, %p144
      %s147 = sadd.s32 %s146, 1
      %p150 = scmp.eq.s32.totalorder %s44, 1
      %p151 = scmp.ne.s32.totalorder %s146, %s148
      %p152 = scmp.eq.s32.totalorder %s44, 0
      %p153 = por %p151, %p152
      %p154 = scmp.ne.s32.totalorder %s146, %s148
      %p155 = scmp.eq.s32.totalorder %s49, 1
      %p156 = por %p154, %p155
      %p157 = scmp.ne.s32.totalorder %s148, %s149
      %p158 = scmp.eq.s32.totalorder %s49, 0
      %p159 = por %p157, %p158
      %p160 = scmp.ne.s32.totalorder %s148, %s149
      %p161 = scmp.eq.s32.totalorder %s50, 1
      %p162 = por %p160, %p161
      %p164 = scmp.ne.s32.totalorder %s149, %s163
      %p165 = scmp.eq.s32.totalorder %s50, 0
      %p166 = por %p164, %p165
      %s168 = sadd.s32 %s167, 1
      %p171 = scmp.eq.s32.totalorder %s44, 1
      %p172 = scmp.ne.s32.totalorder %s167, %s169
      %p173 = scmp.eq.s32.totalorder %s44, 0
      %p174 = por %p172, %p173
      %p175 = scmp.ne.s32.totalorder %s167, %s169
      %p176 = scmp.eq.s32.totalorder %s49, 1
      %p177 = por %p175, %p176
      %p178 = scmp.ne.s32.totalorder %s169, %s170
      %p179 = scmp.eq.s32.totalorder %s49, 0
      %p180 = por %p178, %p179
      %p181 = scmp.ne.s32.totalorder %s169, %s170
      %p182 = scmp.eq.s32.totalorder %s50, 1
      %p183 = por %p181, %p182
      %p185 = scmp.ne.s32.totalorder %s170, %s184
      %p186 = scmp.eq.s32.totalorder %s50, 0
      %p187 = por %p185, %p186
      %s189 = sadd.s32 %s188, 1
      %p192 = scmp.eq.s32.totalorder %s44, 1
      %p193 = scmp.ne.s32.totalorder %s188, %s190
      %p194 = scmp.eq.s32.totalorder %s44, 0
      %p195 = por %p193, %p194
      %p196 = scmp.ne.s32.totalorder %s188, %s190
      %p197 = scmp.eq.s32.totalorder %s49, 1
      %p198 = por %p196, %p197
      %p199 = scmp.ne.s32.totalorder %s190, %s191
      %p200 = scmp.eq.s32.totalorder %s49, 0
      %p201 = por %p199, %p200
      %p202 = scmp.ne.s32.totalorder %s190, %s191
      %p203 = scmp.eq.s32.totalorder %s50, 1
      %p204 = por %p202, %p203
      %p206 = scmp.ne.s32.totalorder %s191, %s205
      %p207 = scmp.eq.s32.totalorder %s50, 0
      %p208 = por %p206, %p207
      %s210 = sadd.s32 %s209, 1
      %p213 = scmp.eq.s32.totalorder %s44, 1
      %p214 = scmp.ne.s32.totalorder %s209, %s211
      %p215 = scmp.eq.s32.totalorder %s44, 0
      %p216 = por %p214, %p215
      %p217 = scmp.ne.s32.totalorder %s209, %s211
      %p218 = scmp.eq.s32.totalorder %s49, 1
      %p219 = por %p217, %p218
      %p220 = scmp.ne.s32.totalorder %s211, %s212
      %p221 = scmp.eq.s32.totalorder %s49, 0
      %p222 = por %p220, %p221
      %p223 = scmp.ne.s32.totalorder %s211, %s212
      %p224 = scmp.eq.s32.totalorder %s50, 1
      %p225 = por %p223, %p224
      %p227 = scmp.ne.s32.totalorder %s212, %s226
      %p228 = scmp.eq.s32.totalorder %s50, 0
      %p229 = por %p227, %p228
      %s231 = sadd.s32 %s230, 1
      %p234 = scmp.eq.s32.totalorder %s44, 1
      %p235 = scmp.ne.s32.totalorder %s230, %s232
      %p236 = scmp.eq.s32.totalorder %s44, 0
      %p237 = por %p235, %p236
      %p238 = scmp.ne.s32.totalorder %s230, %s232
      %p239 = scmp.eq.s32.totalorder %s49, 1
      %p240 = por %p238, %p239
      %p241 = scmp.ne.s32.totalorder %s232, %s233
      %p242 = scmp.eq.s32.totalorder %s49, 0
      %p243 = por %p241, %p242
      %p244 = scmp.ne.s32.totalorder %s232, %s233
      %p245 = scmp.eq.s32.totalorder %s50, 1
      %p246 = por %p244, %p245
      %p248 = scmp.ne.s32.totalorder %s233, %s247
      %p249 = scmp.eq.s32.totalorder %s50, 0
      %p250 = por %p248, %p249
      %s252 = sadd.s32 %s251, 1
      %p255 = scmp.eq.s32.totalorder %s44, 1
      %p256 = scmp.ne.s32.totalorder %s251, %s253
      %p257 = scmp.eq.s32.totalorder %s44, 0
      %p258 = por %p256, %p257
      %p259 = scmp.ne.s32.totalorder %s251, %s253
      %p260 = scmp.eq.s32.totalorder %s49, 1
      %p261 = por %p259, %p260
      %p262 = scmp.ne.s32.totalorder %s253, %s254
      %p263 = scmp.eq.s32.totalorder %s49, 0
      %p264 = por %p262, %p263
      %p265 = scmp.ne.s32.totalorder %s253, %s254
      %p266 = scmp.eq.s32.totalorder %s50, 1
      %p267 = por %p265, %p266
      %p269 = scmp.ne.s32.totalorder %s254, %s268
      %p270 = scmp.eq.s32.totalorder %s50, 0
      %p271 = por %p269, %p270
      %s273 = sadd.s32 %s272, 1
      %p276 = scmp.eq.s32.totalorder %s44, 1
      %p277 = scmp.ne.s32.totalorder %s272, %s274
      %p278 = scmp.eq.s32.totalorder %s44, 0
      %p279 = por %p277, %p278
      %p280 = scmp.ne.s32.totalorder %s272, %s274
      %p281 = scmp.eq.s32.totalorder %s49, 1
      %p282 = por %p280, %p281
      %p283 = scmp.ne.s32.totalorder %s274, %s275
      %p284 = scmp.eq.s32.totalorder %s49, 0
      %p285 = por %p283, %p284
      %p286 = scmp.ne.s32.totalorder %s274, %s275
      %p287 = scmp.eq.s32.totalorder %s50, 1
      %p288 = por %p286, %p287
      %p290 = scmp.ne.s32.totalorder %s275, %s289
      %p291 = scmp.eq.s32.totalorder %s50, 0
      %p292 = por %p290, %p291
      %s294 = sadd.s32 %s293, 1
      %p297 = scmp.eq.s32.totalorder %s44, 1
      %p298 = scmp.ne.s32.totalorder %s293, %s295
      %p299 = scmp.eq.s32.totalorder %s44, 0
      %p300 = por %p298, %p299
      %p301 = scmp.ne.s32.totalorder %s293, %s295
      %p302 = scmp.eq.s32.totalorder %s49, 1
      %p303 = por %p301, %p302
      %p304 = scmp.ne.s32.totalorder %s295, %s296
      %p305 = scmp.eq.s32.totalorder %s49, 0
      %p306 = por %p304, %p305
      %p307 = scmp.ne.s32.totalorder %s295, %s296
      %p308 = scmp.eq.s32.totalorder %s50, 1
      %p309 = por %p307, %p308
      %p311 = scmp.ne.s32.totalorder %s296, %s310
      %p312 = scmp.eq.s32.totalorder %s50, 0
      %p313 = por %p311, %p312
      %s315 = sadd.s32 %s314, 1
      %p318 = scmp.eq.s32.totalorder %s44, 1
      %p319 = scmp.ne.s32.totalorder %s314, %s316
      %p320 = scmp.eq.s32.totalorder %s44, 0
      %p321 = por %p319, %p320
      %p322 = scmp.ne.s32.totalorder %s314, %s316
      %p323 = scmp.eq.s32.totalorder %s49, 1
      %p324 = por %p322, %p323
      %p325 = scmp.ne.s32.totalorder %s316, %s317
      %p326 = scmp.eq.s32.totalorder %s49, 0
      %p327 = por %p325, %p326
      %p328 = scmp.ne.s32.totalorder %s316, %s317
      %p329 = scmp.eq.s32.totalorder %s50, 1
      %p330 = por %p328, %p329
      %p332 = scmp.ne.s32.totalorder %s317, %s331
      %p333 = scmp.eq.s32.totalorder %s50, 0
      %p334 = por %p332, %p333
      %s336 = sadd.s32 %s335, 1
      %p339 = scmp.eq.s32.totalorder %s44, 1
      %p340 = scmp.ne.s32.totalorder %s335, %s337
      %p341 = scmp.eq.s32.totalorder %s44, 0
      %p342 = por %p340, %p341
      %p343 = scmp.ne.s32.totalorder %s335, %s337
      %p344 = scmp.eq.s32.totalorder %s49, 1
      %p345 = por %p343, %p344
      %p346 = scmp.ne.s32.totalorder %s337, %s338
      %p347 = scmp.eq.s32.totalorder %s49, 0
      %p348 = por %p346, %p347
      %p349 = scmp.ne.s32.totalorder %s337, %s338
      %p350 = scmp.eq.s32.totalorder %s50, 1
      %p351 = por %p349, %p350
      %p353 = scmp.ne.s32.totalorder %s338, %s352
      %p354 = scmp.eq.s32.totalorder %s50, 0
      %p355 = por %p353, %p354
      %s357 = sadd.s32 %s356, 1
      %p360 = scmp.eq.s32.totalorder %s44, 1
      %p361 = scmp.ne.s32.totalorder %s356, %s358
      %p362 = scmp.eq.s32.totalorder %s44, 0
      %p363 = por %p361, %p362
      %p364 = scmp.ne.s32.totalorder %s356, %s358
      %p365 = scmp.eq.s32.totalorder %s49, 1
      %p366 = por %p364, %p365
      %p367 = scmp.ne.s32.totalorder %s358, %s359
      %p368 = scmp.eq.s32.totalorder %s49, 0
      %p369 = por %p367, %p368
      %p370 = scmp.ne.s32.totalorder %s358, %s359
      %p371 = scmp.eq.s32.totalorder %s50, 1
      %p372 = por %p370, %p371
      %p374 = scmp.ne.s32.totalorder %s359, %s373
      %p375 = scmp.eq.s32.totalorder %s50, 0
      %p376 = por %p374, %p375
      %s378 = sadd.s32 %s377, 1
      %p381 = scmp.eq.s32.totalorder %s44, 1
      %p382 = scmp.ne.s32.totalorder %s377, %s379
      %p383 = scmp.eq.s32.totalorder %s44, 0
      %p384 = por %p382, %p383
      %p385 = scmp.ne.s32.totalorder %s377, %s379
      %p386 = scmp.eq.s32.totalorder %s49, 1
      %p387 = por %p385, %p386
      %p388 = scmp.ne.s32.totalorder %s379, %s380
      %p389 = scmp.eq.s32.totalorder %s49, 0
      %p390 = por %p388, %p389
      %p391 = scmp.ne.s32.totalorder %s379, %s380
      %p392 = scmp.eq.s32.totalorder %s50, 1
      %p393 = por %p391, %p392
      %p395 = scmp.ne.s32.totalorder %s380, %s394
      %p396 = scmp.eq.s32.totalorder %s50, 0
      %p397 = por %p395, %p396
      %s399 = sadd.s32 %s398, 1
      %p402 = scmp.eq.s32.totalorder %s44, 1
      %p403 = scmp.ne.s32.totalorder %s398, %s400
      %p404 = scmp.eq.s32.totalorder %s44, 0
      %p405 = por %p403, %p404
      %p406 = scmp.ne.s32.totalorder %s398, %s400
      %p407 = scmp.eq.s32.totalorder %s49, 1
      %p408 = por %p406, %p407
      %p409 = scmp.ne.s32.totalorder %s400, %s401
      %p410 = scmp.eq.s32.totalorder %s49, 0
      %p411 = por %p409, %p410
      %p412 = scmp.ne.s32.totalorder %s400, %s401
      %p413 = scmp.eq.s32.totalorder %s50, 1
      %p414 = por %p412, %p413
      %p416 = scmp.ne.s32.totalorder %s401, %s415
      %p417 = scmp.eq.s32.totalorder %s50, 0
      %p418 = por %p416, %p417
      %s420 = sadd.s32 %s419, 1
      %p423 = scmp.eq.s32.totalorder %s44, 1
      %p424 = scmp.ne.s32.totalorder %s419, %s421
      %p425 = scmp.eq.s32.totalorder %s44, 0
      %p426 = por %p424, %p425
      %p427 = scmp.ne.s32.totalorder %s419, %s421
      %p428 = scmp.eq.s32.totalorder %s49, 1
      %p429 = por %p427, %p428
      %p430 = scmp.ne.s32.totalorder %s421, %s422
      %p431 = scmp.eq.s32.totalorder %s49, 0
      %p432 = por %p430, %p431
      %p433 = scmp.ne.s32.totalorder %s421, %s422
      %p434 = scmp.eq.s32.totalorder %s50, 1
      %p435 = por %p433, %p434
      %p437 = scmp.ne.s32.totalorder %s422, %s436
      %p438 = scmp.eq.s32.totalorder %s50, 0
      %p439 = por %p437, %p438
      %s441 = sadd.s32 %s440, 1
      %p444 = scmp.eq.s32.totalorder %s44, 1
      %p445 = scmp.ne.s32.totalorder %s440, %s442
      %p446 = scmp.eq.s32.totalorder %s44, 0
      %p447 = por %p445, %p446
      %p448 = scmp.ne.s32.totalorder %s440, %s442
      %p449 = scmp.eq.s32.totalorder %s49, 1
      %p450 = por %p448, %p449
      %p451 = scmp.ne.s32.totalorder %s442, %s443
      %p452 = scmp.eq.s32.totalorder %s49, 0
      %p453 = por %p451, %p452
      %p454 = scmp.ne.s32.totalorder %s442, %s443
      %p455 = scmp.eq.s32.totalorder %s50, 1
      %p456 = por %p454, %p455
      %p458 = scmp.ne.s32.totalorder %s443, %s457
      %p459 = scmp.eq.s32.totalorder %s50, 0
      %p460 = por %p458, %p459
      %s462 = sadd.s32 %s461, 1
      %p465 = scmp.eq.s32.totalorder %s44, 1
      %p466 = scmp.ne.s32.totalorder %s461, %s463
      %p467 = scmp.eq.s32.totalorder %s44, 0
      %p468 = por %p466, %p467
      %p469 = scmp.ne.s32.totalorder %s461, %s463
      %p470 = scmp.eq.s32.totalorder %s49, 1
      %p471 = por %p469, %p470
      %p472 = scmp.ne.s32.totalorder %s463, %s464
      %p473 = scmp.eq.s32.totalorder %s49, 0
      %p474 = por %p472, %p473
      %p475 = scmp.ne.s32.totalorder %s463, %s464
      %p476 = scmp.eq.s32.totalorder %s50, 1
      %p477 = por %p475, %p476
      %p479 = scmp.ne.s32.totalorder %s464, %s478
      %p480 = scmp.eq.s32.totalorder %s50, 0
      %p481 = por %p479, %p480
      %s483 = sadd.s32 %s482, 1
      %p486 = scmp.eq.s32.totalorder %s44, 1
      %p487 = scmp.ne.s32.totalorder %s482, %s484
      %p488 = scmp.eq.s32.totalorder %s44, 0
      %p489 = por %p487, %p488
      %p490 = scmp.ne.s32.totalorder %s482, %s484
      %p491 = scmp.eq.s32.totalorder %s49, 1
      %p492 = por %p490, %p491
      %p493 = scmp.ne.s32.totalorder %s484, %s485
      %p494 = scmp.eq.s32.totalorder %s49, 0
      %p495 = por %p493, %p494
      %p496 = scmp.ne.s32.totalorder %s484, %s485
      %p497 = scmp.eq.s32.totalorder %s50, 1
      %p498 = por %p496, %p497
      %p500 = scmp.ne.s32.totalorder %s485, %s499
      %p501 = scmp.eq.s32.totalorder %s50, 0
      %p502 = por %p500, %p501
      %s504 = sadd.s32 %s503, 1
      %p507 = scmp.eq.s32.totalorder %s44, 1
      %p508 = scmp.ne.s32.totalorder %s503, %s505
      %p509 = scmp.eq.s32.totalorder %s44, 0
      %p510 = por %p508, %p509
      %p511 = scmp.ne.s32.totalorder %s503, %s505
      %p512 = scmp.eq.s32.totalorder %s49, 1
      %p513 = por %p511, %p512
      %p514 = scmp.ne.s32.totalorder %s505, %s506
      %p515 = scmp.eq.s32.totalorder %s49, 0
      %p516 = por %p514, %p515
      %p517 = scmp.ne.s32.totalorder %s505, %s506
      %p518 = scmp.eq.s32.totalorder %s50, 1
      %p519 = por %p517, %p518
      %p521 = scmp.ne.s32.totalorder %s506, %s520
      %p522 = scmp.eq.s32.totalorder %s50, 0
      %p523 = por %p521, %p522
      %s524 = ssub.s32 %s44, %s51
      %p525 = scmp.eq.s32.totalorder %s524, 0
      %s527 = sadd.s32 %s526, 1
      %s528 = scalar_select %p525, %s526, %s527
      %p531 = pneg %p525
      %p532 = scmp.eq.s32.totalorder %s44, 1
      %p533 = por %p531, %p532
      %p534 = scmp.ne.s32.totalorder %s526, %s529
      %p535 = scmp.eq.s32.totalorder %s44, 0
      %p536 = por %p534, %p535
      %p537 = scmp.ne.s32.totalorder %s526, %s529
      %p538 = scmp.eq.s32.totalorder %s49, 1
      %p539 = por %p537, %p538
      %p540 = scmp.ne.s32.totalorder %s529, %s530
      %p541 = scmp.eq.s32.totalorder %s49, 0
      %p542 = por %p540, %p541
      %p543 = scmp.ne.s32.totalorder %s529, %s530
      %p544 = scmp.eq.s32.totalorder %s50, 1
      %p545 = por %p543, %p544
      %p547 = scmp.ne.s32.totalorder %s530, %s546
      %p548 = scmp.eq.s32.totalorder %s50, 0
      %p549 = por %p547, %p548
      %p550 = scmp.le.s32.totalorder 1, %s44
      %p551 = scmp.lt.s32.totalorder %s44, 3
      %p552 = pnand %p550, %p551
      %p553 = pneg %p552
      // Predicated region
      $region9: #{_lambda_.8} parent=5 // pred_check
        _
      $region10: #{_lambda_.8} parent=5 // pred_check_branch
        %555 = sbr.rel (%p552) target = $region12
      $region11: #{_lambda_.8} parent=5 // pred_region
        %s556 = ssub.s32 %s44, 1
        // Predicated region
        $region13: #{_lambda_.8} parent=11 // pred_check
          %p557 = pneg %p117
        $region14: #{_lambda_.8} parent=11 // pred_check_branch
          %559 = sbr.rel (%p557) target = $region16
        $region15: #{_lambda_.8} parent=11 // pred_region
          _
        $region16: #{_lambda_.8} parent=11 // pred_fallthru
          _
        // Predicated region
        $region17: #{_lambda_.8} parent=11 // pred_check
          %p560 = pneg %p138
        $region18: #{_lambda_.8} parent=11 // pred_check_branch
          %562 = sbr.rel (%p560) target = $region20
        $region19: #{_lambda_.8} parent=11 // pred_region
          %564 = vsyncadd [#allocation5], 0
          %s566 = sshll.u32 %s4, 4
          %s567 = int_to_ptr.hbm [resolvable:$true] %s566
          %s568 = sshll.u32 [#allocation4], 4
          %s569 = int_to_ptr.vmem [resolvable:$true] %s568
          %571 = dma.hbm_to_vmem [thread:$0]  %s567, 16, %s569, [#allocation5]
        $region20: #{_lambda_.8} parent=11 // pred_fallthru
          _
        // Predicated region
        $region21: #{_lambda_.8} parent=11 // pred_check
          %p572 = pneg %p159
        $region22: #{_lambda_.8} parent=11 // pred_check_branch
          %574 = sbr.rel (%p572) target = $region24
        $region23: #{_lambda_.8} parent=11 // pred_region
          _
        $region24: #{_lambda_.8} parent=11 // pred_fallthru
          _
        // Predicated region
        $region25: #{_lambda_.8} parent=11 // pred_check
          %p575 = pneg %p180
        $region26: #{_lambda_.8} parent=11 // pred_check_branch
          %577 = sbr.rel (%p575) target = $region28
        $region27: #{_lambda_.8} parent=11 // pred_region
          %579 = vsyncadd [#allocation7], 0
          %s581 = sshll.u32 %s6, 4
          %s582 = int_to_ptr.hbm [resolvable:$true] %s581
          %s583 = sshll.u32 [#allocation6], 4
          %s584 = int_to_ptr.vmem [resolvable:$true] %s583
          %586 = dma.hbm_to_vmem [thread:$0]  %s582, 16, %s584, [#allocation7]
        $region28: #{_lambda_.8} parent=11 // pred_fallthru
          _
        // Predicated region
        $region29: #{_lambda_.8} parent=11 // pred_check
          %p587 = pneg %p201
        $region30: #{_lambda_.8} parent=11 // pred_check_branch
          %589 = sbr.rel (%p587) target = $region32
        $region31: #{_lambda_.8} parent=11 // pred_region
          %591 = vsyncadd [#allocation7], 0
          %s593 = sshll.u32 %s7, 4
          %s594 = int_to_ptr.hbm [resolvable:$true] %s593
          %s595 = sshll.u32 [#allocation8], 4
          %s596 = int_to_ptr.vmem [resolvable:$true] %s595
          %598 = dma.hbm_to_vmem [thread:$0]  %s594, 16, %s596, [#allocation7]
        $region32: #{_lambda_.8} parent=11 // pred_fallthru
          _
        // Predicated region
        $region33: #{_lambda_.8} parent=11 // pred_check
          %p599 = pneg %p222
        $region34: #{_lambda_.8} parent=11 // pred_check_branch
          %601 = sbr.rel (%p599) target = $region36
        $region35: #{_lambda_.8} parent=11 // pred_region
          %603 = vsyncadd [#allocation10], 0
          %s605 = sshll.u32 %s8, 4
          %s606 = int_to_ptr.hbm [resolvable:$true] %s605
          %s607 = sshll.u32 [#allocation9], 4
          %s608 = int_to_ptr.vmem [resolvable:$true] %s607
          %610 = dma.hbm_to_vmem [thread:$0]  %s606, 16, %s608, [#allocation10]
        $region36: #{_lambda_.8} parent=11 // pred_fallthru
          _
        // Predicated region
        $region37: #{_lambda_.8} parent=11 // pred_check
          %p611 = pneg %p243
        $region38: #{_lambda_.8} parent=11 // pred_check_branch
          %613 = sbr.rel (%p611) target = $region40
        $region39: #{_lambda_.8} parent=11 // pred_region
          _
        $region40: #{_lambda_.8} parent=11 // pred_fallthru
          _
        // Predicated region
        $region41: #{_lambda_.8} parent=11 // pred_check
          %p614 = pneg %p264
        $region42: #{_lambda_.8} parent=11 // pred_check_branch
          %616 = sbr.rel (%p614) target = $region44
        $region43: #{_lambda_.8} parent=11 // pred_region
          %618 = vsyncadd [#allocation10], 0
          %s620 = sshll.u32 %s10, 4
          %s621 = int_to_ptr.hbm [resolvable:$true] %s620
          %s622 = sshll.u32 [#allocation11], 4
          %s623 = int_to_ptr.vmem [resolvable:$true] %s622
          %625 = dma.hbm_to_vmem [thread:$0]  %s621, 16, %s623, [#allocation10]
        $region44: #{_lambda_.8} parent=11 // pred_fallthru
          _
        // Predicated region
        $region45: #{_lambda_.8} parent=11 // pred_check
          %p626 = pneg %p285
        $region46: #{_lambda_.8} parent=11 // pred_check_branch
          %628 = sbr.rel (%p626) target = $region48
        $region47: #{_lambda_.8} parent=11 // pred_region
          _
        $region48: #{_lambda_.8} parent=11 // pred_fallthru
          _
        // Predicated region
        $region49: #{_lambda_.8} parent=11 // pred_check
          %p629 = pneg %p306
        $region50: #{_lambda_.8} parent=11 // pred_check_branch
          %631 = sbr.rel (%p629) target = $region52
        $region51: #{_lambda_.8} parent=11 // pred_region
          %633 = vsyncadd [#allocation13], 0
          %s635 = sshll.u32 %s12, 4
          %s636 = int_to_ptr.hbm [resolvable:$true] %s635
          %s637 = sshll.u32 [#allocation12], 4
          %s638 = int_to_ptr.vmem [resolvable:$true] %s637
          %640 = dma.hbm_to_vmem [thread:$0]  %s636, 16, %s638, [#allocation13]
        $region52: #{_lambda_.8} parent=11 // pred_fallthru
          _
        // Predicated region
        $region53: #{_lambda_.8} parent=11 // pred_check
          %p641 = pneg %p327
        $region54: #{_lambda_.8} parent=11 // pred_check_branch
          %643 = sbr.rel (%p641) target = $region56
        $region55: #{_lambda_.8} parent=11 // pred_region
          _
        $region56: #{_lambda_.8} parent=11 // pred_fallthru
          _
        // Predicated region
        $region57: #{_lambda_.8} parent=11 // pred_check
          %p644 = pneg %p348
        $region58: #{_lambda_.8} parent=11 // pred_check_branch
          %646 = sbr.rel (%p644) target = $region60
        $region59: #{_lambda_.8} parent=11 // pred_region
          %648 = vsyncadd [#allocation13], 0
          %s650 = sshll.u32 %s14, 4
          %s651 = int_to_ptr.hbm [resolvable:$true] %s650
          %s652 = sshll.u32 [#allocation14], 4
          %s653 = int_to_ptr.vmem [resolvable:$true] %s652
          %655 = dma.hbm_to_vmem [thread:$0]  %s651, 16, %s653, [#allocation13]
        $region60: #{_lambda_.8} parent=11 // pred_fallthru
          _
        // Predicated region
        $region61: #{_lambda_.8} parent=11 // pred_check
          %p656 = pneg %p369
        $region62: #{_lambda_.8} parent=11 // pred_check_branch
          %658 = sbr.rel (%p656) target = $region64
        $region63: #{_lambda_.8} parent=11 // pred_region
          %660 = vsyncadd [#allocation16], 0
          %s662 = sshll.u32 %s15, 4
          %s663 = int_to_ptr.hbm [resolvable:$true] %s662
          %s664 = sshll.u32 [#allocation15], 4
          %s665 = int_to_ptr.vmem [resolvable:$true] %s664
          %667 = dma.hbm_to_vmem [thread:$0]  %s663, 16, %s665, [#allocation16]
        $region64: #{_lambda_.8} parent=11 // pred_fallthru
          _
        // Predicated region
        $region65: #{_lambda_.8} parent=11 // pred_check
          %p668 = pneg %p390
        $region66: #{_lambda_.8} parent=11 // pred_check_branch
          %670 = sbr.rel (%p668) target = $region68
        $region67: #{_lambda_.8} parent=11 // pred_region
          %672 = vsyncadd [#allocation16], 0
          %s674 = sshll.u32 %s16, 4
          %s675 = int_to_ptr.hbm [resolvable:$true] %s674
          %s676 = sshll.u32 [#allocation17], 4
          %s677 = int_to_ptr.vmem [resolvable:$true] %s676
          %679 = dma.hbm_to_vmem [thread:$0]  %s675, 16, %s677, [#allocation16]
        $region68: #{_lambda_.8} parent=11 // pred_fallthru
          _
        // Predicated region
        $region69: #{_lambda_.8} parent=11 // pred_check
          %p680 = pneg %p411
        $region70: #{_lambda_.8} parent=11 // pred_check_branch
          %682 = sbr.rel (%p680) target = $region72
        $region71: #{_lambda_.8} parent=11 // pred_region
          _
        $region72: #{_lambda_.8} parent=11 // pred_fallthru
          _
        // Predicated region
        $region73: #{_lambda_.8} parent=11 // pred_check
          %p683 = pneg %p432
        $region74: #{_lambda_.8} parent=11 // pred_check_branch
          %685 = sbr.rel (%p683) target = $region76
        $region75: #{_lambda_.8} parent=11 // pred_region
          %687 = vsyncadd [#allocation19], 0
          %s689 = sshll.u32 %s18, 4
          %s690 = int_to_ptr.hbm [resolvable:$true] %s689
          %s691 = sshll.u32 [#allocation18], 4
          %s692 = int_to_ptr.vmem [resolvable:$true] %s691
          %694 = dma.hbm_to_vmem [thread:$0]  %s690, 16, %s692, [#allocation19]
        $region76: #{_lambda_.8} parent=11 // pred_fallthru
          _
        // Predicated region
        $region77: #{_lambda_.8} parent=11 // pred_check
          %p695 = pneg %p453
        $region78: #{_lambda_.8} parent=11 // pred_check_branch
          %697 = sbr.rel (%p695) target = $region80
        $region79: #{_lambda_.8} parent=11 // pred_region
          _
        $region80: #{_lambda_.8} parent=11 // pred_fallthru
          _
        // Predicated region
        $region81: #{_lambda_.8} parent=11 // pred_check
          %p698 = pneg %p474
        $region82: #{_lambda_.8} parent=11 // pred_check_branch
          %700 = sbr.rel (%p698) target = $region84
        $region83: #{_lambda_.8} parent=11 // pred_region
          %702 = vsyncadd [#allocation19], 0
          %s704 = sshll.u32 %s20, 4
          %s705 = int_to_ptr.hbm [resolvable:$true] %s704
          %s706 = sshll.u32 [#allocation20], 4
          %s707 = int_to_ptr.vmem [resolvable:$true] %s706
          %709 = dma.hbm_to_vmem [thread:$0]  %s705, 16, %s707, [#allocation19]
        $region84: #{_lambda_.8} parent=11 // pred_fallthru
          _
        // Predicated region
        $region85: #{_lambda_.8} parent=11 // pred_check
          %p710 = pneg %p495
        $region86: #{_lambda_.8} parent=11 // pred_check_branch
          %712 = sbr.rel (%p710) target = $region88
        $region87: #{_lambda_.8} parent=11 // pred_region
          %714 = vsyncadd [#allocation22], 0
          %s716 = sshll.u32 %s21, 4
          %s717 = int_to_ptr.hbm [resolvable:$true] %s716
          %s718 = sshll.u32 [#allocation21], 4
          %s719 = int_to_ptr.vmem [resolvable:$true] %s718
          %721 = dma.hbm_to_vmem [thread:$0]  %s717, 16, %s719, [#allocation22]
        $region88: #{_lambda_.8} parent=11 // pred_fallthru
          _
        // Predicated region
        $region89: #{_lambda_.8} parent=11 // pred_check
          %p722 = pneg %p516
        $region90: #{_lambda_.8} parent=11 // pred_check_branch
          %724 = sbr.rel (%p722) target = $region92
        $region91: #{_lambda_.8} parent=11 // pred_region
          %726 = vsyncadd [#allocation22], 0
          %s728 = sshll.u32 %s22, 4
          %s729 = int_to_ptr.hbm [resolvable:$true] %s728
          %s730 = sshll.u32 [#allocation23], 4
          %s731 = int_to_ptr.vmem [resolvable:$true] %s730
          %733 = dma.hbm_to_vmem [thread:$0]  %s729, 16, %s731, [#allocation22]
        $region92: #{_lambda_.8} parent=11 // pred_fallthru
          _
      $region12: #{_lambda_.8} parent=5 // pred_fallthru
        _
      %p734 = scmp.lt.s32.totalorder %s44, 2
      // Predicated region
      $region93: #{_lambda_.8} parent=5 // pred_check
        %p735 = pneg %p734
      $region94: #{_lambda_.8} parent=5 // pred_check_branch
        %737 = sbr.rel (%p735) target = $region96
      $region95: #{_lambda_.8} parent=5 // pred_region
        // Predicated region
        $region97: #{_lambda_.8} parent=95 // pred_check
          %p738 = pneg %p64
        $region98: #{_lambda_.8} parent=95 // pred_check_branch
          %740 = sbr.rel (%p738) target = $region100
        $region99: #{_lambda_.8} parent=95 // pred_region
          %p741 = scmp.lt.s32.totalorder %s44, 1
          %s742 = scalar_select %p741, %s44, 1
          %s743 = smul.addr %s742, 8
          %s744 = scalar_lea.vmem %s1, %s743
        $region100: #{_lambda_.8} parent=95 // pred_fallthru
          _
        // Predicated region
        $region101: #{_lambda_.8} parent=95 // pred_check
          %p745 = pneg %p90
        $region102: #{_lambda_.8} parent=95 // pred_check_branch
          %747 = sbr.rel (%p745) target = $region104
        $region103: #{_lambda_.8} parent=95 // pred_region
          %p748 = scmp.lt.s32.totalorder %s44, 1
          %s749 = scalar_select %p748, %s44, 1
          %s750 = smul.addr %s749, 8
          %s751 = scalar_lea.vmem %s2, %s750
        $region104: #{_lambda_.8} parent=95 // pred_fallthru
          _
      $region96: #{_lambda_.8} parent=5 // pred_fallthru
        _
      %p752 = scmp.le.s32.totalorder 1, %s44
      %p753 = scmp.lt.s32.totalorder %s44, 3
      %p754 = pnand %p752, %p753
      %p755 = pneg %p754
      // Predicated region
      $region105: #{_lambda_.8} parent=5 // pred_check
        _
      $region106: #{_lambda_.8} parent=5 // pred_check_branch
        %757 = sbr.rel (%p754) target = $region108
      $region107: #{_lambda_.8} parent=5 // pred_region
        %s758 = ssub.s32 %s44, 1
        // Predicated region
        $region109: #{_lambda_.8} parent=107 // pred_check
          %p759 = pneg %p138
        $region110: #{_lambda_.8} parent=107 // pred_check_branch
          %761 = sbr.rel (%p759) target = $region112
        $region111: #{_lambda_.8} parent=107 // pred_region
          %763 = dma.done [#allocation5], 16
        $region112: #{_lambda_.8} parent=107 // pred_fallthru
          _
        // Predicated region
        $region113: #{_lambda_.8} parent=107 // pred_check
          %p764 = pneg %p180
        $region114: #{_lambda_.8} parent=107 // pred_check_branch
          %766 = sbr.rel (%p764) target = $region116
        $region115: #{_lambda_.8} parent=107 // pred_region
          %768 = dma.done [#allocation7], 16
        $region116: #{_lambda_.8} parent=107 // pred_fallthru
          _
        // Predicated region
        $region117: #{_lambda_.8} parent=107 // pred_check
          %p769 = pneg %p201
        $region118: #{_lambda_.8} parent=107 // pred_check_branch
          %771 = sbr.rel (%p769) target = $region120
        $region119: #{_lambda_.8} parent=107 // pred_region
          %773 = dma.done [#allocation7], 16
        $region120: #{_lambda_.8} parent=107 // pred_fallthru
          _
        // Predicated region
        $region121: #{_lambda_.8} parent=107 // pred_check
          %p774 = pneg %p222
        $region122: #{_lambda_.8} parent=107 // pred_check_branch
          %776 = sbr.rel (%p774) target = $region124
        $region123: #{_lambda_.8} parent=107 // pred_region
          %778 = dma.done [#allocation10], 16
        $region124: #{_lambda_.8} parent=107 // pred_fallthru
          _
        // Predicated region
        $region125: #{_lambda_.8} parent=107 // pred_check
          %p779 = pneg %p264
        $region126: #{_lambda_.8} parent=107 // pred_check_branch
          %781 = sbr.rel (%p779) target = $region128
        $region127: #{_lambda_.8} parent=107 // pred_region
          %783 = dma.done [#allocation10], 16
        $region128: #{_lambda_.8} parent=107 // pred_fallthru
          _
        // Predicated region
        $region129: #{_lambda_.8} parent=107 // pred_check
          %p784 = pneg %p306
        $region130: #{_lambda_.8} parent=107 // pred_check_branch
          %786 = sbr.rel (%p784) target = $region132
        $region131: #{_lambda_.8} parent=107 // pred_region
          %788 = dma.done [#allocation13], 16
        $region132: #{_lambda_.8} parent=107 // pred_fallthru
          _
        // Predicated region
        $region133: #{_lambda_.8} parent=107 // pred_check
          %p789 = pneg %p348
        $region134: #{_lambda_.8} parent=107 // pred_check_branch
          %791 = sbr.rel (%p789) target = $region136
        $region135: #{_lambda_.8} parent=107 // pred_region
          %793 = dma.done [#allocation13], 16
        $region136: #{_lambda_.8} parent=107 // pred_fallthru
          _
        // Predicated region
        $region137: #{_lambda_.8} parent=107 // pred_check
          %p794 = pneg %p369
        $region138: #{_lambda_.8} parent=107 // pred_check_branch
          %796 = sbr.rel (%p794) target = $region140
        $region139: #{_lambda_.8} parent=107 // pred_region
          %798 = dma.done [#allocation16], 16
        $region140: #{_lambda_.8} parent=107 // pred_fallthru
          _
        // Predicated region
        $region141: #{_lambda_.8} parent=107 // pred_check
          %p799 = pneg %p390
        $region142: #{_lambda_.8} parent=107 // pred_check_branch
          %801 = sbr.rel (%p799) target = $region144
        $region143: #{_lambda_.8} parent=107 // pred_region
          %803 = dma.done [#allocation16], 16
        $region144: #{_lambda_.8} parent=107 // pred_fallthru
          _
        // Predicated region
        $region145: #{_lambda_.8} parent=107 // pred_check
          %p804 = pneg %p432
        $region146: #{_lambda_.8} parent=107 // pred_check_branch
          %806 = sbr.rel (%p804) target = $region148
        $region147: #{_lambda_.8} parent=107 // pred_region
          %808 = dma.done [#allocation19], 16
        $region148: #{_lambda_.8} parent=107 // pred_fallthru
          _
        // Predicated region
        $region149: #{_lambda_.8} parent=107 // pred_check
          %p809 = pneg %p474
        $region150: #{_lambda_.8} parent=107 // pred_check_branch
          %811 = sbr.rel (%p809) target = $region152
        $region151: #{_lambda_.8} parent=107 // pred_region
          %813 = dma.done [#allocation19], 16
        $region152: #{_lambda_.8} parent=107 // pred_fallthru
          _
        // Predicated region
        $region153: #{_lambda_.8} parent=107 // pred_check
          %p814 = pneg %p495
        $region154: #{_lambda_.8} parent=107 // pred_check_branch
          %816 = sbr.rel (%p814) target = $region156
        $region155: #{_lambda_.8} parent=107 // pred_region
          %818 = dma.done [#allocation22], 16
        $region156: #{_lambda_.8} parent=107 // pred_fallthru
          _
        // Predicated region
        $region157: #{_lambda_.8} parent=107 // pred_check
          %p819 = pneg %p516
        $region158: #{_lambda_.8} parent=107 // pred_check_branch
          %821 = sbr.rel (%p819) target = $region160
        $region159: #{_lambda_.8} parent=107 // pred_region
          %823 = dma.done [#allocation22], 16
        $region160: #{_lambda_.8} parent=107 // pred_fallthru
          _
        %p824 = scmp.lt.s32.totalorder %s49, 1
        %s825 = scalar_select %p824, %s49, 1
        %s826 = smul.addr %s825, 8
        %s827 = scalar_lea.vmem %s1, %s826
        %p828 = pneg %p70
        %p829 = pneg %p67
        %p830 = scmp.lt.s32.totalorder %s49, 1
        %s831 = scalar_select %p830, %s49, 1
        %s832 = smul.addr %s831, 8
        %s833 = scalar_lea.vmem %s2, %s832
        %p834 = pneg %p96
        %p835 = pneg %p93
        %p836 = pneg %p117
        %p837 = pneg %p114
        %p838 = pneg %p138
        %p839 = pneg %p135
        %p840 = pneg %p159
        %p841 = pneg %p156
        %p842 = pneg %p180
        %p843 = pneg %p177
        %p844 = pneg %p201
        %p845 = pneg %p198
        %p846 = pneg %p222
        %p847 = pneg %p219
        %p848 = pneg %p243
        %p849 = pneg %p240
        %p850 = pneg %p264
        %p851 = pneg %p261
        %p852 = pneg %p285
        %p853 = pneg %p282
        %p854 = pneg %p306
        %p855 = pneg %p303
        %p856 = pneg %p327
        %p857 = pneg %p324
        %p858 = pneg %p348
        %p859 = pneg %p345
        %p860 = pneg %p369
        %p861 = pneg %p366
        %p862 = pneg %p390
        %p863 = pneg %p387
        %p864 = pneg %p411
        %p865 = pneg %p408
        %p866 = pneg %p432
        %p867 = pneg %p429
        %p868 = pneg %p453
        %p869 = pneg %p450
        %p870 = pneg %p474
        %p871 = pneg %p471
        %p872 = pneg %p495
        %p873 = pneg %p492
        %p874 = pneg %p516
        %p875 = pneg %p513
        %p876 = pneg %p542
        %p877 = pneg %p539
        %p878 = scmp.lt.s32.totalorder %s49, 1
        %s879 = scalar_select %p878, %s49, 1
        %s880 = smul.addr %s879, 8
        %s881 = scalar_lea.vmem %s23, %s880
        %p882 = scmp.lt.s32.totalorder %s49, 1
        %s883 = scalar_select %p882, %s49, 1
        %s884 = smul.addr %s883, 8
        %s885 = scalar_lea.vmem %s1, %s884
        %p886 = scmp.lt.s32.totalorder %s49, 1
        %s887 = scalar_select %p886, %s49, 1
        %s888 = smul.addr %s887, 8
        %s889 = scalar_lea.vmem %s2, %s888
        %p890 = scmp.lt.s32.totalorder %s49, 1
        %s891 = scalar_select %p890, %s49, 1
        %s892 = smul.addr %s891, 8
        %s893 = scalar_lea.vmem %s23, %s892
        %v895 = vld [vmem:[%s885] sm:$0xff]
        %v896 = vld [vmem:[%s889] sm:$0xff]
        %s897 = sld [smem:[#allocation3 + %s49]]
        %v898 = vlaneseq
        %v899 = vand.u32 %v898, 127
        %v900 = vstv %s897
        %vm901 = vcmp.lt.s32.totalorder %v899, %v900
        %v902 = vpack.c.bf16 %v895, %v895
        %v903 = vld [vmem:[%s3] sm:$0xf]
        %v904 = vld [vmem:[%s3 + $0x4] sm:$0xf]
        %v905 = vld [vmem:[%s3 + $0x8] sm:$0xf]
        %v906 = vld [vmem:[%s3 + $0xc] sm:$0xf]
        %v907 = vld [vmem:[#allocation4] sm:$0x1]
        %v909 = vperm.slane %v907, 0
        %v915 = vunpack.c.l.b16 %v903
        %v916 = vunpack.c.l.b16 %v904
        %v917 = vunpack.c.l.b16 %v905
        %v918 = vunpack.c.l.b16 %v906
        %v919 = vpack.c.b16 %v916, %v915
        %v920 = vpack.c.b16 %v918, %v917
        %vm923 = vcmask 261120
        %v925 = vsel %vm923, %v902, 0
        %927 = vmatpush.bf16.msra.mxu0 0
        %928 = vmatpush.bf16.msra.mxu0 0
        %929 = vmatpush.bf16.msra.mxu0 0
        %930 = vmatpush.bf16.msra.mxu0 0
        %931 = vmatpush.bf16.msra.mxu0 0
        %932 = vmatpush.bf16.msra.mxu0 0
        %933 = vmatpush.bf16.msra.mxu0 %v920
        %934 = vmatpush.bf16.msra.mxu0 %v919
        %935 = vmatmul.bf16.gmra.mxu0 %v925
        %v936 = vpop.f32.mrf.mxu0
        %v937 = vadd.f32 %v909, %v936
        %v938 = vpop.f32.mrf.mxu0
        %939 = vdwg.mxu0
        %v940 = vld [vmem:[%s5] sm:$0xf]
        %v941 = vld [vmem:[%s5 + $0x4] sm:$0xf]
        %v942 = vld [vmem:[%s5 + $0x8] sm:$0xf]
        %v943 = vld [vmem:[%s5 + $0xc] sm:$0xf]
        %v944 = vld [vmem:[#allocation6] sm:$0x1]
        %v945 = vmul.f32 %v937, 0.35355338
        %v946 = vpack.c.bf16 %v945, %v945
        %v947 = vpack.c.bf16 %v937, %v937
        %949 = vrot.lane.b32.xlu0 %v947, 96
        %v950 = vpop.permute.xlu0 %949
        %vm951 = vcmask 64512
        %v953 = vsel %vm951, %v946, 0
        %v956 = vsel %vm951, %v950, 0
        %958 = vmatpush.bf16.xpose.msra.mxu0 0
        %959 = vmatpush.bf16.xpose.msra.mxu0 0
        %960 = vmatpush.bf16.xpose.msra.mxu0 0
        %961 = vmatpush.bf16.xpose.msra.mxu0 0
        %962 = vmatpush.bf16.xpose.msra.mxu0 0
        %963 = vmatpush.bf16.xpose.msra.mxu0 0
        %964 = vmatpush.bf16.xpose.msra.mxu0 0
        %965 = vmatpush.bf16.xpose.msra.mxu0 %v956
        %966 = vmatmul.bf16.gmra.mxu0 %v953
        %v967 = vpop.f32.mrf.mxu0
        %v968 = vadd.f32 0.0, %v967
        %v969 = vpop.f32.mrf.mxu0
        %970 = vdwg.mxu0
        %v971 = vsel %vm951, %v968, -inf
        %972 = vmax.xlane.f32.xlu0 %v971
        %v973 = vpop.xlane.xlu0 %972
        %v974 = vsub.f32 %v968, %v973
        %v975 = vmul.f32 %v974, 1.442695
        %v976 = vpow.pop %v975
        %v977 = vsel %vm951, %v976, 0.0
        %978 = vadd.xlane.f32.xlu0 %v977
        %v979 = vpop.xlane.xlu0 %978
        %v980 = vrcp.pop %v979
        %v981 = vmul.f32 %v976, %v980
        %v982 = vpack.c.bf16 %v981, %v981
        %983 = vrot.lane.b32.xlu0 %v947, 64
        %v984 = vpop.permute.xlu0 %983
        %v986 = vsel %vm951, %v982, 0
        %vm988 = vcmask 1043456
        %v990 = vsel %vm988, %v984, 0
        %992 = vmatpush.bf16.msra.mxu0 0
        %993 = vmatpush.bf16.msra.mxu0 0
        %994 = vmatpush.bf16.msra.mxu0 0
        %995 = vmatpush.bf16.msra.mxu0 0
        %996 = vmatpush.bf16.msra.mxu0 0
        %997 = vmatpush.bf16.msra.mxu0 0
        %998 = vmatpush.bf16.msra.mxu0 0
        %999 = vmatpush.bf16.msra.mxu0 %v990
        %1000 = vmatmul.bf16.gmra.mxu0 %v986
        %v1001 = vpop.f32.mrf.mxu0
        %v1002 = vadd.f32 0.0, %v1001
        %v1003 = vpop.f32.mrf.mxu0
        %1004 = vdwg.mxu0
        %1006 = vrot.lane.b32.xlu0 %v946, 120
        %v1007 = vpop.permute.xlu0 %1006
        %1008 = vrot.lane.b32.xlu0 %v947, 88
        %v1009 = vpop.permute.xlu0 %1008
        %v1011 = vsel %vm951, %v1007, 0
        %v1014 = vsel %vm951, %v1009, 0
        %1016 = vmatpush.bf16.xpose.msra.mxu0 0
        %1017 = vmatpush.bf16.xpose.msra.mxu0 0
        %1018 = vmatpush.bf16.xpose.msra.mxu0 0
        %1019 = vmatpush.bf16.xpose.msra.mxu0 0
        %1020 = vmatpush.bf16.xpose.msra.mxu0 0
        %1021 = vmatpush.bf16.xpose.msra.mxu0 0
        %1022 = vmatpush.bf16.xpose.msra.mxu0 0
        %1023 = vmatpush.bf16.xpose.msra.mxu0 %v1014
        %1024 = vmatmul.bf16.gmra.mxu0 %v1011
        %v1025 = vpop.f32.mrf.mxu0
        %v1026 = vadd.f32 0.0, %v1025
        %v1027 = vpop.f32.mrf.mxu0
        %1028 = vdwg.mxu0
        %v1029 = vsel %vm951, %v1026, -inf
        %1030 = vmax.xlane.f32.xlu0 %v1029
        %v1031 = vpop.xlane.xlu0 %1030
        %v1032 = vsub.f32 %v1026, %v1031
        %v1033 = vmul.f32 %v1032, 1.442695
        %v1034 = vpow.pop %v1033
        %v1035 = vsel %vm951, %v1034, 0.0
        %1036 = vadd.xlane.f32.xlu0 %v1035
        %v1037 = vpop.xlane.xlu0 %1036
        %v1038 = vrcp.pop %v1037
        %v1039 = vmul.f32 %v1034, %v1038
        %v1040 = vpack.c.bf16 %v1039, %v1039
        %1041 = vrot.lane.b32.xlu0 %v947, 56
        %v1042 = vpop.permute.xlu0 %1041
        %v1044 = vsel %vm951, %v1040, 0
        %v1047 = vsel %vm988, %v1042, 0
        %1049 = vmatpush.bf16.msra.mxu0 0
        %1050 = vmatpush.bf16.msra.mxu0 0
        %1051 = vmatpush.bf16.msra.mxu0 0
        %1052 = vmatpush.bf16.msra.mxu0 0
        %1053 = vmatpush.bf16.msra.mxu0 0
        %1054 = vmatpush.bf16.msra.mxu0 0
        %1055 = vmatpush.bf16.msra.mxu0 0
        %1056 = vmatpush.bf16.msra.mxu0 %v1047
        %1057 = vmatmul.bf16.gmra.mxu0 %v1044
        %v1058 = vpop.f32.mrf.mxu0
        %v1059 = vadd.f32 0.0, %v1058
        %v1060 = vpop.f32.mrf.mxu0
        %1061 = vdwg.mxu0
        %1062 = vrot.lane.b32.xlu0 %v946, 112
        %v1063 = vpop.permute.xlu0 %1062
        %1064 = vrot.lane.b32.xlu0 %v947, 80
        %v1065 = vpop.permute.xlu0 %1064
        %v1067 = vsel %vm951, %v1063, 0
        %v1070 = vsel %vm951, %v1065, 0
        %1072 = vmatpush.bf16.xpose.msra.mxu0 0
        %1073 = vmatpush.bf16.xpose.msra.mxu0 0
        %1074 = vmatpush.bf16.xpose.msra.mxu0 0
        %1075 = vmatpush.bf16.xpose.msra.mxu0 0
        %1076 = vmatpush.bf16.xpose.msra.mxu0 0
        %1077 = vmatpush.bf16.xpose.msra.mxu0 0
        %1078 = vmatpush.bf16.xpose.msra.mxu0 0
        %1079 = vmatpush.bf16.xpose.msra.mxu0 %v1070
        %1080 = vmatmul.bf16.gmra.mxu0 %v1067
        %v1081 = vpop.f32.mrf.mxu0
        %v1082 = vadd.f32 0.0, %v1081
        %v1083 = vpop.f32.mrf.mxu0
        %1084 = vdwg.mxu0
        %v1085 = vsel %vm951, %v1082, -inf
        %1086 = vmax.xlane.f32.xlu0 %v1085
        %v1087 = vpop.xlane.xlu0 %1086
        %v1088 = vsub.f32 %v1082, %v1087
        %v1089 = vmul.f32 %v1088, 1.442695
        %v1090 = vpow.pop %v1089
        %v1091 = vsel %vm951, %v1090, 0.0
        %1092 = vadd.xlane.f32.xlu0 %v1091
        %v1093 = vpop.xlane.xlu0 %1092
        %v1094 = vrcp.pop %v1093
        %v1095 = vmul.f32 %v1090, %v1094
        %v1096 = vpack.c.bf16 %v1095, %v1095
        %1097 = vrot.lane.b32.xlu0 %v947, 48
        %v1098 = vpop.permute.xlu0 %1097
        %v1100 = vsel %vm951, %v1096, 0
        %v1103 = vsel %vm988, %v1098, 0
        %1105 = vmatpush.bf16.msra.mxu0 0
        %1106 = vmatpush.bf16.msra.mxu0 0
        %1107 = vmatpush.bf16.msra.mxu0 0
        %1108 = vmatpush.bf16.msra.mxu0 0
        %1109 = vmatpush.bf16.msra.mxu0 0
        %1110 = vmatpush.bf16.msra.mxu0 0
        %1111 = vmatpush.bf16.msra.mxu0 0
        %1112 = vmatpush.bf16.msra.mxu0 %v1103
        %1113 = vmatmul.bf16.gmra.mxu0 %v1100
        %v1114 = vpop.f32.mrf.mxu0
        %v1115 = vadd.f32 0.0, %v1114
        %v1116 = vpop.f32.mrf.mxu0
        %1117 = vdwg.mxu0
        %1118 = vrot.lane.b32.xlu0 %v946, 104
        %v1119 = vpop.permute.xlu0 %1118
        %1120 = vrot.lane.b32.xlu0 %v947, 72
        %v1121 = vpop.permute.xlu0 %1120
        %v1123 = vsel %vm951, %v1119, 0
        %v1126 = vsel %vm951, %v1121, 0
        %1128 = vmatpush.bf16.xpose.msra.mxu0 0
        %1129 = vmatpush.bf16.xpose.msra.mxu0 0
        %1130 = vmatpush.bf16.xpose.msra.mxu0 0
        %1131 = vmatpush.bf16.xpose.msra.mxu0 0
        %1132 = vmatpush.bf16.xpose.msra.mxu0 0
        %1133 = vmatpush.bf16.xpose.msra.mxu0 0
        %1134 = vmatpush.bf16.xpose.msra.mxu0 0
        %1135 = vmatpush.bf16.xpose.msra.mxu0 %v1126
        %1136 = vmatmul.bf16.gmra.mxu0 %v1123
        %v1137 = vpop.f32.mrf.mxu0
        %v1138 = vadd.f32 0.0, %v1137
        %v1139 = vpop.f32.mrf.mxu0
        %1140 = vdwg.mxu0
        %v1141 = vsel %vm951, %v1138, -inf
        %1142 = vmax.xlane.f32.xlu0 %v1141
        %v1143 = vpop.xlane.xlu0 %1142
        %v1144 = vsub.f32 %v1138, %v1143
        %v1145 = vmul.f32 %v1144, 1.442695
        %v1146 = vpow.pop %v1145
        %v1147 = vsel %vm951, %v1146, 0.0
        %1148 = vadd.xlane.f32.xlu0 %v1147
        %v1149 = vpop.xlane.xlu0 %1148
        %v1150 = vrcp.pop %v1149
        %v1151 = vmul.f32 %v1146, %v1150
        %v1152 = vpack.c.bf16 %v1151, %v1151
        %1153 = vrot.lane.b32.xlu0 %v947, 40
        %v1154 = vpop.permute.xlu0 %1153
        %v1156 = vsel %vm951, %v1152, 0
        %v1159 = vsel %vm988, %v1154, 0
        %1161 = vmatpush.bf16.msra.mxu0 0
        %1162 = vmatpush.bf16.msra.mxu0 0
        %1163 = vmatpush.bf16.msra.mxu0 0
        %1164 = vmatpush.bf16.msra.mxu0 0
        %1165 = vmatpush.bf16.msra.mxu0 0
        %1166 = vmatpush.bf16.msra.mxu0 0
        %1167 = vmatpush.bf16.msra.mxu0 0
        %1168 = vmatpush.bf16.msra.mxu0 %v1159
        %1169 = vmatmul.bf16.gmra.mxu0 %v1156
        %v1170 = vpop.f32.mrf.mxu0
        %v1171 = vadd.f32 0.0, %v1170
        %v1172 = vpop.f32.mrf.mxu0
        %1173 = vdwg.mxu0
        %1175 = vrot.lane.b32.xlu0 %v1059, 8
        %v1176 = vpop.permute.xlu0 %1175
        %1179 = vrot.lane.b32.xlu0 %v1115, 16
        %v1180 = vpop.permute.xlu0 %1179
        %1183 = vrot.lane.b32.xlu0 %v1171, 24
        %v1184 = vpop.permute.xlu0 %1183
        %v1186 = vsel %vm951, %v1002, %v1176
        %vm1187 = vcmask 130048
        %v1188 = vsel %vm1187, %v1186, %v1180
        %vm1189 = vcmask 195584
        %v1190 = vsel %vm1189, %v1188, %v1184
        %v1191 = vpack.c.bf16 %v1190, %v1190
        %v1193 = vperm.slane %v944, 0
        %v1199 = vunpack.c.l.b16 %v940
        %v1200 = vunpack.c.l.b16 %v941
        %v1201 = vunpack.c.l.b16 %v942
        %v1202 = vunpack.c.l.b16 %v943
        %v1203 = vpack.c.b16 %v1200, %v1199
        %v1204 = vpack.c.b16 %v1202, %v1201
        %v1208 = vsel %vm923, %v1191, 0
        %1210 = vmatpush.bf16.msra.mxu0 0
        %1211 = vmatpush.bf16.msra.mxu0 0
        %1212 = vmatpush.bf16.msra.mxu0 0
        %1213 = vmatpush.bf16.msra.mxu0 0
        %1214 = vmatpush.bf16.msra.mxu0 0
        %1215 = vmatpush.bf16.msra.mxu0 0
        %1216 = vmatpush.bf16.msra.mxu0 %v1204
        %1217 = vmatpush.bf16.msra.mxu0 %v1203
        %1218 = vmatmul.bf16.gmra.mxu0 %v1208
        %v1219 = vpop.f32.mrf.mxu0
        %v1220 = vadd.f32 %v1193, %v1219
        %v1221 = vpop.f32.mrf.mxu0
        %1222 = vdwg.mxu0
        %v1223 = vadd.f32 %v895, %v1220
        %v1224 = vld [vmem:[#allocation8] sm:$0x1]
        %v1225 = vld [vmem:[#allocation9] sm:$0x1]
        %v1226 = vsel %vm923, %v1223, 0.0
        %1227 = vadd.xlane.f32.xlu0 %v1226
        %v1228 = vpop.xlane.xlu0 %1227
        %v1229 = vrcp.pop 32.0
        %v1230 = vmul.f32 32.0, %v1229
        %v1231 = vsub.f32 1.0, %v1230
        %v1232 = vmul.f32 %v1229, %v1231
        %v1233 = vadd.f32 %v1229, %v1232
        %vm1234 = vweird.f32 %v1229
        %v1235 = vsel %vm1234, %v1229, %v1233
        %v1236 = vmul.f32 %v1228, %v1235
        %v1237 = vsub.f32 %v1223, %v1236
        %v1238 = vmul.f32 %v1237, %v1237
        %v1239 = vsel %vm923, %v1238, 0.0
        %1240 = vadd.xlane.f32.xlu0 %v1239
        %v1241 = vpop.xlane.xlu0 %1240
        %v1242 = vmul.f32 %v1241, %v1235
        %v1243 = vadd.f32 %v1242, 1e-05
        %v1244 = vrsqrt.pop %v1243
        %v1245 = vmul.f32 %v1244, %v1243
        %v1246 = vmul.f32 %v1245, %v1244
        %v1247 = vmul.f32 0.5, %v1246
        %v1248 = vsub.f32 1.5, %v1247
        %v1249 = vmul.f32 %v1244, %v1248
        %vm1250 = vweird.f32 %v1243
        %vm1251 = vweird.f32 %v1244
        %vm1252 = vmor %vm1250, %vm1251
        %v1253 = vsel %vm1252, %v1244, %v1249
        %v1254 = vmul.f32 %v1237, %v1253
        %v1256 = vperm.slane %v1224, 0
        %v1258 = vmul.f32 %v1254, %v1256
        %v1260 = vperm.slane %v1225, 0
        %v1262 = vadd.f32 %v1258, %v1260
        %v1263 = vpack.c.bf16 %v1262, %v1262
        %v1264 = vld [vmem:[%s9] sm:$0xf]
        %v1265 = vld [vmem:[%s9 + $0x4] sm:$0xf]
        %v1266 = vld [vmem:[%s9 + $0x8] sm:$0xf]
        %v1267 = vld [vmem:[%s9 + $0xc] sm:$0xf]
        %v1268 = vld [vmem:[#allocation11] sm:$0x1]
        %v1270 = vperm.slane %v1268, 0
        %v1276 = vunpack.c.l.b16 %v1264
        %v1277 = vunpack.c.l.b16 %v1265
        %v1278 = vunpack.c.l.b16 %v1266
        %v1279 = vunpack.c.l.b16 %v1267
        %v1280 = vpack.c.b16 %v1277, %v1276
        %v1281 = vpack.c.b16 %v1279, %v1278
        %v1285 = vsel %vm923, %v1263, 0
        %1287 = vmatpush.bf16.msra.mxu0 0
        %1288 = vmatpush.bf16.msra.mxu0 0
        %1289 = vmatpush.bf16.msra.mxu0 0
        %1290 = vmatpush.bf16.msra.mxu0 0
        %1291 = vmatpush.bf16.msra.mxu0 0
        %1292 = vmatpush.bf16.msra.mxu0 0
        %1293 = vmatpush.bf16.msra.mxu0 %v1281
        %1294 = vmatpush.bf16.msra.mxu0 %v1280
        %1295 = vmatmul.bf16.gmra.mxu0 %v1285
        %v1296 = vpop.f32.mrf.mxu0
        %v1297 = vadd.f32 %v1270, %v1296
        %v1298 = vpop.f32.mrf.mxu0
        %1299 = vdwg.mxu0
        %v1300 = vpack.c.bf16 %v896, %v896
        %v1301 = vld [vmem:[%s11] sm:$0xf]
        %v1302 = vld [vmem:[%s11 + $0x4] sm:$0xf]
        %v1303 = vld [vmem:[%s11 + $0x8] sm:$0xf]
        %v1304 = vld [vmem:[%s11 + $0xc] sm:$0xf]
        %v1305 = vld [vmem:[#allocation12] sm:$0x1]
        %v1307 = vperm.slane %v1305, 0
        %v1313 = vunpack.c.l.b16 %v1301
        %v1314 = vunpack.c.l.b16 %v1302
        %v1315 = vunpack.c.l.b16 %v1303
        %v1316 = vunpack.c.l.b16 %v1304
        %v1317 = vpack.c.b16 %v1314, %v1313
        %v1318 = vpack.c.b16 %v1316, %v1315
        %v1322 = vsel %vm923, %v1300, 0
        %1324 = vmatpush.bf16.msra.mxu0 0
        %1325 = vmatpush.bf16.msra.mxu0 0
        %1326 = vmatpush.bf16.msra.mxu0 0
        %1327 = vmatpush.bf16.msra.mxu0 0
        %1328 = vmatpush.bf16.msra.mxu0 0
        %1329 = vmatpush.bf16.msra.mxu0 0
        %1330 = vmatpush.bf16.msra.mxu0 %v1318
        %1331 = vmatpush.bf16.msra.mxu0 %v1317
        %1332 = vmatmul.bf16.gmra.mxu0 %v1322
        %v1333 = vpop.f32.mrf.mxu0
        %v1334 = vadd.f32 %v1307, %v1333
        %v1335 = vpop.f32.mrf.mxu0
        %1336 = vdwg.mxu0
        %v1337 = vld [vmem:[%s13] sm:$0xf]
        %v1338 = vld [vmem:[%s13 + $0x4] sm:$0xf]
        %v1339 = vld [vmem:[%s13 + $0x8] sm:$0xf]
        %v1340 = vld [vmem:[%s13 + $0xc] sm:$0xf]
        %v1341 = vld [vmem:[#allocation14] sm:$0x1]
        %v1342 = vmul.f32 %v1297, 0.35355338
        %v1343 = vpack.c.bf16 %v1342, %v1342
        %v1344 = vpack.c.bf16 %v1334, %v1334
        %v1346 = vsel %vm951, %v1343, 0
        %v1349 = vsel %vm951, %v1344, 0
        %1351 = vmatpush.bf16.xpose.msra.mxu0 0
        %1352 = vmatpush.bf16.xpose.msra.mxu0 0
        %1353 = vmatpush.bf16.xpose.msra.mxu0 0
        %1354 = vmatpush.bf16.xpose.msra.mxu0 0
        %1355 = vmatpush.bf16.xpose.msra.mxu0 0
        %1356 = vmatpush.bf16.xpose.msra.mxu0 0
        %1357 = vmatpush.bf16.xpose.msra.mxu0 0
        %1358 = vmatpush.bf16.xpose.msra.mxu0 %v1349
        %1359 = vmatmul.bf16.gmra.mxu0 %v1346
        %v1360 = vpop.f32.mrf.mxu0
        %v1361 = vadd.f32 0.0, %v1360
        %v1362 = vpop.f32.mrf.mxu0
        %1363 = vdwg.mxu0
        %v1364 = vsel %vm901, %v1361, -1000000.0
        %v1365 = vsel %vm951, %v1364, -inf
        %1366 = vmax.xlane.f32.xlu0 %v1365
        %v1367 = vpop.xlane.xlu0 %1366
        %v1368 = vsub.f32 %v1364, %v1367
        %v1369 = vmul.f32 %v1368, 1.442695
        %v1370 = vpow.pop %v1369
        %v1371 = vsel %vm951, %v1370, 0.0
        %1372 = vadd.xlane.f32.xlu0 %v1371
        %v1373 = vpop.xlane.xlu0 %1372
        %v1374 = vrcp.pop %v1373
        %v1375 = vmul.f32 %v1370, %v1374
        %v1376 = vpack.c.bf16 %v1375, %v1375
        %1378 = vrot.lane.b32.xlu0 %v1344, 96
        %v1379 = vpop.permute.xlu0 %1378
        %v1381 = vsel %vm951, %v1376, 0
        %v1384 = vsel %vm988, %v1379, 0
        %1386 = vmatpush.bf16.msra.mxu0 0
        %1387 = vmatpush.bf16.msra.mxu0 0
        %1388 = vmatpush.bf16.msra.mxu0 0
        %1389 = vmatpush.bf16.msra.mxu0 0
        %1390 = vmatpush.bf16.msra.mxu0 0
        %1391 = vmatpush.bf16.msra.mxu0 0
        %1392 = vmatpush.bf16.msra.mxu0 0
        %1393 = vmatpush.bf16.msra.mxu0 %v1384
        %1394 = vmatmul.bf16.gmra.mxu0 %v1381
        %v1395 = vpop.f32.mrf.mxu0
        %v1396 = vadd.f32 0.0, %v1395
        %v1397 = vpop.f32.mrf.mxu0
        %1398 = vdwg.mxu0
        %1400 = vrot.lane.b32.xlu0 %v1343, 120
        %v1401 = vpop.permute.xlu0 %1400
        %1402 = vrot.lane.b32.xlu0 %v1344, 120
        %v1403 = vpop.permute.xlu0 %1402
        %v1405 = vsel %vm951, %v1401, 0
        %v1408 = vsel %vm951, %v1403, 0
        %1410 = vmatpush.bf16.xpose.msra.mxu0 0
        %1411 = vmatpush.bf16.xpose.msra.mxu0 0
        %1412 = vmatpush.bf16.xpose.msra.mxu0 0
        %1413 = vmatpush.bf16.xpose.msra.mxu0 0
        %1414 = vmatpush.bf16.xpose.msra.mxu0 0
        %1415 = vmatpush.bf16.xpose.msra.mxu0 0
        %1416 = vmatpush.bf16.xpose.msra.mxu0 0
        %1417 = vmatpush.bf16.xpose.msra.mxu0 %v1408
        %1418 = vmatmul.bf16.gmra.mxu0 %v1405
        %v1419 = vpop.f32.mrf.mxu0
        %v1420 = vadd.f32 0.0, %v1419
        %v1421 = vpop.f32.mrf.mxu0
        %1422 = vdwg.mxu0
        %v1423 = vsel %vm901, %v1420, -1000000.0
        %v1424 = vsel %vm951, %v1423, -inf
        %1425 = vmax.xlane.f32.xlu0 %v1424
        %v1426 = vpop.xlane.xlu0 %1425
        %v1427 = vsub.f32 %v1423, %v1426
        %v1428 = vmul.f32 %v1427, 1.442695
        %v1429 = vpow.pop %v1428
        %v1430 = vsel %vm951, %v1429, 0.0
        %1431 = vadd.xlane.f32.xlu0 %v1430
        %v1432 = vpop.xlane.xlu0 %1431
        %v1433 = vrcp.pop %v1432
        %v1434 = vmul.f32 %v1429, %v1433
        %v1435 = vpack.c.bf16 %v1434, %v1434
        %1436 = vrot.lane.b32.xlu0 %v1344, 88
        %v1437 = vpop.permute.xlu0 %1436
        %v1439 = vsel %vm951, %v1435, 0
        %v1442 = vsel %vm988, %v1437, 0
        %1444 = vmatpush.bf16.msra.mxu0 0
        %1445 = vmatpush.bf16.msra.mxu0 0
        %1446 = vmatpush.bf16.msra.mxu0 0
        %1447 = vmatpush.bf16.msra.mxu0 0
        %1448 = vmatpush.bf16.msra.mxu0 0
        %1449 = vmatpush.bf16.msra.mxu0 0
        %1450 = vmatpush.bf16.msra.mxu0 0
        %1451 = vmatpush.bf16.msra.mxu0 %v1442
        %1452 = vmatmul.bf16.gmra.mxu0 %v1439
        %v1453 = vpop.f32.mrf.mxu0
        %v1454 = vadd.f32 0.0, %v1453
        %v1455 = vpop.f32.mrf.mxu0
        %1456 = vdwg.mxu0
        %1457 = vrot.lane.b32.xlu0 %v1343, 112
        %v1458 = vpop.permute.xlu0 %1457
        %1459 = vrot.lane.b32.xlu0 %v1344, 112
        %v1460 = vpop.permute.xlu0 %1459
        %v1462 = vsel %vm951, %v1458, 0
        %v1465 = vsel %vm951, %v1460, 0
        %1467 = vmatpush.bf16.xpose.msra.mxu0 0
        %1468 = vmatpush.bf16.xpose.msra.mxu0 0
        %1469 = vmatpush.bf16.xpose.msra.mxu0 0
        %1470 = vmatpush.bf16.xpose.msra.mxu0 0
        %1471 = vmatpush.bf16.xpose.msra.mxu0 0
        %1472 = vmatpush.bf16.xpose.msra.mxu0 0
        %1473 = vmatpush.bf16.xpose.msra.mxu0 0
        %1474 = vmatpush.bf16.xpose.msra.mxu0 %v1465
        %1475 = vmatmul.bf16.gmra.mxu0 %v1462
        %v1476 = vpop.f32.mrf.mxu0
        %v1477 = vadd.f32 0.0, %v1476
        %v1478 = vpop.f32.mrf.mxu0
        %1479 = vdwg.mxu0
        %v1480 = vsel %vm901, %v1477, -1000000.0
        %v1481 = vsel %vm951, %v1480, -inf
        %1482 = vmax.xlane.f32.xlu0 %v1481
        %v1483 = vpop.xlane.xlu0 %1482
        %v1484 = vsub.f32 %v1480, %v1483
        %v1485 = vmul.f32 %v1484, 1.442695
        %v1486 = vpow.pop %v1485
        %v1487 = vsel %vm951, %v1486, 0.0
        %1488 = vadd.xlane.f32.xlu0 %v1487
        %v1489 = vpop.xlane.xlu0 %1488
        %v1490 = vrcp.pop %v1489
        %v1491 = vmul.f32 %v1486, %v1490
        %v1492 = vpack.c.bf16 %v1491, %v1491
        %1493 = vrot.lane.b32.xlu0 %v1344, 80
        %v1494 = vpop.permute.xlu0 %1493
        %v1496 = vsel %vm951, %v1492, 0
        %v1499 = vsel %vm988, %v1494, 0
        %1501 = vmatpush.bf16.msra.mxu0 0
        %1502 = vmatpush.bf16.msra.mxu0 0
        %1503 = vmatpush.bf16.msra.mxu0 0
        %1504 = vmatpush.bf16.msra.mxu0 0
        %1505 = vmatpush.bf16.msra.mxu0 0
        %1506 = vmatpush.bf16.msra.mxu0 0
        %1507 = vmatpush.bf16.msra.mxu0 0
        %1508 = vmatpush.bf16.msra.mxu0 %v1499
        %1509 = vmatmul.bf16.gmra.mxu0 %v1496
        %v1510 = vpop.f32.mrf.mxu0
        %v1511 = vadd.f32 0.0, %v1510
        %v1512 = vpop.f32.mrf.mxu0
        %1513 = vdwg.mxu0
        %1514 = vrot.lane.b32.xlu0 %v1343, 104
        %v1515 = vpop.permute.xlu0 %1514
        %1516 = vrot.lane.b32.xlu0 %v1344, 104
        %v1517 = vpop.permute.xlu0 %1516
        %v1519 = vsel %vm951, %v1515, 0
        %v1522 = vsel %vm951, %v1517, 0
        %1524 = vmatpush.bf16.xpose.msra.mxu0 0
        %1525 = vmatpush.bf16.xpose.msra.mxu0 0
        %1526 = vmatpush.bf16.xpose.msra.mxu0 0
        %1527 = vmatpush.bf16.xpose.msra.mxu0 0
        %1528 = vmatpush.bf16.xpose.msra.mxu0 0
        %1529 = vmatpush.bf16.xpose.msra.mxu0 0
        %1530 = vmatpush.bf16.xpose.msra.mxu0 0
        %1531 = vmatpush.bf16.xpose.msra.mxu0 %v1522
        %1532 = vmatmul.bf16.gmra.mxu0 %v1519
        %v1533 = vpop.f32.mrf.mxu0
        %v1534 = vadd.f32 0.0, %v1533
        %v1535 = vpop.f32.mrf.mxu0
        %1536 = vdwg.mxu0
        %v1537 = vsel %vm901, %v1534, -1000000.0
        %v1538 = vsel %vm951, %v1537, -inf
        %1539 = vmax.xlane.f32.xlu0 %v1538
        %v1540 = vpop.xlane.xlu0 %1539
        %v1541 = vsub.f32 %v1537, %v1540
        %v1542 = vmul.f32 %v1541, 1.442695
        %v1543 = vpow.pop %v1542
        %v1544 = vsel %vm951, %v1543, 0.0
        %1545 = vadd.xlane.f32.xlu0 %v1544
        %v1546 = vpop.xlane.xlu0 %1545
        %v1547 = vrcp.pop %v1546
        %v1548 = vmul.f32 %v1543, %v1547
        %v1549 = vpack.c.bf16 %v1548, %v1548
        %1550 = vrot.lane.b32.xlu0 %v1344, 72
        %v1551 = vpop.permute.xlu0 %1550
        %v1553 = vsel %vm951, %v1549, 0
        %v1556 = vsel %vm988, %v1551, 0
        %1558 = vmatpush.bf16.msra.mxu0 0
        %1559 = vmatpush.bf16.msra.mxu0 0
        %1560 = vmatpush.bf16.msra.mxu0 0
        %1561 = vmatpush.bf16.msra.mxu0 0
        %1562 = vmatpush.bf16.msra.mxu0 0
        %1563 = vmatpush.bf16.msra.mxu0 0
        %1564 = vmatpush.bf16.msra.mxu0 0
        %1565 = vmatpush.bf16.msra.mxu0 %v1556
        %1566 = vmatmul.bf16.gmra.mxu0 %v1553
        %v1567 = vpop.f32.mrf.mxu0
        %v1568 = vadd.f32 0.0, %v1567
        %v1569 = vpop.f32.mrf.mxu0
        %1570 = vdwg.mxu0
        %1572 = vrot.lane.b32.xlu0 %v1454, 8
        %v1573 = vpop.permute.xlu0 %1572
        %1576 = vrot.lane.b32.xlu0 %v1511, 16
        %v1577 = vpop.permute.xlu0 %1576
        %1580 = vrot.lane.b32.xlu0 %v1568, 24
        %v1581 = vpop.permute.xlu0 %1580
        %v1583 = vsel %vm951, %v1396, %v1573
        %v1584 = vsel %vm1187, %v1583, %v1577
        %v1585 = vsel %vm1189, %v1584, %v1581
        %v1586 = vpack.c.bf16 %v1585, %v1585
        %v1588 = vperm.slane %v1341, 0
        %v1594 = vunpack.c.l.b16 %v1337
        %v1595 = vunpack.c.l.b16 %v1338
        %v1596 = vunpack.c.l.b16 %v1339
        %v1597 = vunpack.c.l.b16 %v1340
        %v1598 = vpack.c.b16 %v1595, %v1594
        %v1599 = vpack.c.b16 %v1597, %v1596
        %v1603 = vsel %vm923, %v1586, 0
        %1605 = vmatpush.bf16.msra.mxu0 0
        %1606 = vmatpush.bf16.msra.mxu0 0
        %1607 = vmatpush.bf16.msra.mxu0 0
        %1608 = vmatpush.bf16.msra.mxu0 0
        %1609 = vmatpush.bf16.msra.mxu0 0
        %1610 = vmatpush.bf16.msra.mxu0 0
        %1611 = vmatpush.bf16.msra.mxu0 %v1599
        %1612 = vmatpush.bf16.msra.mxu0 %v1598
        %1613 = vmatmul.bf16.gmra.mxu0 %v1603
        %v1614 = vpop.f32.mrf.mxu0
        %v1615 = vadd.f32 %v1588, %v1614
        %v1616 = vpop.f32.mrf.mxu0
        %1617 = vdwg.mxu0
        %v1618 = vadd.f32 %v1262, %v1615
        %v1619 = vld [vmem:[#allocation15] sm:$0x1]
        %v1620 = vld [vmem:[#allocation17] sm:$0x1]
        %v1621 = vsel %vm923, %v1618, 0.0
        %1622 = vadd.xlane.f32.xlu0 %v1621
        %v1623 = vpop.xlane.xlu0 %1622
        %v1624 = vmul.f32 %v1623, %v1235
        %v1625 = vsub.f32 %v1618, %v1624
        %v1626 = vmul.f32 %v1625, %v1625
        %v1627 = vsel %vm923, %v1626, 0.0
        %1628 = vadd.xlane.f32.xlu0 %v1627
        %v1629 = vpop.xlane.xlu0 %1628
        %v1630 = vmul.f32 %v1629, %v1235
        %v1631 = vadd.f32 %v1630, 1e-05
        %v1632 = vrsqrt.pop %v1631
        %v1633 = vmul.f32 %v1632, %v1631
        %v1634 = vmul.f32 %v1633, %v1632
        %v1635 = vmul.f32 0.5, %v1634
        %v1636 = vsub.f32 1.5, %v1635
        %v1637 = vmul.f32 %v1632, %v1636
        %vm1638 = vweird.f32 %v1631
        %vm1639 = vweird.f32 %v1632
        %vm1640 = vmor %vm1638, %vm1639
        %v1641 = vsel %vm1640, %v1632, %v1637
        %v1642 = vmul.f32 %v1625, %v1641
        %v1644 = vperm.slane %v1619, 0
        %v1646 = vmul.f32 %v1642, %v1644
        %v1648 = vperm.slane %v1620, 0
        %v1650 = vadd.f32 %v1646, %v1648
        %v1651 = vpack.c.bf16 %v1650, %v1650
        %v1652 = vld [vmem:[%s17] sm:$0xf]
        %v1653 = vld [vmem:[%s17 + $0x4] sm:$0xf]
        %v1654 = vld [vmem:[%s17 + $0x8] sm:$0xf]
        %v1655 = vld [vmem:[%s17 + $0xc] sm:$0xf]
        %v1656 = vld [vmem:[#allocation18] sm:$0x1]
        %v1658 = vperm.slane %v1656, 0
        %v1664 = vunpack.c.l.b16 %v1652
        %v1665 = vunpack.c.l.b16 %v1653
        %v1666 = vunpack.c.l.b16 %v1654
        %v1667 = vunpack.c.l.b16 %v1655
        %v1668 = vpack.c.b16 %v1665, %v1664
        %v1669 = vpack.c.b16 %v1667, %v1666
        %v1673 = vsel %vm923, %v1651, 0
        %1675 = vmatpush.bf16.msra.mxu0 0
        %1676 = vmatpush.bf16.msra.mxu0 0
        %1677 = vmatpush.bf16.msra.mxu0 0
        %1678 = vmatpush.bf16.msra.mxu0 0
        %1679 = vmatpush.bf16.msra.mxu0 0
        %1680 = vmatpush.bf16.msra.mxu0 0
        %1681 = vmatpush.bf16.msra.mxu0 %v1669
        %1682 = vmatpush.bf16.msra.mxu0 %v1668
        %1683 = vmatmul.bf16.gmra.mxu0 %v1673
        %v1684 = vpop.f32.mrf.mxu0
        %v1685 = vadd.f32 %v1658, %v1684
        %v1686 = vpop.f32.mrf.mxu0
        %1687 = vdwg.mxu0
        %v1688 = vmax.f32 %v1685, 0.0
        %v1689 = vpack.c.bf16 %v1688, %v1688
        %v1690 = vld [vmem:[%s19] sm:$0xf]
        %v1691 = vld [vmem:[%s19 + $0x4] sm:$0xf]
        %v1692 = vld [vmem:[%s19 + $0x8] sm:$0xf]
        %v1693 = vld [vmem:[%s19 + $0xc] sm:$0xf]
        %v1694 = vld [vmem:[%s19 + $0x10] sm:$0xf]
        %v1695 = vld [vmem:[%s19 + $0x14] sm:$0xf]
        %v1696 = vld [vmem:[%s19 + $0x18] sm:$0xf]
        %v1697 = vld [vmem:[%s19 + $0x1c] sm:$0xf]
        %v1698 = vld [vmem:[#allocation20] sm:$0x1]
        %v1700 = vperm.slane %v1698, 0
        %v1710 = vunpack.c.l.b16 %v1690
        %v1711 = vunpack.c.l.b16 %v1691
        %v1712 = vunpack.c.l.b16 %v1692
        %v1713 = vunpack.c.l.b16 %v1693
        %v1714 = vunpack.c.l.b16 %v1694
        %v1715 = vunpack.c.l.b16 %v1695
        %v1716 = vunpack.c.l.b16 %v1696
        %v1717 = vunpack.c.l.b16 %v1697
        %v1718 = vpack.c.b16 %v1711, %v1710
        %v1719 = vpack.c.b16 %v1713, %v1712
        %v1720 = vpack.c.b16 %v1715, %v1714
        %v1721 = vpack.c.b16 %v1717, %v1716
        %vm1726 = vcmask 523264
        %v1728 = vsel %vm1726, %v1689, 0
        %1730 = vmatpush.bf16.msra.mxu0 0
        %1731 = vmatpush.bf16.msra.mxu0 0
        %1732 = vmatpush.bf16.msra.mxu0 0
        %1733 = vmatpush.bf16.msra.mxu0 0
        %1734 = vmatpush.bf16.msra.mxu0 %v1721
        %1735 = vmatpush.bf16.msra.mxu0 %v1720
        %1736 = vmatpush.bf16.msra.mxu0 %v1719
        %1737 = vmatpush.bf16.msra.mxu0 %v1718
        %1738 = vmatmul.bf16.gmra.mxu0 %v1728
        %v1739 = vpop.f32.mrf.mxu0
        %v1740 = vadd.f32 %v1700, %v1739
        %v1741 = vpop.f32.mrf.mxu0
        %1742 = vdwg.mxu0
        %v1743 = vadd.f32 %v1650, %v1740
        %v1744 = vld [vmem:[#allocation21] sm:$0x1]
        %v1745 = vld [vmem:[#allocation23] sm:$0x1]
        %v1746 = vsel %vm923, %v1743, 0.0
        %1747 = vadd.xlane.f32.xlu0 %v1746
        %v1748 = vpop.xlane.xlu0 %1747
        %v1749 = vmul.f32 %v1748, %v1235
        %v1750 = vsub.f32 %v1743, %v1749
        %v1751 = vmul.f32 %v1750, %v1750
        %v1752 = vsel %vm923, %v1751, 0.0
        %1753 = vadd.xlane.f32.xlu0 %v1752
        %v1754 = vpop.xlane.xlu0 %1753
        %v1755 = vmul.f32 %v1754, %v1235
        %v1756 = vadd.f32 %v1755, 1e-05
        %v1757 = vrsqrt.pop %v1756
        %v1758 = vmul.f32 %v1757, %v1756
        %v1759 = vmul.f32 %v1758, %v1757
        %v1760 = vmul.f32 0.5, %v1759
        %v1761 = vsub.f32 1.5, %v1760
        %v1762 = vmul.f32 %v1757, %v1761
        %vm1763 = vweird.f32 %v1756
        %vm1764 = vweird.f32 %v1757
        %vm1765 = vmor %vm1763, %vm1764
        %v1766 = vsel %vm1765, %v1757, %v1762
        %v1767 = vmul.f32 %v1750, %v1766
        %v1769 = vperm.slane %v1744, 0
        %v1771 = vmul.f32 %v1767, %v1769
        %v1773 = vperm.slane %v1745, 0
        %v1775 = vadd.f32 %v1771, %v1773
        %1776 = vst.msk [vmem:[%s893] sm:$0xff] %vm923, %v1775
        %p1777 = scmp.lt.s32.totalorder %s49, 1
        %s1778 = scalar_select %p1777, %s49, 1
        %s1779 = smul.addr %s1778, 8
        %s1780 = scalar_lea.vmem %s23, %s1779
        // Predicated region
        $region161: #{_lambda_.8} parent=107 // pred_check
          %p1781 = pneg %p539
        $region162: #{_lambda_.8} parent=107 // pred_check_branch
          %1783 = sbr.rel (%p1781) target = $region164
        $region163: #{_lambda_.8} parent=107 // pred_region
          _
        $region164: #{_lambda_.8} parent=107 // pred_fallthru
          _
      $region108: #{_lambda_.8} parent=5 // pred_fallthru
        _
      %p1784 = scmp.le.s32.totalorder 2, %s44
      // Predicated region
      $region165: #{_lambda_.8} parent=5 // pred_check
        %p1785 = pneg %p1784
      $region166: #{_lambda_.8} parent=5 // pred_check_branch
        %1787 = sbr.rel (%p1785) target = $region168
      $region167: #{_lambda_.8} parent=5 // pred_region
        %s1788 = ssub.s32 %s44, 2
        // Predicated region
        $region169: #{_lambda_.8} parent=167 // pred_check
          %p1789 = pneg %p545
        $region170: #{_lambda_.8} parent=167 // pred_check_branch
          %1791 = sbr.rel (%p1789) target = $region172
        $region171: #{_lambda_.8} parent=167 // pred_region
          %p1792 = scmp.lt.s32.totalorder %s50, 1
          %s1793 = scalar_select %p1792, %s50, 1
          %s1794 = smul.addr %s1793, 8
          %s1795 = scalar_lea.vmem %s23, %s1794
        $region172: #{_lambda_.8} parent=167 // pred_fallthru
          _
      $region168: #{_lambda_.8} parent=5 // pred_fallthru
        _
    $region6: #{_lambda_.8} parent=1 // loop_footer
      %s48 = sadd.s32 1, %s44
    $region7: #{_lambda_.8} parent=1 // loop_footer_branch
      %43 = sbr.rel target = $region3
    $region8: #{_lambda_.8} parent=1 // loop_exit
      _
    %1796 = vsyncpa [#allocation5], 1
    %s1797 = scalar_lea.sflag [#allocation5], 1
    %1798 = vsyncpa %s1797, 1
    %1799 = vsyncpa [#allocation7], 1
    %1800 = vsyncpa [#allocation10], 1
    %1801 = vsyncpa [#allocation13], 1
    %1802 = vsyncpa [#allocation16], 1
    %1803 = vsyncpa [#allocation19], 1
    %1804 = vsyncpa [#allocation22], 1

// kernel: _lambda_.7
$region0: #{_lambda_.7}
  #allocation0 [shape = 'u32[]', space=smem, size = 0x4, offset = 0x4, fixed_abs, tag = 'smem constant byte address 0x4 - core index']
  #allocation1 [shape = 'u32[72,128]{1,0:T(1,128)}', space=vmem, size = 0x9000, scoped, tag = 'internal scratch']
  #allocation2 [shape = 's32[1]{0}', space=sflag, size = 0x4, scoped, tag = 'scoped memory for _lambda_.7']
  #allocation3 [shape = 'u8[512]{0}', space=smem, size = 0x200, scoped, tag = 'prefetched SMEM operand 0']
  %s0 = inlined_call_operand.vmem [shape: s32[2], index: 0, kind: input, shape index: {}]
  %s1 = inlined_call_operand.vmem [shape: f32[16,32], index: 1, kind: input, shape index: {}]
  %s2 = inlined_call_operand.vmem [shape: f32[16,32], index: 2, kind: input, shape index: {}]
  %s3 = inlined_call_operand.vmem [shape: bf16[32,96], index: 3, kind: input, shape index: {}]
  %s4 = inlined_call_operand.vmem [shape: f32[1,96], index: 4, kind: input, shape index: {}]
  %s5 = inlined_call_operand.vmem [shape: bf16[32,32], index: 5, kind: input, shape index: {}]
  %s6 = inlined_call_operand.vmem [shape: f32[1,32], index: 6, kind: input, shape index: {}]
  %s7 = inlined_call_operand.vmem [shape: f32[1,32], index: 7, kind: input, shape index: {}]
  %s8 = inlined_call_operand.hbm [shape: f32[1,32], index: 8, kind: input, shape index: {}]
  %s9 = inlined_call_operand.vmem [shape: bf16[32,32], index: 9, kind: input, shape index: {}]
  %s10 = inlined_call_operand.hbm [shape: f32[1,32], index: 10, kind: input, shape index: {}]
  %s11 = inlined_call_operand.vmem [shape: bf16[32,64], index: 11, kind: input, shape index: {}]
  %s12 = inlined_call_operand.hbm [shape: f32[1,64], index: 12, kind: input, shape index: {}]
  %s13 = inlined_call_operand.vmem [shape: bf16[32,32], index: 13, kind: input, shape index: {}]
  %s14 = inlined_call_operand.hbm [shape: f32[1,32], index: 14, kind: input, shape index: {}]
  %s15 = inlined_call_operand.hbm [shape: f32[1,32], index: 15, kind: input, shape index: {}]
  %s16 = inlined_call_operand.hbm [shape: f32[1,32], index: 16, kind: input, shape index: {}]
  %s17 = inlined_call_operand.vmem [shape: bf16[32,64], index: 17, kind: input, shape index: {}]
  %s18 = inlined_call_operand.hbm [shape: f32[1,64], index: 18, kind: input, shape index: {}]
  %s19 = inlined_call_operand.vmem [shape: bf16[64,32], index: 19, kind: input, shape index: {}]
  %s20 = inlined_call_operand.hbm [shape: f32[1,32], index: 20, kind: input, shape index: {}]
  %s21 = inlined_call_operand.hbm [shape: f32[1,32], index: 21, kind: input, shape index: {}]
  %s22 = inlined_call_operand.hbm [shape: f32[1,32], index: 22, kind: input, shape index: {}]
  %s23 = inlined_call_operand.vmem [shape: f32[16,32], index: 23, kind: output, shape index: {}]
  %s24 = sld [smem:[#allocation0]]
  $region161: #{_lambda_.7} parent=0
    _
  %s26 = ssub.s32 1, %s24
  %s27 = scalar_select 0, %s26, %s24
  %s29 = sshll.u32 %s0, 4
  %s30 = int_to_ptr.vmem [resolvable:$true] %s29
  %32 = dma.vmem_to_smem %s30, 16, [#allocation3], [#allocation2]
  %34 = dma.done [#allocation2], 16
  %35 = sfence
  $region1: #{_lambda_.7} parent=0
    #allocation4 [shape = 'u8[512]{0}', space=vmem, size = 0x400, scoped, tag = 'input window, operand 8, single buffered']
    #allocation5 [shape = 's32[2]{0}', space=sflag, size = 0x8, scoped, tag = 'scoped memory for _lambda_.7']
    #allocation6 [shape = 'u8[512]{0}', space=vmem, size = 0x400, scoped, tag = 'input window, operand 10, single buffered']
    #allocation7 [shape = 's32[1]{0}', space=sflag, size = 0x4, scoped, tag = 'scoped memory for _lambda_.7']
    #allocation8 [shape = 'u8[512]{0}', space=vmem, size = 0x400, scoped, tag = 'input window, operand 12, single buffered']
    #allocation9 [shape = 'u8[512]{0}', space=vmem, size = 0x400, scoped, tag = 'input window, operand 14, single buffered']
    #allocation10 [shape = 's32[1]{0}', space=sflag, size = 0x4, scoped, tag = 'scoped memory for _lambda_.7']
    #allocation11 [shape = 'u8[512]{0}', space=vmem, size = 0x400, scoped, tag = 'input window, operand 15, single buffered']
    #allocation12 [shape = 'u8[512]{0}', space=vmem, size = 0x400, scoped, tag = 'input window, operand 16, single buffered']
    #allocation13 [shape = 's32[1]{0}', space=sflag, size = 0x4, scoped, tag = 'scoped memory for _lambda_.7']
    #allocation14 [shape = 'u8[512]{0}', space=vmem, size = 0x400, scoped, tag = 'input window, operand 18, single buffered']
    #allocation15 [shape = 'u8[512]{0}', space=vmem, size = 0x400, scoped, tag = 'input window, operand 20, single buffered']
    #allocation16 [shape = 's32[1]{0}', space=sflag, size = 0x4, scoped, tag = 'scoped memory for _lambda_.7']
    #allocation17 [shape = 'u8[512]{0}', space=vmem, size = 0x400, scoped, tag = 'input window, operand 21, single buffered']
    #allocation18 [shape = 'u8[512]{0}', space=vmem, size = 0x400, scoped, tag = 'input window, operand 22, single buffered']
    #allocation19 [shape = 's32[1]{0}', space=sflag, size = 0x4, scoped, tag = 'scoped memory for _lambda_.7']
    %36 = vsyncpa [#allocation5], 0
    %37 = vsyncpa [#allocation7], 0
    %38 = vsyncpa [#allocation10], 0
    %39 = vsyncpa [#allocation13], 0
    %40 = vsyncpa [#allocation16], 0
    %41 = vsyncpa [#allocation19], 0
    loop: start=0, step=1, limit=4
    $region2: #{_lambda_.7} parent=1 // loop_pre_header
      _
    $region3: #{_lambda_.7} parent=1 // loop_header
      %s43 = sphi 0, %s47
      %p44 = scmp.ge.s32.totalorder %s43, 4
      %s53 = sphi 0, %s55
      %s56 = sphi 0, %s53
      %s57 = sphi 0, %s56
      %s73 = sphi 0, %s57
      %s79 = sphi 0, %s81
      %s82 = sphi 0, %s79
      %s83 = sphi 0, %s82
      %s99 = sphi 0, %s83
      %s103 = sphi 0, %s103
      %s105 = sphi 0, %s103
      %s106 = sphi 0, %s105
      %s120 = sphi 0, %s106
      %s124 = sphi 0, %s124
      %s126 = sphi 0, %s124
      %s127 = sphi 0, %s126
      %s141 = sphi 0, %s127
      %s145 = sphi 0, %s145
      %s147 = sphi 0, %s145
      %s148 = sphi 0, %s147
      %s162 = sphi 0, %s148
      %s166 = sphi 0, %s166
      %s168 = sphi 0, %s166
      %s169 = sphi 0, %s168
      %s183 = sphi 0, %s169
      %s187 = sphi 0, %s187
      %s189 = sphi 0, %s187
      %s190 = sphi 0, %s189
      %s204 = sphi 0, %s190
      %s208 = sphi 0, %s208
      %s210 = sphi 0, %s208
      %s211 = sphi 0, %s210
      %s225 = sphi 0, %s211
      %s229 = sphi 0, %s229
      %s231 = sphi 0, %s229
      %s232 = sphi 0, %s231
      %s246 = sphi 0, %s232
      %s250 = sphi 0, %s250
      %s252 = sphi 0, %s250
      %s253 = sphi 0, %s252
      %s267 = sphi 0, %s253
      %s271 = sphi 0, %s271
      %s273 = sphi 0, %s271
      %s274 = sphi 0, %s273
      %s288 = sphi 0, %s274
      %s292 = sphi 0, %s292
      %s294 = sphi 0, %s292
      %s295 = sphi 0, %s294
      %s309 = sphi 0, %s295
      %s313 = sphi 0, %s313
      %s315 = sphi 0, %s313
      %s316 = sphi 0, %s315
      %s330 = sphi 0, %s316
      %s334 = sphi 0, %s334
      %s336 = sphi 0, %s334
      %s337 = sphi 0, %s336
      %s351 = sphi 0, %s337
      %s355 = sphi 0, %s355
      %s357 = sphi 0, %s355
      %s358 = sphi 0, %s357
      %s372 = sphi 0, %s358
      %s376 = sphi 0, %s376
      %s378 = sphi 0, %s376
      %s379 = sphi 0, %s378
      %s393 = sphi 0, %s379
      %s397 = sphi 0, %s397
      %s399 = sphi 0, %s397
      %s400 = sphi 0, %s399
      %s414 = sphi 0, %s400
      %s418 = sphi 0, %s418
      %s420 = sphi 0, %s418
      %s421 = sphi 0, %s420
      %s435 = sphi 0, %s421
      %s439 = sphi 0, %s439
      %s441 = sphi 0, %s439
      %s442 = sphi 0, %s441
      %s456 = sphi 0, %s442
      %s460 = sphi 0, %s460
      %s462 = sphi 0, %s460
      %s463 = sphi 0, %s462
      %s477 = sphi 0, %s463
      %s481 = sphi 0, %s481
      %s483 = sphi 0, %s481
      %s484 = sphi 0, %s483
      %s498 = sphi 0, %s484
      %s502 = sphi 0, %s502
      %s504 = sphi 0, %s502
      %s505 = sphi 0, %s504
      %s519 = sphi 0, %s505
      %s525 = sphi 0, %s527
      %s528 = sphi 0, %s525
      %s529 = sphi 0, %s528
      %s545 = sphi 0, %s529
    $region4: #{_lambda_.7} parent=1 // loop_header_branch
      %46 = sbr.rel (%p44) target = $region8
    $region5: #{_lambda_.7} parent=1 // loop_body
      %s48 = ssub.s32 %s43, 1
      %s49 = ssub.s32 %s43, 2
      %s50 = sadd.s32 %s43, 1
      %s51 = ssub.s32 %s43, %s50
      %p52 = scmp.eq.s32.totalorder %s51, 0
      %s54 = sadd.s32 %s53, 1
      %s55 = scalar_select %p52, %s53, %s54
      %p58 = pneg %p52
      %p59 = scmp.eq.s32.totalorder %s43, 1
      %p60 = por %p58, %p59
      %p61 = scmp.ne.s32.totalorder %s53, %s56
      %p62 = scmp.eq.s32.totalorder %s43, 0
      %p63 = por %p61, %p62
      %p64 = scmp.ne.s32.totalorder %s53, %s56
      %p65 = scmp.eq.s32.totalorder %s48, 1
      %p66 = por %p64, %p65
      %p67 = scmp.ne.s32.totalorder %s56, %s57
      %p68 = scmp.eq.s32.totalorder %s48, 0
      %p69 = por %p67, %p68
      %p70 = scmp.ne.s32.totalorder %s56, %s57
      %p71 = scmp.eq.s32.totalorder %s49, 1
      %p72 = por %p70, %p71
      %p74 = scmp.ne.s32.totalorder %s57, %s73
      %p75 = scmp.eq.s32.totalorder %s49, 0
      %p76 = por %p74, %p75
      %s77 = ssub.s32 %s43, %s50
      %p78 = scmp.eq.s32.totalorder %s77, 0
      %s80 = sadd.s32 %s79, 1
      %s81 = scalar_select %p78, %s79, %s80
      %p84 = pneg %p78
      %p85 = scmp.eq.s32.totalorder %s43, 1
      %p86 = por %p84, %p85
      %p87 = scmp.ne.s32.totalorder %s79, %s82
      %p88 = scmp.eq.s32.totalorder %s43, 0
      %p89 = por %p87, %p88
      %p90 = scmp.ne.s32.totalorder %s79, %s82
      %p91 = scmp.eq.s32.totalorder %s48, 1
      %p92 = por %p90, %p91
      %p93 = scmp.ne.s32.totalorder %s82, %s83
      %p94 = scmp.eq.s32.totalorder %s48, 0
      %p95 = por %p93, %p94
      %p96 = scmp.ne.s32.totalorder %s82, %s83
      %p97 = scmp.eq.s32.totalorder %s49, 1
      %p98 = por %p96, %p97
      %p100 = scmp.ne.s32.totalorder %s83, %s99
      %p101 = scmp.eq.s32.totalorder %s49, 0
      %p102 = por %p100, %p101
      %s104 = sadd.s32 %s103, 1
      %p107 = scmp.eq.s32.totalorder %s43, 1
      %p108 = scmp.ne.s32.totalorder %s103, %s105
      %p109 = scmp.eq.s32.totalorder %s43, 0
      %p110 = por %p108, %p109
      %p111 = scmp.ne.s32.totalorder %s103, %s105
      %p112 = scmp.eq.s32.totalorder %s48, 1
      %p113 = por %p111, %p112
      %p114 = scmp.ne.s32.totalorder %s105, %s106
      %p115 = scmp.eq.s32.totalorder %s48, 0
      %p116 = por %p114, %p115
      %p117 = scmp.ne.s32.totalorder %s105, %s106
      %p118 = scmp.eq.s32.totalorder %s49, 1
      %p119 = por %p117, %p118
      %p121 = scmp.ne.s32.totalorder %s106, %s120
      %p122 = scmp.eq.s32.totalorder %s49, 0
      %p123 = por %p121, %p122
      %s125 = sadd.s32 %s124, 1
      %p128 = scmp.eq.s32.totalorder %s43, 1
      %p129 = scmp.ne.s32.totalorder %s124, %s126
      %p130 = scmp.eq.s32.totalorder %s43, 0
      %p131 = por %p129, %p130
      %p132 = scmp.ne.s32.totalorder %s124, %s126
      %p133 = scmp.eq.s32.totalorder %s48, 1
      %p134 = por %p132, %p133
      %p135 = scmp.ne.s32.totalorder %s126, %s127
      %p136 = scmp.eq.s32.totalorder %s48, 0
      %p137 = por %p135, %p136
      %p138 = scmp.ne.s32.totalorder %s126, %s127
      %p139 = scmp.eq.s32.totalorder %s49, 1
      %p140 = por %p138, %p139
      %p142 = scmp.ne.s32.totalorder %s127, %s141
      %p143 = scmp.eq.s32.totalorder %s49, 0
      %p144 = por %p142, %p143
      %s146 = sadd.s32 %s145, 1
      %p149 = scmp.eq.s32.totalorder %s43, 1
      %p150 = scmp.ne.s32.totalorder %s145, %s147
      %p151 = scmp.eq.s32.totalorder %s43, 0
      %p152 = por %p150, %p151
      %p153 = scmp.ne.s32.totalorder %s145, %s147
      %p154 = scmp.eq.s32.totalorder %s48, 1
      %p155 = por %p153, %p154
      %p156 = scmp.ne.s32.totalorder %s147, %s148
      %p157 = scmp.eq.s32.totalorder %s48, 0
      %p158 = por %p156, %p157
      %p159 = scmp.ne.s32.totalorder %s147, %s148
      %p160 = scmp.eq.s32.totalorder %s49, 1
      %p161 = por %p159, %p160
      %p163 = scmp.ne.s32.totalorder %s148, %s162
      %p164 = scmp.eq.s32.totalorder %s49, 0
      %p165 = por %p163, %p164
      %s167 = sadd.s32 %s166, 1
      %p170 = scmp.eq.s32.totalorder %s43, 1
      %p171 = scmp.ne.s32.totalorder %s166, %s168
      %p172 = scmp.eq.s32.totalorder %s43, 0
      %p173 = por %p171, %p172
      %p174 = scmp.ne.s32.totalorder %s166, %s168
      %p175 = scmp.eq.s32.totalorder %s48, 1
      %p176 = por %p174, %p175
      %p177 = scmp.ne.s32.totalorder %s168, %s169
      %p178 = scmp.eq.s32.totalorder %s48, 0
      %p179 = por %p177, %p178
      %p180 = scmp.ne.s32.totalorder %s168, %s169
      %p181 = scmp.eq.s32.totalorder %s49, 1
      %p182 = por %p180, %p181
      %p184 = scmp.ne.s32.totalorder %s169, %s183
      %p185 = scmp.eq.s32.totalorder %s49, 0
      %p186 = por %p184, %p185
      %s188 = sadd.s32 %s187, 1
      %p191 = scmp.eq.s32.totalorder %s43, 1
      %p192 = scmp.ne.s32.totalorder %s187, %s189
      %p193 = scmp.eq.s32.totalorder %s43, 0
      %p194 = por %p192, %p193
      %p195 = scmp.ne.s32.totalorder %s187, %s189
      %p196 = scmp.eq.s32.totalorder %s48, 1
      %p197 = por %p195, %p196
      %p198 = scmp.ne.s32.totalorder %s189, %s190
      %p199 = scmp.eq.s32.totalorder %s48, 0
      %p200 = por %p198, %p199
      %p201 = scmp.ne.s32.totalorder %s189, %s190
      %p202 = scmp.eq.s32.totalorder %s49, 1
      %p203 = por %p201, %p202
      %p205 = scmp.ne.s32.totalorder %s190, %s204
      %p206 = scmp.eq.s32.totalorder %s49, 0
      %p207 = por %p205, %p206
      %s209 = sadd.s32 %s208, 1
      %p212 = scmp.eq.s32.totalorder %s43, 1
      %p213 = scmp.ne.s32.totalorder %s208, %s210
      %p214 = scmp.eq.s32.totalorder %s43, 0
      %p215 = por %p213, %p214
      %p216 = scmp.ne.s32.totalorder %s208, %s210
      %p217 = scmp.eq.s32.totalorder %s48, 1
      %p218 = por %p216, %p217
      %p219 = scmp.ne.s32.totalorder %s210, %s211
      %p220 = scmp.eq.s32.totalorder %s48, 0
      %p221 = por %p219, %p220
      %p222 = scmp.ne.s32.totalorder %s210, %s211
      %p223 = scmp.eq.s32.totalorder %s49, 1
      %p224 = por %p222, %p223
      %p226 = scmp.ne.s32.totalorder %s211, %s225
      %p227 = scmp.eq.s32.totalorder %s49, 0
      %p228 = por %p226, %p227
      %s230 = sadd.s32 %s229, 1
      %p233 = scmp.eq.s32.totalorder %s43, 1
      %p234 = scmp.ne.s32.totalorder %s229, %s231
      %p235 = scmp.eq.s32.totalorder %s43, 0
      %p236 = por %p234, %p235
      %p237 = scmp.ne.s32.totalorder %s229, %s231
      %p238 = scmp.eq.s32.totalorder %s48, 1
      %p239 = por %p237, %p238
      %p240 = scmp.ne.s32.totalorder %s231, %s232
      %p241 = scmp.eq.s32.totalorder %s48, 0
      %p242 = por %p240, %p241
      %p243 = scmp.ne.s32.totalorder %s231, %s232
      %p244 = scmp.eq.s32.totalorder %s49, 1
      %p245 = por %p243, %p244
      %p247 = scmp.ne.s32.totalorder %s232, %s246
      %p248 = scmp.eq.s32.totalorder %s49, 0
      %p249 = por %p247, %p248
      %s251 = sadd.s32 %s250, 1
      %p254 = scmp.eq.s32.totalorder %s43, 1
      %p255 = scmp.ne.s32.totalorder %s250, %s252
      %p256 = scmp.eq.s32.totalorder %s43, 0
      %p257 = por %p255, %p256
      %p258 = scmp.ne.s32.totalorder %s250, %s252
      %p259 = scmp.eq.s32.totalorder %s48, 1
      %p260 = por %p258, %p259
      %p261 = scmp.ne.s32.totalorder %s252, %s253
      %p262 = scmp.eq.s32.totalorder %s48, 0
      %p263 = por %p261, %p262
      %p264 = scmp.ne.s32.totalorder %s252, %s253
      %p265 = scmp.eq.s32.totalorder %s49, 1
      %p266 = por %p264, %p265
      %p268 = scmp.ne.s32.totalorder %s253, %s267
      %p269 = scmp.eq.s32.totalorder %s49, 0
      %p270 = por %p268, %p269
      %s272 = sadd.s32 %s271, 1
      %p275 = scmp.eq.s32.totalorder %s43, 1
      %p276 = scmp.ne.s32.totalorder %s271, %s273
      %p277 = scmp.eq.s32.totalorder %s43, 0
      %p278 = por %p276, %p277
      %p279 = scmp.ne.s32.totalorder %s271, %s273
      %p280 = scmp.eq.s32.totalorder %s48, 1
      %p281 = por %p279, %p280
      %p282 = scmp.ne.s32.totalorder %s273, %s274
      %p283 = scmp.eq.s32.totalorder %s48, 0
      %p284 = por %p282, %p283
      %p285 = scmp.ne.s32.totalorder %s273, %s274
      %p286 = scmp.eq.s32.totalorder %s49, 1
      %p287 = por %p285, %p286
      %p289 = scmp.ne.s32.totalorder %s274, %s288
      %p290 = scmp.eq.s32.totalorder %s49, 0
      %p291 = por %p289, %p290
      %s293 = sadd.s32 %s292, 1
      %p296 = scmp.eq.s32.totalorder %s43, 1
      %p297 = scmp.ne.s32.totalorder %s292, %s294
      %p298 = scmp.eq.s32.totalorder %s43, 0
      %p299 = por %p297, %p298
      %p300 = scmp.ne.s32.totalorder %s292, %s294
      %p301 = scmp.eq.s32.totalorder %s48, 1
      %p302 = por %p300, %p301
      %p303 = scmp.ne.s32.totalorder %s294, %s295
      %p304 = scmp.eq.s32.totalorder %s48, 0
      %p305 = por %p303, %p304
      %p306 = scmp.ne.s32.totalorder %s294, %s295
      %p307 = scmp.eq.s32.totalorder %s49, 1
      %p308 = por %p306, %p307
      %p310 = scmp.ne.s32.totalorder %s295, %s309
      %p311 = scmp.eq.s32.totalorder %s49, 0
      %p312 = por %p310, %p311
      %s314 = sadd.s32 %s313, 1
      %p317 = scmp.eq.s32.totalorder %s43, 1
      %p318 = scmp.ne.s32.totalorder %s313, %s315
      %p319 = scmp.eq.s32.totalorder %s43, 0
      %p320 = por %p318, %p319
      %p321 = scmp.ne.s32.totalorder %s313, %s315
      %p322 = scmp.eq.s32.totalorder %s48, 1
      %p323 = por %p321, %p322
      %p324 = scmp.ne.s32.totalorder %s315, %s316
      %p325 = scmp.eq.s32.totalorder %s48, 0
      %p326 = por %p324, %p325
      %p327 = scmp.ne.s32.totalorder %s315, %s316
      %p328 = scmp.eq.s32.totalorder %s49, 1
      %p329 = por %p327, %p328
      %p331 = scmp.ne.s32.totalorder %s316, %s330
      %p332 = scmp.eq.s32.totalorder %s49, 0
      %p333 = por %p331, %p332
      %s335 = sadd.s32 %s334, 1
      %p338 = scmp.eq.s32.totalorder %s43, 1
      %p339 = scmp.ne.s32.totalorder %s334, %s336
      %p340 = scmp.eq.s32.totalorder %s43, 0
      %p341 = por %p339, %p340
      %p342 = scmp.ne.s32.totalorder %s334, %s336
      %p343 = scmp.eq.s32.totalorder %s48, 1
      %p344 = por %p342, %p343
      %p345 = scmp.ne.s32.totalorder %s336, %s337
      %p346 = scmp.eq.s32.totalorder %s48, 0
      %p347 = por %p345, %p346
      %p348 = scmp.ne.s32.totalorder %s336, %s337
      %p349 = scmp.eq.s32.totalorder %s49, 1
      %p350 = por %p348, %p349
      %p352 = scmp.ne.s32.totalorder %s337, %s351
      %p353 = scmp.eq.s32.totalorder %s49, 0
      %p354 = por %p352, %p353
      %s356 = sadd.s32 %s355, 1
      %p359 = scmp.eq.s32.totalorder %s43, 1
      %p360 = scmp.ne.s32.totalorder %s355, %s357
      %p361 = scmp.eq.s32.totalorder %s43, 0
      %p362 = por %p360, %p361
      %p363 = scmp.ne.s32.totalorder %s355, %s357
      %p364 = scmp.eq.s32.totalorder %s48, 1
      %p365 = por %p363, %p364
      %p366 = scmp.ne.s32.totalorder %s357, %s358
      %p367 = scmp.eq.s32.totalorder %s48, 0
      %p368 = por %p366, %p367
      %p369 = scmp.ne.s32.totalorder %s357, %s358
      %p370 = scmp.eq.s32.totalorder %s49, 1
      %p371 = por %p369, %p370
      %p373 = scmp.ne.s32.totalorder %s358, %s372
      %p374 = scmp.eq.s32.totalorder %s49, 0
      %p375 = por %p373, %p374
      %s377 = sadd.s32 %s376, 1
      %p380 = scmp.eq.s32.totalorder %s43, 1
      %p381 = scmp.ne.s32.totalorder %s376, %s378
      %p382 = scmp.eq.s32.totalorder %s43, 0
      %p383 = por %p381, %p382
      %p384 = scmp.ne.s32.totalorder %s376, %s378
      %p385 = scmp.eq.s32.totalorder %s48, 1
      %p386 = por %p384, %p385
      %p387 = scmp.ne.s32.totalorder %s378, %s379
      %p388 = scmp.eq.s32.totalorder %s48, 0
      %p389 = por %p387, %p388
      %p390 = scmp.ne.s32.totalorder %s378, %s379
      %p391 = scmp.eq.s32.totalorder %s49, 1
      %p392 = por %p390, %p391
      %p394 = scmp.ne.s32.totalorder %s379, %s393
      %p395 = scmp.eq.s32.totalorder %s49, 0
      %p396 = por %p394, %p395
      %s398 = sadd.s32 %s397, 1
      %p401 = scmp.eq.s32.totalorder %s43, 1
      %p402 = scmp.ne.s32.totalorder %s397, %s399
      %p403 = scmp.eq.s32.totalorder %s43, 0
      %p404 = por %p402, %p403
      %p405 = scmp.ne.s32.totalorder %s397, %s399
      %p406 = scmp.eq.s32.totalorder %s48, 1
      %p407 = por %p405, %p406
      %p408 = scmp.ne.s32.totalorder %s399, %s400
      %p409 = scmp.eq.s32.totalorder %s48, 0
      %p410 = por %p408, %p409
      %p411 = scmp.ne.s32.totalorder %s399, %s400
      %p412 = scmp.eq.s32.totalorder %s49, 1
      %p413 = por %p411, %p412
      %p415 = scmp.ne.s32.totalorder %s400, %s414
      %p416 = scmp.eq.s32.totalorder %s49, 0
      %p417 = por %p415, %p416
      %s419 = sadd.s32 %s418, 1
      %p422 = scmp.eq.s32.totalorder %s43, 1
      %p423 = scmp.ne.s32.totalorder %s418, %s420
      %p424 = scmp.eq.s32.totalorder %s43, 0
      %p425 = por %p423, %p424
      %p426 = scmp.ne.s32.totalorder %s418, %s420
      %p427 = scmp.eq.s32.totalorder %s48, 1
      %p428 = por %p426, %p427
      %p429 = scmp.ne.s32.totalorder %s420, %s421
      %p430 = scmp.eq.s32.totalorder %s48, 0
      %p431 = por %p429, %p430
      %p432 = scmp.ne.s32.totalorder %s420, %s421
      %p433 = scmp.eq.s32.totalorder %s49, 1
      %p434 = por %p432, %p433
      %p436 = scmp.ne.s32.totalorder %s421, %s435
      %p437 = scmp.eq.s32.totalorder %s49, 0
      %p438 = por %p436, %p437
      %s440 = sadd.s32 %s439, 1
      %p443 = scmp.eq.s32.totalorder %s43, 1
      %p444 = scmp.ne.s32.totalorder %s439, %s441
      %p445 = scmp.eq.s32.totalorder %s43, 0
      %p446 = por %p444, %p445
      %p447 = scmp.ne.s32.totalorder %s439, %s441
      %p448 = scmp.eq.s32.totalorder %s48, 1
      %p449 = por %p447, %p448
      %p450 = scmp.ne.s32.totalorder %s441, %s442
      %p451 = scmp.eq.s32.totalorder %s48, 0
      %p452 = por %p450, %p451
      %p453 = scmp.ne.s32.totalorder %s441, %s442
      %p454 = scmp.eq.s32.totalorder %s49, 1
      %p455 = por %p453, %p454
      %p457 = scmp.ne.s32.totalorder %s442, %s456
      %p458 = scmp.eq.s32.totalorder %s49, 0
      %p459 = por %p457, %p458
      %s461 = sadd.s32 %s460, 1
      %p464 = scmp.eq.s32.totalorder %s43, 1
      %p465 = scmp.ne.s32.totalorder %s460, %s462
      %p466 = scmp.eq.s32.totalorder %s43, 0
      %p467 = por %p465, %p466
      %p468 = scmp.ne.s32.totalorder %s460, %s462
      %p469 = scmp.eq.s32.totalorder %s48, 1
      %p470 = por %p468, %p469
      %p471 = scmp.ne.s32.totalorder %s462, %s463
      %p472 = scmp.eq.s32.totalorder %s48, 0
      %p473 = por %p471, %p472
      %p474 = scmp.ne.s32.totalorder %s462, %s463
      %p475 = scmp.eq.s32.totalorder %s49, 1
      %p476 = por %p474, %p475
      %p478 = scmp.ne.s32.totalorder %s463, %s477
      %p479 = scmp.eq.s32.totalorder %s49, 0
      %p480 = por %p478, %p479
      %s482 = sadd.s32 %s481, 1
      %p485 = scmp.eq.s32.totalorder %s43, 1
      %p486 = scmp.ne.s32.totalorder %s481, %s483
      %p487 = scmp.eq.s32.totalorder %s43, 0
      %p488 = por %p486, %p487
      %p489 = scmp.ne.s32.totalorder %s481, %s483
      %p490 = scmp.eq.s32.totalorder %s48, 1
      %p491 = por %p489, %p490
      %p492 = scmp.ne.s32.totalorder %s483, %s484
      %p493 = scmp.eq.s32.totalorder %s48, 0
      %p494 = por %p492, %p493
      %p495 = scmp.ne.s32.totalorder %s483, %s484
      %p496 = scmp.eq.s32.totalorder %s49, 1
      %p497 = por %p495, %p496
      %p499 = scmp.ne.s32.totalorder %s484, %s498
      %p500 = scmp.eq.s32.totalorder %s49, 0
      %p501 = por %p499, %p500
      %s503 = sadd.s32 %s502, 1
      %p506 = scmp.eq.s32.totalorder %s43, 1
      %p507 = scmp.ne.s32.totalorder %s502, %s504
      %p508 = scmp.eq.s32.totalorder %s43, 0
      %p509 = por %p507, %p508
      %p510 = scmp.ne.s32.totalorder %s502, %s504
      %p511 = scmp.eq.s32.totalorder %s48, 1
      %p512 = por %p510, %p511
      %p513 = scmp.ne.s32.totalorder %s504, %s505
      %p514 = scmp.eq.s32.totalorder %s48, 0
      %p515 = por %p513, %p514
      %p516 = scmp.ne.s32.totalorder %s504, %s505
      %p517 = scmp.eq.s32.totalorder %s49, 1
      %p518 = por %p516, %p517
      %p520 = scmp.ne.s32.totalorder %s505, %s519
      %p521 = scmp.eq.s32.totalorder %s49, 0
      %p522 = por %p520, %p521
      %s523 = ssub.s32 %s43, %s50
      %p524 = scmp.eq.s32.totalorder %s523, 0
      %s526 = sadd.s32 %s525, 1
      %s527 = scalar_select %p524, %s525, %s526
      %p530 = pneg %p524
      %p531 = scmp.eq.s32.totalorder %s43, 1
      %p532 = por %p530, %p531
      %p533 = scmp.ne.s32.totalorder %s525, %s528
      %p534 = scmp.eq.s32.totalorder %s43, 0
      %p535 = por %p533, %p534
      %p536 = scmp.ne.s32.totalorder %s525, %s528
      %p537 = scmp.eq.s32.totalorder %s48, 1
      %p538 = por %p536, %p537
      %p539 = scmp.ne.s32.totalorder %s528, %s529
      %p540 = scmp.eq.s32.totalorder %s48, 0
      %p541 = por %p539, %p540
      %p542 = scmp.ne.s32.totalorder %s528, %s529
      %p543 = scmp.eq.s32.totalorder %s49, 1
      %p544 = por %p542, %p543
      %p546 = scmp.ne.s32.totalorder %s529, %s545
      %p547 = scmp.eq.s32.totalorder %s49, 0
      %p548 = por %p546, %p547
      %p549 = scmp.le.s32.totalorder 1, %s43
      %p550 = scmp.lt.s32.totalorder %s43, 3
      %p551 = pnand %p549, %p550
      %p552 = pneg %p551
      // Predicated region
      $region9: #{_lambda_.7} parent=5 // pred_check
        _
      $region10: #{_lambda_.7} parent=5 // pred_check_branch
        %554 = sbr.rel (%p551) target = $region12
      $region11: #{_lambda_.7} parent=5 // pred_region
        %s555 = ssub.s32 %s43, 1
        // Predicated region
        $region13: #{_lambda_.7} parent=11 // pred_check
          %p556 = pneg %p116
        $region14: #{_lambda_.7} parent=11 // pred_check_branch
          %558 = sbr.rel (%p556) target = $region16
        $region15: #{_lambda_.7} parent=11 // pred_region
          _
        $region16: #{_lambda_.7} parent=11 // pred_fallthru
          _
        // Predicated region
        $region17: #{_lambda_.7} parent=11 // pred_check
          %p559 = pneg %p137
        $region18: #{_lambda_.7} parent=11 // pred_check_branch
          %561 = sbr.rel (%p559) target = $region20
        $region19: #{_lambda_.7} parent=11 // pred_region
          _
        $region20: #{_lambda_.7} parent=11 // pred_fallthru
          _
        // Predicated region
        $region21: #{_lambda_.7} parent=11 // pred_check
          %p562 = pneg %p158
        $region22: #{_lambda_.7} parent=11 // pred_check_branch
          %564 = sbr.rel (%p562) target = $region24
        $region23: #{_lambda_.7} parent=11 // pred_region
          _
        $region24: #{_lambda_.7} parent=11 // pred_fallthru
          _
        // Predicated region
        $region25: #{_lambda_.7} parent=11 // pred_check
          %p565 = pneg %p179
        $region26: #{_lambda_.7} parent=11 // pred_check_branch
          %567 = sbr.rel (%p565) target = $region28
        $region27: #{_lambda_.7} parent=11 // pred_region
          _
        $region28: #{_lambda_.7} parent=11 // pred_fallthru
          _
        // Predicated region
        $region29: #{_lambda_.7} parent=11 // pred_check
          %p568 = pneg %p200
        $region30: #{_lambda_.7} parent=11 // pred_check_branch
          %570 = sbr.rel (%p568) target = $region32
        $region31: #{_lambda_.7} parent=11 // pred_region
          _
        $region32: #{_lambda_.7} parent=11 // pred_fallthru
          _
        // Predicated region
        $region33: #{_lambda_.7} parent=11 // pred_check
          %p571 = pneg %p221
        $region34: #{_lambda_.7} parent=11 // pred_check_branch
          %573 = sbr.rel (%p571) target = $region36
        $region35: #{_lambda_.7} parent=11 // pred_region
          %575 = vsyncadd [#allocation5], 0
          %s577 = sshll.u32 %s8, 4
          %s578 = int_to_ptr.hbm [resolvable:$true] %s577
          %s579 = sshll.u32 [#allocation4], 4
          %s580 = int_to_ptr.vmem [resolvable:$true] %s579
          %582 = dma.hbm_to_vmem [thread:$0]  %s578, 16, %s580, [#allocation5]
        $region36: #{_lambda_.7} parent=11 // pred_fallthru
          _
        // Predicated region
        $region37: #{_lambda_.7} parent=11 // pred_check
          %p583 = pneg %p242
        $region38: #{_lambda_.7} parent=11 // pred_check_branch
          %585 = sbr.rel (%p583) target = $region40
        $region39: #{_lambda_.7} parent=11 // pred_region
          _
        $region40: #{_lambda_.7} parent=11 // pred_fallthru
          _
        // Predicated region
        $region41: #{_lambda_.7} parent=11 // pred_check
          %p586 = pneg %p263
        $region42: #{_lambda_.7} parent=11 // pred_check_branch
          %588 = sbr.rel (%p586) target = $region44
        $region43: #{_lambda_.7} parent=11 // pred_region
          %590 = vsyncadd [#allocation7], 0
          %s592 = sshll.u32 %s10, 4
          %s593 = int_to_ptr.hbm [resolvable:$true] %s592
          %s594 = sshll.u32 [#allocation6], 4
          %s595 = int_to_ptr.vmem [resolvable:$true] %s594
          %597 = dma.hbm_to_vmem [thread:$0]  %s593, 16, %s595, [#allocation7]
        $region44: #{_lambda_.7} parent=11 // pred_fallthru
          _
        // Predicated region
        $region45: #{_lambda_.7} parent=11 // pred_check
          %p598 = pneg %p284
        $region46: #{_lambda_.7} parent=11 // pred_check_branch
          %600 = sbr.rel (%p598) target = $region48
        $region47: #{_lambda_.7} parent=11 // pred_region
          _
        $region48: #{_lambda_.7} parent=11 // pred_fallthru
          _
        // Predicated region
        $region49: #{_lambda_.7} parent=11 // pred_check
          %p601 = pneg %p305
        $region50: #{_lambda_.7} parent=11 // pred_check_branch
          %603 = sbr.rel (%p601) target = $region52
        $region51: #{_lambda_.7} parent=11 // pred_region
          %605 = vsyncadd [#allocation7], 0
          %s607 = sshll.u32 %s12, 4
          %s608 = int_to_ptr.hbm [resolvable:$true] %s607
          %s609 = sshll.u32 [#allocation8], 4
          %s610 = int_to_ptr.vmem [resolvable:$true] %s609
          %612 = dma.hbm_to_vmem [thread:$0]  %s608, 16, %s610, [#allocation7]
        $region52: #{_lambda_.7} parent=11 // pred_fallthru
          _
        // Predicated region
        $region53: #{_lambda_.7} parent=11 // pred_check
          %p613 = pneg %p326
        $region54: #{_lambda_.7} parent=11 // pred_check_branch
          %615 = sbr.rel (%p613) target = $region56
        $region55: #{_lambda_.7} parent=11 // pred_region
          _
        $region56: #{_lambda_.7} parent=11 // pred_fallthru
          _
        // Predicated region
        $region57: #{_lambda_.7} parent=11 // pred_check
          %p616 = pneg %p347
        $region58: #{_lambda_.7} parent=11 // pred_check_branch
          %618 = sbr.rel (%p616) target = $region60
        $region59: #{_lambda_.7} parent=11 // pred_region
          %620 = vsyncadd [#allocation10], 0
          %s622 = sshll.u32 %s14, 4
          %s623 = int_to_ptr.hbm [resolvable:$true] %s622
          %s624 = sshll.u32 [#allocation9], 4
          %s625 = int_to_ptr.vmem [resolvable:$true] %s624
          %627 = dma.hbm_to_vmem [thread:$0]  %s623, 16, %s625, [#allocation10]
        $region60: #{_lambda_.7} parent=11 // pred_fallthru
          _
        // Predicated region
        $region61: #{_lambda_.7} parent=11 // pred_check
          %p628 = pneg %p368
        $region62: #{_lambda_.7} parent=11 // pred_check_branch
          %630 = sbr.rel (%p628) target = $region64
        $region63: #{_lambda_.7} parent=11 // pred_region
          %632 = vsyncadd [#allocation10], 0
          %s634 = sshll.u32 %s15, 4
          %s635 = int_to_ptr.hbm [resolvable:$true] %s634
          %s636 = sshll.u32 [#allocation11], 4
          %s637 = int_to_ptr.vmem [resolvable:$true] %s636
          %639 = dma.hbm_to_vmem [thread:$0]  %s635, 16, %s637, [#allocation10]
        $region64: #{_lambda_.7} parent=11 // pred_fallthru
          _
        // Predicated region
        $region65: #{_lambda_.7} parent=11 // pred_check
          %p640 = pneg %p389
        $region66: #{_lambda_.7} parent=11 // pred_check_branch
          %642 = sbr.rel (%p640) target = $region68
        $region67: #{_lambda_.7} parent=11 // pred_region
          %644 = vsyncadd [#allocation13], 0
          %s646 = sshll.u32 %s16, 4
          %s647 = int_to_ptr.hbm [resolvable:$true] %s646
          %s648 = sshll.u32 [#allocation12], 4
          %s649 = int_to_ptr.vmem [resolvable:$true] %s648
          %651 = dma.hbm_to_vmem [thread:$0]  %s647, 16, %s649, [#allocation13]
        $region68: #{_lambda_.7} parent=11 // pred_fallthru
          _
        // Predicated region
        $region69: #{_lambda_.7} parent=11 // pred_check
          %p652 = pneg %p410
        $region70: #{_lambda_.7} parent=11 // pred_check_branch
          %654 = sbr.rel (%p652) target = $region72
        $region71: #{_lambda_.7} parent=11 // pred_region
          _
        $region72: #{_lambda_.7} parent=11 // pred_fallthru
          _
        // Predicated region
        $region73: #{_lambda_.7} parent=11 // pred_check
          %p655 = pneg %p431
        $region74: #{_lambda_.7} parent=11 // pred_check_branch
          %657 = sbr.rel (%p655) target = $region76
        $region75: #{_lambda_.7} parent=11 // pred_region
          %659 = vsyncadd [#allocation13], 0
          %s661 = sshll.u32 %s18, 4
          %s662 = int_to_ptr.hbm [resolvable:$true] %s661
          %s663 = sshll.u32 [#allocation14], 4
          %s664 = int_to_ptr.vmem [resolvable:$true] %s663
          %666 = dma.hbm_to_vmem [thread:$0]  %s662, 16, %s664, [#allocation13]
        $region76: #{_lambda_.7} parent=11 // pred_fallthru
          _
        // Predicated region
        $region77: #{_lambda_.7} parent=11 // pred_check
          %p667 = pneg %p452
        $region78: #{_lambda_.7} parent=11 // pred_check_branch
          %669 = sbr.rel (%p667) target = $region80
        $region79: #{_lambda_.7} parent=11 // pred_region
          _
        $region80: #{_lambda_.7} parent=11 // pred_fallthru
          _
        // Predicated region
        $region81: #{_lambda_.7} parent=11 // pred_check
          %p670 = pneg %p473
        $region82: #{_lambda_.7} parent=11 // pred_check_branch
          %672 = sbr.rel (%p670) target = $region84
        $region83: #{_lambda_.7} parent=11 // pred_region
          %674 = vsyncadd [#allocation16], 0
          %s676 = sshll.u32 %s20, 4
          %s677 = int_to_ptr.hbm [resolvable:$true] %s676
          %s678 = sshll.u32 [#allocation15], 4
          %s679 = int_to_ptr.vmem [resolvable:$true] %s678
          %681 = dma.hbm_to_vmem [thread:$0]  %s677, 16, %s679, [#allocation16]
        $region84: #{_lambda_.7} parent=11 // pred_fallthru
          _
        // Predicated region
        $region85: #{_lambda_.7} parent=11 // pred_check
          %p682 = pneg %p494
        $region86: #{_lambda_.7} parent=11 // pred_check_branch
          %684 = sbr.rel (%p682) target = $region88
        $region87: #{_lambda_.7} parent=11 // pred_region
          %686 = vsyncadd [#allocation16], 0
          %s688 = sshll.u32 %s21, 4
          %s689 = int_to_ptr.hbm [resolvable:$true] %s688
          %s690 = sshll.u32 [#allocation17], 4
          %s691 = int_to_ptr.vmem [resolvable:$true] %s690
          %693 = dma.hbm_to_vmem [thread:$0]  %s689, 16, %s691, [#allocation16]
        $region88: #{_lambda_.7} parent=11 // pred_fallthru
          _
        // Predicated region
        $region89: #{_lambda_.7} parent=11 // pred_check
          %p694 = pneg %p515
        $region90: #{_lambda_.7} parent=11 // pred_check_branch
          %696 = sbr.rel (%p694) target = $region92
        $region91: #{_lambda_.7} parent=11 // pred_region
          %698 = vsyncadd [#allocation19], 0
          %s700 = sshll.u32 %s22, 4
          %s701 = int_to_ptr.hbm [resolvable:$true] %s700
          %s702 = sshll.u32 [#allocation18], 4
          %s703 = int_to_ptr.vmem [resolvable:$true] %s702
          %705 = dma.hbm_to_vmem [thread:$0]  %s701, 16, %s703, [#allocation19]
        $region92: #{_lambda_.7} parent=11 // pred_fallthru
          _
      $region12: #{_lambda_.7} parent=5 // pred_fallthru
        _
      %p706 = scmp.lt.s32.totalorder %s43, 2
      // Predicated region
      $region93: #{_lambda_.7} parent=5 // pred_check
        %p707 = pneg %p706
      $region94: #{_lambda_.7} parent=5 // pred_check_branch
        %709 = sbr.rel (%p707) target = $region96
      $region95: #{_lambda_.7} parent=5 // pred_region
        // Predicated region
        $region97: #{_lambda_.7} parent=95 // pred_check
          %p710 = pneg %p63
        $region98: #{_lambda_.7} parent=95 // pred_check_branch
          %712 = sbr.rel (%p710) target = $region100
        $region99: #{_lambda_.7} parent=95 // pred_region
          %p713 = scmp.lt.s32.totalorder %s43, 1
          %s714 = scalar_select %p713, %s43, 1
          %s715 = smul.addr %s714, 8
          %s716 = scalar_lea.vmem %s1, %s715
        $region100: #{_lambda_.7} parent=95 // pred_fallthru
          _
        // Predicated region
        $region101: #{_lambda_.7} parent=95 // pred_check
          %p717 = pneg %p89
        $region102: #{_lambda_.7} parent=95 // pred_check_branch
          %719 = sbr.rel (%p717) target = $region104
        $region103: #{_lambda_.7} parent=95 // pred_region
          %p720 = scmp.lt.s32.totalorder %s43, 1
          %s721 = scalar_select %p720, %s43, 1
          %s722 = smul.addr %s721, 8
          %s723 = scalar_lea.vmem %s2, %s722
        $region104: #{_lambda_.7} parent=95 // pred_fallthru
          _
      $region96: #{_lambda_.7} parent=5 // pred_fallthru
        _
      %p724 = scmp.le.s32.totalorder 1, %s43
      %p725 = scmp.lt.s32.totalorder %s43, 3
      %p726 = pnand %p724, %p725
      %p727 = pneg %p726
      // Predicated region
      $region105: #{_lambda_.7} parent=5 // pred_check
        _
      $region106: #{_lambda_.7} parent=5 // pred_check_branch
        %729 = sbr.rel (%p726) target = $region108
      $region107: #{_lambda_.7} parent=5 // pred_region
        %s730 = ssub.s32 %s43, 1
        // Predicated region
        $region109: #{_lambda_.7} parent=107 // pred_check
          %p731 = pneg %p221
        $region110: #{_lambda_.7} parent=107 // pred_check_branch
          %733 = sbr.rel (%p731) target = $region112
        $region111: #{_lambda_.7} parent=107 // pred_region
          %735 = dma.done [#allocation5], 16
        $region112: #{_lambda_.7} parent=107 // pred_fallthru
          _
        // Predicated region
        $region113: #{_lambda_.7} parent=107 // pred_check
          %p736 = pneg %p263
        $region114: #{_lambda_.7} parent=107 // pred_check_branch
          %738 = sbr.rel (%p736) target = $region116
        $region115: #{_lambda_.7} parent=107 // pred_region
          %740 = dma.done [#allocation7], 16
        $region116: #{_lambda_.7} parent=107 // pred_fallthru
          _
        // Predicated region
        $region117: #{_lambda_.7} parent=107 // pred_check
          %p741 = pneg %p305
        $region118: #{_lambda_.7} parent=107 // pred_check_branch
          %743 = sbr.rel (%p741) target = $region120
        $region119: #{_lambda_.7} parent=107 // pred_region
          %745 = dma.done [#allocation7], 16
        $region120: #{_lambda_.7} parent=107 // pred_fallthru
          _
        // Predicated region
        $region121: #{_lambda_.7} parent=107 // pred_check
          %p746 = pneg %p347
        $region122: #{_lambda_.7} parent=107 // pred_check_branch
          %748 = sbr.rel (%p746) target = $region124
        $region123: #{_lambda_.7} parent=107 // pred_region
          %750 = dma.done [#allocation10], 16
        $region124: #{_lambda_.7} parent=107 // pred_fallthru
          _
        // Predicated region
        $region125: #{_lambda_.7} parent=107 // pred_check
          %p751 = pneg %p368
        $region126: #{_lambda_.7} parent=107 // pred_check_branch
          %753 = sbr.rel (%p751) target = $region128
        $region127: #{_lambda_.7} parent=107 // pred_region
          %755 = dma.done [#allocation10], 16
        $region128: #{_lambda_.7} parent=107 // pred_fallthru
          _
        // Predicated region
        $region129: #{_lambda_.7} parent=107 // pred_check
          %p756 = pneg %p389
        $region130: #{_lambda_.7} parent=107 // pred_check_branch
          %758 = sbr.rel (%p756) target = $region132
        $region131: #{_lambda_.7} parent=107 // pred_region
          %760 = dma.done [#allocation13], 16
        $region132: #{_lambda_.7} parent=107 // pred_fallthru
          _
        // Predicated region
        $region133: #{_lambda_.7} parent=107 // pred_check
          %p761 = pneg %p431
        $region134: #{_lambda_.7} parent=107 // pred_check_branch
          %763 = sbr.rel (%p761) target = $region136
        $region135: #{_lambda_.7} parent=107 // pred_region
          %765 = dma.done [#allocation13], 16
        $region136: #{_lambda_.7} parent=107 // pred_fallthru
          _
        // Predicated region
        $region137: #{_lambda_.7} parent=107 // pred_check
          %p766 = pneg %p473
        $region138: #{_lambda_.7} parent=107 // pred_check_branch
          %768 = sbr.rel (%p766) target = $region140
        $region139: #{_lambda_.7} parent=107 // pred_region
          %770 = dma.done [#allocation16], 16
        $region140: #{_lambda_.7} parent=107 // pred_fallthru
          _
        // Predicated region
        $region141: #{_lambda_.7} parent=107 // pred_check
          %p771 = pneg %p494
        $region142: #{_lambda_.7} parent=107 // pred_check_branch
          %773 = sbr.rel (%p771) target = $region144
        $region143: #{_lambda_.7} parent=107 // pred_region
          %775 = dma.done [#allocation16], 16
        $region144: #{_lambda_.7} parent=107 // pred_fallthru
          _
        // Predicated region
        $region145: #{_lambda_.7} parent=107 // pred_check
          %p776 = pneg %p515
        $region146: #{_lambda_.7} parent=107 // pred_check_branch
          %778 = sbr.rel (%p776) target = $region148
        $region147: #{_lambda_.7} parent=107 // pred_region
          %780 = dma.done [#allocation19], 16
        $region148: #{_lambda_.7} parent=107 // pred_fallthru
          _
        %p781 = scmp.lt.s32.totalorder %s48, 1
        %s782 = scalar_select %p781, %s48, 1
        %s783 = smul.addr %s782, 8
        %s784 = scalar_lea.vmem %s1, %s783
        %p785 = pneg %p69
        %p786 = pneg %p66
        %p787 = scmp.lt.s32.totalorder %s48, 1
        %s788 = scalar_select %p787, %s48, 1
        %s789 = smul.addr %s788, 8
        %s790 = scalar_lea.vmem %s2, %s789
        %p791 = pneg %p95
        %p792 = pneg %p92
        %p793 = pneg %p116
        %p794 = pneg %p113
        %p795 = pneg %p137
        %p796 = pneg %p134
        %p797 = pneg %p158
        %p798 = pneg %p155
        %p799 = pneg %p179
        %p800 = pneg %p176
        %p801 = pneg %p200
        %p802 = pneg %p197
        %p803 = pneg %p221
        %p804 = pneg %p218
        %p805 = pneg %p242
        %p806 = pneg %p239
        %p807 = pneg %p263
        %p808 = pneg %p260
        %p809 = pneg %p284
        %p810 = pneg %p281
        %p811 = pneg %p305
        %p812 = pneg %p302
        %p813 = pneg %p326
        %p814 = pneg %p323
        %p815 = pneg %p347
        %p816 = pneg %p344
        %p817 = pneg %p368
        %p818 = pneg %p365
        %p819 = pneg %p389
        %p820 = pneg %p386
        %p821 = pneg %p410
        %p822 = pneg %p407
        %p823 = pneg %p431
        %p824 = pneg %p428
        %p825 = pneg %p452
        %p826 = pneg %p449
        %p827 = pneg %p473
        %p828 = pneg %p470
        %p829 = pneg %p494
        %p830 = pneg %p491
        %p831 = pneg %p515
        %p832 = pneg %p512
        %p833 = pneg %p541
        %p834 = pneg %p538
        %p835 = scmp.lt.s32.totalorder %s48, 1
        %s836 = scalar_select %p835, %s48, 1
        %s837 = smul.addr %s836, 8
        %s838 = scalar_lea.vmem %s23, %s837
        %p839 = scmp.lt.s32.totalorder %s48, 1
        %s840 = scalar_select %p839, %s48, 1
        %s841 = smul.addr %s840, 8
        %s842 = scalar_lea.vmem %s1, %s841
        %p843 = scmp.lt.s32.totalorder %s48, 1
        %s844 = scalar_select %p843, %s48, 1
        %s845 = smul.addr %s844, 8
        %s846 = scalar_lea.vmem %s2, %s845
        %p847 = scmp.lt.s32.totalorder %s48, 1
        %s848 = scalar_select %p847, %s48, 1
        %s849 = smul.addr %s848, 8
        %s850 = scalar_lea.vmem %s23, %s849
        %v852 = vld [vmem:[%s842] sm:$0xff]
        %v853 = vld [vmem:[%s846] sm:$0xff]
        %s854 = sld [smem:[#allocation3 + %s48]]
        %v855 = vlaneseq
        %v856 = vand.u32 %v855, 127
        %v857 = vstv %s854
        %vm858 = vcmp.lt.s32.totalorder %v856, %v857
        %v859 = vpack.c.bf16 %v852, %v852
        %v860 = vld [vmem:[%s3] sm:$0xf]
        %v861 = vld [vmem:[%s3 + $0x4] sm:$0xf]
        %v862 = vld [vmem:[%s3 + $0x8] sm:$0xf]
        %v863 = vld [vmem:[%s3 + $0xc] sm:$0xf]
        %v864 = vld [vmem:[%s4] sm:$0x1]
        %v866 = vperm.slane %v864, 0
        %v872 = vunpack.c.l.b16 %v860
        %v873 = vunpack.c.l.b16 %v861
        %v874 = vunpack.c.l.b16 %v862
        %v875 = vunpack.c.l.b16 %v863
        %v876 = vpack.c.b16 %v873, %v872
        %v877 = vpack.c.b16 %v875, %v874
        %vm880 = vcmask 261120
        %v882 = vsel %vm880, %v859, 0
        %884 = vmatpush.bf16.msra.mxu0 0
        %885 = vmatpush.bf16.msra.mxu0 0
        %886 = vmatpush.bf16.msra.mxu0 0
        %887 = vmatpush.bf16.msra.mxu0 0
        %888 = vmatpush.bf16.msra.mxu0 0
        %889 = vmatpush.bf16.msra.mxu0 0
        %890 = vmatpush.bf16.msra.mxu0 %v877
        %891 = vmatpush.bf16.msra.mxu0 %v876
        %892 = vmatmul.bf16.gmra.mxu0 %v882
        %v893 = vpop.f32.mrf.mxu0
        %v894 = vadd.f32 %v866, %v893
        %v895 = vpop.f32.mrf.mxu0
        %896 = vdwg.mxu0
        %v897 = vld [vmem:[%s5] sm:$0xf]
        %v898 = vld [vmem:[%s5 + $0x4] sm:$0xf]
        %v899 = vld [vmem:[%s5 + $0x8] sm:$0xf]
        %v900 = vld [vmem:[%s5 + $0xc] sm:$0xf]
        %v901 = vld [vmem:[%s6] sm:$0x1]
        %v902 = vmul.f32 %v894, 0.35355338
        %v903 = vpack.c.bf16 %v902, %v902
        %v904 = vpack.c.bf16 %v894, %v894
        %906 = vrot.lane.b32.xlu0 %v904, 96
        %v907 = vpop.permute.xlu0 %906
        %vm908 = vcmask 64512
        %v910 = vsel %vm908, %v903, 0
        %v913 = vsel %vm908, %v907, 0
        %915 = vmatpush.bf16.xpose.msra.mxu0 0
        %916 = vmatpush.bf16.xpose.msra.mxu0 0
        %917 = vmatpush.bf16.xpose.msra.mxu0 0
        %918 = vmatpush.bf16.xpose.msra.mxu0 0
        %919 = vmatpush.bf16.xpose.msra.mxu0 0
        %920 = vmatpush.bf16.xpose.msra.mxu0 0
        %921 = vmatpush.bf16.xpose.msra.mxu0 0
        %922 = vmatpush.bf16.xpose.msra.mxu0 %v913
        %923 = vmatmul.bf16.gmra.mxu0 %v910
        %v924 = vpop.f32.mrf.mxu0
        %v925 = vadd.f32 0.0, %v924
        %v926 = vpop.f32.mrf.mxu0
        %927 = vdwg.mxu0
        %v928 = vsel %vm908, %v925, -inf
        %929 = vmax.xlane.f32.xlu0 %v928
        %v930 = vpop.xlane.xlu0 %929
        %v931 = vsub.f32 %v925, %v930
        %v932 = vmul.f32 %v931, 1.442695
        %v933 = vpow.pop %v932
        %v934 = vsel %vm908, %v933, 0.0
        %935 = vadd.xlane.f32.xlu0 %v934
        %v936 = vpop.xlane.xlu0 %935
        %v937 = vrcp.pop %v936
        %v938 = vmul.f32 %v933, %v937
        %v939 = vpack.c.bf16 %v938, %v938
        %940 = vrot.lane.b32.xlu0 %v904, 64
        %v941 = vpop.permute.xlu0 %940
        %v943 = vsel %vm908, %v939, 0
        %vm945 = vcmask 1043456
        %v947 = vsel %vm945, %v941, 0
        %949 = vmatpush.bf16.msra.mxu0 0
        %950 = vmatpush.bf16.msra.mxu0 0
        %951 = vmatpush.bf16.msra.mxu0 0
        %952 = vmatpush.bf16.msra.mxu0 0
        %953 = vmatpush.bf16.msra.mxu0 0
        %954 = vmatpush.bf16.msra.mxu0 0
        %955 = vmatpush.bf16.msra.mxu0 0
        %956 = vmatpush.bf16.msra.mxu0 %v947
        %957 = vmatmul.bf16.gmra.mxu0 %v943
        %v958 = vpop.f32.mrf.mxu0
        %v959 = vadd.f32 0.0, %v958
        %v960 = vpop.f32.mrf.mxu0
        %961 = vdwg.mxu0
        %963 = vrot.lane.b32.xlu0 %v903, 120
        %v964 = vpop.permute.xlu0 %963
        %965 = vrot.lane.b32.xlu0 %v904, 88
        %v966 = vpop.permute.xlu0 %965
        %v968 = vsel %vm908, %v964, 0
        %v971 = vsel %vm908, %v966, 0
        %973 = vmatpush.bf16.xpose.msra.mxu0 0
        %974 = vmatpush.bf16.xpose.msra.mxu0 0
        %975 = vmatpush.bf16.xpose.msra.mxu0 0
        %976 = vmatpush.bf16.xpose.msra.mxu0 0
        %977 = vmatpush.bf16.xpose.msra.mxu0 0
        %978 = vmatpush.bf16.xpose.msra.mxu0 0
        %979 = vmatpush.bf16.xpose.msra.mxu0 0
        %980 = vmatpush.bf16.xpose.msra.mxu0 %v971
        %981 = vmatmul.bf16.gmra.mxu0 %v968
        %v982 = vpop.f32.mrf.mxu0
        %v983 = vadd.f32 0.0, %v982
        %v984 = vpop.f32.mrf.mxu0
        %985 = vdwg.mxu0
        %v986 = vsel %vm908, %v983, -inf
        %987 = vmax.xlane.f32.xlu0 %v986
        %v988 = vpop.xlane.xlu0 %987
        %v989 = vsub.f32 %v983, %v988
        %v990 = vmul.f32 %v989, 1.442695
        %v991 = vpow.pop %v990
        %v992 = vsel %vm908, %v991, 0.0
        %993 = vadd.xlane.f32.xlu0 %v992
        %v994 = vpop.xlane.xlu0 %993
        %v995 = vrcp.pop %v994
        %v996 = vmul.f32 %v991, %v995
        %v997 = vpack.c.bf16 %v996, %v996
        %998 = vrot.lane.b32.xlu0 %v904, 56
        %v999 = vpop.permute.xlu0 %998
        %v1001 = vsel %vm908, %v997, 0
        %v1004 = vsel %vm945, %v999, 0
        %1006 = vmatpush.bf16.msra.mxu0 0
        %1007 = vmatpush.bf16.msra.mxu0 0
        %1008 = vmatpush.bf16.msra.mxu0 0
        %1009 = vmatpush.bf16.msra.mxu0 0
        %1010 = vmatpush.bf16.msra.mxu0 0
        %1011 = vmatpush.bf16.msra.mxu0 0
        %1012 = vmatpush.bf16.msra.mxu0 0
        %1013 = vmatpush.bf16.msra.mxu0 %v1004
        %1014 = vmatmul.bf16.gmra.mxu0 %v1001
        %v1015 = vpop.f32.mrf.mxu0
        %v1016 = vadd.f32 0.0, %v1015
        %v1017 = vpop.f32.mrf.mxu0
        %1018 = vdwg.mxu0
        %1019 = vrot.lane.b32.xlu0 %v903, 112
        %v1020 = vpop.permute.xlu0 %1019
        %1021 = vrot.lane.b32.xlu0 %v904, 80
        %v1022 = vpop.permute.xlu0 %1021
        %v1024 = vsel %vm908, %v1020, 0
        %v1027 = vsel %vm908, %v1022, 0
        %1029 = vmatpush.bf16.xpose.msra.mxu0 0
        %1030 = vmatpush.bf16.xpose.msra.mxu0 0
        %1031 = vmatpush.bf16.xpose.msra.mxu0 0
        %1032 = vmatpush.bf16.xpose.msra.mxu0 0
        %1033 = vmatpush.bf16.xpose.msra.mxu0 0
        %1034 = vmatpush.bf16.xpose.msra.mxu0 0
        %1035 = vmatpush.bf16.xpose.msra.mxu0 0
        %1036 = vmatpush.bf16.xpose.msra.mxu0 %v1027
        %1037 = vmatmul.bf16.gmra.mxu0 %v1024
        %v1038 = vpop.f32.mrf.mxu0
        %v1039 = vadd.f32 0.0, %v1038
        %v1040 = vpop.f32.mrf.mxu0
        %1041 = vdwg.mxu0
        %v1042 = vsel %vm908, %v1039, -inf
        %1043 = vmax.xlane.f32.xlu0 %v1042
        %v1044 = vpop.xlane.xlu0 %1043
        %v1045 = vsub.f32 %v1039, %v1044
        %v1046 = vmul.f32 %v1045, 1.442695
        %v1047 = vpow.pop %v1046
        %v1048 = vsel %vm908, %v1047, 0.0
        %1049 = vadd.xlane.f32.xlu0 %v1048
        %v1050 = vpop.xlane.xlu0 %1049
        %v1051 = vrcp.pop %v1050
        %v1052 = vmul.f32 %v1047, %v1051
        %v1053 = vpack.c.bf16 %v1052, %v1052
        %1054 = vrot.lane.b32.xlu0 %v904, 48
        %v1055 = vpop.permute.xlu0 %1054
        %v1057 = vsel %vm908, %v1053, 0
        %v1060 = vsel %vm945, %v1055, 0
        %1062 = vmatpush.bf16.msra.mxu0 0
        %1063 = vmatpush.bf16.msra.mxu0 0
        %1064 = vmatpush.bf16.msra.mxu0 0
        %1065 = vmatpush.bf16.msra.mxu0 0
        %1066 = vmatpush.bf16.msra.mxu0 0
        %1067 = vmatpush.bf16.msra.mxu0 0
        %1068 = vmatpush.bf16.msra.mxu0 0
        %1069 = vmatpush.bf16.msra.mxu0 %v1060
        %1070 = vmatmul.bf16.gmra.mxu0 %v1057
        %v1071 = vpop.f32.mrf.mxu0
        %v1072 = vadd.f32 0.0, %v1071
        %v1073 = vpop.f32.mrf.mxu0
        %1074 = vdwg.mxu0
        %1075 = vrot.lane.b32.xlu0 %v903, 104
        %v1076 = vpop.permute.xlu0 %1075
        %1077 = vrot.lane.b32.xlu0 %v904, 72
        %v1078 = vpop.permute.xlu0 %1077
        %v1080 = vsel %vm908, %v1076, 0
        %v1083 = vsel %vm908, %v1078, 0
        %1085 = vmatpush.bf16.xpose.msra.mxu0 0
        %1086 = vmatpush.bf16.xpose.msra.mxu0 0
        %1087 = vmatpush.bf16.xpose.msra.mxu0 0
        %1088 = vmatpush.bf16.xpose.msra.mxu0 0
        %1089 = vmatpush.bf16.xpose.msra.mxu0 0
        %1090 = vmatpush.bf16.xpose.msra.mxu0 0
        %1091 = vmatpush.bf16.xpose.msra.mxu0 0
        %1092 = vmatpush.bf16.xpose.msra.mxu0 %v1083
        %1093 = vmatmul.bf16.gmra.mxu0 %v1080
        %v1094 = vpop.f32.mrf.mxu0
        %v1095 = vadd.f32 0.0, %v1094
        %v1096 = vpop.f32.mrf.mxu0
        %1097 = vdwg.mxu0
        %v1098 = vsel %vm908, %v1095, -inf
        %1099 = vmax.xlane.f32.xlu0 %v1098
        %v1100 = vpop.xlane.xlu0 %1099
        %v1101 = vsub.f32 %v1095, %v1100
        %v1102 = vmul.f32 %v1101, 1.442695
        %v1103 = vpow.pop %v1102
        %v1104 = vsel %vm908, %v1103, 0.0
        %1105 = vadd.xlane.f32.xlu0 %v1104
        %v1106 = vpop.xlane.xlu0 %1105
        %v1107 = vrcp.pop %v1106
        %v1108 = vmul.f32 %v1103, %v1107
        %v1109 = vpack.c.bf16 %v1108, %v1108
        %1110 = vrot.lane.b32.xlu0 %v904, 40
        %v1111 = vpop.permute.xlu0 %1110
        %v1113 = vsel %vm908, %v1109, 0
        %v1116 = vsel %vm945, %v1111, 0
        %1118 = vmatpush.bf16.msra.mxu0 0
        %1119 = vmatpush.bf16.msra.mxu0 0
        %1120 = vmatpush.bf16.msra.mxu0 0
        %1121 = vmatpush.bf16.msra.mxu0 0
        %1122 = vmatpush.bf16.msra.mxu0 0
        %1123 = vmatpush.bf16.msra.mxu0 0
        %1124 = vmatpush.bf16.msra.mxu0 0
        %1125 = vmatpush.bf16.msra.mxu0 %v1116
        %1126 = vmatmul.bf16.gmra.mxu0 %v1113
        %v1127 = vpop.f32.mrf.mxu0
        %v1128 = vadd.f32 0.0, %v1127
        %v1129 = vpop.f32.mrf.mxu0
        %1130 = vdwg.mxu0
        %1132 = vrot.lane.b32.xlu0 %v1016, 8
        %v1133 = vpop.permute.xlu0 %1132
        %1136 = vrot.lane.b32.xlu0 %v1072, 16
        %v1137 = vpop.permute.xlu0 %1136
        %1140 = vrot.lane.b32.xlu0 %v1128, 24
        %v1141 = vpop.permute.xlu0 %1140
        %v1143 = vsel %vm908, %v959, %v1133
        %vm1144 = vcmask 130048
        %v1145 = vsel %vm1144, %v1143, %v1137
        %vm1146 = vcmask 195584
        %v1147 = vsel %vm1146, %v1145, %v1141
        %v1148 = vpack.c.bf16 %v1147, %v1147
        %v1150 = vperm.slane %v901, 0
        %v1156 = vunpack.c.l.b16 %v897
        %v1157 = vunpack.c.l.b16 %v898
        %v1158 = vunpack.c.l.b16 %v899
        %v1159 = vunpack.c.l.b16 %v900
        %v1160 = vpack.c.b16 %v1157, %v1156
        %v1161 = vpack.c.b16 %v1159, %v1158
        %v1165 = vsel %vm880, %v1148, 0
        %1167 = vmatpush.bf16.msra.mxu0 0
        %1168 = vmatpush.bf16.msra.mxu0 0
        %1169 = vmatpush.bf16.msra.mxu0 0
        %1170 = vmatpush.bf16.msra.mxu0 0
        %1171 = vmatpush.bf16.msra.mxu0 0
        %1172 = vmatpush.bf16.msra.mxu0 0
        %1173 = vmatpush.bf16.msra.mxu0 %v1161
        %1174 = vmatpush.bf16.msra.mxu0 %v1160
        %1175 = vmatmul.bf16.gmra.mxu0 %v1165
        %v1176 = vpop.f32.mrf.mxu0
        %v1177 = vadd.f32 %v1150, %v1176
        %v1178 = vpop.f32.mrf.mxu0
        %1179 = vdwg.mxu0
        %v1180 = vadd.f32 %v852, %v1177
        %v1181 = vld [vmem:[%s7] sm:$0x1]
        %v1182 = vld [vmem:[#allocation4] sm:$0x1]
        %v1183 = vsel %vm880, %v1180, 0.0
        %1184 = vadd.xlane.f32.xlu0 %v1183
        %v1185 = vpop.xlane.xlu0 %1184
        %v1186 = vrcp.pop 32.0
        %v1187 = vmul.f32 32.0, %v1186
        %v1188 = vsub.f32 1.0, %v1187
        %v1189 = vmul.f32 %v1186, %v1188
        %v1190 = vadd.f32 %v1186, %v1189
        %vm1191 = vweird.f32 %v1186
        %v1192 = vsel %vm1191, %v1186, %v1190
        %v1193 = vmul.f32 %v1185, %v1192
        %v1194 = vsub.f32 %v1180, %v1193
        %v1195 = vmul.f32 %v1194, %v1194
        %v1196 = vsel %vm880, %v1195, 0.0
        %1197 = vadd.xlane.f32.xlu0 %v1196
        %v1198 = vpop.xlane.xlu0 %1197
        %v1199 = vmul.f32 %v1198, %v1192
        %v1200 = vadd.f32 %v1199, 1e-05
        %v1201 = vrsqrt.pop %v1200
        %v1202 = vmul.f32 %v1201, %v1200
        %v1203 = vmul.f32 %v1202, %v1201
        %v1204 = vmul.f32 0.5, %v1203
        %v1205 = vsub.f32 1.5, %v1204
        %v1206 = vmul.f32 %v1201, %v1205
        %vm1207 = vweird.f32 %v1200
        %vm1208 = vweird.f32 %v1201
        %vm1209 = vmor %vm1207, %vm1208
        %v1210 = vsel %vm1209, %v1201, %v1206
        %v1211 = vmul.f32 %v1194, %v1210
        %v1213 = vperm.slane %v1181, 0
        %v1215 = vmul.f32 %v1211, %v1213
        %v1217 = vperm.slane %v1182, 0
        %v1219 = vadd.f32 %v1215, %v1217
        %v1220 = vpack.c.bf16 %v1219, %v1219
        %v1221 = vld [vmem:[%s9] sm:$0xf]
        %v1222 = vld [vmem:[%s9 + $0x4] sm:$0xf]
        %v1223 = vld [vmem:[%s9 + $0x8] sm:$0xf]
        %v1224 = vld [vmem:[%s9 + $0xc] sm:$0xf]
        %v1225 = vld [vmem:[#allocation6] sm:$0x1]
        %v1227 = vperm.slane %v1225, 0
        %v1233 = vunpack.c.l.b16 %v1221
        %v1234 = vunpack.c.l.b16 %v1222
        %v1235 = vunpack.c.l.b16 %v1223
        %v1236 = vunpack.c.l.b16 %v1224
        %v1237 = vpack.c.b16 %v1234, %v1233
        %v1238 = vpack.c.b16 %v1236, %v1235
        %v1242 = vsel %vm880, %v1220, 0
        %1244 = vmatpush.bf16.msra.mxu0 0
        %1245 = vmatpush.bf16.msra.mxu0 0
        %1246 = vmatpush.bf16.msra.mxu0 0
        %1247 = vmatpush.bf16.msra.mxu0 0
        %1248 = vmatpush.bf16.msra.mxu0 0
        %1249 = vmatpush.bf16.msra.mxu0 0
        %1250 = vmatpush.bf16.msra.mxu0 %v1238
        %1251 = vmatpush.bf16.msra.mxu0 %v1237
        %1252 = vmatmul.bf16.gmra.mxu0 %v1242
        %v1253 = vpop.f32.mrf.mxu0
        %v1254 = vadd.f32 %v1227, %v1253
        %v1255 = vpop.f32.mrf.mxu0
        %1256 = vdwg.mxu0
        %v1257 = vpack.c.bf16 %v853, %v853
        %v1258 = vld [vmem:[%s11] sm:$0xf]
        %v1259 = vld [vmem:[%s11 + $0x4] sm:$0xf]
        %v1260 = vld [vmem:[%s11 + $0x8] sm:$0xf]
        %v1261 = vld [vmem:[%s11 + $0xc] sm:$0xf]
        %v1262 = vld [vmem:[#allocation8] sm:$0x1]
        %v1264 = vperm.slane %v1262, 0
        %v1270 = vunpack.c.l.b16 %v1258
        %v1271 = vunpack.c.l.b16 %v1259
        %v1272 = vunpack.c.l.b16 %v1260
        %v1273 = vunpack.c.l.b16 %v1261
        %v1274 = vpack.c.b16 %v1271, %v1270
        %v1275 = vpack.c.b16 %v1273, %v1272
        %v1279 = vsel %vm880, %v1257, 0
        %1281 = vmatpush.bf16.msra.mxu0 0
        %1282 = vmatpush.bf16.msra.mxu0 0
        %1283 = vmatpush.bf16.msra.mxu0 0
        %1284 = vmatpush.bf16.msra.mxu0 0
        %1285 = vmatpush.bf16.msra.mxu0 0
        %1286 = vmatpush.bf16.msra.mxu0 0
        %1287 = vmatpush.bf16.msra.mxu0 %v1275
        %1288 = vmatpush.bf16.msra.mxu0 %v1274
        %1289 = vmatmul.bf16.gmra.mxu0 %v1279
        %v1290 = vpop.f32.mrf.mxu0
        %v1291 = vadd.f32 %v1264, %v1290
        %v1292 = vpop.f32.mrf.mxu0
        %1293 = vdwg.mxu0
        %v1294 = vld [vmem:[%s13] sm:$0xf]
        %v1295 = vld [vmem:[%s13 + $0x4] sm:$0xf]
        %v1296 = vld [vmem:[%s13 + $0x8] sm:$0xf]
        %v1297 = vld [vmem:[%s13 + $0xc] sm:$0xf]
        %v1298 = vld [vmem:[#allocation9] sm:$0x1]
        %v1299 = vmul.f32 %v1254, 0.35355338
        %v1300 = vpack.c.bf16 %v1299, %v1299
        %v1301 = vpack.c.bf16 %v1291, %v1291
        %v1303 = vsel %vm908, %v1300, 0
        %v1306 = vsel %vm908, %v1301, 0
        %1308 = vmatpush.bf16.xpose.msra.mxu0 0
        %1309 = vmatpush.bf16.xpose.msra.mxu0 0
        %1310 = vmatpush.bf16.xpose.msra.mxu0 0
        %1311 = vmatpush.bf16.xpose.msra.mxu0 0
        %1312 = vmatpush.bf16.xpose.msra.mxu0 0
        %1313 = vmatpush.bf16.xpose.msra.mxu0 0
        %1314 = vmatpush.bf16.xpose.msra.mxu0 0
        %1315 = vmatpush.bf16.xpose.msra.mxu0 %v1306
        %1316 = vmatmul.bf16.gmra.mxu0 %v1303
        %v1317 = vpop.f32.mrf.mxu0
        %v1318 = vadd.f32 0.0, %v1317
        %v1319 = vpop.f32.mrf.mxu0
        %1320 = vdwg.mxu0
        %v1321 = vsel %vm858, %v1318, -1000000.0
        %v1322 = vsel %vm908, %v1321, -inf
        %1323 = vmax.xlane.f32.xlu0 %v1322
        %v1324 = vpop.xlane.xlu0 %1323
        %v1325 = vsub.f32 %v1321, %v1324
        %v1326 = vmul.f32 %v1325, 1.442695
        %v1327 = vpow.pop %v1326
        %v1328 = vsel %vm908, %v1327, 0.0
        %1329 = vadd.xlane.f32.xlu0 %v1328
        %v1330 = vpop.xlane.xlu0 %1329
        %v1331 = vrcp.pop %v1330
        %v1332 = vmul.f32 %v1327, %v1331
        %v1333 = vpack.c.bf16 %v1332, %v1332
        %1335 = vrot.lane.b32.xlu0 %v1301, 96
        %v1336 = vpop.permute.xlu0 %1335
        %v1338 = vsel %vm908, %v1333, 0
        %v1341 = vsel %vm945, %v1336, 0
        %1343 = vmatpush.bf16.msra.mxu0 0
        %1344 = vmatpush.bf16.msra.mxu0 0
        %1345 = vmatpush.bf16.msra.mxu0 0
        %1346 = vmatpush.bf16.msra.mxu0 0
        %1347 = vmatpush.bf16.msra.mxu0 0
        %1348 = vmatpush.bf16.msra.mxu0 0
        %1349 = vmatpush.bf16.msra.mxu0 0
        %1350 = vmatpush.bf16.msra.mxu0 %v1341
        %1351 = vmatmul.bf16.gmra.mxu0 %v1338
        %v1352 = vpop.f32.mrf.mxu0
        %v1353 = vadd.f32 0.0, %v1352
        %v1354 = vpop.f32.mrf.mxu0
        %1355 = vdwg.mxu0
        %1357 = vrot.lane.b32.xlu0 %v1300, 120
        %v1358 = vpop.permute.xlu0 %1357
        %1359 = vrot.lane.b32.xlu0 %v1301, 120
        %v1360 = vpop.permute.xlu0 %1359
        %v1362 = vsel %vm908, %v1358, 0
        %v1365 = vsel %vm908, %v1360, 0
        %1367 = vmatpush.bf16.xpose.msra.mxu0 0
        %1368 = vmatpush.bf16.xpose.msra.mxu0 0
        %1369 = vmatpush.bf16.xpose.msra.mxu0 0
        %1370 = vmatpush.bf16.xpose.msra.mxu0 0
        %1371 = vmatpush.bf16.xpose.msra.mxu0 0
        %1372 = vmatpush.bf16.xpose.msra.mxu0 0
        %1373 = vmatpush.bf16.xpose.msra.mxu0 0
        %1374 = vmatpush.bf16.xpose.msra.mxu0 %v1365
        %1375 = vmatmul.bf16.gmra.mxu0 %v1362
        %v1376 = vpop.f32.mrf.mxu0
        %v1377 = vadd.f32 0.0, %v1376
        %v1378 = vpop.f32.mrf.mxu0
        %1379 = vdwg.mxu0
        %v1380 = vsel %vm858, %v1377, -1000000.0
        %v1381 = vsel %vm908, %v1380, -inf
        %1382 = vmax.xlane.f32.xlu0 %v1381
        %v1383 = vpop.xlane.xlu0 %1382
        %v1384 = vsub.f32 %v1380, %v1383
        %v1385 = vmul.f32 %v1384, 1.442695
        %v1386 = vpow.pop %v1385
        %v1387 = vsel %vm908, %v1386, 0.0
        %1388 = vadd.xlane.f32.xlu0 %v1387
        %v1389 = vpop.xlane.xlu0 %1388
        %v1390 = vrcp.pop %v1389
        %v1391 = vmul.f32 %v1386, %v1390
        %v1392 = vpack.c.bf16 %v1391, %v1391
        %1393 = vrot.lane.b32.xlu0 %v1301, 88
        %v1394 = vpop.permute.xlu0 %1393
        %v1396 = vsel %vm908, %v1392, 0
        %v1399 = vsel %vm945, %v1394, 0
        %1401 = vmatpush.bf16.msra.mxu0 0
        %1402 = vmatpush.bf16.msra.mxu0 0
        %1403 = vmatpush.bf16.msra.mxu0 0
        %1404 = vmatpush.bf16.msra.mxu0 0
        %1405 = vmatpush.bf16.msra.mxu0 0
        %1406 = vmatpush.bf16.msra.mxu0 0
        %1407 = vmatpush.bf16.msra.mxu0 0
        %1408 = vmatpush.bf16.msra.mxu0 %v1399
        %1409 = vmatmul.bf16.gmra.mxu0 %v1396
        %v1410 = vpop.f32.mrf.mxu0
        %v1411 = vadd.f32 0.0, %v1410
        %v1412 = vpop.f32.mrf.mxu0
        %1413 = vdwg.mxu0
        %1414 = vrot.lane.b32.xlu0 %v1300, 112
        %v1415 = vpop.permute.xlu0 %1414
        %1416 = vrot.lane.b32.xlu0 %v1301, 112
        %v1417 = vpop.permute.xlu0 %1416
        %v1419 = vsel %vm908, %v1415, 0
        %v1422 = vsel %vm908, %v1417, 0
        %1424 = vmatpush.bf16.xpose.msra.mxu0 0
        %1425 = vmatpush.bf16.xpose.msra.mxu0 0
        %1426 = vmatpush.bf16.xpose.msra.mxu0 0
        %1427 = vmatpush.bf16.xpose.msra.mxu0 0
        %1428 = vmatpush.bf16.xpose.msra.mxu0 0
        %1429 = vmatpush.bf16.xpose.msra.mxu0 0
        %1430 = vmatpush.bf16.xpose.msra.mxu0 0
        %1431 = vmatpush.bf16.xpose.msra.mxu0 %v1422
        %1432 = vmatmul.bf16.gmra.mxu0 %v1419
        %v1433 = vpop.f32.mrf.mxu0
        %v1434 = vadd.f32 0.0, %v1433
        %v1435 = vpop.f32.mrf.mxu0
        %1436 = vdwg.mxu0
        %v1437 = vsel %vm858, %v1434, -1000000.0
        %v1438 = vsel %vm908, %v1437, -inf
        %1439 = vmax.xlane.f32.xlu0 %v1438
        %v1440 = vpop.xlane.xlu0 %1439
        %v1441 = vsub.f32 %v1437, %v1440
        %v1442 = vmul.f32 %v1441, 1.442695
        %v1443 = vpow.pop %v1442
        %v1444 = vsel %vm908, %v1443, 0.0
        %1445 = vadd.xlane.f32.xlu0 %v1444
        %v1446 = vpop.xlane.xlu0 %1445
        %v1447 = vrcp.pop %v1446
        %v1448 = vmul.f32 %v1443, %v1447
        %v1449 = vpack.c.bf16 %v1448, %v1448
        %1450 = vrot.lane.b32.xlu0 %v1301, 80
        %v1451 = vpop.permute.xlu0 %1450
        %v1453 = vsel %vm908, %v1449, 0
        %v1456 = vsel %vm945, %v1451, 0
        %1458 = vmatpush.bf16.msra.mxu0 0
        %1459 = vmatpush.bf16.msra.mxu0 0
        %1460 = vmatpush.bf16.msra.mxu0 0
        %1461 = vmatpush.bf16.msra.mxu0 0
        %1462 = vmatpush.bf16.msra.mxu0 0
        %1463 = vmatpush.bf16.msra.mxu0 0
        %1464 = vmatpush.bf16.msra.mxu0 0
        %1465 = vmatpush.bf16.msra.mxu0 %v1456
        %1466 = vmatmul.bf16.gmra.mxu0 %v1453
        %v1467 = vpop.f32.mrf.mxu0
        %v1468 = vadd.f32 0.0, %v1467
        %v1469 = vpop.f32.mrf.mxu0
        %1470 = vdwg.mxu0
        %1471 = vrot.lane.b32.xlu0 %v1300, 104
        %v1472 = vpop.permute.xlu0 %1471
        %1473 = vrot.lane.b32.xlu0 %v1301, 104
        %v1474 = vpop.permute.xlu0 %1473
        %v1476 = vsel %vm908, %v1472, 0
        %v1479 = vsel %vm908, %v1474, 0
        %1481 = vmatpush.bf16.xpose.msra.mxu0 0
        %1482 = vmatpush.bf16.xpose.msra.mxu0 0
        %1483 = vmatpush.bf16.xpose.msra.mxu0 0
        %1484 = vmatpush.bf16.xpose.msra.mxu0 0
        %1485 = vmatpush.bf16.xpose.msra.mxu0 0
        %1486 = vmatpush.bf16.xpose.msra.mxu0 0
        %1487 = vmatpush.bf16.xpose.msra.mxu0 0
        %1488 = vmatpush.bf16.xpose.msra.mxu0 %v1479
        %1489 = vmatmul.bf16.gmra.mxu0 %v1476
        %v1490 = vpop.f32.mrf.mxu0
        %v1491 = vadd.f32 0.0, %v1490
        %v1492 = vpop.f32.mrf.mxu0
        %1493 = vdwg.mxu0
        %v1494 = vsel %vm858, %v1491, -1000000.0
        %v1495 = vsel %vm908, %v1494, -inf
        %1496 = vmax.xlane.f32.xlu0 %v1495
        %v1497 = vpop.xlane.xlu0 %1496
        %v1498 = vsub.f32 %v1494, %v1497
        %v1499 = vmul.f32 %v1498, 1.442695
        %v1500 = vpow.pop %v1499
        %v1501 = vsel %vm908, %v1500, 0.0
        %1502 = vadd.xlane.f32.xlu0 %v1501
        %v1503 = vpop.xlane.xlu0 %1502
        %v1504 = vrcp.pop %v1503
        %v1505 = vmul.f32 %v1500, %v1504
        %v1506 = vpack.c.bf16 %v1505, %v1505
        %1507 = vrot.lane.b32.xlu0 %v1301, 72
        %v1508 = vpop.permute.xlu0 %1507
        %v1510 = vsel %vm908, %v1506, 0
        %v1513 = vsel %vm945, %v1508, 0
        %1515 = vmatpush.bf16.msra.mxu0 0
        %1516 = vmatpush.bf16.msra.mxu0 0
        %1517 = vmatpush.bf16.msra.mxu0 0
        %1518 = vmatpush.bf16.msra.mxu0 0
        %1519 = vmatpush.bf16.msra.mxu0 0
        %1520 = vmatpush.bf16.msra.mxu0 0
        %1521 = vmatpush.bf16.msra.mxu0 0
        %1522 = vmatpush.bf16.msra.mxu0 %v1513
        %1523 = vmatmul.bf16.gmra.mxu0 %v1510
        %v1524 = vpop.f32.mrf.mxu0
        %v1525 = vadd.f32 0.0, %v1524
        %v1526 = vpop.f32.mrf.mxu0
        %1527 = vdwg.mxu0
        %1529 = vrot.lane.b32.xlu0 %v1411, 8
        %v1530 = vpop.permute.xlu0 %1529
        %1533 = vrot.lane.b32.xlu0 %v1468, 16
        %v1534 = vpop.permute.xlu0 %1533
        %1537 = vrot.lane.b32.xlu0 %v1525, 24
        %v1538 = vpop.permute.xlu0 %1537
        %v1540 = vsel %vm908, %v1353, %v1530
        %v1541 = vsel %vm1144, %v1540, %v1534
        %v1542 = vsel %vm1146, %v1541, %v1538
        %v1543 = vpack.c.bf16 %v1542, %v1542
        %v1545 = vperm.slane %v1298, 0
        %v1551 = vunpack.c.l.b16 %v1294
        %v1552 = vunpack.c.l.b16 %v1295
        %v1553 = vunpack.c.l.b16 %v1296
        %v1554 = vunpack.c.l.b16 %v1297
        %v1555 = vpack.c.b16 %v1552, %v1551
        %v1556 = vpack.c.b16 %v1554, %v1553
        %v1560 = vsel %vm880, %v1543, 0
        %1562 = vmatpush.bf16.msra.mxu0 0
        %1563 = vmatpush.bf16.msra.mxu0 0
        %1564 = vmatpush.bf16.msra.mxu0 0
        %1565 = vmatpush.bf16.msra.mxu0 0
        %1566 = vmatpush.bf16.msra.mxu0 0
        %1567 = vmatpush.bf16.msra.mxu0 0
        %1568 = vmatpush.bf16.msra.mxu0 %v1556
        %1569 = vmatpush.bf16.msra.mxu0 %v1555
        %1570 = vmatmul.bf16.gmra.mxu0 %v1560
        %v1571 = vpop.f32.mrf.mxu0
        %v1572 = vadd.f32 %v1545, %v1571
        %v1573 = vpop.f32.mrf.mxu0
        %1574 = vdwg.mxu0
        %v1575 = vadd.f32 %v1219, %v1572
        %v1576 = vld [vmem:[#allocation11] sm:$0x1]
        %v1577 = vld [vmem:[#allocation12] sm:$0x1]
        %v1578 = vsel %vm880, %v1575, 0.0
        %1579 = vadd.xlane.f32.xlu0 %v1578
        %v1580 = vpop.xlane.xlu0 %1579
        %v1581 = vmul.f32 %v1580, %v1192
        %v1582 = vsub.f32 %v1575, %v1581
        %v1583 = vmul.f32 %v1582, %v1582
        %v1584 = vsel %vm880, %v1583, 0.0
        %1585 = vadd.xlane.f32.xlu0 %v1584
        %v1586 = vpop.xlane.xlu0 %1585
        %v1587 = vmul.f32 %v1586, %v1192
        %v1588 = vadd.f32 %v1587, 1e-05
        %v1589 = vrsqrt.pop %v1588
        %v1590 = vmul.f32 %v1589, %v1588
        %v1591 = vmul.f32 %v1590, %v1589
        %v1592 = vmul.f32 0.5, %v1591
        %v1593 = vsub.f32 1.5, %v1592
        %v1594 = vmul.f32 %v1589, %v1593
        %vm1595 = vweird.f32 %v1588
        %vm1596 = vweird.f32 %v1589
        %vm1597 = vmor %vm1595, %vm1596
        %v1598 = vsel %vm1597, %v1589, %v1594
        %v1599 = vmul.f32 %v1582, %v1598
        %v1601 = vperm.slane %v1576, 0
        %v1603 = vmul.f32 %v1599, %v1601
        %v1605 = vperm.slane %v1577, 0
        %v1607 = vadd.f32 %v1603, %v1605
        %v1608 = vpack.c.bf16 %v1607, %v1607
        %v1609 = vld [vmem:[%s17] sm:$0xf]
        %v1610 = vld [vmem:[%s17 + $0x4] sm:$0xf]
        %v1611 = vld [vmem:[%s17 + $0x8] sm:$0xf]
        %v1612 = vld [vmem:[%s17 + $0xc] sm:$0xf]
        %v1613 = vld [vmem:[#allocation14] sm:$0x1]
        %v1615 = vperm.slane %v1613, 0
        %v1621 = vunpack.c.l.b16 %v1609
        %v1622 = vunpack.c.l.b16 %v1610
        %v1623 = vunpack.c.l.b16 %v1611
        %v1624 = vunpack.c.l.b16 %v1612
        %v1625 = vpack.c.b16 %v1622, %v1621
        %v1626 = vpack.c.b16 %v1624, %v1623
        %v1630 = vsel %vm880, %v1608, 0
        %1632 = vmatpush.bf16.msra.mxu0 0
        %1633 = vmatpush.bf16.msra.mxu0 0
        %1634 = vmatpush.bf16.msra.mxu0 0
        %1635 = vmatpush.bf16.msra.mxu0 0
        %1636 = vmatpush.bf16.msra.mxu0 0
        %1637 = vmatpush.bf16.msra.mxu0 0
        %1638 = vmatpush.bf16.msra.mxu0 %v1626
        %1639 = vmatpush.bf16.msra.mxu0 %v1625
        %1640 = vmatmul.bf16.gmra.mxu0 %v1630
        %v1641 = vpop.f32.mrf.mxu0
        %v1642 = vadd.f32 %v1615, %v1641
        %v1643 = vpop.f32.mrf.mxu0
        %1644 = vdwg.mxu0
        %v1645 = vmax.f32 %v1642, 0.0
        %v1646 = vpack.c.bf16 %v1645, %v1645
        %v1647 = vld [vmem:[%s19] sm:$0xf]
        %v1648 = vld [vmem:[%s19 + $0x4] sm:$0xf]
        %v1649 = vld [vmem:[%s19 + $0x8] sm:$0xf]
        %v1650 = vld [vmem:[%s19 + $0xc] sm:$0xf]
        %v1651 = vld [vmem:[%s19 + $0x10] sm:$0xf]
        %v1652 = vld [vmem:[%s19 + $0x14] sm:$0xf]
        %v1653 = vld [vmem:[%s19 + $0x18] sm:$0xf]
        %v1654 = vld [vmem:[%s19 + $0x1c] sm:$0xf]
        %v1655 = vld [vmem:[#allocation15] sm:$0x1]
        %v1657 = vperm.slane %v1655, 0
        %v1667 = vunpack.c.l.b16 %v1647
        %v1668 = vunpack.c.l.b16 %v1648
        %v1669 = vunpack.c.l.b16 %v1649
        %v1670 = vunpack.c.l.b16 %v1650
        %v1671 = vunpack.c.l.b16 %v1651
        %v1672 = vunpack.c.l.b16 %v1652
        %v1673 = vunpack.c.l.b16 %v1653
        %v1674 = vunpack.c.l.b16 %v1654
        %v1675 = vpack.c.b16 %v1668, %v1667
        %v1676 = vpack.c.b16 %v1670, %v1669
        %v1677 = vpack.c.b16 %v1672, %v1671
        %v1678 = vpack.c.b16 %v1674, %v1673
        %vm1683 = vcmask 523264
        %v1685 = vsel %vm1683, %v1646, 0
        %1687 = vmatpush.bf16.msra.mxu0 0
        %1688 = vmatpush.bf16.msra.mxu0 0
        %1689 = vmatpush.bf16.msra.mxu0 0
        %1690 = vmatpush.bf16.msra.mxu0 0
        %1691 = vmatpush.bf16.msra.mxu0 %v1678
        %1692 = vmatpush.bf16.msra.mxu0 %v1677
        %1693 = vmatpush.bf16.msra.mxu0 %v1676
        %1694 = vmatpush.bf16.msra.mxu0 %v1675
        %1695 = vmatmul.bf16.gmra.mxu0 %v1685
        %v1696 = vpop.f32.mrf.mxu0
        %v1697 = vadd.f32 %v1657, %v1696
        %v1698 = vpop.f32.mrf.mxu0
        %1699 = vdwg.mxu0
        %v1700 = vadd.f32 %v1607, %v1697
        %v1701 = vld [vmem:[#allocation17] sm:$0x1]
        %v1702 = vld [vmem:[#allocation18] sm:$0x1]
        %v1703 = vsel %vm880, %v1700, 0.0
        %1704 = vadd.xlane.f32.xlu0 %v1703
        %v1705 = vpop.xlane.xlu0 %1704
        %v1706 = vmul.f32 %v1705, %v1192
        %v1707 = vsub.f32 %v1700, %v1706
        %v1708 = vmul.f32 %v1707, %v1707
        %v1709 = vsel %vm880, %v1708, 0.0
        %1710 = vadd.xlane.f32.xlu0 %v1709
        %v1711 = vpop.xlane.xlu0 %1710
        %v1712 = vmul.f32 %v1711, %v1192
        %v1713 = vadd.f32 %v1712, 1e-05
        %v1714 = vrsqrt.pop %v1713
        %v1715 = vmul.f32 %v1714, %v1713
        %v1716 = vmul.f32 %v1715, %v1714
        %v1717 = vmul.f32 0.5, %v1716
        %v1718 = vsub.f32 1.5, %v1717
        %v1719 = vmul.f32 %v1714, %v1718
        %vm1720 = vweird.f32 %v1713
        %vm1721 = vweird.f32 %v1714
        %vm1722 = vmor %vm1720, %vm1721
        %v1723 = vsel %vm1722, %v1714, %v1719
        %v1724 = vmul.f32 %v1707, %v1723
        %v1726 = vperm.slane %v1701, 0
        %v1728 = vmul.f32 %v1724, %v1726
        %v1730 = vperm.slane %v1702, 0
        %v1732 = vadd.f32 %v1728, %v1730
        %1733 = vst.msk [vmem:[%s850] sm:$0xff] %vm880, %v1732
        %p1734 = scmp.lt.s32.totalorder %s48, 1
        %s1735 = scalar_select %p1734, %s48, 1
        %s1736 = smul.addr %s1735, 8
        %s1737 = scalar_lea.vmem %s23, %s1736
        // Predicated region
        $region149: #{_lambda_.7} parent=107 // pred_check
          %p1738 = pneg %p538
        $region150: #{_lambda_.7} parent=107 // pred_check_branch
          %1740 = sbr.rel (%p1738) target = $region152
        $region151: #{_lambda_.7} parent=107 // pred_region
          _
        $region152: #{_lambda_.7} parent=107 // pred_fallthru
          _
      $region108: #{_lambda_.7} parent=5 // pred_fallthru
        _
      %p1741 = scmp.le.s32.totalorder 2, %s43
      // Predicated region
      $region153: #{_lambda_.7} parent=5 // pred_check
        %p1742 = pneg %p1741
      $region154: #{_lambda_.7} parent=5 // pred_check_branch
        %1744 = sbr.rel (%p1742) target = $region156
      $region155: #{_lambda_.7} parent=5 // pred_region
        %s1745 = ssub.s32 %s43, 2
        // Predicated region
        $region157: #{_lambda_.7} parent=155 // pred_check
          %p1746 = pneg %p544
        $region158: #{_lambda_.7} parent=155 // pred_check_branch
          %1748 = sbr.rel (%p1746) target = $region160
        $region159: #{_lambda_.7} parent=155 // pred_region
          %p1749 = scmp.lt.s32.totalorder %s49, 1
          %s1750 = scalar_select %p1749, %s49, 1
          %s1751 = smul.addr %s1750, 8
          %s1752 = scalar_lea.vmem %s23, %s1751
        $region160: #{_lambda_.7} parent=155 // pred_fallthru
          _
      $region156: #{_lambda_.7} parent=5 // pred_fallthru
        _
    $region6: #{_lambda_.7} parent=1 // loop_footer
      %s47 = sadd.s32 1, %s43
    $region7: #{_lambda_.7} parent=1 // loop_footer_branch
      %42 = sbr.rel target = $region3
    $region8: #{_lambda_.7} parent=1 // loop_exit
      _
    %1753 = vsyncpa [#allocation5], 1
    %s1754 = scalar_lea.sflag [#allocation5], 1
    %1755 = vsyncpa %s1754, 1
    %1756 = vsyncpa [#allocation7], 1
    %1757 = vsyncpa [#allocation10], 1
    %1758 = vsyncpa [#allocation13], 1
    %1759 = vsyncpa [#allocation16], 1
    %1760 = vsyncpa [#allocation19], 1

</llo_original>
